<compile_context>
chip_gen: v5e
topology: v5e:2x2
jax: 0.10.0
libtpu: 0.0.40
codegen_flags: <defaults>
</compile_context>

<pallas_src>
import jax
import jax.numpy as jnp
from jax.experimental import pallas as pl
from jax.experimental.pallas import tpu as pltpu


IN_CH = 3          # colorization-style 3-channel input/output
HH = 16            # spatial height = width of the representative instantiation
MAX_CH = 32        # widest activation (mid1 output)


# -----------------------------------------------------------------------------
# Fused kernel: one batch element per grid step, everything VMEM resident.
# Activation layout inside the kernel: (channels, H*W)  -- channels on
# sublanes, flattened spatial (lane-dense) on lanes.
# -----------------------------------------------------------------------------
def _deoldify_fused_kernel(
    x_ref,
    w_e1, b_e1, w_e2, b_e2,
    w_m1, b_m1, w_m2, b_m2,
    w_d1a, w_d1b, b_d1,
    w_d2a, w_d2b, b_d2,
    w_pa, w_pb, b_p,
    pool1_ref, pool2_ref, up2_ref, up1_ref,
    o_ref,
    pad_ref,
):
    f32 = jnp.float32

    # Shared im2col staging scratch.  Halo / stale reads are masked out below,
    # but zero it once for hygiene (tiny VMEM store).
    pad_ref[...] = jnp.zeros(pad_ref.shape, pad_ref.dtype)

    def conv3x3(parts, w_refs, b_ref, h, w, act):
        """'same' 3x3 conv over the channel-concatenation of `parts`.

        parts  : list of (C_i, h*w) f32 activations.
        w_refs : list of (9, Cout, C_i) bf16 weight refs (Cin-split of the full
                 conv weight, so no in-kernel channel concat is needed).
        b_ref  : (Cout, 1) f32 bias.
        """
        m = h * w
        p = w + 1                          # halo covers the largest |dy*w+dx|
        cout = w_refs[0].shape[1]
        log2w = w.bit_length() - 1         # w is a power of two (16 / 8 / 4)
        col = jax.lax.broadcasted_iota(jnp.int32, (1, m), 1)
        hh = col >> log2w                  # row index of each flattened pixel
        ww = col & (w - 1)                 # col index of each flattened pixel

        acc = jnp.zeros((cout, m), f32)
        for part, w_ref in zip(parts, w_refs):
            c = part.shape[0]
            # Stage this part with halo room; 9 shifted windows are then just
            # static VMEM window loads (in-kernel im2col, no HBM traffic).
            pad_ref[0:c, p:p + m] = part
            for d in range(9):
                dy, dx = d // 3 - 1, d % 3 - 1
                delta = dy * w + dx
                shifted = pad_ref[0:c, p + delta:p + delta + m]
                valid = ((hh + dy >= 0) & (hh + dy < h) &
                         (ww + dx >= 0) & (ww + dx < w))
                patch = jnp.where(valid, shifted, 0.0).astype(jnp.bfloat16)
                # bf16 MXU inputs, f32 accumulation.
                acc = acc + jnp.dot(w_ref[d], patch,
                                    preferred_element_type=f32)
        acc = acc + b_ref[...]             # (Cout, 1) broadcast over lanes
        if act == "relu":
            acc = jnp.maximum(acc, 0.0)
        elif act == "sigmoid":
            acc = jax.nn.sigmoid(acc)
        return acc

    x0 = x_ref[0].astype(f32)                                     # (Cin, 256)

    # ---- layers_enc: features + shortcut list --------------------------------
    s1 = conv3x3([x0], [w_e1], b_e1, 16, 16, "relu")              # (8, 256)
    d1 = jnp.dot(s1, pool1_ref[...], preferred_element_type=f32)  # (8, 64)
    s2 = conv3x3([d1], [w_e2], b_e2, 8, 8, "relu")                # (16, 64)
    d2 = jnp.dot(s2, pool2_ref[...], preferred_element_type=f32)  # (16, 16)

    # ---- layers_mid -----------------------------------------------------------
    r = conv3x3([d2], [w_m1], b_m1, 4, 4, "relu")                 # (32, 16)
    r = conv3x3([r], [w_m2], b_m2, 4, 4, "relu")                  # (16, 16)

    # ---- layers_dec (shortcuts reversed: [s2, s1]) ----------------------------
    r = jnp.dot(r, up2_ref[...], preferred_element_type=f32)      # (16, 64)
    r = conv3x3([r, s2], [w_d1a, w_d1b], b_d1, 8, 8, "relu")      # (16, 64)
    r = jnp.dot(r, up1_ref[...], preferred_element_type=f32)      # (16, 256)
    r = conv3x3([r, s1], [w_d2a, w_d2b], b_d2, 16, 16, "relu")    # (8, 256)

    # ---- layers_post (decoded features + original input) ---------------------
    r = conv3x3([r, x0], [w_pa, w_pb], b_p, 16, 16, "sigmoid")    # (3, 256)

    o_ref[0] = r.astype(o_ref.dtype)


# -----------------------------------------------------------------------------
# Host-side parameter / operator preparation.
# -----------------------------------------------------------------------------
def _full_spec(shape):
    zeros = (0,) * len(shape)
    return pl.BlockSpec(shape, lambda i: zeros)


def _w_kernel_layout(w_hwio):
    """(3,3,Cin,Cout) HWIO -> (9, Cout, Cin) bf16 (MXU-ready, f32 accumulate)."""
    k, _, cin, cout = w_hwio.shape
    return (jnp.transpose(w_hwio, (0, 1, 3, 2))
            .reshape(k * k, cout, cin)
            .astype(jnp.bfloat16))


def _bias_col(b):
    return b.reshape(-1, 1).astype(jnp.float32)


def _pool_mat(h, w):
    """(h*w, (h//2)*(w//2)) 2x2 average-pool operator acting on the lane axis."""
    m = h * w
    rows = jnp.arange(m)
    cols = (rows // w // 2) * (w // 2) + (rows % w) // 2
    return jnp.zeros((m, (h // 2) * (w // 2)), jnp.float32).at[rows, cols].set(0.25)


def _upsample_mat(h_lo, w_lo):
    """(h_lo*w_lo, 4*h_lo*w_lo) nearest-neighbour 2x upsample operator."""
    h_hi, w_hi = 2 * h_lo, 2 * w_lo
    m_hi = h_hi * w_hi
    cols = jnp.arange(m_hi)
    src = (cols // w_hi // 2) * w_lo + (cols % w_hi) // 2
    return jnp.zeros((h_lo * w_lo, m_hi), jnp.float32).at[src, cols].set(1.0)


def init_params(key, in_ch=IN_CH, gain=0.02):
    """Deterministic 'normal' init (gain=0.02), matching generation_init_weights."""
    def conv_p(k, cin, cout):
        return {"w": gain * jax.random.normal(k, (3, 3, cin, cout), jnp.float32),
                "b": jnp.zeros((cout,), jnp.float32)}
    ks = jax.random.split(key, 7)
    return {
        "enc1": conv_p(ks[0], in_ch, 8),
        "enc2": conv_p(ks[1], 8, 16),
        "mid1": conv_p(ks[2], 16, 32),
        "mid2": conv_p(ks[3], 32, 16),
        "dec1": conv_p(ks[4], 16 + 16, 16),
        "dec2": conv_p(ks[5], 16 + 8, 8),
        "post": conv_p(ks[6], 8 + in_ch, in_ch),
    }


def deoldify_generator_forward(params, x_nchw):
    n, cin, h, w = x_nchw.shape
    assert (h, w) == (HH, HH) and cin == IN_CH
    m = h * w

    # NCHW flattened over spatial is already the kernel layout:
    # channels on sublanes, H*W (lane-dense, multiple of 128) on lanes.
    x = x_nchw.reshape(n, cin, m).astype(jnp.float32)

    def wb(name):
        return _w_kernel_layout(params[name]["w"]), _bias_col(params[name]["b"])

    def wb_split(name, c_first):
        wf = params[name]["w"]
        w_a, w_b = wf[:, :, :c_first, :], wf[:, :, c_first:, :]
        return (_w_kernel_layout(w_a), _w_kernel_layout(w_b),
                _bias_col(params[name]["b"]))

    w_e1, b_e1 = wb("enc1")
    w_e2, b_e2 = wb("enc2")
    w_m1, b_m1 = wb("mid1")
    w_m2, b_m2 = wb("mid2")
    w_d1a, w_d1b, b_d1 = wb_split("dec1", 16)   # [upsampled res | s2]
    w_d2a, w_d2b, b_d2 = wb_split("dec2", 16)   # [upsampled res | s1]
    w_pa, w_pb, b_p = wb_split("post", 8)       # [decoded res   | x ]

    pool1 = _pool_mat(16, 16)      # (256, 64)
    pool2 = _pool_mat(8, 8)        # (64, 16)
    up2 = _upsample_mat(4, 4)      # (16, 64)
    up1 = _upsample_mat(8, 8)      # (64, 256)

    args = (x,
            w_e1, b_e1, w_e2, b_e2, w_m1, b_m1, w_m2, b_m2,
            w_d1a, w_d1b, b_d1, w_d2a, w_d2b, b_d2, w_pa, w_pb, b_p,
            pool1, pool2, up2, up1)

    in_specs = [pl.BlockSpec((1, cin, m), lambda i: (i, 0, 0))]
    in_specs += [_full_spec(a.shape) for a in args[1:]]

    out = pl.pallas_call(
        _deoldify_fused_kernel,
        out_shape=jax.ShapeDtypeStruct((n, cin, m), jnp.float32),
        grid=(n,),
        in_specs=in_specs,
        out_specs=pl.BlockSpec((1, cin, m), lambda i: (i, 0, 0)),
        scratch_shapes=[pltpu.VMEM((MAX_CH, m + 2 * (HH + 1)), jnp.float32)],
        compiler_params=pltpu.CompilerParams(
            dimension_semantics=("parallel",)),
    )(*args)

    return out.reshape(n, cin, h, w)


# -----------------------------------------------------------------------------
# Pure-JAX reference (f32) for a loose correctness check.
# -----------------------------------------------------------------------------
def _reference_forward(params, x_nchw):
    x = jnp.transpose(x_nchw, (0, 2, 3, 1))  # NHWC

    def conv(hh, w_hwio, b, act):
        y = jax.lax.conv_general_dilated(
            hh, w_hwio, window_strides=(1, 1), padding="SAME",
            dimension_numbers=("NHWC", "HWIO", "NHWC"))
        y = y + b
        if act == "relu":
            return jax.nn.relu(y)
        return jax.nn.sigmoid(y)

    def pool(t):
        n, a, b, c = t.shape
        return t.reshape(n, a // 2, 2, b // 2, 2, c).mean(axis=(2, 4))

    def up(t):
        return jnp.repeat(jnp.repeat(t, 2, axis=1), 2, axis=2)

    p = params
    s1 = conv(x, p["enc1"]["w"], p["enc1"]["b"], "relu")
    d1 = pool(s1)
    s2 = conv(d1, p["enc2"]["w"], p["enc2"]["b"], "relu")
    d2 = pool(s2)
    r = conv(d2, p["mid1"]["w"], p["mid1"]["b"], "relu")
    r = conv(r, p["mid2"]["w"], p["mid2"]["b"], "relu")
    r = up(r)
    r = conv(jnp.concatenate([r, s2], -1), p["dec1"]["w"], p["dec1"]["b"], "relu")
    r = up(r)
    r = conv(jnp.concatenate([r, s1], -1), p["dec2"]["w"], p["dec2"]["b"], "relu")
    r = conv(jnp.concatenate([r, x], -1), p["post"]["w"], p["post"]["b"], "sigmoid")
    return jnp.transpose(r, (0, 3, 1, 2))


if __name__ == "__main__":
    key = jax.random.PRNGKey(0)
    k_param, k_input = jax.random.split(key)

    params = init_params(k_param, in_ch=IN_CH)
    x = jax.random.normal(k_input, (2, IN_CH, HH, HH), dtype=jnp.float32)  # NCHW

    fwd = jax.jit(deoldify_generator_forward)
    out = fwd(params, x)
    jax.block_until_ready(out)

    assert out.shape == (2, IN_CH, HH, HH), out.shape
    assert out.dtype == jnp.float32
    assert bool(jnp.all(jnp.isfinite(out)))

    # Loose check vs. f32 XLA reference (kernel uses bf16 MXU inputs).
    ref = jax.jit(_reference_forward)(params, x)
    jax.block_until_ready(ref)
    max_err = float(jnp.max(jnp.abs(out - ref)))
    assert max_err < 2e-2, f"max abs error vs reference: {max_err}"

    print("KERNEL_OK")
</pallas_src>

<mosaic_0001>
module attributes {stable_mosaic.version = 11 : i64} {
  func.func @_deoldify_fused_kernel(%arg0: i32, %arg1: memref<1x3x256xf32, #tpu.memory_space<vmem>>, %arg2: memref<9x8x3xbf16, #tpu.memory_space<vmem>>, %arg3: memref<8x1xf32, #tpu.memory_space<vmem>>, %arg4: memref<9x16x8xbf16, #tpu.memory_space<vmem>>, %arg5: memref<16x1xf32, #tpu.memory_space<vmem>>, %arg6: memref<9x32x16xbf16, #tpu.memory_space<vmem>>, %arg7: memref<32x1xf32, #tpu.memory_space<vmem>>, %arg8: memref<9x16x32xbf16, #tpu.memory_space<vmem>>, %arg9: memref<16x1xf32, #tpu.memory_space<vmem>>, %arg10: memref<9x16x16xbf16, #tpu.memory_space<vmem>>, %arg11: memref<9x16x16xbf16, #tpu.memory_space<vmem>>, %arg12: memref<16x1xf32, #tpu.memory_space<vmem>>, %arg13: memref<9x8x16xbf16, #tpu.memory_space<vmem>>, %arg14: memref<9x8x8xbf16, #tpu.memory_space<vmem>>, %arg15: memref<8x1xf32, #tpu.memory_space<vmem>>, %arg16: memref<9x3x8xbf16, #tpu.memory_space<vmem>>, %arg17: memref<9x3x3xbf16, #tpu.memory_space<vmem>>, %arg18: memref<3x1xf32, #tpu.memory_space<vmem>>, %arg19: memref<256x64xf32, #tpu.memory_space<vmem>>, %arg20: memref<64x16xf32, #tpu.memory_space<vmem>>, %arg21: memref<16x64xf32, #tpu.memory_space<vmem>>, %arg22: memref<64x256xf32, #tpu.memory_space<vmem>>, %arg23: memref<1x3x256xf32, #tpu.memory_space<vmem>>, %arg24: memref<32x290xf32, #tpu.memory_space<vmem>>) attributes {dimension_semantics = [#tpu.dimension_semantics<parallel>], iteration_bounds = array<i64: 2>, scalar_prefetch = 0 : i64, scratch_operands = 1 : i64, tpu.core_type = #tpu.core_type<tc>, window_params = [{transform_indices = @transform_0, window_bounds = array<i64: 1, 3, 256>}, {pipeline_mode = #tpu.pipeline_mode<synchronous>, transform_indices = @transform_1, window_bounds = array<i64: 9, 8, 3>}, {pipeline_mode = #tpu.pipeline_mode<synchronous>, transform_indices = @transform_2, window_bounds = array<i64: 8, 1>}, {pipeline_mode = #tpu.pipeline_mode<synchronous>, transform_indices = @transform_3, window_bounds = array<i64: 9, 16, 8>}, {pipeline_mode = #tpu.pipeline_mode<synchronous>, transform_indices = @transform_4, window_bounds = array<i64: 16, 1>}, {pipeline_mode = #tpu.pipeline_mode<synchronous>, transform_indices = @transform_5, window_bounds = array<i64: 9, 32, 16>}, {pipeline_mode = #tpu.pipeline_mode<synchronous>, transform_indices = @transform_6, window_bounds = array<i64: 32, 1>}, {pipeline_mode = #tpu.pipeline_mode<synchronous>, transform_indices = @transform_7, window_bounds = array<i64: 9, 16, 32>}, {pipeline_mode = #tpu.pipeline_mode<synchronous>, transform_indices = @transform_8, window_bounds = array<i64: 16, 1>}, {pipeline_mode = #tpu.pipeline_mode<synchronous>, transform_indices = @transform_9, window_bounds = array<i64: 9, 16, 16>}, {pipeline_mode = #tpu.pipeline_mode<synchronous>, transform_indices = @transform_10, window_bounds = array<i64: 9, 16, 16>}, {pipeline_mode = #tpu.pipeline_mode<synchronous>, transform_indices = @transform_11, window_bounds = array<i64: 16, 1>}, {pipeline_mode = #tpu.pipeline_mode<synchronous>, transform_indices = @transform_12, window_bounds = array<i64: 9, 8, 16>}, {pipeline_mode = #tpu.pipeline_mode<synchronous>, transform_indices = @transform_13, window_bounds = array<i64: 9, 8, 8>}, {pipeline_mode = #tpu.pipeline_mode<synchronous>, transform_indices = @transform_14, window_bounds = array<i64: 8, 1>}, {pipeline_mode = #tpu.pipeline_mode<synchronous>, transform_indices = @transform_15, window_bounds = array<i64: 9, 3, 8>}, {pipeline_mode = #tpu.pipeline_mode<synchronous>, transform_indices = @transform_16, window_bounds = array<i64: 9, 3, 3>}, {pipeline_mode = #tpu.pipeline_mode<synchronous>, transform_indices = @transform_17, window_bounds = array<i64: 3, 1>}, {pipeline_mode = #tpu.pipeline_mode<synchronous>, transform_indices = @transform_18, window_bounds = array<i64: 256, 64>}, {pipeline_mode = #tpu.pipeline_mode<synchronous>, transform_indices = @transform_19, window_bounds = array<i64: 64, 16>}, {pipeline_mode = #tpu.pipeline_mode<synchronous>, transform_indices = @transform_20, window_bounds = array<i64: 16, 64>}, {pipeline_mode = #tpu.pipeline_mode<synchronous>, transform_indices = @transform_21, window_bounds = array<i64: 64, 256>}, {transform_indices = @transform_22, window_bounds = array<i64: 1, 3, 256>}]} {
    %cst = arith.constant 0.000000e+00 : f32
    %0 = vector.broadcast %cst : f32 to vector<32x290xf32>
    %c0 = arith.constant 0 : index
    %c0_0 = arith.constant 0 : index
    %1 = vector.load %arg24[%c0, %c0_0] : memref<32x290xf32, #tpu.memory_space<vmem>>, vector<32x290xf32>
    tpu.vector_store %arg24[%c0, %c0_0], %0 {strides = array<i32>} : memref<32x290xf32, #tpu.memory_space<vmem>>, vector<32x290xf32>,
    %c0_1 = arith.constant 0 : index
    %c0_2 = arith.constant 0 : index
    %c0_3 = arith.constant 0 : index
    %2 = vector.load %arg1[%c0_1, %c0_2, %c0_3] : memref<1x3x256xf32, #tpu.memory_space<vmem>>, vector<1x3x256xf32>
    %3 = vector.shape_cast %2 : vector<1x3x256xf32> to vector<3x256xf32>
    %4 = tpu.iota {dimensions = array<i32: 1>} : vector<1x256xi32>
    %c4_i32 = arith.constant 4 : i32
    %5 = vector.broadcast %c4_i32 : i32 to vector<1x256xi32>
    %6 = arith.shrsi %4, %5 : vector<1x256xi32>
    %c15_i32 = arith.constant 15 : i32
    %7 = vector.broadcast %c15_i32 : i32 to vector<1x256xi32>
    %8 = arith.andi %4, %7 : vector<1x256xi32>
    %cst_4 = arith.constant 0.000000e+00 : f32
    %9 = vector.broadcast %cst_4 : f32 to vector<8x256xf32>
    %c0_5 = arith.constant 0 : index
    %c17 = arith.constant 17 : index
    %10 = vector.load %arg24[%c0_5, %c17] : memref<32x290xf32, #tpu.memory_space<vmem>>, vector<3x256xf32>
    tpu.vector_store %arg24[%c0_5, %c17], %3 {strides = array<i32>} : memref<32x290xf32, #tpu.memory_space<vmem>>, vector<3x256xf32>,
    %c0_6 = arith.constant 0 : index
    %c0_7 = arith.constant 0 : index
    %11 = vector.load %arg24[%c0_6, %c0_7] : memref<32x290xf32, #tpu.memory_space<vmem>>, vector<3x256xf32>
    %c-1_i32 = arith.constant -1 : i32
    %12 = vector.broadcast %c-1_i32 : i32 to vector<1x256xi32>
    %13 = arith.addi %6, %12 : vector<1x256xi32>
    %c0_i32 = arith.constant 0 : i32
    %14 = vector.broadcast %c0_i32 : i32 to vector<1x256xi32>
    %15 = arith.cmpi sge, %13, %14 : vector<1x256xi32>
    %c-1_i32_8 = arith.constant -1 : i32
    %16 = vector.broadcast %c-1_i32_8 : i32 to vector<1x256xi32>
    %17 = arith.addi %6, %16 : vector<1x256xi32>
    %c16_i32 = arith.constant 16 : i32
    %18 = vector.broadcast %c16_i32 : i32 to vector<1x256xi32>
    %19 = arith.cmpi slt, %17, %18 : vector<1x256xi32>
    %20 = arith.andi %15, %19 : vector<1x256xi1>
    %c-1_i32_9 = arith.constant -1 : i32
    %21 = vector.broadcast %c-1_i32_9 : i32 to vector<1x256xi32>
    %22 = arith.addi %8, %21 : vector<1x256xi32>
    %c0_i32_10 = arith.constant 0 : i32
    %23 = vector.broadcast %c0_i32_10 : i32 to vector<1x256xi32>
    %24 = arith.cmpi sge, %22, %23 : vector<1x256xi32>
    %25 = arith.andi %20, %24 : vector<1x256xi1>
    %c-1_i32_11 = arith.constant -1 : i32
    %26 = vector.broadcast %c-1_i32_11 : i32 to vector<1x256xi32>
    %27 = arith.addi %8, %26 : vector<1x256xi32>
    %c16_i32_12 = arith.constant 16 : i32
    %28 = vector.broadcast %c16_i32_12 : i32 to vector<1x256xi32>
    %29 = arith.cmpi slt, %27, %28 : vector<1x256xi32>
    %30 = arith.andi %25, %29 : vector<1x256xi1>
    %cst_13 = arith.constant 0.000000e+00 : f32
    %31 = vector.shape_cast %30 : vector<1x256xi1> to vector<1x256xi1>
    %32 = vector.broadcast %31 : vector<1x256xi1> to vector<3x256xi1>
    %33 = vector.broadcast %cst_13 : f32 to vector<3x256xf32>
    %34 = arith.select %32, %11, %33 : vector<3x256xi1>, vector<3x256xf32>
    %35 = arith.truncf %34 : vector<3x256xf32> to vector<3x256xbf16>
    %c0_14 = arith.constant 0 : index
    %c0_15 = arith.constant 0 : index
    %c0_16 = arith.constant 0 : index
    %36 = vector.load %arg2[%c0_14, %c0_15, %c0_16] : memref<9x8x3xbf16, #tpu.memory_space<vmem>>, vector<1x8x3xbf16>
    %37 = vector.shape_cast %36 : vector<1x8x3xbf16> to vector<8x3xbf16>
    %cst_17 = arith.constant dense<0.000000e+00> : vector<8x256xf32>
    %38 = tpu.matmul %37, %35, %cst_17 {dimension_numbers = #tpu.dot_dimension_numbers<[1], [0], [0], [1], [0, 0, 1, 1], [], []>} : vector<8x3xbf16>, vector<3x256xbf16>, vector<8x256xf32> -> vector<8x256xf32>
    %39 = arith.addf %9, %38 : vector<8x256xf32>
    %c0_18 = arith.constant 0 : index
    %c1 = arith.constant 1 : index
    %40 = vector.load %arg24[%c0_18, %c1] : memref<32x290xf32, #tpu.memory_space<vmem>>, vector<3x256xf32>
    %c-1_i32_19 = arith.constant -1 : i32
    %41 = vector.broadcast %c-1_i32_19 : i32 to vector<1x256xi32>
    %42 = arith.addi %6, %41 : vector<1x256xi32>
    %c0_i32_20 = arith.constant 0 : i32
    %43 = vector.broadcast %c0_i32_20 : i32 to vector<1x256xi32>
    %44 = arith.cmpi sge, %42, %43 : vector<1x256xi32>
    %c-1_i32_21 = arith.constant -1 : i32
    %45 = vector.broadcast %c-1_i32_21 : i32 to vector<1x256xi32>
    %46 = arith.addi %6, %45 : vector<1x256xi32>
    %c16_i32_22 = arith.constant 16 : i32
    %47 = vector.broadcast %c16_i32_22 : i32 to vector<1x256xi32>
    %48 = arith.cmpi slt, %46, %47 : vector<1x256xi32>
    %49 = arith.andi %44, %48 : vector<1x256xi1>
    %c0_i32_23 = arith.constant 0 : i32
    %50 = vector.broadcast %c0_i32_23 : i32 to vector<1x256xi32>
    %51 = arith.addi %8, %50 : vector<1x256xi32>
    %c0_i32_24 = arith.constant 0 : i32
    %52 = vector.broadcast %c0_i32_24 : i32 to vector<1x256xi32>
    %53 = arith.cmpi sge, %51, %52 : vector<1x256xi32>
    %54 = arith.andi %49, %53 : vector<1x256xi1>
    %c0_i32_25 = arith.constant 0 : i32
    %55 = vector.broadcast %c0_i32_25 : i32 to vector<1x256xi32>
    %56 = arith.addi %8, %55 : vector<1x256xi32>
    %c16_i32_26 = arith.constant 16 : i32
    %57 = vector.broadcast %c16_i32_26 : i32 to vector<1x256xi32>
    %58 = arith.cmpi slt, %56, %57 : vector<1x256xi32>
    %59 = arith.andi %54, %58 : vector<1x256xi1>
    %cst_27 = arith.constant 0.000000e+00 : f32
    %60 = vector.shape_cast %59 : vector<1x256xi1> to vector<1x256xi1>
    %61 = vector.broadcast %60 : vector<1x256xi1> to vector<3x256xi1>
    %62 = vector.broadcast %cst_27 : f32 to vector<3x256xf32>
    %63 = arith.select %61, %40, %62 : vector<3x256xi1>, vector<3x256xf32>
    %64 = arith.truncf %63 : vector<3x256xf32> to vector<3x256xbf16>
    %c1_28 = arith.constant 1 : index
    %c0_29 = arith.constant 0 : index
    %c0_30 = arith.constant 0 : index
    %65 = vector.load %arg2[%c1_28, %c0_29, %c0_30] : memref<9x8x3xbf16, #tpu.memory_space<vmem>>, vector<1x8x3xbf16>
    %66 = vector.shape_cast %65 : vector<1x8x3xbf16> to vector<8x3xbf16>
    %cst_31 = arith.constant dense<0.000000e+00> : vector<8x256xf32>
    %67 = tpu.matmul %66, %64, %cst_31 {dimension_numbers = #tpu.dot_dimension_numbers<[1], [0], [0], [1], [0, 0, 1, 1], [], []>} : vector<8x3xbf16>, vector<3x256xbf16>, vector<8x256xf32> -> vector<8x256xf32>
    %68 = arith.addf %39, %67 : vector<8x256xf32>
    %c0_32 = arith.constant 0 : index
    %c2 = arith.constant 2 : index
    %69 = vector.load %arg24[%c0_32, %c2] : memref<32x290xf32, #tpu.memory_space<vmem>>, vector<3x256xf32>
    %c-1_i32_33 = arith.constant -1 : i32
    %70 = vector.broadcast %c-1_i32_33 : i32 to vector<1x256xi32>
    %71 = arith.addi %6, %70 : vector<1x256xi32>
    %c0_i32_34 = arith.constant 0 : i32
    %72 = vector.broadcast %c0_i32_34 : i32 to vector<1x256xi32>
    %73 = arith.cmpi sge, %71, %72 : vector<1x256xi32>
    %c-1_i32_35 = arith.constant -1 : i32
    %74 = vector.broadcast %c-1_i32_35 : i32 to vector<1x256xi32>
    %75 = arith.addi %6, %74 : vector<1x256xi32>
    %c16_i32_36 = arith.constant 16 : i32
    %76 = vector.broadcast %c16_i32_36 : i32 to vector<1x256xi32>
    %77 = arith.cmpi slt, %75, %76 : vector<1x256xi32>
    %78 = arith.andi %73, %77 : vector<1x256xi1>
    %c1_i32 = arith.constant 1 : i32
    %79 = vector.broadcast %c1_i32 : i32 to vector<1x256xi32>
    %80 = arith.addi %8, %79 : vector<1x256xi32>
    %c0_i32_37 = arith.constant 0 : i32
    %81 = vector.broadcast %c0_i32_37 : i32 to vector<1x256xi32>
    %82 = arith.cmpi sge, %80, %81 : vector<1x256xi32>
    %83 = arith.andi %78, %82 : vector<1x256xi1>
    %c1_i32_38 = arith.constant 1 : i32
    %84 = vector.broadcast %c1_i32_38 : i32 to vector<1x256xi32>
    %85 = arith.addi %8, %84 : vector<1x256xi32>
    %c16_i32_39 = arith.constant 16 : i32
    %86 = vector.broadcast %c16_i32_39 : i32 to vector<1x256xi32>
    %87 = arith.cmpi slt, %85, %86 : vector<1x256xi32>
    %88 = arith.andi %83, %87 : vector<1x256xi1>
    %cst_40 = arith.constant 0.000000e+00 : f32
    %89 = vector.shape_cast %88 : vector<1x256xi1> to vector<1x256xi1>
    %90 = vector.broadcast %89 : vector<1x256xi1> to vector<3x256xi1>
    %91 = vector.broadcast %cst_40 : f32 to vector<3x256xf32>
    %92 = arith.select %90, %69, %91 : vector<3x256xi1>, vector<3x256xf32>
    %93 = arith.truncf %92 : vector<3x256xf32> to vector<3x256xbf16>
    %c2_41 = arith.constant 2 : index
    %c0_42 = arith.constant 0 : index
    %c0_43 = arith.constant 0 : index
    %94 = vector.load %arg2[%c2_41, %c0_42, %c0_43] : memref<9x8x3xbf16, #tpu.memory_space<vmem>>, vector<1x8x3xbf16>
    %95 = vector.shape_cast %94 : vector<1x8x3xbf16> to vector<8x3xbf16>
    %cst_44 = arith.constant dense<0.000000e+00> : vector<8x256xf32>
    %96 = tpu.matmul %95, %93, %cst_44 {dimension_numbers = #tpu.dot_dimension_numbers<[1], [0], [0], [1], [0, 0, 1, 1], [], []>} : vector<8x3xbf16>, vector<3x256xbf16>, vector<8x256xf32> -> vector<8x256xf32>
    %97 = arith.addf %68, %96 : vector<8x256xf32>
    %c0_45 = arith.constant 0 : index
    %c16 = arith.constant 16 : index
    %98 = vector.load %arg24[%c0_45, %c16] : memref<32x290xf32, #tpu.memory_space<vmem>>, vector<3x256xf32>
    %c0_i32_46 = arith.constant 0 : i32
    %99 = vector.broadcast %c0_i32_46 : i32 to vector<1x256xi32>
    %100 = arith.addi %6, %99 : vector<1x256xi32>
    %c0_i32_47 = arith.constant 0 : i32
    %101 = vector.broadcast %c0_i32_47 : i32 to vector<1x256xi32>
    %102 = arith.cmpi sge, %100, %101 : vector<1x256xi32>
    %c0_i32_48 = arith.constant 0 : i32
    %103 = vector.broadcast %c0_i32_48 : i32 to vector<1x256xi32>
    %104 = arith.addi %6, %103 : vector<1x256xi32>
    %c16_i32_49 = arith.constant 16 : i32
    %105 = vector.broadcast %c16_i32_49 : i32 to vector<1x256xi32>
    %106 = arith.cmpi slt, %104, %105 : vector<1x256xi32>
    %107 = arith.andi %102, %106 : vector<1x256xi1>
    %c-1_i32_50 = arith.constant -1 : i32
    %108 = vector.broadcast %c-1_i32_50 : i32 to vector<1x256xi32>
    %109 = arith.addi %8, %108 : vector<1x256xi32>
    %c0_i32_51 = arith.constant 0 : i32
    %110 = vector.broadcast %c0_i32_51 : i32 to vector<1x256xi32>
    %111 = arith.cmpi sge, %109, %110 : vector<1x256xi32>
    %112 = arith.andi %107, %111 : vector<1x256xi1>
    %c-1_i32_52 = arith.constant -1 : i32
    %113 = vector.broadcast %c-1_i32_52 : i32 to vector<1x256xi32>
    %114 = arith.addi %8, %113 : vector<1x256xi32>
    %c16_i32_53 = arith.constant 16 : i32
    %115 = vector.broadcast %c16_i32_53 : i32 to vector<1x256xi32>
    %116 = arith.cmpi slt, %114, %115 : vector<1x256xi32>
    %117 = arith.andi %112, %116 : vector<1x256xi1>
    %cst_54 = arith.constant 0.000000e+00 : f32
    %118 = vector.shape_cast %117 : vector<1x256xi1> to vector<1x256xi1>
    %119 = vector.broadcast %118 : vector<1x256xi1> to vector<3x256xi1>
    %120 = vector.broadcast %cst_54 : f32 to vector<3x256xf32>
    %121 = arith.select %119, %98, %120 : vector<3x256xi1>, vector<3x256xf32>
    %122 = arith.truncf %121 : vector<3x256xf32> to vector<3x256xbf16>
    %c3 = arith.constant 3 : index
    %c0_55 = arith.constant 0 : index
    %c0_56 = arith.constant 0 : index
    %123 = vector.load %arg2[%c3, %c0_55, %c0_56] : memref<9x8x3xbf16, #tpu.memory_space<vmem>>, vector<1x8x3xbf16>
    %124 = vector.shape_cast %123 : vector<1x8x3xbf16> to vector<8x3xbf16>
    %cst_57 = arith.constant dense<0.000000e+00> : vector<8x256xf32>
    %125 = tpu.matmul %124, %122, %cst_57 {dimension_numbers = #tpu.dot_dimension_numbers<[1], [0], [0], [1], [0, 0, 1, 1], [], []>} : vector<8x3xbf16>, vector<3x256xbf16>, vector<8x256xf32> -> vector<8x256xf32>
    %126 = arith.addf %97, %125 : vector<8x256xf32>
    %c0_58 = arith.constant 0 : index
    %c17_59 = arith.constant 17 : index
    %127 = vector.load %arg24[%c0_58, %c17_59] : memref<32x290xf32, #tpu.memory_space<vmem>>, vector<3x256xf32>
    %c0_i32_60 = arith.constant 0 : i32
    %128 = vector.broadcast %c0_i32_60 : i32 to vector<1x256xi32>
    %129 = arith.addi %6, %128 : vector<1x256xi32>
    %c0_i32_61 = arith.constant 0 : i32
    %130 = vector.broadcast %c0_i32_61 : i32 to vector<1x256xi32>
    %131 = arith.cmpi sge, %129, %130 : vector<1x256xi32>
    %c0_i32_62 = arith.constant 0 : i32
    %132 = vector.broadcast %c0_i32_62 : i32 to vector<1x256xi32>
    %133 = arith.addi %6, %132 : vector<1x256xi32>
    %c16_i32_63 = arith.constant 16 : i32
    %134 = vector.broadcast %c16_i32_63 : i32 to vector<1x256xi32>
    %135 = arith.cmpi slt, %133, %134 : vector<1x256xi32>
    %136 = arith.andi %131, %135 : vector<1x256xi1>
    %c0_i32_64 = arith.constant 0 : i32
    %137 = vector.broadcast %c0_i32_64 : i32 to vector<1x256xi32>
    %138 = arith.addi %8, %137 : vector<1x256xi32>
    %c0_i32_65 = arith.constant 0 : i32
    %139 = vector.broadcast %c0_i32_65 : i32 to vector<1x256xi32>
    %140 = arith.cmpi sge, %138, %139 : vector<1x256xi32>
    %141 = arith.andi %136, %140 : vector<1x256xi1>
    %c0_i32_66 = arith.constant 0 : i32
    %142 = vector.broadcast %c0_i32_66 : i32 to vector<1x256xi32>
    %143 = arith.addi %8, %142 : vector<1x256xi32>
    %c16_i32_67 = arith.constant 16 : i32
    %144 = vector.broadcast %c16_i32_67 : i32 to vector<1x256xi32>
    %145 = arith.cmpi slt, %143, %144 : vector<1x256xi32>
    %146 = arith.andi %141, %145 : vector<1x256xi1>
    %cst_68 = arith.constant 0.000000e+00 : f32
    %147 = vector.shape_cast %146 : vector<1x256xi1> to vector<1x256xi1>
    %148 = vector.broadcast %147 : vector<1x256xi1> to vector<3x256xi1>
    %149 = vector.broadcast %cst_68 : f32 to vector<3x256xf32>
    %150 = arith.select %148, %127, %149 : vector<3x256xi1>, vector<3x256xf32>
    %151 = arith.truncf %150 : vector<3x256xf32> to vector<3x256xbf16>
    %c4 = arith.constant 4 : index
    %c0_69 = arith.constant 0 : index
    %c0_70 = arith.constant 0 : index
    %152 = vector.load %arg2[%c4, %c0_69, %c0_70] : memref<9x8x3xbf16, #tpu.memory_space<vmem>>, vector<1x8x3xbf16>
    %153 = vector.shape_cast %152 : vector<1x8x3xbf16> to vector<8x3xbf16>
    %cst_71 = arith.constant dense<0.000000e+00> : vector<8x256xf32>
    %154 = tpu.matmul %153, %151, %cst_71 {dimension_numbers = #tpu.dot_dimension_numbers<[1], [0], [0], [1], [0, 0, 1, 1], [], []>} : vector<8x3xbf16>, vector<3x256xbf16>, vector<8x256xf32> -> vector<8x256xf32>
    %155 = arith.addf %126, %154 : vector<8x256xf32>
    %c0_72 = arith.constant 0 : index
    %c18 = arith.constant 18 : index
    %156 = vector.load %arg24[%c0_72, %c18] : memref<32x290xf32, #tpu.memory_space<vmem>>, vector<3x256xf32>
    %c0_i32_73 = arith.constant 0 : i32
    %157 = vector.broadcast %c0_i32_73 : i32 to vector<1x256xi32>
    %158 = arith.addi %6, %157 : vector<1x256xi32>
    %c0_i32_74 = arith.constant 0 : i32
    %159 = vector.broadcast %c0_i32_74 : i32 to vector<1x256xi32>
    %160 = arith.cmpi sge, %158, %159 : vector<1x256xi32>
    %c0_i32_75 = arith.constant 0 : i32
    %161 = vector.broadcast %c0_i32_75 : i32 to vector<1x256xi32>
    %162 = arith.addi %6, %161 : vector<1x256xi32>
    %c16_i32_76 = arith.constant 16 : i32
    %163 = vector.broadcast %c16_i32_76 : i32 to vector<1x256xi32>
    %164 = arith.cmpi slt, %162, %163 : vector<1x256xi32>
    %165 = arith.andi %160, %164 : vector<1x256xi1>
    %c1_i32_77 = arith.constant 1 : i32
    %166 = vector.broadcast %c1_i32_77 : i32 to vector<1x256xi32>
    %167 = arith.addi %8, %166 : vector<1x256xi32>
    %c0_i32_78 = arith.constant 0 : i32
    %168 = vector.broadcast %c0_i32_78 : i32 to vector<1x256xi32>
    %169 = arith.cmpi sge, %167, %168 : vector<1x256xi32>
    %170 = arith.andi %165, %169 : vector<1x256xi1>
    %c1_i32_79 = arith.constant 1 : i32
    %171 = vector.broadcast %c1_i32_79 : i32 to vector<1x256xi32>
    %172 = arith.addi %8, %171 : vector<1x256xi32>
    %c16_i32_80 = arith.constant 16 : i32
    %173 = vector.broadcast %c16_i32_80 : i32 to vector<1x256xi32>
    %174 = arith.cmpi slt, %172, %173 : vector<1x256xi32>
    %175 = arith.andi %170, %174 : vector<1x256xi1>
    %cst_81 = arith.constant 0.000000e+00 : f32
    %176 = vector.shape_cast %175 : vector<1x256xi1> to vector<1x256xi1>
    %177 = vector.broadcast %176 : vector<1x256xi1> to vector<3x256xi1>
    %178 = vector.broadcast %cst_81 : f32 to vector<3x256xf32>
    %179 = arith.select %177, %156, %178 : vector<3x256xi1>, vector<3x256xf32>
    %180 = arith.truncf %179 : vector<3x256xf32> to vector<3x256xbf16>
    %c5 = arith.constant 5 : index
    %c0_82 = arith.constant 0 : index
    %c0_83 = arith.constant 0 : index
    %181 = vector.load %arg2[%c5, %c0_82, %c0_83] : memref<9x8x3xbf16, #tpu.memory_space<vmem>>, vector<1x8x3xbf16>
    %182 = vector.shape_cast %181 : vector<1x8x3xbf16> to vector<8x3xbf16>
    %cst_84 = arith.constant dense<0.000000e+00> : vector<8x256xf32>
    %183 = tpu.matmul %182, %180, %cst_84 {dimension_numbers = #tpu.dot_dimension_numbers<[1], [0], [0], [1], [0, 0, 1, 1], [], []>} : vector<8x3xbf16>, vector<3x256xbf16>, vector<8x256xf32> -> vector<8x256xf32>
    %184 = arith.addf %155, %183 : vector<8x256xf32>
    %c0_85 = arith.constant 0 : index
    %c32 = arith.constant 32 : index
    %185 = vector.load %arg24[%c0_85, %c32] : memref<32x290xf32, #tpu.memory_space<vmem>>, vector<3x256xf32>
    %c1_i32_86 = arith.constant 1 : i32
    %186 = vector.broadcast %c1_i32_86 : i32 to vector<1x256xi32>
    %187 = arith.addi %6, %186 : vector<1x256xi32>
    %c0_i32_87 = arith.constant 0 : i32
    %188 = vector.broadcast %c0_i32_87 : i32 to vector<1x256xi32>
    %189 = arith.cmpi sge, %187, %188 : vector<1x256xi32>
    %c1_i32_88 = arith.constant 1 : i32
    %190 = vector.broadcast %c1_i32_88 : i32 to vector<1x256xi32>
    %191 = arith.addi %6, %190 : vector<1x256xi32>
    %c16_i32_89 = arith.constant 16 : i32
    %192 = vector.broadcast %c16_i32_89 : i32 to vector<1x256xi32>
    %193 = arith.cmpi slt, %191, %192 : vector<1x256xi32>
    %194 = arith.andi %189, %193 : vector<1x256xi1>
    %c-1_i32_90 = arith.constant -1 : i32
    %195 = vector.broadcast %c-1_i32_90 : i32 to vector<1x256xi32>
    %196 = arith.addi %8, %195 : vector<1x256xi32>
    %c0_i32_91 = arith.constant 0 : i32
    %197 = vector.broadcast %c0_i32_91 : i32 to vector<1x256xi32>
    %198 = arith.cmpi sge, %196, %197 : vector<1x256xi32>
    %199 = arith.andi %194, %198 : vector<1x256xi1>
    %c-1_i32_92 = arith.constant -1 : i32
    %200 = vector.broadcast %c-1_i32_92 : i32 to vector<1x256xi32>
    %201 = arith.addi %8, %200 : vector<1x256xi32>
    %c16_i32_93 = arith.constant 16 : i32
    %202 = vector.broadcast %c16_i32_93 : i32 to vector<1x256xi32>
    %203 = arith.cmpi slt, %201, %202 : vector<1x256xi32>
    %204 = arith.andi %199, %203 : vector<1x256xi1>
    %cst_94 = arith.constant 0.000000e+00 : f32
    %205 = vector.shape_cast %204 : vector<1x256xi1> to vector<1x256xi1>
    %206 = vector.broadcast %205 : vector<1x256xi1> to vector<3x256xi1>
    %207 = vector.broadcast %cst_94 : f32 to vector<3x256xf32>
    %208 = arith.select %206, %185, %207 : vector<3x256xi1>, vector<3x256xf32>
    %209 = arith.truncf %208 : vector<3x256xf32> to vector<3x256xbf16>
    %c6 = arith.constant 6 : index
    %c0_95 = arith.constant 0 : index
    %c0_96 = arith.constant 0 : index
    %210 = vector.load %arg2[%c6, %c0_95, %c0_96] : memref<9x8x3xbf16, #tpu.memory_space<vmem>>, vector<1x8x3xbf16>
    %211 = vector.shape_cast %210 : vector<1x8x3xbf16> to vector<8x3xbf16>
    %cst_97 = arith.constant dense<0.000000e+00> : vector<8x256xf32>
    %212 = tpu.matmul %211, %209, %cst_97 {dimension_numbers = #tpu.dot_dimension_numbers<[1], [0], [0], [1], [0, 0, 1, 1], [], []>} : vector<8x3xbf16>, vector<3x256xbf16>, vector<8x256xf32> -> vector<8x256xf32>
    %213 = arith.addf %184, %212 : vector<8x256xf32>
    %c0_98 = arith.constant 0 : index
    %c33 = arith.constant 33 : index
    %214 = vector.load %arg24[%c0_98, %c33] : memref<32x290xf32, #tpu.memory_space<vmem>>, vector<3x256xf32>
    %c1_i32_99 = arith.constant 1 : i32
    %215 = vector.broadcast %c1_i32_99 : i32 to vector<1x256xi32>
    %216 = arith.addi %6, %215 : vector<1x256xi32>
    %c0_i32_100 = arith.constant 0 : i32
    %217 = vector.broadcast %c0_i32_100 : i32 to vector<1x256xi32>
    %218 = arith.cmpi sge, %216, %217 : vector<1x256xi32>
    %c1_i32_101 = arith.constant 1 : i32
    %219 = vector.broadcast %c1_i32_101 : i32 to vector<1x256xi32>
    %220 = arith.addi %6, %219 : vector<1x256xi32>
    %c16_i32_102 = arith.constant 16 : i32
    %221 = vector.broadcast %c16_i32_102 : i32 to vector<1x256xi32>
    %222 = arith.cmpi slt, %220, %221 : vector<1x256xi32>
    %223 = arith.andi %218, %222 : vector<1x256xi1>
    %c0_i32_103 = arith.constant 0 : i32
    %224 = vector.broadcast %c0_i32_103 : i32 to vector<1x256xi32>
    %225 = arith.addi %8, %224 : vector<1x256xi32>
    %c0_i32_104 = arith.constant 0 : i32
    %226 = vector.broadcast %c0_i32_104 : i32 to vector<1x256xi32>
    %227 = arith.cmpi sge, %225, %226 : vector<1x256xi32>
    %228 = arith.andi %223, %227 : vector<1x256xi1>
    %c0_i32_105 = arith.constant 0 : i32
    %229 = vector.broadcast %c0_i32_105 : i32 to vector<1x256xi32>
    %230 = arith.addi %8, %229 : vector<1x256xi32>
    %c16_i32_106 = arith.constant 16 : i32
    %231 = vector.broadcast %c16_i32_106 : i32 to vector<1x256xi32>
    %232 = arith.cmpi slt, %230, %231 : vector<1x256xi32>
    %233 = arith.andi %228, %232 : vector<1x256xi1>
    %cst_107 = arith.constant 0.000000e+00 : f32
    %234 = vector.shape_cast %233 : vector<1x256xi1> to vector<1x256xi1>
    %235 = vector.broadcast %234 : vector<1x256xi1> to vector<3x256xi1>
    %236 = vector.broadcast %cst_107 : f32 to vector<3x256xf32>
    %237 = arith.select %235, %214, %236 : vector<3x256xi1>, vector<3x256xf32>
    %238 = arith.truncf %237 : vector<3x256xf32> to vector<3x256xbf16>
    %c7 = arith.constant 7 : index
    %c0_108 = arith.constant 0 : index
    %c0_109 = arith.constant 0 : index
    %239 = vector.load %arg2[%c7, %c0_108, %c0_109] : memref<9x8x3xbf16, #tpu.memory_space<vmem>>, vector<1x8x3xbf16>
    %240 = vector.shape_cast %239 : vector<1x8x3xbf16> to vector<8x3xbf16>
    %cst_110 = arith.constant dense<0.000000e+00> : vector<8x256xf32>
    %241 = tpu.matmul %240, %238, %cst_110 {dimension_numbers = #tpu.dot_dimension_numbers<[1], [0], [0], [1], [0, 0, 1, 1], [], []>} : vector<8x3xbf16>, vector<3x256xbf16>, vector<8x256xf32> -> vector<8x256xf32>
    %242 = arith.addf %213, %241 : vector<8x256xf32>
    %c0_111 = arith.constant 0 : index
    %c34 = arith.constant 34 : index
    %243 = vector.load %arg24[%c0_111, %c34] : memref<32x290xf32, #tpu.memory_space<vmem>>, vector<3x256xf32>
    %c1_i32_112 = arith.constant 1 : i32
    %244 = vector.broadcast %c1_i32_112 : i32 to vector<1x256xi32>
    %245 = arith.addi %6, %244 : vector<1x256xi32>
    %c0_i32_113 = arith.constant 0 : i32
    %246 = vector.broadcast %c0_i32_113 : i32 to vector<1x256xi32>
    %247 = arith.cmpi sge, %245, %246 : vector<1x256xi32>
    %c1_i32_114 = arith.constant 1 : i32
    %248 = vector.broadcast %c1_i32_114 : i32 to vector<1x256xi32>
    %249 = arith.addi %6, %248 : vector<1x256xi32>
    %c16_i32_115 = arith.constant 16 : i32
    %250 = vector.broadcast %c16_i32_115 : i32 to vector<1x256xi32>
    %251 = arith.cmpi slt, %249, %250 : vector<1x256xi32>
    %252 = arith.andi %247, %251 : vector<1x256xi1>
    %c1_i32_116 = arith.constant 1 : i32
    %253 = vector.broadcast %c1_i32_116 : i32 to vector<1x256xi32>
    %254 = arith.addi %8, %253 : vector<1x256xi32>
    %c0_i32_117 = arith.constant 0 : i32
    %255 = vector.broadcast %c0_i32_117 : i32 to vector<1x256xi32>
    %256 = arith.cmpi sge, %254, %255 : vector<1x256xi32>
    %257 = arith.andi %252, %256 : vector<1x256xi1>
    %c1_i32_118 = arith.constant 1 : i32
    %258 = vector.broadcast %c1_i32_118 : i32 to vector<1x256xi32>
    %259 = arith.addi %8, %258 : vector<1x256xi32>
    %c16_i32_119 = arith.constant 16 : i32
    %260 = vector.broadcast %c16_i32_119 : i32 to vector<1x256xi32>
    %261 = arith.cmpi slt, %259, %260 : vector<1x256xi32>
    %262 = arith.andi %257, %261 : vector<1x256xi1>
    %cst_120 = arith.constant 0.000000e+00 : f32
    %263 = vector.shape_cast %262 : vector<1x256xi1> to vector<1x256xi1>
    %264 = vector.broadcast %263 : vector<1x256xi1> to vector<3x256xi1>
    %265 = vector.broadcast %cst_120 : f32 to vector<3x256xf32>
    %266 = arith.select %264, %243, %265 : vector<3x256xi1>, vector<3x256xf32>
    %267 = arith.truncf %266 : vector<3x256xf32> to vector<3x256xbf16>
    %c8 = arith.constant 8 : index
    %c0_121 = arith.constant 0 : index
    %c0_122 = arith.constant 0 : index
    %268 = vector.load %arg2[%c8, %c0_121, %c0_122] : memref<9x8x3xbf16, #tpu.memory_space<vmem>>, vector<1x8x3xbf16>
    %269 = vector.shape_cast %268 : vector<1x8x3xbf16> to vector<8x3xbf16>
    %cst_123 = arith.constant dense<0.000000e+00> : vector<8x256xf32>
    %270 = tpu.matmul %269, %267, %cst_123 {dimension_numbers = #tpu.dot_dimension_numbers<[1], [0], [0], [1], [0, 0, 1, 1], [], []>} : vector<8x3xbf16>, vector<3x256xbf16>, vector<8x256xf32> -> vector<8x256xf32>
    %271 = arith.addf %242, %270 : vector<8x256xf32>
    %c0_124 = arith.constant 0 : index
    %c0_125 = arith.constant 0 : index
    %272 = vector.load %arg3[%c0_124, %c0_125] : memref<8x1xf32, #tpu.memory_space<vmem>>, vector<8x1xf32>
    %273 = vector.broadcast %272 : vector<8x1xf32> to vector<8x256xf32>
    %274 = arith.addf %271, %273 : vector<8x256xf32>
    %cst_126 = arith.constant 0.000000e+00 : f32
    %275 = vector.broadcast %cst_126 : f32 to vector<8x256xf32>
    %276 = arith.maximumf %274, %275 : vector<8x256xf32>
    %c0_127 = arith.constant 0 : index
    %c0_128 = arith.constant 0 : index
    %277 = vector.load %arg19[%c0_127, %c0_128] : memref<256x64xf32, #tpu.memory_space<vmem>>, vector<256x64xf32>
    %cst_129 = arith.constant dense<0.000000e+00> : vector<8x64xf32>
    %278 = tpu.matmul %276, %277, %cst_129 {dimension_numbers = #tpu.dot_dimension_numbers<[1], [0], [0], [1], [0, 0, 1, 1], [], []>} : vector<8x256xf32>, vector<256x64xf32>, vector<8x64xf32> -> vector<8x64xf32>
    %279 = tpu.iota {dimensions = array<i32: 1>} : vector<1x64xi32>
    %c3_i32 = arith.constant 3 : i32
    %280 = vector.broadcast %c3_i32 : i32 to vector<1x64xi32>
    %281 = arith.shrsi %279, %280 : vector<1x64xi32>
    %c7_i32 = arith.constant 7 : i32
    %282 = vector.broadcast %c7_i32 : i32 to vector<1x64xi32>
    %283 = arith.andi %279, %282 : vector<1x64xi32>
    %cst_130 = arith.constant 0.000000e+00 : f32
    %284 = vector.broadcast %cst_130 : f32 to vector<16x64xf32>
    %c0_131 = arith.constant 0 : index
    %c9 = arith.constant 9 : index
    %285 = vector.load %arg24[%c0_131, %c9] : memref<32x290xf32, #tpu.memory_space<vmem>>, vector<8x64xf32>
    tpu.vector_store %arg24[%c0_131, %c9], %278 {strides = array<i32>} : memref<32x290xf32, #tpu.memory_space<vmem>>, vector<8x64xf32>,
    %c0_132 = arith.constant 0 : index
    %c0_133 = arith.constant 0 : index
    %286 = vector.load %arg24[%c0_132, %c0_133] : memref<32x290xf32, #tpu.memory_space<vmem>>, vector<8x64xf32>
    %c-1_i32_134 = arith.constant -1 : i32
    %287 = vector.broadcast %c-1_i32_134 : i32 to vector<1x64xi32>
    %288 = arith.addi %281, %287 : vector<1x64xi32>
    %c0_i32_135 = arith.constant 0 : i32
    %289 = vector.broadcast %c0_i32_135 : i32 to vector<1x64xi32>
    %290 = arith.cmpi sge, %288, %289 : vector<1x64xi32>
    %c-1_i32_136 = arith.constant -1 : i32
    %291 = vector.broadcast %c-1_i32_136 : i32 to vector<1x64xi32>
    %292 = arith.addi %281, %291 : vector<1x64xi32>
    %c8_i32 = arith.constant 8 : i32
    %293 = vector.broadcast %c8_i32 : i32 to vector<1x64xi32>
    %294 = arith.cmpi slt, %292, %293 : vector<1x64xi32>
    %295 = arith.andi %290, %294 : vector<1x64xi1>
    %c-1_i32_137 = arith.constant -1 : i32
    %296 = vector.broadcast %c-1_i32_137 : i32 to vector<1x64xi32>
    %297 = arith.addi %283, %296 : vector<1x64xi32>
    %c0_i32_138 = arith.constant 0 : i32
    %298 = vector.broadcast %c0_i32_138 : i32 to vector<1x64xi32>
    %299 = arith.cmpi sge, %297, %298 : vector<1x64xi32>
    %300 = arith.andi %295, %299 : vector<1x64xi1>
    %c-1_i32_139 = arith.constant -1 : i32
    %301 = vector.broadcast %c-1_i32_139 : i32 to vector<1x64xi32>
    %302 = arith.addi %283, %301 : vector<1x64xi32>
    %c8_i32_140 = arith.constant 8 : i32
    %303 = vector.broadcast %c8_i32_140 : i32 to vector<1x64xi32>
    %304 = arith.cmpi slt, %302, %303 : vector<1x64xi32>
    %305 = arith.andi %300, %304 : vector<1x64xi1>
    %cst_141 = arith.constant 0.000000e+00 : f32
    %306 = vector.shape_cast %305 : vector<1x64xi1> to vector<1x64xi1>
    %307 = vector.broadcast %306 : vector<1x64xi1> to vector<8x64xi1>
    %308 = vector.broadcast %cst_141 : f32 to vector<8x64xf32>
    %309 = arith.select %307, %286, %308 : vector<8x64xi1>, vector<8x64xf32>
    %310 = arith.truncf %309 : vector<8x64xf32> to vector<8x64xbf16>
    %c0_142 = arith.constant 0 : index
    %c0_143 = arith.constant 0 : index
    %c0_144 = arith.constant 0 : index
    %311 = vector.load %arg4[%c0_142, %c0_143, %c0_144] : memref<9x16x8xbf16, #tpu.memory_space<vmem>>, vector<1x16x8xbf16>
    %312 = vector.shape_cast %311 : vector<1x16x8xbf16> to vector<16x8xbf16>
    %cst_145 = arith.constant dense<0.000000e+00> : vector<16x64xf32>
    %313 = tpu.matmul %312, %310, %cst_145 {dimension_numbers = #tpu.dot_dimension_numbers<[1], [0], [0], [1], [0, 0, 1, 1], [], []>} : vector<16x8xbf16>, vector<8x64xbf16>, vector<16x64xf32> -> vector<16x64xf32>
    %314 = arith.addf %284, %313 : vector<16x64xf32>
    %c0_146 = arith.constant 0 : index
    %c1_147 = arith.constant 1 : index
    %315 = vector.load %arg24[%c0_146, %c1_147] : memref<32x290xf32, #tpu.memory_space<vmem>>, vector<8x64xf32>
    %c-1_i32_148 = arith.constant -1 : i32
    %316 = vector.broadcast %c-1_i32_148 : i32 to vector<1x64xi32>
    %317 = arith.addi %281, %316 : vector<1x64xi32>
    %c0_i32_149 = arith.constant 0 : i32
    %318 = vector.broadcast %c0_i32_149 : i32 to vector<1x64xi32>
    %319 = arith.cmpi sge, %317, %318 : vector<1x64xi32>
    %c-1_i32_150 = arith.constant -1 : i32
    %320 = vector.broadcast %c-1_i32_150 : i32 to vector<1x64xi32>
    %321 = arith.addi %281, %320 : vector<1x64xi32>
    %c8_i32_151 = arith.constant 8 : i32
    %322 = vector.broadcast %c8_i32_151 : i32 to vector<1x64xi32>
    %323 = arith.cmpi slt, %321, %322 : vector<1x64xi32>
    %324 = arith.andi %319, %323 : vector<1x64xi1>
    %c0_i32_152 = arith.constant 0 : i32
    %325 = vector.broadcast %c0_i32_152 : i32 to vector<1x64xi32>
    %326 = arith.addi %283, %325 : vector<1x64xi32>
    %c0_i32_153 = arith.constant 0 : i32
    %327 = vector.broadcast %c0_i32_153 : i32 to vector<1x64xi32>
    %328 = arith.cmpi sge, %326, %327 : vector<1x64xi32>
    %329 = arith.andi %324, %328 : vector<1x64xi1>
    %c0_i32_154 = arith.constant 0 : i32
    %330 = vector.broadcast %c0_i32_154 : i32 to vector<1x64xi32>
    %331 = arith.addi %283, %330 : vector<1x64xi32>
    %c8_i32_155 = arith.constant 8 : i32
    %332 = vector.broadcast %c8_i32_155 : i32 to vector<1x64xi32>
    %333 = arith.cmpi slt, %331, %332 : vector<1x64xi32>
    %334 = arith.andi %329, %333 : vector<1x64xi1>
    %cst_156 = arith.constant 0.000000e+00 : f32
    %335 = vector.shape_cast %334 : vector<1x64xi1> to vector<1x64xi1>
    %336 = vector.broadcast %335 : vector<1x64xi1> to vector<8x64xi1>
    %337 = vector.broadcast %cst_156 : f32 to vector<8x64xf32>
    %338 = arith.select %336, %315, %337 : vector<8x64xi1>, vector<8x64xf32>
    %339 = arith.truncf %338 : vector<8x64xf32> to vector<8x64xbf16>
    %c1_157 = arith.constant 1 : index
    %c0_158 = arith.constant 0 : index
    %c0_159 = arith.constant 0 : index
    %340 = vector.load %arg4[%c1_157, %c0_158, %c0_159] : memref<9x16x8xbf16, #tpu.memory_space<vmem>>, vector<1x16x8xbf16>
    %341 = vector.shape_cast %340 : vector<1x16x8xbf16> to vector<16x8xbf16>
    %cst_160 = arith.constant dense<0.000000e+00> : vector<16x64xf32>
    %342 = tpu.matmul %341, %339, %cst_160 {dimension_numbers = #tpu.dot_dimension_numbers<[1], [0], [0], [1], [0, 0, 1, 1], [], []>} : vector<16x8xbf16>, vector<8x64xbf16>, vector<16x64xf32> -> vector<16x64xf32>
    %343 = arith.addf %314, %342 : vector<16x64xf32>
    %c0_161 = arith.constant 0 : index
    %c2_162 = arith.constant 2 : index
    %344 = vector.load %arg24[%c0_161, %c2_162] : memref<32x290xf32, #tpu.memory_space<vmem>>, vector<8x64xf32>
    %c-1_i32_163 = arith.constant -1 : i32
    %345 = vector.broadcast %c-1_i32_163 : i32 to vector<1x64xi32>
    %346 = arith.addi %281, %345 : vector<1x64xi32>
    %c0_i32_164 = arith.constant 0 : i32
    %347 = vector.broadcast %c0_i32_164 : i32 to vector<1x64xi32>
    %348 = arith.cmpi sge, %346, %347 : vector<1x64xi32>
    %c-1_i32_165 = arith.constant -1 : i32
    %349 = vector.broadcast %c-1_i32_165 : i32 to vector<1x64xi32>
    %350 = arith.addi %281, %349 : vector<1x64xi32>
    %c8_i32_166 = arith.constant 8 : i32
    %351 = vector.broadcast %c8_i32_166 : i32 to vector<1x64xi32>
    %352 = arith.cmpi slt, %350, %351 : vector<1x64xi32>
    %353 = arith.andi %348, %352 : vector<1x64xi1>
    %c1_i32_167 = arith.constant 1 : i32
    %354 = vector.broadcast %c1_i32_167 : i32 to vector<1x64xi32>
    %355 = arith.addi %283, %354 : vector<1x64xi32>
    %c0_i32_168 = arith.constant 0 : i32
    %356 = vector.broadcast %c0_i32_168 : i32 to vector<1x64xi32>
    %357 = arith.cmpi sge, %355, %356 : vector<1x64xi32>
    %358 = arith.andi %353, %357 : vector<1x64xi1>
    %c1_i32_169 = arith.constant 1 : i32
    %359 = vector.broadcast %c1_i32_169 : i32 to vector<1x64xi32>
    %360 = arith.addi %283, %359 : vector<1x64xi32>
    %c8_i32_170 = arith.constant 8 : i32
    %361 = vector.broadcast %c8_i32_170 : i32 to vector<1x64xi32>
    %362 = arith.cmpi slt, %360, %361 : vector<1x64xi32>
    %363 = arith.andi %358, %362 : vector<1x64xi1>
    %cst_171 = arith.constant 0.000000e+00 : f32
    %364 = vector.shape_cast %363 : vector<1x64xi1> to vector<1x64xi1>
    %365 = vector.broadcast %364 : vector<1x64xi1> to vector<8x64xi1>
    %366 = vector.broadcast %cst_171 : f32 to vector<8x64xf32>
    %367 = arith.select %365, %344, %366 : vector<8x64xi1>, vector<8x64xf32>
    %368 = arith.truncf %367 : vector<8x64xf32> to vector<8x64xbf16>
    %c2_172 = arith.constant 2 : index
    %c0_173 = arith.constant 0 : index
    %c0_174 = arith.constant 0 : index
    %369 = vector.load %arg4[%c2_172, %c0_173, %c0_174] : memref<9x16x8xbf16, #tpu.memory_space<vmem>>, vector<1x16x8xbf16>
    %370 = vector.shape_cast %369 : vector<1x16x8xbf16> to vector<16x8xbf16>
    %cst_175 = arith.constant dense<0.000000e+00> : vector<16x64xf32>
    %371 = tpu.matmul %370, %368, %cst_175 {dimension_numbers = #tpu.dot_dimension_numbers<[1], [0], [0], [1], [0, 0, 1, 1], [], []>} : vector<16x8xbf16>, vector<8x64xbf16>, vector<16x64xf32> -> vector<16x64xf32>
    %372 = arith.addf %343, %371 : vector<16x64xf32>
    %c0_176 = arith.constant 0 : index
    %c8_177 = arith.constant 8 : index
    %373 = vector.load %arg24[%c0_176, %c8_177] : memref<32x290xf32, #tpu.memory_space<vmem>>, vector<8x64xf32>
    %c0_i32_178 = arith.constant 0 : i32
    %374 = vector.broadcast %c0_i32_178 : i32 to vector<1x64xi32>
    %375 = arith.addi %281, %374 : vector<1x64xi32>
    %c0_i32_179 = arith.constant 0 : i32
    %376 = vector.broadcast %c0_i32_179 : i32 to vector<1x64xi32>
    %377 = arith.cmpi sge, %375, %376 : vector<1x64xi32>
    %c0_i32_180 = arith.constant 0 : i32
    %378 = vector.broadcast %c0_i32_180 : i32 to vector<1x64xi32>
    %379 = arith.addi %281, %378 : vector<1x64xi32>
    %c8_i32_181 = arith.constant 8 : i32
    %380 = vector.broadcast %c8_i32_181 : i32 to vector<1x64xi32>
    %381 = arith.cmpi slt, %379, %380 : vector<1x64xi32>
    %382 = arith.andi %377, %381 : vector<1x64xi1>
    %c-1_i32_182 = arith.constant -1 : i32
    %383 = vector.broadcast %c-1_i32_182 : i32 to vector<1x64xi32>
    %384 = arith.addi %283, %383 : vector<1x64xi32>
    %c0_i32_183 = arith.constant 0 : i32
    %385 = vector.broadcast %c0_i32_183 : i32 to vector<1x64xi32>
    %386 = arith.cmpi sge, %384, %385 : vector<1x64xi32>
    %387 = arith.andi %382, %386 : vector<1x64xi1>
    %c-1_i32_184 = arith.constant -1 : i32
    %388 = vector.broadcast %c-1_i32_184 : i32 to vector<1x64xi32>
    %389 = arith.addi %283, %388 : vector<1x64xi32>
    %c8_i32_185 = arith.constant 8 : i32
    %390 = vector.broadcast %c8_i32_185 : i32 to vector<1x64xi32>
    %391 = arith.cmpi slt, %389, %390 : vector<1x64xi32>
    %392 = arith.andi %387, %391 : vector<1x64xi1>
    %cst_186 = arith.constant 0.000000e+00 : f32
    %393 = vector.shape_cast %392 : vector<1x64xi1> to vector<1x64xi1>
    %394 = vector.broadcast %393 : vector<1x64xi1> to vector<8x64xi1>
    %395 = vector.broadcast %cst_186 : f32 to vector<8x64xf32>
    %396 = arith.select %394, %373, %395 : vector<8x64xi1>, vector<8x64xf32>
    %397 = arith.truncf %396 : vector<8x64xf32> to vector<8x64xbf16>
    %c3_187 = arith.constant 3 : index
    %c0_188 = arith.constant 0 : index
    %c0_189 = arith.constant 0 : index
    %398 = vector.load %arg4[%c3_187, %c0_188, %c0_189] : memref<9x16x8xbf16, #tpu.memory_space<vmem>>, vector<1x16x8xbf16>
    %399 = vector.shape_cast %398 : vector<1x16x8xbf16> to vector<16x8xbf16>
    %cst_190 = arith.constant dense<0.000000e+00> : vector<16x64xf32>
    %400 = tpu.matmul %399, %397, %cst_190 {dimension_numbers = #tpu.dot_dimension_numbers<[1], [0], [0], [1], [0, 0, 1, 1], [], []>} : vector<16x8xbf16>, vector<8x64xbf16>, vector<16x64xf32> -> vector<16x64xf32>
    %401 = arith.addf %372, %400 : vector<16x64xf32>
    %c0_191 = arith.constant 0 : index
    %c9_192 = arith.constant 9 : index
    %402 = vector.load %arg24[%c0_191, %c9_192] : memref<32x290xf32, #tpu.memory_space<vmem>>, vector<8x64xf32>
    %c0_i32_193 = arith.constant 0 : i32
    %403 = vector.broadcast %c0_i32_193 : i32 to vector<1x64xi32>
    %404 = arith.addi %281, %403 : vector<1x64xi32>
    %c0_i32_194 = arith.constant 0 : i32
    %405 = vector.broadcast %c0_i32_194 : i32 to vector<1x64xi32>
    %406 = arith.cmpi sge, %404, %405 : vector<1x64xi32>
    %c0_i32_195 = arith.constant 0 : i32
    %407 = vector.broadcast %c0_i32_195 : i32 to vector<1x64xi32>
    %408 = arith.addi %281, %407 : vector<1x64xi32>
    %c8_i32_196 = arith.constant 8 : i32
    %409 = vector.broadcast %c8_i32_196 : i32 to vector<1x64xi32>
    %410 = arith.cmpi slt, %408, %409 : vector<1x64xi32>
    %411 = arith.andi %406, %410 : vector<1x64xi1>
    %c0_i32_197 = arith.constant 0 : i32
    %412 = vector.broadcast %c0_i32_197 : i32 to vector<1x64xi32>
    %413 = arith.addi %283, %412 : vector<1x64xi32>
    %c0_i32_198 = arith.constant 0 : i32
    %414 = vector.broadcast %c0_i32_198 : i32 to vector<1x64xi32>
    %415 = arith.cmpi sge, %413, %414 : vector<1x64xi32>
    %416 = arith.andi %411, %415 : vector<1x64xi1>
    %c0_i32_199 = arith.constant 0 : i32
    %417 = vector.broadcast %c0_i32_199 : i32 to vector<1x64xi32>
    %418 = arith.addi %283, %417 : vector<1x64xi32>
    %c8_i32_200 = arith.constant 8 : i32
    %419 = vector.broadcast %c8_i32_200 : i32 to vector<1x64xi32>
    %420 = arith.cmpi slt, %418, %419 : vector<1x64xi32>
    %421 = arith.andi %416, %420 : vector<1x64xi1>
    %cst_201 = arith.constant 0.000000e+00 : f32
    %422 = vector.shape_cast %421 : vector<1x64xi1> to vector<1x64xi1>
    %423 = vector.broadcast %422 : vector<1x64xi1> to vector<8x64xi1>
    %424 = vector.broadcast %cst_201 : f32 to vector<8x64xf32>
    %425 = arith.select %423, %402, %424 : vector<8x64xi1>, vector<8x64xf32>
    %426 = arith.truncf %425 : vector<8x64xf32> to vector<8x64xbf16>
    %c4_202 = arith.constant 4 : index
    %c0_203 = arith.constant 0 : index
    %c0_204 = arith.constant 0 : index
    %427 = vector.load %arg4[%c4_202, %c0_203, %c0_204] : memref<9x16x8xbf16, #tpu.memory_space<vmem>>, vector<1x16x8xbf16>
    %428 = vector.shape_cast %427 : vector<1x16x8xbf16> to vector<16x8xbf16>
    %cst_205 = arith.constant dense<0.000000e+00> : vector<16x64xf32>
    %429 = tpu.matmul %428, %426, %cst_205 {dimension_numbers = #tpu.dot_dimension_numbers<[1], [0], [0], [1], [0, 0, 1, 1], [], []>} : vector<16x8xbf16>, vector<8x64xbf16>, vector<16x64xf32> -> vector<16x64xf32>
    %430 = arith.addf %401, %429 : vector<16x64xf32>
    %c0_206 = arith.constant 0 : index
    %c10 = arith.constant 10 : index
    %431 = vector.load %arg24[%c0_206, %c10] : memref<32x290xf32, #tpu.memory_space<vmem>>, vector<8x64xf32>
    %c0_i32_207 = arith.constant 0 : i32
    %432 = vector.broadcast %c0_i32_207 : i32 to vector<1x64xi32>
    %433 = arith.addi %281, %432 : vector<1x64xi32>
    %c0_i32_208 = arith.constant 0 : i32
    %434 = vector.broadcast %c0_i32_208 : i32 to vector<1x64xi32>
    %435 = arith.cmpi sge, %433, %434 : vector<1x64xi32>
    %c0_i32_209 = arith.constant 0 : i32
    %436 = vector.broadcast %c0_i32_209 : i32 to vector<1x64xi32>
    %437 = arith.addi %281, %436 : vector<1x64xi32>
    %c8_i32_210 = arith.constant 8 : i32
    %438 = vector.broadcast %c8_i32_210 : i32 to vector<1x64xi32>
    %439 = arith.cmpi slt, %437, %438 : vector<1x64xi32>
    %440 = arith.andi %435, %439 : vector<1x64xi1>
    %c1_i32_211 = arith.constant 1 : i32
    %441 = vector.broadcast %c1_i32_211 : i32 to vector<1x64xi32>
    %442 = arith.addi %283, %441 : vector<1x64xi32>
    %c0_i32_212 = arith.constant 0 : i32
    %443 = vector.broadcast %c0_i32_212 : i32 to vector<1x64xi32>
    %444 = arith.cmpi sge, %442, %443 : vector<1x64xi32>
    %445 = arith.andi %440, %444 : vector<1x64xi1>
    %c1_i32_213 = arith.constant 1 : i32
    %446 = vector.broadcast %c1_i32_213 : i32 to vector<1x64xi32>
    %447 = arith.addi %283, %446 : vector<1x64xi32>
    %c8_i32_214 = arith.constant 8 : i32
    %448 = vector.broadcast %c8_i32_214 : i32 to vector<1x64xi32>
    %449 = arith.cmpi slt, %447, %448 : vector<1x64xi32>
    %450 = arith.andi %445, %449 : vector<1x64xi1>
    %cst_215 = arith.constant 0.000000e+00 : f32
    %451 = vector.shape_cast %450 : vector<1x64xi1> to vector<1x64xi1>
    %452 = vector.broadcast %451 : vector<1x64xi1> to vector<8x64xi1>
    %453 = vector.broadcast %cst_215 : f32 to vector<8x64xf32>
    %454 = arith.select %452, %431, %453 : vector<8x64xi1>, vector<8x64xf32>
    %455 = arith.truncf %454 : vector<8x64xf32> to vector<8x64xbf16>
    %c5_216 = arith.constant 5 : index
    %c0_217 = arith.constant 0 : index
    %c0_218 = arith.constant 0 : index
    %456 = vector.load %arg4[%c5_216, %c0_217, %c0_218] : memref<9x16x8xbf16, #tpu.memory_space<vmem>>, vector<1x16x8xbf16>
    %457 = vector.shape_cast %456 : vector<1x16x8xbf16> to vector<16x8xbf16>
    %cst_219 = arith.constant dense<0.000000e+00> : vector<16x64xf32>
    %458 = tpu.matmul %457, %455, %cst_219 {dimension_numbers = #tpu.dot_dimension_numbers<[1], [0], [0], [1], [0, 0, 1, 1], [], []>} : vector<16x8xbf16>, vector<8x64xbf16>, vector<16x64xf32> -> vector<16x64xf32>
    %459 = arith.addf %430, %458 : vector<16x64xf32>
    %c0_220 = arith.constant 0 : index
    %c16_221 = arith.constant 16 : index
    %460 = vector.load %arg24[%c0_220, %c16_221] : memref<32x290xf32, #tpu.memory_space<vmem>>, vector<8x64xf32>
    %c1_i32_222 = arith.constant 1 : i32
    %461 = vector.broadcast %c1_i32_222 : i32 to vector<1x64xi32>
    %462 = arith.addi %281, %461 : vector<1x64xi32>
    %c0_i32_223 = arith.constant 0 : i32
    %463 = vector.broadcast %c0_i32_223 : i32 to vector<1x64xi32>
    %464 = arith.cmpi sge, %462, %463 : vector<1x64xi32>
    %c1_i32_224 = arith.constant 1 : i32
    %465 = vector.broadcast %c1_i32_224 : i32 to vector<1x64xi32>
    %466 = arith.addi %281, %465 : vector<1x64xi32>
    %c8_i32_225 = arith.constant 8 : i32
    %467 = vector.broadcast %c8_i32_225 : i32 to vector<1x64xi32>
    %468 = arith.cmpi slt, %466, %467 : vector<1x64xi32>
    %469 = arith.andi %464, %468 : vector<1x64xi1>
    %c-1_i32_226 = arith.constant -1 : i32
    %470 = vector.broadcast %c-1_i32_226 : i32 to vector<1x64xi32>
    %471 = arith.addi %283, %470 : vector<1x64xi32>
    %c0_i32_227 = arith.constant 0 : i32
    %472 = vector.broadcast %c0_i32_227 : i32 to vector<1x64xi32>
    %473 = arith.cmpi sge, %471, %472 : vector<1x64xi32>
    %474 = arith.andi %469, %473 : vector<1x64xi1>
    %c-1_i32_228 = arith.constant -1 : i32
    %475 = vector.broadcast %c-1_i32_228 : i32 to vector<1x64xi32>
    %476 = arith.addi %283, %475 : vector<1x64xi32>
    %c8_i32_229 = arith.constant 8 : i32
    %477 = vector.broadcast %c8_i32_229 : i32 to vector<1x64xi32>
    %478 = arith.cmpi slt, %476, %477 : vector<1x64xi32>
    %479 = arith.andi %474, %478 : vector<1x64xi1>
    %cst_230 = arith.constant 0.000000e+00 : f32
    %480 = vector.shape_cast %479 : vector<1x64xi1> to vector<1x64xi1>
    %481 = vector.broadcast %480 : vector<1x64xi1> to vector<8x64xi1>
    %482 = vector.broadcast %cst_230 : f32 to vector<8x64xf32>
    %483 = arith.select %481, %460, %482 : vector<8x64xi1>, vector<8x64xf32>
    %484 = arith.truncf %483 : vector<8x64xf32> to vector<8x64xbf16>
    %c6_231 = arith.constant 6 : index
    %c0_232 = arith.constant 0 : index
    %c0_233 = arith.constant 0 : index
    %485 = vector.load %arg4[%c6_231, %c0_232, %c0_233] : memref<9x16x8xbf16, #tpu.memory_space<vmem>>, vector<1x16x8xbf16>
    %486 = vector.shape_cast %485 : vector<1x16x8xbf16> to vector<16x8xbf16>
    %cst_234 = arith.constant dense<0.000000e+00> : vector<16x64xf32>
    %487 = tpu.matmul %486, %484, %cst_234 {dimension_numbers = #tpu.dot_dimension_numbers<[1], [0], [0], [1], [0, 0, 1, 1], [], []>} : vector<16x8xbf16>, vector<8x64xbf16>, vector<16x64xf32> -> vector<16x64xf32>
    %488 = arith.addf %459, %487 : vector<16x64xf32>
    %c0_235 = arith.constant 0 : index
    %c17_236 = arith.constant 17 : index
    %489 = vector.load %arg24[%c0_235, %c17_236] : memref<32x290xf32, #tpu.memory_space<vmem>>, vector<8x64xf32>
    %c1_i32_237 = arith.constant 1 : i32
    %490 = vector.broadcast %c1_i32_237 : i32 to vector<1x64xi32>
    %491 = arith.addi %281, %490 : vector<1x64xi32>
    %c0_i32_238 = arith.constant 0 : i32
    %492 = vector.broadcast %c0_i32_238 : i32 to vector<1x64xi32>
    %493 = arith.cmpi sge, %491, %492 : vector<1x64xi32>
    %c1_i32_239 = arith.constant 1 : i32
    %494 = vector.broadcast %c1_i32_239 : i32 to vector<1x64xi32>
    %495 = arith.addi %281, %494 : vector<1x64xi32>
    %c8_i32_240 = arith.constant 8 : i32
    %496 = vector.broadcast %c8_i32_240 : i32 to vector<1x64xi32>
    %497 = arith.cmpi slt, %495, %496 : vector<1x64xi32>
    %498 = arith.andi %493, %497 : vector<1x64xi1>
    %c0_i32_241 = arith.constant 0 : i32
    %499 = vector.broadcast %c0_i32_241 : i32 to vector<1x64xi32>
    %500 = arith.addi %283, %499 : vector<1x64xi32>
    %c0_i32_242 = arith.constant 0 : i32
    %501 = vector.broadcast %c0_i32_242 : i32 to vector<1x64xi32>
    %502 = arith.cmpi sge, %500, %501 : vector<1x64xi32>
    %503 = arith.andi %498, %502 : vector<1x64xi1>
    %c0_i32_243 = arith.constant 0 : i32
    %504 = vector.broadcast %c0_i32_243 : i32 to vector<1x64xi32>
    %505 = arith.addi %283, %504 : vector<1x64xi32>
    %c8_i32_244 = arith.constant 8 : i32
    %506 = vector.broadcast %c8_i32_244 : i32 to vector<1x64xi32>
    %507 = arith.cmpi slt, %505, %506 : vector<1x64xi32>
    %508 = arith.andi %503, %507 : vector<1x64xi1>
    %cst_245 = arith.constant 0.000000e+00 : f32
    %509 = vector.shape_cast %508 : vector<1x64xi1> to vector<1x64xi1>
    %510 = vector.broadcast %509 : vector<1x64xi1> to vector<8x64xi1>
    %511 = vector.broadcast %cst_245 : f32 to vector<8x64xf32>
    %512 = arith.select %510, %489, %511 : vector<8x64xi1>, vector<8x64xf32>
    %513 = arith.truncf %512 : vector<8x64xf32> to vector<8x64xbf16>
    %c7_246 = arith.constant 7 : index
    %c0_247 = arith.constant 0 : index
    %c0_248 = arith.constant 0 : index
    %514 = vector.load %arg4[%c7_246, %c0_247, %c0_248] : memref<9x16x8xbf16, #tpu.memory_space<vmem>>, vector<1x16x8xbf16>
    %515 = vector.shape_cast %514 : vector<1x16x8xbf16> to vector<16x8xbf16>
    %cst_249 = arith.constant dense<0.000000e+00> : vector<16x64xf32>
    %516 = tpu.matmul %515, %513, %cst_249 {dimension_numbers = #tpu.dot_dimension_numbers<[1], [0], [0], [1], [0, 0, 1, 1], [], []>} : vector<16x8xbf16>, vector<8x64xbf16>, vector<16x64xf32> -> vector<16x64xf32>
    %517 = arith.addf %488, %516 : vector<16x64xf32>
    %c0_250 = arith.constant 0 : index
    %c18_251 = arith.constant 18 : index
    %518 = vector.load %arg24[%c0_250, %c18_251] : memref<32x290xf32, #tpu.memory_space<vmem>>, vector<8x64xf32>
    %c1_i32_252 = arith.constant 1 : i32
    %519 = vector.broadcast %c1_i32_252 : i32 to vector<1x64xi32>
    %520 = arith.addi %281, %519 : vector<1x64xi32>
    %c0_i32_253 = arith.constant 0 : i32
    %521 = vector.broadcast %c0_i32_253 : i32 to vector<1x64xi32>
    %522 = arith.cmpi sge, %520, %521 : vector<1x64xi32>
    %c1_i32_254 = arith.constant 1 : i32
    %523 = vector.broadcast %c1_i32_254 : i32 to vector<1x64xi32>
    %524 = arith.addi %281, %523 : vector<1x64xi32>
    %c8_i32_255 = arith.constant 8 : i32
    %525 = vector.broadcast %c8_i32_255 : i32 to vector<1x64xi32>
    %526 = arith.cmpi slt, %524, %525 : vector<1x64xi32>
    %527 = arith.andi %522, %526 : vector<1x64xi1>
    %c1_i32_256 = arith.constant 1 : i32
    %528 = vector.broadcast %c1_i32_256 : i32 to vector<1x64xi32>
    %529 = arith.addi %283, %528 : vector<1x64xi32>
    %c0_i32_257 = arith.constant 0 : i32
    %530 = vector.broadcast %c0_i32_257 : i32 to vector<1x64xi32>
    %531 = arith.cmpi sge, %529, %530 : vector<1x64xi32>
    %532 = arith.andi %527, %531 : vector<1x64xi1>
    %c1_i32_258 = arith.constant 1 : i32
    %533 = vector.broadcast %c1_i32_258 : i32 to vector<1x64xi32>
    %534 = arith.addi %283, %533 : vector<1x64xi32>
    %c8_i32_259 = arith.constant 8 : i32
    %535 = vector.broadcast %c8_i32_259 : i32 to vector<1x64xi32>
    %536 = arith.cmpi slt, %534, %535 : vector<1x64xi32>
    %537 = arith.andi %532, %536 : vector<1x64xi1>
    %cst_260 = arith.constant 0.000000e+00 : f32
    %538 = vector.shape_cast %537 : vector<1x64xi1> to vector<1x64xi1>
    %539 = vector.broadcast %538 : vector<1x64xi1> to vector<8x64xi1>
    %540 = vector.broadcast %cst_260 : f32 to vector<8x64xf32>
    %541 = arith.select %539, %518, %540 : vector<8x64xi1>, vector<8x64xf32>
    %542 = arith.truncf %541 : vector<8x64xf32> to vector<8x64xbf16>
    %c8_261 = arith.constant 8 : index
    %c0_262 = arith.constant 0 : index
    %c0_263 = arith.constant 0 : index
    %543 = vector.load %arg4[%c8_261, %c0_262, %c0_263] : memref<9x16x8xbf16, #tpu.memory_space<vmem>>, vector<1x16x8xbf16>
    %544 = vector.shape_cast %543 : vector<1x16x8xbf16> to vector<16x8xbf16>
    %cst_264 = arith.constant dense<0.000000e+00> : vector<16x64xf32>
    %545 = tpu.matmul %544, %542, %cst_264 {dimension_numbers = #tpu.dot_dimension_numbers<[1], [0], [0], [1], [0, 0, 1, 1], [], []>} : vector<16x8xbf16>, vector<8x64xbf16>, vector<16x64xf32> -> vector<16x64xf32>
    %546 = arith.addf %517, %545 : vector<16x64xf32>
    %c0_265 = arith.constant 0 : index
    %c0_266 = arith.constant 0 : index
    %547 = vector.load %arg5[%c0_265, %c0_266] : memref<16x1xf32, #tpu.memory_space<vmem>>, vector<16x1xf32>
    %548 = vector.broadcast %547 : vector<16x1xf32> to vector<16x64xf32>
    %549 = arith.addf %546, %548 : vector<16x64xf32>
    %cst_267 = arith.constant 0.000000e+00 : f32
    %550 = vector.broadcast %cst_267 : f32 to vector<16x64xf32>
    %551 = arith.maximumf %549, %550 : vector<16x64xf32>
    %c0_268 = arith.constant 0 : index
    %c0_269 = arith.constant 0 : index
    %552 = vector.load %arg20[%c0_268, %c0_269] : memref<64x16xf32, #tpu.memory_space<vmem>>, vector<64x16xf32>
    %cst_270 = arith.constant dense<0.000000e+00> : vector<16x16xf32>
    %553 = tpu.matmul %551, %552, %cst_270 {dimension_numbers = #tpu.dot_dimension_numbers<[1], [0], [0], [1], [0, 0, 1, 1], [], []>} : vector<16x64xf32>, vector<64x16xf32>, vector<16x16xf32> -> vector<16x16xf32>
    %554 = tpu.iota {dimensions = array<i32: 1>} : vector<1x16xi32>
    %c2_i32 = arith.constant 2 : i32
    %555 = vector.broadcast %c2_i32 : i32 to vector<1x16xi32>
    %556 = arith.shrsi %554, %555 : vector<1x16xi32>
    %c3_i32_271 = arith.constant 3 : i32
    %557 = vector.broadcast %c3_i32_271 : i32 to vector<1x16xi32>
    %558 = arith.andi %554, %557 : vector<1x16xi32>
    %cst_272 = arith.constant 0.000000e+00 : f32
    %559 = vector.broadcast %cst_272 : f32 to vector<32x16xf32>
    %c0_273 = arith.constant 0 : index
    %c5_274 = arith.constant 5 : index
    %560 = vector.load %arg24[%c0_273, %c5_274] : memref<32x290xf32, #tpu.memory_space<vmem>>, vector<16x16xf32>
    tpu.vector_store %arg24[%c0_273, %c5_274], %553 {strides = array<i32>} : memref<32x290xf32, #tpu.memory_space<vmem>>, vector<16x16xf32>,
    %c0_275 = arith.constant 0 : index
    %c0_276 = arith.constant 0 : index
    %561 = vector.load %arg24[%c0_275, %c0_276] : memref<32x290xf32, #tpu.memory_space<vmem>>, vector<16x16xf32>
    %c-1_i32_277 = arith.constant -1 : i32
    %562 = vector.broadcast %c-1_i32_277 : i32 to vector<1x16xi32>
    %563 = arith.addi %556, %562 : vector<1x16xi32>
    %c0_i32_278 = arith.constant 0 : i32
    %564 = vector.broadcast %c0_i32_278 : i32 to vector<1x16xi32>
    %565 = arith.cmpi sge, %563, %564 : vector<1x16xi32>
    %c-1_i32_279 = arith.constant -1 : i32
    %566 = vector.broadcast %c-1_i32_279 : i32 to vector<1x16xi32>
    %567 = arith.addi %556, %566 : vector<1x16xi32>
    %c4_i32_280 = arith.constant 4 : i32
    %568 = vector.broadcast %c4_i32_280 : i32 to vector<1x16xi32>
    %569 = arith.cmpi slt, %567, %568 : vector<1x16xi32>
    %570 = arith.andi %565, %569 : vector<1x16xi1>
    %c-1_i32_281 = arith.constant -1 : i32
    %571 = vector.broadcast %c-1_i32_281 : i32 to vector<1x16xi32>
    %572 = arith.addi %558, %571 : vector<1x16xi32>
    %c0_i32_282 = arith.constant 0 : i32
    %573 = vector.broadcast %c0_i32_282 : i32 to vector<1x16xi32>
    %574 = arith.cmpi sge, %572, %573 : vector<1x16xi32>
    %575 = arith.andi %570, %574 : vector<1x16xi1>
    %c-1_i32_283 = arith.constant -1 : i32
    %576 = vector.broadcast %c-1_i32_283 : i32 to vector<1x16xi32>
    %577 = arith.addi %558, %576 : vector<1x16xi32>
    %c4_i32_284 = arith.constant 4 : i32
    %578 = vector.broadcast %c4_i32_284 : i32 to vector<1x16xi32>
    %579 = arith.cmpi slt, %577, %578 : vector<1x16xi32>
    %580 = arith.andi %575, %579 : vector<1x16xi1>
    %cst_285 = arith.constant 0.000000e+00 : f32
    %581 = vector.shape_cast %580 : vector<1x16xi1> to vector<1x16xi1>
    %582 = vector.broadcast %581 : vector<1x16xi1> to vector<16x16xi1>
    %583 = vector.broadcast %cst_285 : f32 to vector<16x16xf32>
    %584 = arith.select %582, %561, %583 : vector<16x16xi1>, vector<16x16xf32>
    %585 = arith.truncf %584 : vector<16x16xf32> to vector<16x16xbf16>
    %c0_286 = arith.constant 0 : index
    %c0_287 = arith.constant 0 : index
    %c0_288 = arith.constant 0 : index
    %586 = vector.load %arg6[%c0_286, %c0_287, %c0_288] : memref<9x32x16xbf16, #tpu.memory_space<vmem>>, vector<1x32x16xbf16>
    %587 = vector.shape_cast %586 : vector<1x32x16xbf16> to vector<32x16xbf16>
    %cst_289 = arith.constant dense<0.000000e+00> : vector<32x16xf32>
    %588 = tpu.matmul %587, %585, %cst_289 {dimension_numbers = #tpu.dot_dimension_numbers<[1], [0], [0], [1], [0, 0, 1, 1], [], []>} : vector<32x16xbf16>, vector<16x16xbf16>, vector<32x16xf32> -> vector<32x16xf32>
    %589 = arith.addf %559, %588 : vector<32x16xf32>
    %c0_290 = arith.constant 0 : index
    %c1_291 = arith.constant 1 : index
    %590 = vector.load %arg24[%c0_290, %c1_291] : memref<32x290xf32, #tpu.memory_space<vmem>>, vector<16x16xf32>
    %c-1_i32_292 = arith.constant -1 : i32
    %591 = vector.broadcast %c-1_i32_292 : i32 to vector<1x16xi32>
    %592 = arith.addi %556, %591 : vector<1x16xi32>
    %c0_i32_293 = arith.constant 0 : i32
    %593 = vector.broadcast %c0_i32_293 : i32 to vector<1x16xi32>
    %594 = arith.cmpi sge, %592, %593 : vector<1x16xi32>
    %c-1_i32_294 = arith.constant -1 : i32
    %595 = vector.broadcast %c-1_i32_294 : i32 to vector<1x16xi32>
    %596 = arith.addi %556, %595 : vector<1x16xi32>
    %c4_i32_295 = arith.constant 4 : i32
    %597 = vector.broadcast %c4_i32_295 : i32 to vector<1x16xi32>
    %598 = arith.cmpi slt, %596, %597 : vector<1x16xi32>
    %599 = arith.andi %594, %598 : vector<1x16xi1>
    %c0_i32_296 = arith.constant 0 : i32
    %600 = vector.broadcast %c0_i32_296 : i32 to vector<1x16xi32>
    %601 = arith.addi %558, %600 : vector<1x16xi32>
    %c0_i32_297 = arith.constant 0 : i32
    %602 = vector.broadcast %c0_i32_297 : i32 to vector<1x16xi32>
    %603 = arith.cmpi sge, %601, %602 : vector<1x16xi32>
    %604 = arith.andi %599, %603 : vector<1x16xi1>
    %c0_i32_298 = arith.constant 0 : i32
    %605 = vector.broadcast %c0_i32_298 : i32 to vector<1x16xi32>
    %606 = arith.addi %558, %605 : vector<1x16xi32>
    %c4_i32_299 = arith.constant 4 : i32
    %607 = vector.broadcast %c4_i32_299 : i32 to vector<1x16xi32>
    %608 = arith.cmpi slt, %606, %607 : vector<1x16xi32>
    %609 = arith.andi %604, %608 : vector<1x16xi1>
    %cst_300 = arith.constant 0.000000e+00 : f32
    %610 = vector.shape_cast %609 : vector<1x16xi1> to vector<1x16xi1>
    %611 = vector.broadcast %610 : vector<1x16xi1> to vector<16x16xi1>
    %612 = vector.broadcast %cst_300 : f32 to vector<16x16xf32>
    %613 = arith.select %611, %590, %612 : vector<16x16xi1>, vector<16x16xf32>
    %614 = arith.truncf %613 : vector<16x16xf32> to vector<16x16xbf16>
    %c1_301 = arith.constant 1 : index
    %c0_302 = arith.constant 0 : index
    %c0_303 = arith.constant 0 : index
    %615 = vector.load %arg6[%c1_301, %c0_302, %c0_303] : memref<9x32x16xbf16, #tpu.memory_space<vmem>>, vector<1x32x16xbf16>
    %616 = vector.shape_cast %615 : vector<1x32x16xbf16> to vector<32x16xbf16>
    %cst_304 = arith.constant dense<0.000000e+00> : vector<32x16xf32>
    %617 = tpu.matmul %616, %614, %cst_304 {dimension_numbers = #tpu.dot_dimension_numbers<[1], [0], [0], [1], [0, 0, 1, 1], [], []>} : vector<32x16xbf16>, vector<16x16xbf16>, vector<32x16xf32> -> vector<32x16xf32>
    %618 = arith.addf %589, %617 : vector<32x16xf32>
    %c0_305 = arith.constant 0 : index
    %c2_306 = arith.constant 2 : index
    %619 = vector.load %arg24[%c0_305, %c2_306] : memref<32x290xf32, #tpu.memory_space<vmem>>, vector<16x16xf32>
    %c-1_i32_307 = arith.constant -1 : i32
    %620 = vector.broadcast %c-1_i32_307 : i32 to vector<1x16xi32>
    %621 = arith.addi %556, %620 : vector<1x16xi32>
    %c0_i32_308 = arith.constant 0 : i32
    %622 = vector.broadcast %c0_i32_308 : i32 to vector<1x16xi32>
    %623 = arith.cmpi sge, %621, %622 : vector<1x16xi32>
    %c-1_i32_309 = arith.constant -1 : i32
    %624 = vector.broadcast %c-1_i32_309 : i32 to vector<1x16xi32>
    %625 = arith.addi %556, %624 : vector<1x16xi32>
    %c4_i32_310 = arith.constant 4 : i32
    %626 = vector.broadcast %c4_i32_310 : i32 to vector<1x16xi32>
    %627 = arith.cmpi slt, %625, %626 : vector<1x16xi32>
    %628 = arith.andi %623, %627 : vector<1x16xi1>
    %c1_i32_311 = arith.constant 1 : i32
    %629 = vector.broadcast %c1_i32_311 : i32 to vector<1x16xi32>
    %630 = arith.addi %558, %629 : vector<1x16xi32>
    %c0_i32_312 = arith.constant 0 : i32
    %631 = vector.broadcast %c0_i32_312 : i32 to vector<1x16xi32>
    %632 = arith.cmpi sge, %630, %631 : vector<1x16xi32>
    %633 = arith.andi %628, %632 : vector<1x16xi1>
    %c1_i32_313 = arith.constant 1 : i32
    %634 = vector.broadcast %c1_i32_313 : i32 to vector<1x16xi32>
    %635 = arith.addi %558, %634 : vector<1x16xi32>
    %c4_i32_314 = arith.constant 4 : i32
    %636 = vector.broadcast %c4_i32_314 : i32 to vector<1x16xi32>
    %637 = arith.cmpi slt, %635, %636 : vector<1x16xi32>
    %638 = arith.andi %633, %637 : vector<1x16xi1>
    %cst_315 = arith.constant 0.000000e+00 : f32
    %639 = vector.shape_cast %638 : vector<1x16xi1> to vector<1x16xi1>
    %640 = vector.broadcast %639 : vector<1x16xi1> to vector<16x16xi1>
    %641 = vector.broadcast %cst_315 : f32 to vector<16x16xf32>
    %642 = arith.select %640, %619, %641 : vector<16x16xi1>, vector<16x16xf32>
    %643 = arith.truncf %642 : vector<16x16xf32> to vector<16x16xbf16>
    %c2_316 = arith.constant 2 : index
    %c0_317 = arith.constant 0 : index
    %c0_318 = arith.constant 0 : index
    %644 = vector.load %arg6[%c2_316, %c0_317, %c0_318] : memref<9x32x16xbf16, #tpu.memory_space<vmem>>, vector<1x32x16xbf16>
    %645 = vector.shape_cast %644 : vector<1x32x16xbf16> to vector<32x16xbf16>
    %cst_319 = arith.constant dense<0.000000e+00> : vector<32x16xf32>
    %646 = tpu.matmul %645, %643, %cst_319 {dimension_numbers = #tpu.dot_dimension_numbers<[1], [0], [0], [1], [0, 0, 1, 1], [], []>} : vector<32x16xbf16>, vector<16x16xbf16>, vector<32x16xf32> -> vector<32x16xf32>
    %647 = arith.addf %618, %646 : vector<32x16xf32>
    %c0_320 = arith.constant 0 : index
    %c4_321 = arith.constant 4 : index
    %648 = vector.load %arg24[%c0_320, %c4_321] : memref<32x290xf32, #tpu.memory_space<vmem>>, vector<16x16xf32>
    %c0_i32_322 = arith.constant 0 : i32
    %649 = vector.broadcast %c0_i32_322 : i32 to vector<1x16xi32>
    %650 = arith.addi %556, %649 : vector<1x16xi32>
    %c0_i32_323 = arith.constant 0 : i32
    %651 = vector.broadcast %c0_i32_323 : i32 to vector<1x16xi32>
    %652 = arith.cmpi sge, %650, %651 : vector<1x16xi32>
    %c0_i32_324 = arith.constant 0 : i32
    %653 = vector.broadcast %c0_i32_324 : i32 to vector<1x16xi32>
    %654 = arith.addi %556, %653 : vector<1x16xi32>
    %c4_i32_325 = arith.constant 4 : i32
    %655 = vector.broadcast %c4_i32_325 : i32 to vector<1x16xi32>
    %656 = arith.cmpi slt, %654, %655 : vector<1x16xi32>
    %657 = arith.andi %652, %656 : vector<1x16xi1>
    %c-1_i32_326 = arith.constant -1 : i32
    %658 = vector.broadcast %c-1_i32_326 : i32 to vector<1x16xi32>
    %659 = arith.addi %558, %658 : vector<1x16xi32>
    %c0_i32_327 = arith.constant 0 : i32
    %660 = vector.broadcast %c0_i32_327 : i32 to vector<1x16xi32>
    %661 = arith.cmpi sge, %659, %660 : vector<1x16xi32>
    %662 = arith.andi %657, %661 : vector<1x16xi1>
    %c-1_i32_328 = arith.constant -1 : i32
    %663 = vector.broadcast %c-1_i32_328 : i32 to vector<1x16xi32>
    %664 = arith.addi %558, %663 : vector<1x16xi32>
    %c4_i32_329 = arith.constant 4 : i32
    %665 = vector.broadcast %c4_i32_329 : i32 to vector<1x16xi32>
    %666 = arith.cmpi slt, %664, %665 : vector<1x16xi32>
    %667 = arith.andi %662, %666 : vector<1x16xi1>
    %cst_330 = arith.constant 0.000000e+00 : f32
    %668 = vector.shape_cast %667 : vector<1x16xi1> to vector<1x16xi1>
    %669 = vector.broadcast %668 : vector<1x16xi1> to vector<16x16xi1>
    %670 = vector.broadcast %cst_330 : f32 to vector<16x16xf32>
    %671 = arith.select %669, %648, %670 : vector<16x16xi1>, vector<16x16xf32>
    %672 = arith.truncf %671 : vector<16x16xf32> to vector<16x16xbf16>
    %c3_331 = arith.constant 3 : index
    %c0_332 = arith.constant 0 : index
    %c0_333 = arith.constant 0 : index
    %673 = vector.load %arg6[%c3_331, %c0_332, %c0_333] : memref<9x32x16xbf16, #tpu.memory_space<vmem>>, vector<1x32x16xbf16>
    %674 = vector.shape_cast %673 : vector<1x32x16xbf16> to vector<32x16xbf16>
    %cst_334 = arith.constant dense<0.000000e+00> : vector<32x16xf32>
    %675 = tpu.matmul %674, %672, %cst_334 {dimension_numbers = #tpu.dot_dimension_numbers<[1], [0], [0], [1], [0, 0, 1, 1], [], []>} : vector<32x16xbf16>, vector<16x16xbf16>, vector<32x16xf32> -> vector<32x16xf32>
    %676 = arith.addf %647, %675 : vector<32x16xf32>
    %c0_335 = arith.constant 0 : index
    %c5_336 = arith.constant 5 : index
    %677 = vector.load %arg24[%c0_335, %c5_336] : memref<32x290xf32, #tpu.memory_space<vmem>>, vector<16x16xf32>
    %c0_i32_337 = arith.constant 0 : i32
    %678 = vector.broadcast %c0_i32_337 : i32 to vector<1x16xi32>
    %679 = arith.addi %556, %678 : vector<1x16xi32>
    %c0_i32_338 = arith.constant 0 : i32
    %680 = vector.broadcast %c0_i32_338 : i32 to vector<1x16xi32>
    %681 = arith.cmpi sge, %679, %680 : vector<1x16xi32>
    %c0_i32_339 = arith.constant 0 : i32
    %682 = vector.broadcast %c0_i32_339 : i32 to vector<1x16xi32>
    %683 = arith.addi %556, %682 : vector<1x16xi32>
    %c4_i32_340 = arith.constant 4 : i32
    %684 = vector.broadcast %c4_i32_340 : i32 to vector<1x16xi32>
    %685 = arith.cmpi slt, %683, %684 : vector<1x16xi32>
    %686 = arith.andi %681, %685 : vector<1x16xi1>
    %c0_i32_341 = arith.constant 0 : i32
    %687 = vector.broadcast %c0_i32_341 : i32 to vector<1x16xi32>
    %688 = arith.addi %558, %687 : vector<1x16xi32>
    %c0_i32_342 = arith.constant 0 : i32
    %689 = vector.broadcast %c0_i32_342 : i32 to vector<1x16xi32>
    %690 = arith.cmpi sge, %688, %689 : vector<1x16xi32>
    %691 = arith.andi %686, %690 : vector<1x16xi1>
    %c0_i32_343 = arith.constant 0 : i32
    %692 = vector.broadcast %c0_i32_343 : i32 to vector<1x16xi32>
    %693 = arith.addi %558, %692 : vector<1x16xi32>
    %c4_i32_344 = arith.constant 4 : i32
    %694 = vector.broadcast %c4_i32_344 : i32 to vector<1x16xi32>
    %695 = arith.cmpi slt, %693, %694 : vector<1x16xi32>
    %696 = arith.andi %691, %695 : vector<1x16xi1>
    %cst_345 = arith.constant 0.000000e+00 : f32
    %697 = vector.shape_cast %696 : vector<1x16xi1> to vector<1x16xi1>
    %698 = vector.broadcast %697 : vector<1x16xi1> to vector<16x16xi1>
    %699 = vector.broadcast %cst_345 : f32 to vector<16x16xf32>
    %700 = arith.select %698, %677, %699 : vector<16x16xi1>, vector<16x16xf32>
    %701 = arith.truncf %700 : vector<16x16xf32> to vector<16x16xbf16>
    %c4_346 = arith.constant 4 : index
    %c0_347 = arith.constant 0 : index
    %c0_348 = arith.constant 0 : index
    %702 = vector.load %arg6[%c4_346, %c0_347, %c0_348] : memref<9x32x16xbf16, #tpu.memory_space<vmem>>, vector<1x32x16xbf16>
    %703 = vector.shape_cast %702 : vector<1x32x16xbf16> to vector<32x16xbf16>
    %cst_349 = arith.constant dense<0.000000e+00> : vector<32x16xf32>
    %704 = tpu.matmul %703, %701, %cst_349 {dimension_numbers = #tpu.dot_dimension_numbers<[1], [0], [0], [1], [0, 0, 1, 1], [], []>} : vector<32x16xbf16>, vector<16x16xbf16>, vector<32x16xf32> -> vector<32x16xf32>
    %705 = arith.addf %676, %704 : vector<32x16xf32>
    %c0_350 = arith.constant 0 : index
    %c6_351 = arith.constant 6 : index
    %706 = vector.load %arg24[%c0_350, %c6_351] : memref<32x290xf32, #tpu.memory_space<vmem>>, vector<16x16xf32>
    %c0_i32_352 = arith.constant 0 : i32
    %707 = vector.broadcast %c0_i32_352 : i32 to vector<1x16xi32>
    %708 = arith.addi %556, %707 : vector<1x16xi32>
    %c0_i32_353 = arith.constant 0 : i32
    %709 = vector.broadcast %c0_i32_353 : i32 to vector<1x16xi32>
    %710 = arith.cmpi sge, %708, %709 : vector<1x16xi32>
    %c0_i32_354 = arith.constant 0 : i32
    %711 = vector.broadcast %c0_i32_354 : i32 to vector<1x16xi32>
    %712 = arith.addi %556, %711 : vector<1x16xi32>
    %c4_i32_355 = arith.constant 4 : i32
    %713 = vector.broadcast %c4_i32_355 : i32 to vector<1x16xi32>
    %714 = arith.cmpi slt, %712, %713 : vector<1x16xi32>
    %715 = arith.andi %710, %714 : vector<1x16xi1>
    %c1_i32_356 = arith.constant 1 : i32
    %716 = vector.broadcast %c1_i32_356 : i32 to vector<1x16xi32>
    %717 = arith.addi %558, %716 : vector<1x16xi32>
    %c0_i32_357 = arith.constant 0 : i32
    %718 = vector.broadcast %c0_i32_357 : i32 to vector<1x16xi32>
    %719 = arith.cmpi sge, %717, %718 : vector<1x16xi32>
    %720 = arith.andi %715, %719 : vector<1x16xi1>
    %c1_i32_358 = arith.constant 1 : i32
    %721 = vector.broadcast %c1_i32_358 : i32 to vector<1x16xi32>
    %722 = arith.addi %558, %721 : vector<1x16xi32>
    %c4_i32_359 = arith.constant 4 : i32
    %723 = vector.broadcast %c4_i32_359 : i32 to vector<1x16xi32>
    %724 = arith.cmpi slt, %722, %723 : vector<1x16xi32>
    %725 = arith.andi %720, %724 : vector<1x16xi1>
    %cst_360 = arith.constant 0.000000e+00 : f32
    %726 = vector.shape_cast %725 : vector<1x16xi1> to vector<1x16xi1>
    %727 = vector.broadcast %726 : vector<1x16xi1> to vector<16x16xi1>
    %728 = vector.broadcast %cst_360 : f32 to vector<16x16xf32>
    %729 = arith.select %727, %706, %728 : vector<16x16xi1>, vector<16x16xf32>
    %730 = arith.truncf %729 : vector<16x16xf32> to vector<16x16xbf16>
    %c5_361 = arith.constant 5 : index
    %c0_362 = arith.constant 0 : index
    %c0_363 = arith.constant 0 : index
    %731 = vector.load %arg6[%c5_361, %c0_362, %c0_363] : memref<9x32x16xbf16, #tpu.memory_space<vmem>>, vector<1x32x16xbf16>
    %732 = vector.shape_cast %731 : vector<1x32x16xbf16> to vector<32x16xbf16>
    %cst_364 = arith.constant dense<0.000000e+00> : vector<32x16xf32>
    %733 = tpu.matmul %732, %730, %cst_364 {dimension_numbers = #tpu.dot_dimension_numbers<[1], [0], [0], [1], [0, 0, 1, 1], [], []>} : vector<32x16xbf16>, vector<16x16xbf16>, vector<32x16xf32> -> vector<32x16xf32>
    %734 = arith.addf %705, %733 : vector<32x16xf32>
    %c0_365 = arith.constant 0 : index
    %c8_366 = arith.constant 8 : index
    %735 = vector.load %arg24[%c0_365, %c8_366] : memref<32x290xf32, #tpu.memory_space<vmem>>, vector<16x16xf32>
    %c1_i32_367 = arith.constant 1 : i32
    %736 = vector.broadcast %c1_i32_367 : i32 to vector<1x16xi32>
    %737 = arith.addi %556, %736 : vector<1x16xi32>
    %c0_i32_368 = arith.constant 0 : i32
    %738 = vector.broadcast %c0_i32_368 : i32 to vector<1x16xi32>
    %739 = arith.cmpi sge, %737, %738 : vector<1x16xi32>
    %c1_i32_369 = arith.constant 1 : i32
    %740 = vector.broadcast %c1_i32_369 : i32 to vector<1x16xi32>
    %741 = arith.addi %556, %740 : vector<1x16xi32>
    %c4_i32_370 = arith.constant 4 : i32
    %742 = vector.broadcast %c4_i32_370 : i32 to vector<1x16xi32>
    %743 = arith.cmpi slt, %741, %742 : vector<1x16xi32>
    %744 = arith.andi %739, %743 : vector<1x16xi1>
    %c-1_i32_371 = arith.constant -1 : i32
    %745 = vector.broadcast %c-1_i32_371 : i32 to vector<1x16xi32>
    %746 = arith.addi %558, %745 : vector<1x16xi32>
    %c0_i32_372 = arith.constant 0 : i32
    %747 = vector.broadcast %c0_i32_372 : i32 to vector<1x16xi32>
    %748 = arith.cmpi sge, %746, %747 : vector<1x16xi32>
    %749 = arith.andi %744, %748 : vector<1x16xi1>
    %c-1_i32_373 = arith.constant -1 : i32
    %750 = vector.broadcast %c-1_i32_373 : i32 to vector<1x16xi32>
    %751 = arith.addi %558, %750 : vector<1x16xi32>
    %c4_i32_374 = arith.constant 4 : i32
    %752 = vector.broadcast %c4_i32_374 : i32 to vector<1x16xi32>
    %753 = arith.cmpi slt, %751, %752 : vector<1x16xi32>
    %754 = arith.andi %749, %753 : vector<1x16xi1>
    %cst_375 = arith.constant 0.000000e+00 : f32
    %755 = vector.shape_cast %754 : vector<1x16xi1> to vector<1x16xi1>
    %756 = vector.broadcast %755 : vector<1x16xi1> to vector<16x16xi1>
    %757 = vector.broadcast %cst_375 : f32 to vector<16x16xf32>
    %758 = arith.select %756, %735, %757 : vector<16x16xi1>, vector<16x16xf32>
    %759 = arith.truncf %758 : vector<16x16xf32> to vector<16x16xbf16>
    %c6_376 = arith.constant 6 : index
    %c0_377 = arith.constant 0 : index
    %c0_378 = arith.constant 0 : index
    %760 = vector.load %arg6[%c6_376, %c0_377, %c0_378] : memref<9x32x16xbf16, #tpu.memory_space<vmem>>, vector<1x32x16xbf16>
    %761 = vector.shape_cast %760 : vector<1x32x16xbf16> to vector<32x16xbf16>
    %cst_379 = arith.constant dense<0.000000e+00> : vector<32x16xf32>
    %762 = tpu.matmul %761, %759, %cst_379 {dimension_numbers = #tpu.dot_dimension_numbers<[1], [0], [0], [1], [0, 0, 1, 1], [], []>} : vector<32x16xbf16>, vector<16x16xbf16>, vector<32x16xf32> -> vector<32x16xf32>
    %763 = arith.addf %734, %762 : vector<32x16xf32>
    %c0_380 = arith.constant 0 : index
    %c9_381 = arith.constant 9 : index
    %764 = vector.load %arg24[%c0_380, %c9_381] : memref<32x290xf32, #tpu.memory_space<vmem>>, vector<16x16xf32>
    %c1_i32_382 = arith.constant 1 : i32
    %765 = vector.broadcast %c1_i32_382 : i32 to vector<1x16xi32>
    %766 = arith.addi %556, %765 : vector<1x16xi32>
    %c0_i32_383 = arith.constant 0 : i32
    %767 = vector.broadcast %c0_i32_383 : i32 to vector<1x16xi32>
    %768 = arith.cmpi sge, %766, %767 : vector<1x16xi32>
    %c1_i32_384 = arith.constant 1 : i32
    %769 = vector.broadcast %c1_i32_384 : i32 to vector<1x16xi32>
    %770 = arith.addi %556, %769 : vector<1x16xi32>
    %c4_i32_385 = arith.constant 4 : i32
    %771 = vector.broadcast %c4_i32_385 : i32 to vector<1x16xi32>
    %772 = arith.cmpi slt, %770, %771 : vector<1x16xi32>
    %773 = arith.andi %768, %772 : vector<1x16xi1>
    %c0_i32_386 = arith.constant 0 : i32
    %774 = vector.broadcast %c0_i32_386 : i32 to vector<1x16xi32>
    %775 = arith.addi %558, %774 : vector<1x16xi32>
    %c0_i32_387 = arith.constant 0 : i32
    %776 = vector.broadcast %c0_i32_387 : i32 to vector<1x16xi32>
    %777 = arith.cmpi sge, %775, %776 : vector<1x16xi32>
    %778 = arith.andi %773, %777 : vector<1x16xi1>
    %c0_i32_388 = arith.constant 0 : i32
    %779 = vector.broadcast %c0_i32_388 : i32 to vector<1x16xi32>
    %780 = arith.addi %558, %779 : vector<1x16xi32>
    %c4_i32_389 = arith.constant 4 : i32
    %781 = vector.broadcast %c4_i32_389 : i32 to vector<1x16xi32>
    %782 = arith.cmpi slt, %780, %781 : vector<1x16xi32>
    %783 = arith.andi %778, %782 : vector<1x16xi1>
    %cst_390 = arith.constant 0.000000e+00 : f32
    %784 = vector.shape_cast %783 : vector<1x16xi1> to vector<1x16xi1>
    %785 = vector.broadcast %784 : vector<1x16xi1> to vector<16x16xi1>
    %786 = vector.broadcast %cst_390 : f32 to vector<16x16xf32>
    %787 = arith.select %785, %764, %786 : vector<16x16xi1>, vector<16x16xf32>
    %788 = arith.truncf %787 : vector<16x16xf32> to vector<16x16xbf16>
    %c7_391 = arith.constant 7 : index
    %c0_392 = arith.constant 0 : index
    %c0_393 = arith.constant 0 : index
    %789 = vector.load %arg6[%c7_391, %c0_392, %c0_393] : memref<9x32x16xbf16, #tpu.memory_space<vmem>>, vector<1x32x16xbf16>
    %790 = vector.shape_cast %789 : vector<1x32x16xbf16> to vector<32x16xbf16>
    %cst_394 = arith.constant dense<0.000000e+00> : vector<32x16xf32>
    %791 = tpu.matmul %790, %788, %cst_394 {dimension_numbers = #tpu.dot_dimension_numbers<[1], [0], [0], [1], [0, 0, 1, 1], [], []>} : vector<32x16xbf16>, vector<16x16xbf16>, vector<32x16xf32> -> vector<32x16xf32>
    %792 = arith.addf %763, %791 : vector<32x16xf32>
    %c0_395 = arith.constant 0 : index
    %c10_396 = arith.constant 10 : index
    %793 = vector.load %arg24[%c0_395, %c10_396] : memref<32x290xf32, #tpu.memory_space<vmem>>, vector<16x16xf32>
    %c1_i32_397 = arith.constant 1 : i32
    %794 = vector.broadcast %c1_i32_397 : i32 to vector<1x16xi32>
    %795 = arith.addi %556, %794 : vector<1x16xi32>
    %c0_i32_398 = arith.constant 0 : i32
    %796 = vector.broadcast %c0_i32_398 : i32 to vector<1x16xi32>
    %797 = arith.cmpi sge, %795, %796 : vector<1x16xi32>
    %c1_i32_399 = arith.constant 1 : i32
    %798 = vector.broadcast %c1_i32_399 : i32 to vector<1x16xi32>
    %799 = arith.addi %556, %798 : vector<1x16xi32>
    %c4_i32_400 = arith.constant 4 : i32
    %800 = vector.broadcast %c4_i32_400 : i32 to vector<1x16xi32>
    %801 = arith.cmpi slt, %799, %800 : vector<1x16xi32>
    %802 = arith.andi %797, %801 : vector<1x16xi1>
    %c1_i32_401 = arith.constant 1 : i32
    %803 = vector.broadcast %c1_i32_401 : i32 to vector<1x16xi32>
    %804 = arith.addi %558, %803 : vector<1x16xi32>
    %c0_i32_402 = arith.constant 0 : i32
    %805 = vector.broadcast %c0_i32_402 : i32 to vector<1x16xi32>
    %806 = arith.cmpi sge, %804, %805 : vector<1x16xi32>
    %807 = arith.andi %802, %806 : vector<1x16xi1>
    %c1_i32_403 = arith.constant 1 : i32
    %808 = vector.broadcast %c1_i32_403 : i32 to vector<1x16xi32>
    %809 = arith.addi %558, %808 : vector<1x16xi32>
    %c4_i32_404 = arith.constant 4 : i32
    %810 = vector.broadcast %c4_i32_404 : i32 to vector<1x16xi32>
    %811 = arith.cmpi slt, %809, %810 : vector<1x16xi32>
    %812 = arith.andi %807, %811 : vector<1x16xi1>
    %cst_405 = arith.constant 0.000000e+00 : f32
    %813 = vector.shape_cast %812 : vector<1x16xi1> to vector<1x16xi1>
    %814 = vector.broadcast %813 : vector<1x16xi1> to vector<16x16xi1>
    %815 = vector.broadcast %cst_405 : f32 to vector<16x16xf32>
    %816 = arith.select %814, %793, %815 : vector<16x16xi1>, vector<16x16xf32>
    %817 = arith.truncf %816 : vector<16x16xf32> to vector<16x16xbf16>
    %c8_406 = arith.constant 8 : index
    %c0_407 = arith.constant 0 : index
    %c0_408 = arith.constant 0 : index
    %818 = vector.load %arg6[%c8_406, %c0_407, %c0_408] : memref<9x32x16xbf16, #tpu.memory_space<vmem>>, vector<1x32x16xbf16>
    %819 = vector.shape_cast %818 : vector<1x32x16xbf16> to vector<32x16xbf16>
    %cst_409 = arith.constant dense<0.000000e+00> : vector<32x16xf32>
    %820 = tpu.matmul %819, %817, %cst_409 {dimension_numbers = #tpu.dot_dimension_numbers<[1], [0], [0], [1], [0, 0, 1, 1], [], []>} : vector<32x16xbf16>, vector<16x16xbf16>, vector<32x16xf32> -> vector<32x16xf32>
    %821 = arith.addf %792, %820 : vector<32x16xf32>
    %c0_410 = arith.constant 0 : index
    %c0_411 = arith.constant 0 : index
    %822 = vector.load %arg7[%c0_410, %c0_411] : memref<32x1xf32, #tpu.memory_space<vmem>>, vector<32x1xf32>
    %823 = vector.broadcast %822 : vector<32x1xf32> to vector<32x16xf32>
    %824 = arith.addf %821, %823 : vector<32x16xf32>
    %cst_412 = arith.constant 0.000000e+00 : f32
    %825 = vector.broadcast %cst_412 : f32 to vector<32x16xf32>
    %826 = arith.maximumf %824, %825 : vector<32x16xf32>
    %827 = tpu.iota {dimensions = array<i32: 1>} : vector<1x16xi32>
    %c2_i32_413 = arith.constant 2 : i32
    %828 = vector.broadcast %c2_i32_413 : i32 to vector<1x16xi32>
    %829 = arith.shrsi %827, %828 : vector<1x16xi32>
    %c3_i32_414 = arith.constant 3 : i32
    %830 = vector.broadcast %c3_i32_414 : i32 to vector<1x16xi32>
    %831 = arith.andi %827, %830 : vector<1x16xi32>
    %cst_415 = arith.constant 0.000000e+00 : f32
    %832 = vector.broadcast %cst_415 : f32 to vector<16x16xf32>
    %c0_416 = arith.constant 0 : index
    %c5_417 = arith.constant 5 : index
    %833 = vector.load %arg24[%c0_416, %c5_417] : memref<32x290xf32, #tpu.memory_space<vmem>>, vector<32x16xf32>
    tpu.vector_store %arg24[%c0_416, %c5_417], %826 {strides = array<i32>} : memref<32x290xf32, #tpu.memory_space<vmem>>, vector<32x16xf32>,
    %c0_418 = arith.constant 0 : index
    %c0_419 = arith.constant 0 : index
    %834 = vector.load %arg24[%c0_418, %c0_419] : memref<32x290xf32, #tpu.memory_space<vmem>>, vector<32x16xf32>
    %c-1_i32_420 = arith.constant -1 : i32
    %835 = vector.broadcast %c-1_i32_420 : i32 to vector<1x16xi32>
    %836 = arith.addi %829, %835 : vector<1x16xi32>
    %c0_i32_421 = arith.constant 0 : i32
    %837 = vector.broadcast %c0_i32_421 : i32 to vector<1x16xi32>
    %838 = arith.cmpi sge, %836, %837 : vector<1x16xi32>
    %c-1_i32_422 = arith.constant -1 : i32
    %839 = vector.broadcast %c-1_i32_422 : i32 to vector<1x16xi32>
    %840 = arith.addi %829, %839 : vector<1x16xi32>
    %c4_i32_423 = arith.constant 4 : i32
    %841 = vector.broadcast %c4_i32_423 : i32 to vector<1x16xi32>
    %842 = arith.cmpi slt, %840, %841 : vector<1x16xi32>
    %843 = arith.andi %838, %842 : vector<1x16xi1>
    %c-1_i32_424 = arith.constant -1 : i32
    %844 = vector.broadcast %c-1_i32_424 : i32 to vector<1x16xi32>
    %845 = arith.addi %831, %844 : vector<1x16xi32>
    %c0_i32_425 = arith.constant 0 : i32
    %846 = vector.broadcast %c0_i32_425 : i32 to vector<1x16xi32>
    %847 = arith.cmpi sge, %845, %846 : vector<1x16xi32>
    %848 = arith.andi %843, %847 : vector<1x16xi1>
    %c-1_i32_426 = arith.constant -1 : i32
    %849 = vector.broadcast %c-1_i32_426 : i32 to vector<1x16xi32>
    %850 = arith.addi %831, %849 : vector<1x16xi32>
    %c4_i32_427 = arith.constant 4 : i32
    %851 = vector.broadcast %c4_i32_427 : i32 to vector<1x16xi32>
    %852 = arith.cmpi slt, %850, %851 : vector<1x16xi32>
    %853 = arith.andi %848, %852 : vector<1x16xi1>
    %cst_428 = arith.constant 0.000000e+00 : f32
    %854 = vector.shape_cast %853 : vector<1x16xi1> to vector<1x16xi1>
    %855 = vector.broadcast %854 : vector<1x16xi1> to vector<32x16xi1>
    %856 = vector.broadcast %cst_428 : f32 to vector<32x16xf32>
    %857 = arith.select %855, %834, %856 : vector<32x16xi1>, vector<32x16xf32>
    %858 = arith.truncf %857 : vector<32x16xf32> to vector<32x16xbf16>
    %c0_429 = arith.constant 0 : index
    %c0_430 = arith.constant 0 : index
    %c0_431 = arith.constant 0 : index
    %859 = vector.load %arg8[%c0_429, %c0_430, %c0_431] : memref<9x16x32xbf16, #tpu.memory_space<vmem>>, vector<1x16x32xbf16>
    %860 = vector.shape_cast %859 : vector<1x16x32xbf16> to vector<16x32xbf16>
    %cst_432 = arith.constant dense<0.000000e+00> : vector<16x16xf32>
    %861 = tpu.matmul %860, %858, %cst_432 {dimension_numbers = #tpu.dot_dimension_numbers<[1], [0], [0], [1], [0, 0, 1, 1], [], []>} : vector<16x32xbf16>, vector<32x16xbf16>, vector<16x16xf32> -> vector<16x16xf32>
    %862 = arith.addf %832, %861 : vector<16x16xf32>
    %c0_433 = arith.constant 0 : index
    %c1_434 = arith.constant 1 : index
    %863 = vector.load %arg24[%c0_433, %c1_434] : memref<32x290xf32, #tpu.memory_space<vmem>>, vector<32x16xf32>
    %c-1_i32_435 = arith.constant -1 : i32
    %864 = vector.broadcast %c-1_i32_435 : i32 to vector<1x16xi32>
    %865 = arith.addi %829, %864 : vector<1x16xi32>
    %c0_i32_436 = arith.constant 0 : i32
    %866 = vector.broadcast %c0_i32_436 : i32 to vector<1x16xi32>
    %867 = arith.cmpi sge, %865, %866 : vector<1x16xi32>
    %c-1_i32_437 = arith.constant -1 : i32
    %868 = vector.broadcast %c-1_i32_437 : i32 to vector<1x16xi32>
    %869 = arith.addi %829, %868 : vector<1x16xi32>
    %c4_i32_438 = arith.constant 4 : i32
    %870 = vector.broadcast %c4_i32_438 : i32 to vector<1x16xi32>
    %871 = arith.cmpi slt, %869, %870 : vector<1x16xi32>
    %872 = arith.andi %867, %871 : vector<1x16xi1>
    %c0_i32_439 = arith.constant 0 : i32
    %873 = vector.broadcast %c0_i32_439 : i32 to vector<1x16xi32>
    %874 = arith.addi %831, %873 : vector<1x16xi32>
    %c0_i32_440 = arith.constant 0 : i32
    %875 = vector.broadcast %c0_i32_440 : i32 to vector<1x16xi32>
    %876 = arith.cmpi sge, %874, %875 : vector<1x16xi32>
    %877 = arith.andi %872, %876 : vector<1x16xi1>
    %c0_i32_441 = arith.constant 0 : i32
    %878 = vector.broadcast %c0_i32_441 : i32 to vector<1x16xi32>
    %879 = arith.addi %831, %878 : vector<1x16xi32>
    %c4_i32_442 = arith.constant 4 : i32
    %880 = vector.broadcast %c4_i32_442 : i32 to vector<1x16xi32>
    %881 = arith.cmpi slt, %879, %880 : vector<1x16xi32>
    %882 = arith.andi %877, %881 : vector<1x16xi1>
    %cst_443 = arith.constant 0.000000e+00 : f32
    %883 = vector.shape_cast %882 : vector<1x16xi1> to vector<1x16xi1>
    %884 = vector.broadcast %883 : vector<1x16xi1> to vector<32x16xi1>
    %885 = vector.broadcast %cst_443 : f32 to vector<32x16xf32>
    %886 = arith.select %884, %863, %885 : vector<32x16xi1>, vector<32x16xf32>
    %887 = arith.truncf %886 : vector<32x16xf32> to vector<32x16xbf16>
    %c1_444 = arith.constant 1 : index
    %c0_445 = arith.constant 0 : index
    %c0_446 = arith.constant 0 : index
    %888 = vector.load %arg8[%c1_444, %c0_445, %c0_446] : memref<9x16x32xbf16, #tpu.memory_space<vmem>>, vector<1x16x32xbf16>
    %889 = vector.shape_cast %888 : vector<1x16x32xbf16> to vector<16x32xbf16>
    %cst_447 = arith.constant dense<0.000000e+00> : vector<16x16xf32>
    %890 = tpu.matmul %889, %887, %cst_447 {dimension_numbers = #tpu.dot_dimension_numbers<[1], [0], [0], [1], [0, 0, 1, 1], [], []>} : vector<16x32xbf16>, vector<32x16xbf16>, vector<16x16xf32> -> vector<16x16xf32>
    %891 = arith.addf %862, %890 : vector<16x16xf32>
    %c0_448 = arith.constant 0 : index
    %c2_449 = arith.constant 2 : index
    %892 = vector.load %arg24[%c0_448, %c2_449] : memref<32x290xf32, #tpu.memory_space<vmem>>, vector<32x16xf32>
    %c-1_i32_450 = arith.constant -1 : i32
    %893 = vector.broadcast %c-1_i32_450 : i32 to vector<1x16xi32>
    %894 = arith.addi %829, %893 : vector<1x16xi32>
    %c0_i32_451 = arith.constant 0 : i32
    %895 = vector.broadcast %c0_i32_451 : i32 to vector<1x16xi32>
    %896 = arith.cmpi sge, %894, %895 : vector<1x16xi32>
    %c-1_i32_452 = arith.constant -1 : i32
    %897 = vector.broadcast %c-1_i32_452 : i32 to vector<1x16xi32>
    %898 = arith.addi %829, %897 : vector<1x16xi32>
    %c4_i32_453 = arith.constant 4 : i32
    %899 = vector.broadcast %c4_i32_453 : i32 to vector<1x16xi32>
    %900 = arith.cmpi slt, %898, %899 : vector<1x16xi32>
    %901 = arith.andi %896, %900 : vector<1x16xi1>
    %c1_i32_454 = arith.constant 1 : i32
    %902 = vector.broadcast %c1_i32_454 : i32 to vector<1x16xi32>
    %903 = arith.addi %831, %902 : vector<1x16xi32>
    %c0_i32_455 = arith.constant 0 : i32
    %904 = vector.broadcast %c0_i32_455 : i32 to vector<1x16xi32>
    %905 = arith.cmpi sge, %903, %904 : vector<1x16xi32>
    %906 = arith.andi %901, %905 : vector<1x16xi1>
    %c1_i32_456 = arith.constant 1 : i32
    %907 = vector.broadcast %c1_i32_456 : i32 to vector<1x16xi32>
    %908 = arith.addi %831, %907 : vector<1x16xi32>
    %c4_i32_457 = arith.constant 4 : i32
    %909 = vector.broadcast %c4_i32_457 : i32 to vector<1x16xi32>
    %910 = arith.cmpi slt, %908, %909 : vector<1x16xi32>
    %911 = arith.andi %906, %910 : vector<1x16xi1>
    %cst_458 = arith.constant 0.000000e+00 : f32
    %912 = vector.shape_cast %911 : vector<1x16xi1> to vector<1x16xi1>
    %913 = vector.broadcast %912 : vector<1x16xi1> to vector<32x16xi1>
    %914 = vector.broadcast %cst_458 : f32 to vector<32x16xf32>
    %915 = arith.select %913, %892, %914 : vector<32x16xi1>, vector<32x16xf32>
    %916 = arith.truncf %915 : vector<32x16xf32> to vector<32x16xbf16>
    %c2_459 = arith.constant 2 : index
    %c0_460 = arith.constant 0 : index
    %c0_461 = arith.constant 0 : index
    %917 = vector.load %arg8[%c2_459, %c0_460, %c0_461] : memref<9x16x32xbf16, #tpu.memory_space<vmem>>, vector<1x16x32xbf16>
    %918 = vector.shape_cast %917 : vector<1x16x32xbf16> to vector<16x32xbf16>
    %cst_462 = arith.constant dense<0.000000e+00> : vector<16x16xf32>
    %919 = tpu.matmul %918, %916, %cst_462 {dimension_numbers = #tpu.dot_dimension_numbers<[1], [0], [0], [1], [0, 0, 1, 1], [], []>} : vector<16x32xbf16>, vector<32x16xbf16>, vector<16x16xf32> -> vector<16x16xf32>
    %920 = arith.addf %891, %919 : vector<16x16xf32>
    %c0_463 = arith.constant 0 : index
    %c4_464 = arith.constant 4 : index
    %921 = vector.load %arg24[%c0_463, %c4_464] : memref<32x290xf32, #tpu.memory_space<vmem>>, vector<32x16xf32>
    %c0_i32_465 = arith.constant 0 : i32
    %922 = vector.broadcast %c0_i32_465 : i32 to vector<1x16xi32>
    %923 = arith.addi %829, %922 : vector<1x16xi32>
    %c0_i32_466 = arith.constant 0 : i32
    %924 = vector.broadcast %c0_i32_466 : i32 to vector<1x16xi32>
    %925 = arith.cmpi sge, %923, %924 : vector<1x16xi32>
    %c0_i32_467 = arith.constant 0 : i32
    %926 = vector.broadcast %c0_i32_467 : i32 to vector<1x16xi32>
    %927 = arith.addi %829, %926 : vector<1x16xi32>
    %c4_i32_468 = arith.constant 4 : i32
    %928 = vector.broadcast %c4_i32_468 : i32 to vector<1x16xi32>
    %929 = arith.cmpi slt, %927, %928 : vector<1x16xi32>
    %930 = arith.andi %925, %929 : vector<1x16xi1>
    %c-1_i32_469 = arith.constant -1 : i32
    %931 = vector.broadcast %c-1_i32_469 : i32 to vector<1x16xi32>
    %932 = arith.addi %831, %931 : vector<1x16xi32>
    %c0_i32_470 = arith.constant 0 : i32
    %933 = vector.broadcast %c0_i32_470 : i32 to vector<1x16xi32>
    %934 = arith.cmpi sge, %932, %933 : vector<1x16xi32>
    %935 = arith.andi %930, %934 : vector<1x16xi1>
    %c-1_i32_471 = arith.constant -1 : i32
    %936 = vector.broadcast %c-1_i32_471 : i32 to vector<1x16xi32>
    %937 = arith.addi %831, %936 : vector<1x16xi32>
    %c4_i32_472 = arith.constant 4 : i32
    %938 = vector.broadcast %c4_i32_472 : i32 to vector<1x16xi32>
    %939 = arith.cmpi slt, %937, %938 : vector<1x16xi32>
    %940 = arith.andi %935, %939 : vector<1x16xi1>
    %cst_473 = arith.constant 0.000000e+00 : f32
    %941 = vector.shape_cast %940 : vector<1x16xi1> to vector<1x16xi1>
    %942 = vector.broadcast %941 : vector<1x16xi1> to vector<32x16xi1>
    %943 = vector.broadcast %cst_473 : f32 to vector<32x16xf32>
    %944 = arith.select %942, %921, %943 : vector<32x16xi1>, vector<32x16xf32>
    %945 = arith.truncf %944 : vector<32x16xf32> to vector<32x16xbf16>
    %c3_474 = arith.constant 3 : index
    %c0_475 = arith.constant 0 : index
    %c0_476 = arith.constant 0 : index
    %946 = vector.load %arg8[%c3_474, %c0_475, %c0_476] : memref<9x16x32xbf16, #tpu.memory_space<vmem>>, vector<1x16x32xbf16>
    %947 = vector.shape_cast %946 : vector<1x16x32xbf16> to vector<16x32xbf16>
    %cst_477 = arith.constant dense<0.000000e+00> : vector<16x16xf32>
    %948 = tpu.matmul %947, %945, %cst_477 {dimension_numbers = #tpu.dot_dimension_numbers<[1], [0], [0], [1], [0, 0, 1, 1], [], []>} : vector<16x32xbf16>, vector<32x16xbf16>, vector<16x16xf32> -> vector<16x16xf32>
    %949 = arith.addf %920, %948 : vector<16x16xf32>
    %c0_478 = arith.constant 0 : index
    %c5_479 = arith.constant 5 : index
    %950 = vector.load %arg24[%c0_478, %c5_479] : memref<32x290xf32, #tpu.memory_space<vmem>>, vector<32x16xf32>
    %c0_i32_480 = arith.constant 0 : i32
    %951 = vector.broadcast %c0_i32_480 : i32 to vector<1x16xi32>
    %952 = arith.addi %829, %951 : vector<1x16xi32>
    %c0_i32_481 = arith.constant 0 : i32
    %953 = vector.broadcast %c0_i32_481 : i32 to vector<1x16xi32>
    %954 = arith.cmpi sge, %952, %953 : vector<1x16xi32>
    %c0_i32_482 = arith.constant 0 : i32
    %955 = vector.broadcast %c0_i32_482 : i32 to vector<1x16xi32>
    %956 = arith.addi %829, %955 : vector<1x16xi32>
    %c4_i32_483 = arith.constant 4 : i32
    %957 = vector.broadcast %c4_i32_483 : i32 to vector<1x16xi32>
    %958 = arith.cmpi slt, %956, %957 : vector<1x16xi32>
    %959 = arith.andi %954, %958 : vector<1x16xi1>
    %c0_i32_484 = arith.constant 0 : i32
    %960 = vector.broadcast %c0_i32_484 : i32 to vector<1x16xi32>
    %961 = arith.addi %831, %960 : vector<1x16xi32>
    %c0_i32_485 = arith.constant 0 : i32
    %962 = vector.broadcast %c0_i32_485 : i32 to vector<1x16xi32>
    %963 = arith.cmpi sge, %961, %962 : vector<1x16xi32>
    %964 = arith.andi %959, %963 : vector<1x16xi1>
    %c0_i32_486 = arith.constant 0 : i32
    %965 = vector.broadcast %c0_i32_486 : i32 to vector<1x16xi32>
    %966 = arith.addi %831, %965 : vector<1x16xi32>
    %c4_i32_487 = arith.constant 4 : i32
    %967 = vector.broadcast %c4_i32_487 : i32 to vector<1x16xi32>
    %968 = arith.cmpi slt, %966, %967 : vector<1x16xi32>
    %969 = arith.andi %964, %968 : vector<1x16xi1>
    %cst_488 = arith.constant 0.000000e+00 : f32
    %970 = vector.shape_cast %969 : vector<1x16xi1> to vector<1x16xi1>
    %971 = vector.broadcast %970 : vector<1x16xi1> to vector<32x16xi1>
    %972 = vector.broadcast %cst_488 : f32 to vector<32x16xf32>
    %973 = arith.select %971, %950, %972 : vector<32x16xi1>, vector<32x16xf32>
    %974 = arith.truncf %973 : vector<32x16xf32> to vector<32x16xbf16>
    %c4_489 = arith.constant 4 : index
    %c0_490 = arith.constant 0 : index
    %c0_491 = arith.constant 0 : index
    %975 = vector.load %arg8[%c4_489, %c0_490, %c0_491] : memref<9x16x32xbf16, #tpu.memory_space<vmem>>, vector<1x16x32xbf16>
    %976 = vector.shape_cast %975 : vector<1x16x32xbf16> to vector<16x32xbf16>
    %cst_492 = arith.constant dense<0.000000e+00> : vector<16x16xf32>
    %977 = tpu.matmul %976, %974, %cst_492 {dimension_numbers = #tpu.dot_dimension_numbers<[1], [0], [0], [1], [0, 0, 1, 1], [], []>} : vector<16x32xbf16>, vector<32x16xbf16>, vector<16x16xf32> -> vector<16x16xf32>
    %978 = arith.addf %949, %977 : vector<16x16xf32>
    %c0_493 = arith.constant 0 : index
    %c6_494 = arith.constant 6 : index
    %979 = vector.load %arg24[%c0_493, %c6_494] : memref<32x290xf32, #tpu.memory_space<vmem>>, vector<32x16xf32>
    %c0_i32_495 = arith.constant 0 : i32
    %980 = vector.broadcast %c0_i32_495 : i32 to vector<1x16xi32>
    %981 = arith.addi %829, %980 : vector<1x16xi32>
    %c0_i32_496 = arith.constant 0 : i32
    %982 = vector.broadcast %c0_i32_496 : i32 to vector<1x16xi32>
    %983 = arith.cmpi sge, %981, %982 : vector<1x16xi32>
    %c0_i32_497 = arith.constant 0 : i32
    %984 = vector.broadcast %c0_i32_497 : i32 to vector<1x16xi32>
    %985 = arith.addi %829, %984 : vector<1x16xi32>
    %c4_i32_498 = arith.constant 4 : i32
    %986 = vector.broadcast %c4_i32_498 : i32 to vector<1x16xi32>
    %987 = arith.cmpi slt, %985, %986 : vector<1x16xi32>
    %988 = arith.andi %983, %987 : vector<1x16xi1>
    %c1_i32_499 = arith.constant 1 : i32
    %989 = vector.broadcast %c1_i32_499 : i32 to vector<1x16xi32>
    %990 = arith.addi %831, %989 : vector<1x16xi32>
    %c0_i32_500 = arith.constant 0 : i32
    %991 = vector.broadcast %c0_i32_500 : i32 to vector<1x16xi32>
    %992 = arith.cmpi sge, %990, %991 : vector<1x16xi32>
    %993 = arith.andi %988, %992 : vector<1x16xi1>
    %c1_i32_501 = arith.constant 1 : i32
    %994 = vector.broadcast %c1_i32_501 : i32 to vector<1x16xi32>
    %995 = arith.addi %831, %994 : vector<1x16xi32>
    %c4_i32_502 = arith.constant 4 : i32
    %996 = vector.broadcast %c4_i32_502 : i32 to vector<1x16xi32>
    %997 = arith.cmpi slt, %995, %996 : vector<1x16xi32>
    %998 = arith.andi %993, %997 : vector<1x16xi1>
    %cst_503 = arith.constant 0.000000e+00 : f32
    %999 = vector.shape_cast %998 : vector<1x16xi1> to vector<1x16xi1>
    %1000 = vector.broadcast %999 : vector<1x16xi1> to vector<32x16xi1>
    %1001 = vector.broadcast %cst_503 : f32 to vector<32x16xf32>
    %1002 = arith.select %1000, %979, %1001 : vector<32x16xi1>, vector<32x16xf32>
    %1003 = arith.truncf %1002 : vector<32x16xf32> to vector<32x16xbf16>
    %c5_504 = arith.constant 5 : index
    %c0_505 = arith.constant 0 : index
    %c0_506 = arith.constant 0 : index
    %1004 = vector.load %arg8[%c5_504, %c0_505, %c0_506] : memref<9x16x32xbf16, #tpu.memory_space<vmem>>, vector<1x16x32xbf16>
    %1005 = vector.shape_cast %1004 : vector<1x16x32xbf16> to vector<16x32xbf16>
    %cst_507 = arith.constant dense<0.000000e+00> : vector<16x16xf32>
    %1006 = tpu.matmul %1005, %1003, %cst_507 {dimension_numbers = #tpu.dot_dimension_numbers<[1], [0], [0], [1], [0, 0, 1, 1], [], []>} : vector<16x32xbf16>, vector<32x16xbf16>, vector<16x16xf32> -> vector<16x16xf32>
    %1007 = arith.addf %978, %1006 : vector<16x16xf32>
    %c0_508 = arith.constant 0 : index
    %c8_509 = arith.constant 8 : index
    %1008 = vector.load %arg24[%c0_508, %c8_509] : memref<32x290xf32, #tpu.memory_space<vmem>>, vector<32x16xf32>
    %c1_i32_510 = arith.constant 1 : i32
    %1009 = vector.broadcast %c1_i32_510 : i32 to vector<1x16xi32>
    %1010 = arith.addi %829, %1009 : vector<1x16xi32>
    %c0_i32_511 = arith.constant 0 : i32
    %1011 = vector.broadcast %c0_i32_511 : i32 to vector<1x16xi32>
    %1012 = arith.cmpi sge, %1010, %1011 : vector<1x16xi32>
    %c1_i32_512 = arith.constant 1 : i32
    %1013 = vector.broadcast %c1_i32_512 : i32 to vector<1x16xi32>
    %1014 = arith.addi %829, %1013 : vector<1x16xi32>
    %c4_i32_513 = arith.constant 4 : i32
    %1015 = vector.broadcast %c4_i32_513 : i32 to vector<1x16xi32>
    %1016 = arith.cmpi slt, %1014, %1015 : vector<1x16xi32>
    %1017 = arith.andi %1012, %1016 : vector<1x16xi1>
    %c-1_i32_514 = arith.constant -1 : i32
    %1018 = vector.broadcast %c-1_i32_514 : i32 to vector<1x16xi32>
    %1019 = arith.addi %831, %1018 : vector<1x16xi32>
    %c0_i32_515 = arith.constant 0 : i32
    %1020 = vector.broadcast %c0_i32_515 : i32 to vector<1x16xi32>
    %1021 = arith.cmpi sge, %1019, %1020 : vector<1x16xi32>
    %1022 = arith.andi %1017, %1021 : vector<1x16xi1>
    %c-1_i32_516 = arith.constant -1 : i32
    %1023 = vector.broadcast %c-1_i32_516 : i32 to vector<1x16xi32>
    %1024 = arith.addi %831, %1023 : vector<1x16xi32>
    %c4_i32_517 = arith.constant 4 : i32
    %1025 = vector.broadcast %c4_i32_517 : i32 to vector<1x16xi32>
    %1026 = arith.cmpi slt, %1024, %1025 : vector<1x16xi32>
    %1027 = arith.andi %1022, %1026 : vector<1x16xi1>
    %cst_518 = arith.constant 0.000000e+00 : f32
    %1028 = vector.shape_cast %1027 : vector<1x16xi1> to vector<1x16xi1>
    %1029 = vector.broadcast %1028 : vector<1x16xi1> to vector<32x16xi1>
    %1030 = vector.broadcast %cst_518 : f32 to vector<32x16xf32>
    %1031 = arith.select %1029, %1008, %1030 : vector<32x16xi1>, vector<32x16xf32>
    %1032 = arith.truncf %1031 : vector<32x16xf32> to vector<32x16xbf16>
    %c6_519 = arith.constant 6 : index
    %c0_520 = arith.constant 0 : index
    %c0_521 = arith.constant 0 : index
    %1033 = vector.load %arg8[%c6_519, %c0_520, %c0_521] : memref<9x16x32xbf16, #tpu.memory_space<vmem>>, vector<1x16x32xbf16>
    %1034 = vector.shape_cast %1033 : vector<1x16x32xbf16> to vector<16x32xbf16>
    %cst_522 = arith.constant dense<0.000000e+00> : vector<16x16xf32>
    %1035 = tpu.matmul %1034, %1032, %cst_522 {dimension_numbers = #tpu.dot_dimension_numbers<[1], [0], [0], [1], [0, 0, 1, 1], [], []>} : vector<16x32xbf16>, vector<32x16xbf16>, vector<16x16xf32> -> vector<16x16xf32>
    %1036 = arith.addf %1007, %1035 : vector<16x16xf32>
    %c0_523 = arith.constant 0 : index
    %c9_524 = arith.constant 9 : index
    %1037 = vector.load %arg24[%c0_523, %c9_524] : memref<32x290xf32, #tpu.memory_space<vmem>>, vector<32x16xf32>
    %c1_i32_525 = arith.constant 1 : i32
    %1038 = vector.broadcast %c1_i32_525 : i32 to vector<1x16xi32>
    %1039 = arith.addi %829, %1038 : vector<1x16xi32>
    %c0_i32_526 = arith.constant 0 : i32
    %1040 = vector.broadcast %c0_i32_526 : i32 to vector<1x16xi32>
    %1041 = arith.cmpi sge, %1039, %1040 : vector<1x16xi32>
    %c1_i32_527 = arith.constant 1 : i32
    %1042 = vector.broadcast %c1_i32_527 : i32 to vector<1x16xi32>
    %1043 = arith.addi %829, %1042 : vector<1x16xi32>
    %c4_i32_528 = arith.constant 4 : i32
    %1044 = vector.broadcast %c4_i32_528 : i32 to vector<1x16xi32>
    %1045 = arith.cmpi slt, %1043, %1044 : vector<1x16xi32>
    %1046 = arith.andi %1041, %1045 : vector<1x16xi1>
    %c0_i32_529 = arith.constant 0 : i32
    %1047 = vector.broadcast %c0_i32_529 : i32 to vector<1x16xi32>
    %1048 = arith.addi %831, %1047 : vector<1x16xi32>
    %c0_i32_530 = arith.constant 0 : i32
    %1049 = vector.broadcast %c0_i32_530 : i32 to vector<1x16xi32>
    %1050 = arith.cmpi sge, %1048, %1049 : vector<1x16xi32>
    %1051 = arith.andi %1046, %1050 : vector<1x16xi1>
    %c0_i32_531 = arith.constant 0 : i32
    %1052 = vector.broadcast %c0_i32_531 : i32 to vector<1x16xi32>
    %1053 = arith.addi %831, %1052 : vector<1x16xi32>
    %c4_i32_532 = arith.constant 4 : i32
    %1054 = vector.broadcast %c4_i32_532 : i32 to vector<1x16xi32>
    %1055 = arith.cmpi slt, %1053, %1054 : vector<1x16xi32>
    %1056 = arith.andi %1051, %1055 : vector<1x16xi1>
    %cst_533 = arith.constant 0.000000e+00 : f32
    %1057 = vector.shape_cast %1056 : vector<1x16xi1> to vector<1x16xi1>
    %1058 = vector.broadcast %1057 : vector<1x16xi1> to vector<32x16xi1>
    %1059 = vector.broadcast %cst_533 : f32 to vector<32x16xf32>
    %1060 = arith.select %1058, %1037, %1059 : vector<32x16xi1>, vector<32x16xf32>
    %1061 = arith.truncf %1060 : vector<32x16xf32> to vector<32x16xbf16>
    %c7_534 = arith.constant 7 : index
    %c0_535 = arith.constant 0 : index
    %c0_536 = arith.constant 0 : index
    %1062 = vector.load %arg8[%c7_534, %c0_535, %c0_536] : memref<9x16x32xbf16, #tpu.memory_space<vmem>>, vector<1x16x32xbf16>
    %1063 = vector.shape_cast %1062 : vector<1x16x32xbf16> to vector<16x32xbf16>
    %cst_537 = arith.constant dense<0.000000e+00> : vector<16x16xf32>
    %1064 = tpu.matmul %1063, %1061, %cst_537 {dimension_numbers = #tpu.dot_dimension_numbers<[1], [0], [0], [1], [0, 0, 1, 1], [], []>} : vector<16x32xbf16>, vector<32x16xbf16>, vector<16x16xf32> -> vector<16x16xf32>
    %1065 = arith.addf %1036, %1064 : vector<16x16xf32>
    %c0_538 = arith.constant 0 : index
    %c10_539 = arith.constant 10 : index
    %1066 = vector.load %arg24[%c0_538, %c10_539] : memref<32x290xf32, #tpu.memory_space<vmem>>, vector<32x16xf32>
    %c1_i32_540 = arith.constant 1 : i32
    %1067 = vector.broadcast %c1_i32_540 : i32 to vector<1x16xi32>
    %1068 = arith.addi %829, %1067 : vector<1x16xi32>
    %c0_i32_541 = arith.constant 0 : i32
    %1069 = vector.broadcast %c0_i32_541 : i32 to vector<1x16xi32>
    %1070 = arith.cmpi sge, %1068, %1069 : vector<1x16xi32>
    %c1_i32_542 = arith.constant 1 : i32
    %1071 = vector.broadcast %c1_i32_542 : i32 to vector<1x16xi32>
    %1072 = arith.addi %829, %1071 : vector<1x16xi32>
    %c4_i32_543 = arith.constant 4 : i32
    %1073 = vector.broadcast %c4_i32_543 : i32 to vector<1x16xi32>
    %1074 = arith.cmpi slt, %1072, %1073 : vector<1x16xi32>
    %1075 = arith.andi %1070, %1074 : vector<1x16xi1>
    %c1_i32_544 = arith.constant 1 : i32
    %1076 = vector.broadcast %c1_i32_544 : i32 to vector<1x16xi32>
    %1077 = arith.addi %831, %1076 : vector<1x16xi32>
    %c0_i32_545 = arith.constant 0 : i32
    %1078 = vector.broadcast %c0_i32_545 : i32 to vector<1x16xi32>
    %1079 = arith.cmpi sge, %1077, %1078 : vector<1x16xi32>
    %1080 = arith.andi %1075, %1079 : vector<1x16xi1>
    %c1_i32_546 = arith.constant 1 : i32
    %1081 = vector.broadcast %c1_i32_546 : i32 to vector<1x16xi32>
    %1082 = arith.addi %831, %1081 : vector<1x16xi32>
    %c4_i32_547 = arith.constant 4 : i32
    %1083 = vector.broadcast %c4_i32_547 : i32 to vector<1x16xi32>
    %1084 = arith.cmpi slt, %1082, %1083 : vector<1x16xi32>
    %1085 = arith.andi %1080, %1084 : vector<1x16xi1>
    %cst_548 = arith.constant 0.000000e+00 : f32
    %1086 = vector.shape_cast %1085 : vector<1x16xi1> to vector<1x16xi1>
    %1087 = vector.broadcast %1086 : vector<1x16xi1> to vector<32x16xi1>
    %1088 = vector.broadcast %cst_548 : f32 to vector<32x16xf32>
    %1089 = arith.select %1087, %1066, %1088 : vector<32x16xi1>, vector<32x16xf32>
    %1090 = arith.truncf %1089 : vector<32x16xf32> to vector<32x16xbf16>
    %c8_549 = arith.constant 8 : index
    %c0_550 = arith.constant 0 : index
    %c0_551 = arith.constant 0 : index
    %1091 = vector.load %arg8[%c8_549, %c0_550, %c0_551] : memref<9x16x32xbf16, #tpu.memory_space<vmem>>, vector<1x16x32xbf16>
    %1092 = vector.shape_cast %1091 : vector<1x16x32xbf16> to vector<16x32xbf16>
    %cst_552 = arith.constant dense<0.000000e+00> : vector<16x16xf32>
    %1093 = tpu.matmul %1092, %1090, %cst_552 {dimension_numbers = #tpu.dot_dimension_numbers<[1], [0], [0], [1], [0, 0, 1, 1], [], []>} : vector<16x32xbf16>, vector<32x16xbf16>, vector<16x16xf32> -> vector<16x16xf32>
    %1094 = arith.addf %1065, %1093 : vector<16x16xf32>
    %c0_553 = arith.constant 0 : index
    %c0_554 = arith.constant 0 : index
    %1095 = vector.load %arg9[%c0_553, %c0_554] : memref<16x1xf32, #tpu.memory_space<vmem>>, vector<16x1xf32>
    %1096 = vector.broadcast %1095 : vector<16x1xf32> to vector<16x16xf32>
    %1097 = arith.addf %1094, %1096 : vector<16x16xf32>
    %cst_555 = arith.constant 0.000000e+00 : f32
    %1098 = vector.broadcast %cst_555 : f32 to vector<16x16xf32>
    %1099 = arith.maximumf %1097, %1098 : vector<16x16xf32>
    %c0_556 = arith.constant 0 : index
    %c0_557 = arith.constant 0 : index
    %1100 = vector.load %arg21[%c0_556, %c0_557] : memref<16x64xf32, #tpu.memory_space<vmem>>, vector<16x64xf32>
    %cst_558 = arith.constant dense<0.000000e+00> : vector<16x64xf32>
    %1101 = tpu.matmul %1099, %1100, %cst_558 {dimension_numbers = #tpu.dot_dimension_numbers<[1], [0], [0], [1], [0, 0, 1, 1], [], []>} : vector<16x16xf32>, vector<16x64xf32>, vector<16x64xf32> -> vector<16x64xf32>
    %1102 = tpu.iota {dimensions = array<i32: 1>} : vector<1x64xi32>
    %c3_i32_559 = arith.constant 3 : i32
    %1103 = vector.broadcast %c3_i32_559 : i32 to vector<1x64xi32>
    %1104 = arith.shrsi %1102, %1103 : vector<1x64xi32>
    %c7_i32_560 = arith.constant 7 : i32
    %1105 = vector.broadcast %c7_i32_560 : i32 to vector<1x64xi32>
    %1106 = arith.andi %1102, %1105 : vector<1x64xi32>
    %cst_561 = arith.constant 0.000000e+00 : f32
    %1107 = vector.broadcast %cst_561 : f32 to vector<16x64xf32>
    %c0_562 = arith.constant 0 : index
    %c9_563 = arith.constant 9 : index
    %1108 = vector.load %arg24[%c0_562, %c9_563] : memref<32x290xf32, #tpu.memory_space<vmem>>, vector<16x64xf32>
    tpu.vector_store %arg24[%c0_562, %c9_563], %1101 {strides = array<i32>} : memref<32x290xf32, #tpu.memory_space<vmem>>, vector<16x64xf32>,
    %c0_564 = arith.constant 0 : index
    %c0_565 = arith.constant 0 : index
    %1109 = vector.load %arg24[%c0_564, %c0_565] : memref<32x290xf32, #tpu.memory_space<vmem>>, vector<16x64xf32>
    %c-1_i32_566 = arith.constant -1 : i32
    %1110 = vector.broadcast %c-1_i32_566 : i32 to vector<1x64xi32>
    %1111 = arith.addi %1104, %1110 : vector<1x64xi32>
    %c0_i32_567 = arith.constant 0 : i32
    %1112 = vector.broadcast %c0_i32_567 : i32 to vector<1x64xi32>
    %1113 = arith.cmpi sge, %1111, %1112 : vector<1x64xi32>
    %c-1_i32_568 = arith.constant -1 : i32
    %1114 = vector.broadcast %c-1_i32_568 : i32 to vector<1x64xi32>
    %1115 = arith.addi %1104, %1114 : vector<1x64xi32>
    %c8_i32_569 = arith.constant 8 : i32
    %1116 = vector.broadcast %c8_i32_569 : i32 to vector<1x64xi32>
    %1117 = arith.cmpi slt, %1115, %1116 : vector<1x64xi32>
    %1118 = arith.andi %1113, %1117 : vector<1x64xi1>
    %c-1_i32_570 = arith.constant -1 : i32
    %1119 = vector.broadcast %c-1_i32_570 : i32 to vector<1x64xi32>
    %1120 = arith.addi %1106, %1119 : vector<1x64xi32>
    %c0_i32_571 = arith.constant 0 : i32
    %1121 = vector.broadcast %c0_i32_571 : i32 to vector<1x64xi32>
    %1122 = arith.cmpi sge, %1120, %1121 : vector<1x64xi32>
    %1123 = arith.andi %1118, %1122 : vector<1x64xi1>
    %c-1_i32_572 = arith.constant -1 : i32
    %1124 = vector.broadcast %c-1_i32_572 : i32 to vector<1x64xi32>
    %1125 = arith.addi %1106, %1124 : vector<1x64xi32>
    %c8_i32_573 = arith.constant 8 : i32
    %1126 = vector.broadcast %c8_i32_573 : i32 to vector<1x64xi32>
    %1127 = arith.cmpi slt, %1125, %1126 : vector<1x64xi32>
    %1128 = arith.andi %1123, %1127 : vector<1x64xi1>
    %cst_574 = arith.constant 0.000000e+00 : f32
    %1129 = vector.shape_cast %1128 : vector<1x64xi1> to vector<1x64xi1>
    %1130 = vector.broadcast %1129 : vector<1x64xi1> to vector<16x64xi1>
    %1131 = vector.broadcast %cst_574 : f32 to vector<16x64xf32>
    %1132 = arith.select %1130, %1109, %1131 : vector<16x64xi1>, vector<16x64xf32>
    %1133 = arith.truncf %1132 : vector<16x64xf32> to vector<16x64xbf16>
    %c0_575 = arith.constant 0 : index
    %c0_576 = arith.constant 0 : index
    %c0_577 = arith.constant 0 : index
    %1134 = vector.load %arg10[%c0_575, %c0_576, %c0_577] : memref<9x16x16xbf16, #tpu.memory_space<vmem>>, vector<1x16x16xbf16>
    %1135 = vector.shape_cast %1134 : vector<1x16x16xbf16> to vector<16x16xbf16>
    %cst_578 = arith.constant dense<0.000000e+00> : vector<16x64xf32>
    %1136 = tpu.matmul %1135, %1133, %cst_578 {dimension_numbers = #tpu.dot_dimension_numbers<[1], [0], [0], [1], [0, 0, 1, 1], [], []>} : vector<16x16xbf16>, vector<16x64xbf16>, vector<16x64xf32> -> vector<16x64xf32>
    %1137 = arith.addf %1107, %1136 : vector<16x64xf32>
    %c0_579 = arith.constant 0 : index
    %c1_580 = arith.constant 1 : index
    %1138 = vector.load %arg24[%c0_579, %c1_580] : memref<32x290xf32, #tpu.memory_space<vmem>>, vector<16x64xf32>
    %c-1_i32_581 = arith.constant -1 : i32
    %1139 = vector.broadcast %c-1_i32_581 : i32 to vector<1x64xi32>
    %1140 = arith.addi %1104, %1139 : vector<1x64xi32>
    %c0_i32_582 = arith.constant 0 : i32
    %1141 = vector.broadcast %c0_i32_582 : i32 to vector<1x64xi32>
    %1142 = arith.cmpi sge, %1140, %1141 : vector<1x64xi32>
    %c-1_i32_583 = arith.constant -1 : i32
    %1143 = vector.broadcast %c-1_i32_583 : i32 to vector<1x64xi32>
    %1144 = arith.addi %1104, %1143 : vector<1x64xi32>
    %c8_i32_584 = arith.constant 8 : i32
    %1145 = vector.broadcast %c8_i32_584 : i32 to vector<1x64xi32>
    %1146 = arith.cmpi slt, %1144, %1145 : vector<1x64xi32>
    %1147 = arith.andi %1142, %1146 : vector<1x64xi1>
    %c0_i32_585 = arith.constant 0 : i32
    %1148 = vector.broadcast %c0_i32_585 : i32 to vector<1x64xi32>
    %1149 = arith.addi %1106, %1148 : vector<1x64xi32>
    %c0_i32_586 = arith.constant 0 : i32
    %1150 = vector.broadcast %c0_i32_586 : i32 to vector<1x64xi32>
    %1151 = arith.cmpi sge, %1149, %1150 : vector<1x64xi32>
    %1152 = arith.andi %1147, %1151 : vector<1x64xi1>
    %c0_i32_587 = arith.constant 0 : i32
    %1153 = vector.broadcast %c0_i32_587 : i32 to vector<1x64xi32>
    %1154 = arith.addi %1106, %1153 : vector<1x64xi32>
    %c8_i32_588 = arith.constant 8 : i32
    %1155 = vector.broadcast %c8_i32_588 : i32 to vector<1x64xi32>
    %1156 = arith.cmpi slt, %1154, %1155 : vector<1x64xi32>
    %1157 = arith.andi %1152, %1156 : vector<1x64xi1>
    %cst_589 = arith.constant 0.000000e+00 : f32
    %1158 = vector.shape_cast %1157 : vector<1x64xi1> to vector<1x64xi1>
    %1159 = vector.broadcast %1158 : vector<1x64xi1> to vector<16x64xi1>
    %1160 = vector.broadcast %cst_589 : f32 to vector<16x64xf32>
    %1161 = arith.select %1159, %1138, %1160 : vector<16x64xi1>, vector<16x64xf32>
    %1162 = arith.truncf %1161 : vector<16x64xf32> to vector<16x64xbf16>
    %c1_590 = arith.constant 1 : index
    %c0_591 = arith.constant 0 : index
    %c0_592 = arith.constant 0 : index
    %1163 = vector.load %arg10[%c1_590, %c0_591, %c0_592] : memref<9x16x16xbf16, #tpu.memory_space<vmem>>, vector<1x16x16xbf16>
    %1164 = vector.shape_cast %1163 : vector<1x16x16xbf16> to vector<16x16xbf16>
    %cst_593 = arith.constant dense<0.000000e+00> : vector<16x64xf32>
    %1165 = tpu.matmul %1164, %1162, %cst_593 {dimension_numbers = #tpu.dot_dimension_numbers<[1], [0], [0], [1], [0, 0, 1, 1], [], []>} : vector<16x16xbf16>, vector<16x64xbf16>, vector<16x64xf32> -> vector<16x64xf32>
    %1166 = arith.addf %1137, %1165 : vector<16x64xf32>
    %c0_594 = arith.constant 0 : index
    %c2_595 = arith.constant 2 : index
    %1167 = vector.load %arg24[%c0_594, %c2_595] : memref<32x290xf32, #tpu.memory_space<vmem>>, vector<16x64xf32>
    %c-1_i32_596 = arith.constant -1 : i32
    %1168 = vector.broadcast %c-1_i32_596 : i32 to vector<1x64xi32>
    %1169 = arith.addi %1104, %1168 : vector<1x64xi32>
    %c0_i32_597 = arith.constant 0 : i32
    %1170 = vector.broadcast %c0_i32_597 : i32 to vector<1x64xi32>
    %1171 = arith.cmpi sge, %1169, %1170 : vector<1x64xi32>
    %c-1_i32_598 = arith.constant -1 : i32
    %1172 = vector.broadcast %c-1_i32_598 : i32 to vector<1x64xi32>
    %1173 = arith.addi %1104, %1172 : vector<1x64xi32>
    %c8_i32_599 = arith.constant 8 : i32
    %1174 = vector.broadcast %c8_i32_599 : i32 to vector<1x64xi32>
    %1175 = arith.cmpi slt, %1173, %1174 : vector<1x64xi32>
    %1176 = arith.andi %1171, %1175 : vector<1x64xi1>
    %c1_i32_600 = arith.constant 1 : i32
    %1177 = vector.broadcast %c1_i32_600 : i32 to vector<1x64xi32>
    %1178 = arith.addi %1106, %1177 : vector<1x64xi32>
    %c0_i32_601 = arith.constant 0 : i32
    %1179 = vector.broadcast %c0_i32_601 : i32 to vector<1x64xi32>
    %1180 = arith.cmpi sge, %1178, %1179 : vector<1x64xi32>
    %1181 = arith.andi %1176, %1180 : vector<1x64xi1>
    %c1_i32_602 = arith.constant 1 : i32
    %1182 = vector.broadcast %c1_i32_602 : i32 to vector<1x64xi32>
    %1183 = arith.addi %1106, %1182 : vector<1x64xi32>
    %c8_i32_603 = arith.constant 8 : i32
    %1184 = vector.broadcast %c8_i32_603 : i32 to vector<1x64xi32>
    %1185 = arith.cmpi slt, %1183, %1184 : vector<1x64xi32>
    %1186 = arith.andi %1181, %1185 : vector<1x64xi1>
    %cst_604 = arith.constant 0.000000e+00 : f32
    %1187 = vector.shape_cast %1186 : vector<1x64xi1> to vector<1x64xi1>
    %1188 = vector.broadcast %1187 : vector<1x64xi1> to vector<16x64xi1>
    %1189 = vector.broadcast %cst_604 : f32 to vector<16x64xf32>
    %1190 = arith.select %1188, %1167, %1189 : vector<16x64xi1>, vector<16x64xf32>
    %1191 = arith.truncf %1190 : vector<16x64xf32> to vector<16x64xbf16>
    %c2_605 = arith.constant 2 : index
    %c0_606 = arith.constant 0 : index
    %c0_607 = arith.constant 0 : index
    %1192 = vector.load %arg10[%c2_605, %c0_606, %c0_607] : memref<9x16x16xbf16, #tpu.memory_space<vmem>>, vector<1x16x16xbf16>
    %1193 = vector.shape_cast %1192 : vector<1x16x16xbf16> to vector<16x16xbf16>
    %cst_608 = arith.constant dense<0.000000e+00> : vector<16x64xf32>
    %1194 = tpu.matmul %1193, %1191, %cst_608 {dimension_numbers = #tpu.dot_dimension_numbers<[1], [0], [0], [1], [0, 0, 1, 1], [], []>} : vector<16x16xbf16>, vector<16x64xbf16>, vector<16x64xf32> -> vector<16x64xf32>
    %1195 = arith.addf %1166, %1194 : vector<16x64xf32>
    %c0_609 = arith.constant 0 : index
    %c8_610 = arith.constant 8 : index
    %1196 = vector.load %arg24[%c0_609, %c8_610] : memref<32x290xf32, #tpu.memory_space<vmem>>, vector<16x64xf32>
    %c0_i32_611 = arith.constant 0 : i32
    %1197 = vector.broadcast %c0_i32_611 : i32 to vector<1x64xi32>
    %1198 = arith.addi %1104, %1197 : vector<1x64xi32>
    %c0_i32_612 = arith.constant 0 : i32
    %1199 = vector.broadcast %c0_i32_612 : i32 to vector<1x64xi32>
    %1200 = arith.cmpi sge, %1198, %1199 : vector<1x64xi32>
    %c0_i32_613 = arith.constant 0 : i32
    %1201 = vector.broadcast %c0_i32_613 : i32 to vector<1x64xi32>
    %1202 = arith.addi %1104, %1201 : vector<1x64xi32>
    %c8_i32_614 = arith.constant 8 : i32
    %1203 = vector.broadcast %c8_i32_614 : i32 to vector<1x64xi32>
    %1204 = arith.cmpi slt, %1202, %1203 : vector<1x64xi32>
    %1205 = arith.andi %1200, %1204 : vector<1x64xi1>
    %c-1_i32_615 = arith.constant -1 : i32
    %1206 = vector.broadcast %c-1_i32_615 : i32 to vector<1x64xi32>
    %1207 = arith.addi %1106, %1206 : vector<1x64xi32>
    %c0_i32_616 = arith.constant 0 : i32
    %1208 = vector.broadcast %c0_i32_616 : i32 to vector<1x64xi32>
    %1209 = arith.cmpi sge, %1207, %1208 : vector<1x64xi32>
    %1210 = arith.andi %1205, %1209 : vector<1x64xi1>
    %c-1_i32_617 = arith.constant -1 : i32
    %1211 = vector.broadcast %c-1_i32_617 : i32 to vector<1x64xi32>
    %1212 = arith.addi %1106, %1211 : vector<1x64xi32>
    %c8_i32_618 = arith.constant 8 : i32
    %1213 = vector.broadcast %c8_i32_618 : i32 to vector<1x64xi32>
    %1214 = arith.cmpi slt, %1212, %1213 : vector<1x64xi32>
    %1215 = arith.andi %1210, %1214 : vector<1x64xi1>
    %cst_619 = arith.constant 0.000000e+00 : f32
    %1216 = vector.shape_cast %1215 : vector<1x64xi1> to vector<1x64xi1>
    %1217 = vector.broadcast %1216 : vector<1x64xi1> to vector<16x64xi1>
    %1218 = vector.broadcast %cst_619 : f32 to vector<16x64xf32>
    %1219 = arith.select %1217, %1196, %1218 : vector<16x64xi1>, vector<16x64xf32>
    %1220 = arith.truncf %1219 : vector<16x64xf32> to vector<16x64xbf16>
    %c3_620 = arith.constant 3 : index
    %c0_621 = arith.constant 0 : index
    %c0_622 = arith.constant 0 : index
    %1221 = vector.load %arg10[%c3_620, %c0_621, %c0_622] : memref<9x16x16xbf16, #tpu.memory_space<vmem>>, vector<1x16x16xbf16>
    %1222 = vector.shape_cast %1221 : vector<1x16x16xbf16> to vector<16x16xbf16>
    %cst_623 = arith.constant dense<0.000000e+00> : vector<16x64xf32>
    %1223 = tpu.matmul %1222, %1220, %cst_623 {dimension_numbers = #tpu.dot_dimension_numbers<[1], [0], [0], [1], [0, 0, 1, 1], [], []>} : vector<16x16xbf16>, vector<16x64xbf16>, vector<16x64xf32> -> vector<16x64xf32>
    %1224 = arith.addf %1195, %1223 : vector<16x64xf32>
    %c0_624 = arith.constant 0 : index
    %c9_625 = arith.constant 9 : index
    %1225 = vector.load %arg24[%c0_624, %c9_625] : memref<32x290xf32, #tpu.memory_space<vmem>>, vector<16x64xf32>
    %c0_i32_626 = arith.constant 0 : i32
    %1226 = vector.broadcast %c0_i32_626 : i32 to vector<1x64xi32>
    %1227 = arith.addi %1104, %1226 : vector<1x64xi32>
    %c0_i32_627 = arith.constant 0 : i32
    %1228 = vector.broadcast %c0_i32_627 : i32 to vector<1x64xi32>
    %1229 = arith.cmpi sge, %1227, %1228 : vector<1x64xi32>
    %c0_i32_628 = arith.constant 0 : i32
    %1230 = vector.broadcast %c0_i32_628 : i32 to vector<1x64xi32>
    %1231 = arith.addi %1104, %1230 : vector<1x64xi32>
    %c8_i32_629 = arith.constant 8 : i32
    %1232 = vector.broadcast %c8_i32_629 : i32 to vector<1x64xi32>
    %1233 = arith.cmpi slt, %1231, %1232 : vector<1x64xi32>
    %1234 = arith.andi %1229, %1233 : vector<1x64xi1>
    %c0_i32_630 = arith.constant 0 : i32
    %1235 = vector.broadcast %c0_i32_630 : i32 to vector<1x64xi32>
    %1236 = arith.addi %1106, %1235 : vector<1x64xi32>
    %c0_i32_631 = arith.constant 0 : i32
    %1237 = vector.broadcast %c0_i32_631 : i32 to vector<1x64xi32>
    %1238 = arith.cmpi sge, %1236, %1237 : vector<1x64xi32>
    %1239 = arith.andi %1234, %1238 : vector<1x64xi1>
    %c0_i32_632 = arith.constant 0 : i32
    %1240 = vector.broadcast %c0_i32_632 : i32 to vector<1x64xi32>
    %1241 = arith.addi %1106, %1240 : vector<1x64xi32>
    %c8_i32_633 = arith.constant 8 : i32
    %1242 = vector.broadcast %c8_i32_633 : i32 to vector<1x64xi32>
    %1243 = arith.cmpi slt, %1241, %1242 : vector<1x64xi32>
    %1244 = arith.andi %1239, %1243 : vector<1x64xi1>
    %cst_634 = arith.constant 0.000000e+00 : f32
    %1245 = vector.shape_cast %1244 : vector<1x64xi1> to vector<1x64xi1>
    %1246 = vector.broadcast %1245 : vector<1x64xi1> to vector<16x64xi1>
    %1247 = vector.broadcast %cst_634 : f32 to vector<16x64xf32>
    %1248 = arith.select %1246, %1225, %1247 : vector<16x64xi1>, vector<16x64xf32>
    %1249 = arith.truncf %1248 : vector<16x64xf32> to vector<16x64xbf16>
    %c4_635 = arith.constant 4 : index
    %c0_636 = arith.constant 0 : index
    %c0_637 = arith.constant 0 : index
    %1250 = vector.load %arg10[%c4_635, %c0_636, %c0_637] : memref<9x16x16xbf16, #tpu.memory_space<vmem>>, vector<1x16x16xbf16>
    %1251 = vector.shape_cast %1250 : vector<1x16x16xbf16> to vector<16x16xbf16>
    %cst_638 = arith.constant dense<0.000000e+00> : vector<16x64xf32>
    %1252 = tpu.matmul %1251, %1249, %cst_638 {dimension_numbers = #tpu.dot_dimension_numbers<[1], [0], [0], [1], [0, 0, 1, 1], [], []>} : vector<16x16xbf16>, vector<16x64xbf16>, vector<16x64xf32> -> vector<16x64xf32>
    %1253 = arith.addf %1224, %1252 : vector<16x64xf32>
    %c0_639 = arith.constant 0 : index
    %c10_640 = arith.constant 10 : index
    %1254 = vector.load %arg24[%c0_639, %c10_640] : memref<32x290xf32, #tpu.memory_space<vmem>>, vector<16x64xf32>
    %c0_i32_641 = arith.constant 0 : i32
    %1255 = vector.broadcast %c0_i32_641 : i32 to vector<1x64xi32>
    %1256 = arith.addi %1104, %1255 : vector<1x64xi32>
    %c0_i32_642 = arith.constant 0 : i32
    %1257 = vector.broadcast %c0_i32_642 : i32 to vector<1x64xi32>
    %1258 = arith.cmpi sge, %1256, %1257 : vector<1x64xi32>
    %c0_i32_643 = arith.constant 0 : i32
    %1259 = vector.broadcast %c0_i32_643 : i32 to vector<1x64xi32>
    %1260 = arith.addi %1104, %1259 : vector<1x64xi32>
    %c8_i32_644 = arith.constant 8 : i32
    %1261 = vector.broadcast %c8_i32_644 : i32 to vector<1x64xi32>
    %1262 = arith.cmpi slt, %1260, %1261 : vector<1x64xi32>
    %1263 = arith.andi %1258, %1262 : vector<1x64xi1>
    %c1_i32_645 = arith.constant 1 : i32
    %1264 = vector.broadcast %c1_i32_645 : i32 to vector<1x64xi32>
    %1265 = arith.addi %1106, %1264 : vector<1x64xi32>
    %c0_i32_646 = arith.constant 0 : i32
    %1266 = vector.broadcast %c0_i32_646 : i32 to vector<1x64xi32>
    %1267 = arith.cmpi sge, %1265, %1266 : vector<1x64xi32>
    %1268 = arith.andi %1263, %1267 : vector<1x64xi1>
    %c1_i32_647 = arith.constant 1 : i32
    %1269 = vector.broadcast %c1_i32_647 : i32 to vector<1x64xi32>
    %1270 = arith.addi %1106, %1269 : vector<1x64xi32>
    %c8_i32_648 = arith.constant 8 : i32
    %1271 = vector.broadcast %c8_i32_648 : i32 to vector<1x64xi32>
    %1272 = arith.cmpi slt, %1270, %1271 : vector<1x64xi32>
    %1273 = arith.andi %1268, %1272 : vector<1x64xi1>
    %cst_649 = arith.constant 0.000000e+00 : f32
    %1274 = vector.shape_cast %1273 : vector<1x64xi1> to vector<1x64xi1>
    %1275 = vector.broadcast %1274 : vector<1x64xi1> to vector<16x64xi1>
    %1276 = vector.broadcast %cst_649 : f32 to vector<16x64xf32>
    %1277 = arith.select %1275, %1254, %1276 : vector<16x64xi1>, vector<16x64xf32>
    %1278 = arith.truncf %1277 : vector<16x64xf32> to vector<16x64xbf16>
    %c5_650 = arith.constant 5 : index
    %c0_651 = arith.constant 0 : index
    %c0_652 = arith.constant 0 : index
    %1279 = vector.load %arg10[%c5_650, %c0_651, %c0_652] : memref<9x16x16xbf16, #tpu.memory_space<vmem>>, vector<1x16x16xbf16>
    %1280 = vector.shape_cast %1279 : vector<1x16x16xbf16> to vector<16x16xbf16>
    %cst_653 = arith.constant dense<0.000000e+00> : vector<16x64xf32>
    %1281 = tpu.matmul %1280, %1278, %cst_653 {dimension_numbers = #tpu.dot_dimension_numbers<[1], [0], [0], [1], [0, 0, 1, 1], [], []>} : vector<16x16xbf16>, vector<16x64xbf16>, vector<16x64xf32> -> vector<16x64xf32>
    %1282 = arith.addf %1253, %1281 : vector<16x64xf32>
    %c0_654 = arith.constant 0 : index
    %c16_655 = arith.constant 16 : index
    %1283 = vector.load %arg24[%c0_654, %c16_655] : memref<32x290xf32, #tpu.memory_space<vmem>>, vector<16x64xf32>
    %c1_i32_656 = arith.constant 1 : i32
    %1284 = vector.broadcast %c1_i32_656 : i32 to vector<1x64xi32>
    %1285 = arith.addi %1104, %1284 : vector<1x64xi32>
    %c0_i32_657 = arith.constant 0 : i32
    %1286 = vector.broadcast %c0_i32_657 : i32 to vector<1x64xi32>
    %1287 = arith.cmpi sge, %1285, %1286 : vector<1x64xi32>
    %c1_i32_658 = arith.constant 1 : i32
    %1288 = vector.broadcast %c1_i32_658 : i32 to vector<1x64xi32>
    %1289 = arith.addi %1104, %1288 : vector<1x64xi32>
    %c8_i32_659 = arith.constant 8 : i32
    %1290 = vector.broadcast %c8_i32_659 : i32 to vector<1x64xi32>
    %1291 = arith.cmpi slt, %1289, %1290 : vector<1x64xi32>
    %1292 = arith.andi %1287, %1291 : vector<1x64xi1>
    %c-1_i32_660 = arith.constant -1 : i32
    %1293 = vector.broadcast %c-1_i32_660 : i32 to vector<1x64xi32>
    %1294 = arith.addi %1106, %1293 : vector<1x64xi32>
    %c0_i32_661 = arith.constant 0 : i32
    %1295 = vector.broadcast %c0_i32_661 : i32 to vector<1x64xi32>
    %1296 = arith.cmpi sge, %1294, %1295 : vector<1x64xi32>
    %1297 = arith.andi %1292, %1296 : vector<1x64xi1>
    %c-1_i32_662 = arith.constant -1 : i32
    %1298 = vector.broadcast %c-1_i32_662 : i32 to vector<1x64xi32>
    %1299 = arith.addi %1106, %1298 : vector<1x64xi32>
    %c8_i32_663 = arith.constant 8 : i32
    %1300 = vector.broadcast %c8_i32_663 : i32 to vector<1x64xi32>
    %1301 = arith.cmpi slt, %1299, %1300 : vector<1x64xi32>
    %1302 = arith.andi %1297, %1301 : vector<1x64xi1>
    %cst_664 = arith.constant 0.000000e+00 : f32
    %1303 = vector.shape_cast %1302 : vector<1x64xi1> to vector<1x64xi1>
    %1304 = vector.broadcast %1303 : vector<1x64xi1> to vector<16x64xi1>
    %1305 = vector.broadcast %cst_664 : f32 to vector<16x64xf32>
    %1306 = arith.select %1304, %1283, %1305 : vector<16x64xi1>, vector<16x64xf32>
    %1307 = arith.truncf %1306 : vector<16x64xf32> to vector<16x64xbf16>
    %c6_665 = arith.constant 6 : index
    %c0_666 = arith.constant 0 : index
    %c0_667 = arith.constant 0 : index
    %1308 = vector.load %arg10[%c6_665, %c0_666, %c0_667] : memref<9x16x16xbf16, #tpu.memory_space<vmem>>, vector<1x16x16xbf16>
    %1309 = vector.shape_cast %1308 : vector<1x16x16xbf16> to vector<16x16xbf16>
    %cst_668 = arith.constant dense<0.000000e+00> : vector<16x64xf32>
    %1310 = tpu.matmul %1309, %1307, %cst_668 {dimension_numbers = #tpu.dot_dimension_numbers<[1], [0], [0], [1], [0, 0, 1, 1], [], []>} : vector<16x16xbf16>, vector<16x64xbf16>, vector<16x64xf32> -> vector<16x64xf32>
    %1311 = arith.addf %1282, %1310 : vector<16x64xf32>
    %c0_669 = arith.constant 0 : index
    %c17_670 = arith.constant 17 : index
    %1312 = vector.load %arg24[%c0_669, %c17_670] : memref<32x290xf32, #tpu.memory_space<vmem>>, vector<16x64xf32>
    %c1_i32_671 = arith.constant 1 : i32
    %1313 = vector.broadcast %c1_i32_671 : i32 to vector<1x64xi32>
    %1314 = arith.addi %1104, %1313 : vector<1x64xi32>
    %c0_i32_672 = arith.constant 0 : i32
    %1315 = vector.broadcast %c0_i32_672 : i32 to vector<1x64xi32>
    %1316 = arith.cmpi sge, %1314, %1315 : vector<1x64xi32>
    %c1_i32_673 = arith.constant 1 : i32
    %1317 = vector.broadcast %c1_i32_673 : i32 to vector<1x64xi32>
    %1318 = arith.addi %1104, %1317 : vector<1x64xi32>
    %c8_i32_674 = arith.constant 8 : i32
    %1319 = vector.broadcast %c8_i32_674 : i32 to vector<1x64xi32>
    %1320 = arith.cmpi slt, %1318, %1319 : vector<1x64xi32>
    %1321 = arith.andi %1316, %1320 : vector<1x64xi1>
    %c0_i32_675 = arith.constant 0 : i32
    %1322 = vector.broadcast %c0_i32_675 : i32 to vector<1x64xi32>
    %1323 = arith.addi %1106, %1322 : vector<1x64xi32>
    %c0_i32_676 = arith.constant 0 : i32
    %1324 = vector.broadcast %c0_i32_676 : i32 to vector<1x64xi32>
    %1325 = arith.cmpi sge, %1323, %1324 : vector<1x64xi32>
    %1326 = arith.andi %1321, %1325 : vector<1x64xi1>
    %c0_i32_677 = arith.constant 0 : i32
    %1327 = vector.broadcast %c0_i32_677 : i32 to vector<1x64xi32>
    %1328 = arith.addi %1106, %1327 : vector<1x64xi32>
    %c8_i32_678 = arith.constant 8 : i32
    %1329 = vector.broadcast %c8_i32_678 : i32 to vector<1x64xi32>
    %1330 = arith.cmpi slt, %1328, %1329 : vector<1x64xi32>
    %1331 = arith.andi %1326, %1330 : vector<1x64xi1>
    %cst_679 = arith.constant 0.000000e+00 : f32
    %1332 = vector.shape_cast %1331 : vector<1x64xi1> to vector<1x64xi1>
    %1333 = vector.broadcast %1332 : vector<1x64xi1> to vector<16x64xi1>
    %1334 = vector.broadcast %cst_679 : f32 to vector<16x64xf32>
    %1335 = arith.select %1333, %1312, %1334 : vector<16x64xi1>, vector<16x64xf32>
    %1336 = arith.truncf %1335 : vector<16x64xf32> to vector<16x64xbf16>
    %c7_680 = arith.constant 7 : index
    %c0_681 = arith.constant 0 : index
    %c0_682 = arith.constant 0 : index
    %1337 = vector.load %arg10[%c7_680, %c0_681, %c0_682] : memref<9x16x16xbf16, #tpu.memory_space<vmem>>, vector<1x16x16xbf16>
    %1338 = vector.shape_cast %1337 : vector<1x16x16xbf16> to vector<16x16xbf16>
    %cst_683 = arith.constant dense<0.000000e+00> : vector<16x64xf32>
    %1339 = tpu.matmul %1338, %1336, %cst_683 {dimension_numbers = #tpu.dot_dimension_numbers<[1], [0], [0], [1], [0, 0, 1, 1], [], []>} : vector<16x16xbf16>, vector<16x64xbf16>, vector<16x64xf32> -> vector<16x64xf32>
    %1340 = arith.addf %1311, %1339 : vector<16x64xf32>
    %c0_684 = arith.constant 0 : index
    %c18_685 = arith.constant 18 : index
    %1341 = vector.load %arg24[%c0_684, %c18_685] : memref<32x290xf32, #tpu.memory_space<vmem>>, vector<16x64xf32>
    %c1_i32_686 = arith.constant 1 : i32
    %1342 = vector.broadcast %c1_i32_686 : i32 to vector<1x64xi32>
    %1343 = arith.addi %1104, %1342 : vector<1x64xi32>
    %c0_i32_687 = arith.constant 0 : i32
    %1344 = vector.broadcast %c0_i32_687 : i32 to vector<1x64xi32>
    %1345 = arith.cmpi sge, %1343, %1344 : vector<1x64xi32>
    %c1_i32_688 = arith.constant 1 : i32
    %1346 = vector.broadcast %c1_i32_688 : i32 to vector<1x64xi32>
    %1347 = arith.addi %1104, %1346 : vector<1x64xi32>
    %c8_i32_689 = arith.constant 8 : i32
    %1348 = vector.broadcast %c8_i32_689 : i32 to vector<1x64xi32>
    %1349 = arith.cmpi slt, %1347, %1348 : vector<1x64xi32>
    %1350 = arith.andi %1345, %1349 : vector<1x64xi1>
    %c1_i32_690 = arith.constant 1 : i32
    %1351 = vector.broadcast %c1_i32_690 : i32 to vector<1x64xi32>
    %1352 = arith.addi %1106, %1351 : vector<1x64xi32>
    %c0_i32_691 = arith.constant 0 : i32
    %1353 = vector.broadcast %c0_i32_691 : i32 to vector<1x64xi32>
    %1354 = arith.cmpi sge, %1352, %1353 : vector<1x64xi32>
    %1355 = arith.andi %1350, %1354 : vector<1x64xi1>
    %c1_i32_692 = arith.constant 1 : i32
    %1356 = vector.broadcast %c1_i32_692 : i32 to vector<1x64xi32>
    %1357 = arith.addi %1106, %1356 : vector<1x64xi32>
    %c8_i32_693 = arith.constant 8 : i32
    %1358 = vector.broadcast %c8_i32_693 : i32 to vector<1x64xi32>
    %1359 = arith.cmpi slt, %1357, %1358 : vector<1x64xi32>
    %1360 = arith.andi %1355, %1359 : vector<1x64xi1>
    %cst_694 = arith.constant 0.000000e+00 : f32
    %1361 = vector.shape_cast %1360 : vector<1x64xi1> to vector<1x64xi1>
    %1362 = vector.broadcast %1361 : vector<1x64xi1> to vector<16x64xi1>
    %1363 = vector.broadcast %cst_694 : f32 to vector<16x64xf32>
    %1364 = arith.select %1362, %1341, %1363 : vector<16x64xi1>, vector<16x64xf32>
    %1365 = arith.truncf %1364 : vector<16x64xf32> to vector<16x64xbf16>
    %c8_695 = arith.constant 8 : index
    %c0_696 = arith.constant 0 : index
    %c0_697 = arith.constant 0 : index
    %1366 = vector.load %arg10[%c8_695, %c0_696, %c0_697] : memref<9x16x16xbf16, #tpu.memory_space<vmem>>, vector<1x16x16xbf16>
    %1367 = vector.shape_cast %1366 : vector<1x16x16xbf16> to vector<16x16xbf16>
    %cst_698 = arith.constant dense<0.000000e+00> : vector<16x64xf32>
    %1368 = tpu.matmul %1367, %1365, %cst_698 {dimension_numbers = #tpu.dot_dimension_numbers<[1], [0], [0], [1], [0, 0, 1, 1], [], []>} : vector<16x16xbf16>, vector<16x64xbf16>, vector<16x64xf32> -> vector<16x64xf32>
    %1369 = arith.addf %1340, %1368 : vector<16x64xf32>
    %c0_699 = arith.constant 0 : index
    %c9_700 = arith.constant 9 : index
    %1370 = vector.load %arg24[%c0_699, %c9_700] : memref<32x290xf32, #tpu.memory_space<vmem>>, vector<16x64xf32>
    tpu.vector_store %arg24[%c0_699, %c9_700], %551 {strides = array<i32>} : memref<32x290xf32, #tpu.memory_space<vmem>>, vector<16x64xf32>,
    %c0_701 = arith.constant 0 : index
    %c0_702 = arith.constant 0 : index
    %1371 = vector.load %arg24[%c0_701, %c0_702] : memref<32x290xf32, #tpu.memory_space<vmem>>, vector<16x64xf32>
    %c-1_i32_703 = arith.constant -1 : i32
    %1372 = vector.broadcast %c-1_i32_703 : i32 to vector<1x64xi32>
    %1373 = arith.addi %1104, %1372 : vector<1x64xi32>
    %c0_i32_704 = arith.constant 0 : i32
    %1374 = vector.broadcast %c0_i32_704 : i32 to vector<1x64xi32>
    %1375 = arith.cmpi sge, %1373, %1374 : vector<1x64xi32>
    %c-1_i32_705 = arith.constant -1 : i32
    %1376 = vector.broadcast %c-1_i32_705 : i32 to vector<1x64xi32>
    %1377 = arith.addi %1104, %1376 : vector<1x64xi32>
    %c8_i32_706 = arith.constant 8 : i32
    %1378 = vector.broadcast %c8_i32_706 : i32 to vector<1x64xi32>
    %1379 = arith.cmpi slt, %1377, %1378 : vector<1x64xi32>
    %1380 = arith.andi %1375, %1379 : vector<1x64xi1>
    %c-1_i32_707 = arith.constant -1 : i32
    %1381 = vector.broadcast %c-1_i32_707 : i32 to vector<1x64xi32>
    %1382 = arith.addi %1106, %1381 : vector<1x64xi32>
    %c0_i32_708 = arith.constant 0 : i32
    %1383 = vector.broadcast %c0_i32_708 : i32 to vector<1x64xi32>
    %1384 = arith.cmpi sge, %1382, %1383 : vector<1x64xi32>
    %1385 = arith.andi %1380, %1384 : vector<1x64xi1>
    %c-1_i32_709 = arith.constant -1 : i32
    %1386 = vector.broadcast %c-1_i32_709 : i32 to vector<1x64xi32>
    %1387 = arith.addi %1106, %1386 : vector<1x64xi32>
    %c8_i32_710 = arith.constant 8 : i32
    %1388 = vector.broadcast %c8_i32_710 : i32 to vector<1x64xi32>
    %1389 = arith.cmpi slt, %1387, %1388 : vector<1x64xi32>
    %1390 = arith.andi %1385, %1389 : vector<1x64xi1>
    %cst_711 = arith.constant 0.000000e+00 : f32
    %1391 = vector.shape_cast %1390 : vector<1x64xi1> to vector<1x64xi1>
    %1392 = vector.broadcast %1391 : vector<1x64xi1> to vector<16x64xi1>
    %1393 = vector.broadcast %cst_711 : f32 to vector<16x64xf32>
    %1394 = arith.select %1392, %1371, %1393 : vector<16x64xi1>, vector<16x64xf32>
    %1395 = arith.truncf %1394 : vector<16x64xf32> to vector<16x64xbf16>
    %c0_712 = arith.constant 0 : index
    %c0_713 = arith.constant 0 : index
    %c0_714 = arith.constant 0 : index
    %1396 = vector.load %arg11[%c0_712, %c0_713, %c0_714] : memref<9x16x16xbf16, #tpu.memory_space<vmem>>, vector<1x16x16xbf16>
    %1397 = vector.shape_cast %1396 : vector<1x16x16xbf16> to vector<16x16xbf16>
    %cst_715 = arith.constant dense<0.000000e+00> : vector<16x64xf32>
    %1398 = tpu.matmul %1397, %1395, %cst_715 {dimension_numbers = #tpu.dot_dimension_numbers<[1], [0], [0], [1], [0, 0, 1, 1], [], []>} : vector<16x16xbf16>, vector<16x64xbf16>, vector<16x64xf32> -> vector<16x64xf32>
    %1399 = arith.addf %1369, %1398 : vector<16x64xf32>
    %c0_716 = arith.constant 0 : index
    %c1_717 = arith.constant 1 : index
    %1400 = vector.load %arg24[%c0_716, %c1_717] : memref<32x290xf32, #tpu.memory_space<vmem>>, vector<16x64xf32>
    %c-1_i32_718 = arith.constant -1 : i32
    %1401 = vector.broadcast %c-1_i32_718 : i32 to vector<1x64xi32>
    %1402 = arith.addi %1104, %1401 : vector<1x64xi32>
    %c0_i32_719 = arith.constant 0 : i32
    %1403 = vector.broadcast %c0_i32_719 : i32 to vector<1x64xi32>
    %1404 = arith.cmpi sge, %1402, %1403 : vector<1x64xi32>
    %c-1_i32_720 = arith.constant -1 : i32
    %1405 = vector.broadcast %c-1_i32_720 : i32 to vector<1x64xi32>
    %1406 = arith.addi %1104, %1405 : vector<1x64xi32>
    %c8_i32_721 = arith.constant 8 : i32
    %1407 = vector.broadcast %c8_i32_721 : i32 to vector<1x64xi32>
    %1408 = arith.cmpi slt, %1406, %1407 : vector<1x64xi32>
    %1409 = arith.andi %1404, %1408 : vector<1x64xi1>
    %c0_i32_722 = arith.constant 0 : i32
    %1410 = vector.broadcast %c0_i32_722 : i32 to vector<1x64xi32>
    %1411 = arith.addi %1106, %1410 : vector<1x64xi32>
    %c0_i32_723 = arith.constant 0 : i32
    %1412 = vector.broadcast %c0_i32_723 : i32 to vector<1x64xi32>
    %1413 = arith.cmpi sge, %1411, %1412 : vector<1x64xi32>
    %1414 = arith.andi %1409, %1413 : vector<1x64xi1>
    %c0_i32_724 = arith.constant 0 : i32
    %1415 = vector.broadcast %c0_i32_724 : i32 to vector<1x64xi32>
    %1416 = arith.addi %1106, %1415 : vector<1x64xi32>
    %c8_i32_725 = arith.constant 8 : i32
    %1417 = vector.broadcast %c8_i32_725 : i32 to vector<1x64xi32>
    %1418 = arith.cmpi slt, %1416, %1417 : vector<1x64xi32>
    %1419 = arith.andi %1414, %1418 : vector<1x64xi1>
    %cst_726 = arith.constant 0.000000e+00 : f32
    %1420 = vector.shape_cast %1419 : vector<1x64xi1> to vector<1x64xi1>
    %1421 = vector.broadcast %1420 : vector<1x64xi1> to vector<16x64xi1>
    %1422 = vector.broadcast %cst_726 : f32 to vector<16x64xf32>
    %1423 = arith.select %1421, %1400, %1422 : vector<16x64xi1>, vector<16x64xf32>
    %1424 = arith.truncf %1423 : vector<16x64xf32> to vector<16x64xbf16>
    %c1_727 = arith.constant 1 : index
    %c0_728 = arith.constant 0 : index
    %c0_729 = arith.constant 0 : index
    %1425 = vector.load %arg11[%c1_727, %c0_728, %c0_729] : memref<9x16x16xbf16, #tpu.memory_space<vmem>>, vector<1x16x16xbf16>
    %1426 = vector.shape_cast %1425 : vector<1x16x16xbf16> to vector<16x16xbf16>
    %cst_730 = arith.constant dense<0.000000e+00> : vector<16x64xf32>
    %1427 = tpu.matmul %1426, %1424, %cst_730 {dimension_numbers = #tpu.dot_dimension_numbers<[1], [0], [0], [1], [0, 0, 1, 1], [], []>} : vector<16x16xbf16>, vector<16x64xbf16>, vector<16x64xf32> -> vector<16x64xf32>
    %1428 = arith.addf %1399, %1427 : vector<16x64xf32>
    %c0_731 = arith.constant 0 : index
    %c2_732 = arith.constant 2 : index
    %1429 = vector.load %arg24[%c0_731, %c2_732] : memref<32x290xf32, #tpu.memory_space<vmem>>, vector<16x64xf32>
    %c-1_i32_733 = arith.constant -1 : i32
    %1430 = vector.broadcast %c-1_i32_733 : i32 to vector<1x64xi32>
    %1431 = arith.addi %1104, %1430 : vector<1x64xi32>
    %c0_i32_734 = arith.constant 0 : i32
    %1432 = vector.broadcast %c0_i32_734 : i32 to vector<1x64xi32>
    %1433 = arith.cmpi sge, %1431, %1432 : vector<1x64xi32>
    %c-1_i32_735 = arith.constant -1 : i32
    %1434 = vector.broadcast %c-1_i32_735 : i32 to vector<1x64xi32>
    %1435 = arith.addi %1104, %1434 : vector<1x64xi32>
    %c8_i32_736 = arith.constant 8 : i32
    %1436 = vector.broadcast %c8_i32_736 : i32 to vector<1x64xi32>
    %1437 = arith.cmpi slt, %1435, %1436 : vector<1x64xi32>
    %1438 = arith.andi %1433, %1437 : vector<1x64xi1>
    %c1_i32_737 = arith.constant 1 : i32
    %1439 = vector.broadcast %c1_i32_737 : i32 to vector<1x64xi32>
    %1440 = arith.addi %1106, %1439 : vector<1x64xi32>
    %c0_i32_738 = arith.constant 0 : i32
    %1441 = vector.broadcast %c0_i32_738 : i32 to vector<1x64xi32>
    %1442 = arith.cmpi sge, %1440, %1441 : vector<1x64xi32>
    %1443 = arith.andi %1438, %1442 : vector<1x64xi1>
    %c1_i32_739 = arith.constant 1 : i32
    %1444 = vector.broadcast %c1_i32_739 : i32 to vector<1x64xi32>
    %1445 = arith.addi %1106, %1444 : vector<1x64xi32>
    %c8_i32_740 = arith.constant 8 : i32
    %1446 = vector.broadcast %c8_i32_740 : i32 to vector<1x64xi32>
    %1447 = arith.cmpi slt, %1445, %1446 : vector<1x64xi32>
    %1448 = arith.andi %1443, %1447 : vector<1x64xi1>
    %cst_741 = arith.constant 0.000000e+00 : f32
    %1449 = vector.shape_cast %1448 : vector<1x64xi1> to vector<1x64xi1>
    %1450 = vector.broadcast %1449 : vector<1x64xi1> to vector<16x64xi1>
    %1451 = vector.broadcast %cst_741 : f32 to vector<16x64xf32>
    %1452 = arith.select %1450, %1429, %1451 : vector<16x64xi1>, vector<16x64xf32>
    %1453 = arith.truncf %1452 : vector<16x64xf32> to vector<16x64xbf16>
    %c2_742 = arith.constant 2 : index
    %c0_743 = arith.constant 0 : index
    %c0_744 = arith.constant 0 : index
    %1454 = vector.load %arg11[%c2_742, %c0_743, %c0_744] : memref<9x16x16xbf16, #tpu.memory_space<vmem>>, vector<1x16x16xbf16>
    %1455 = vector.shape_cast %1454 : vector<1x16x16xbf16> to vector<16x16xbf16>
    %cst_745 = arith.constant dense<0.000000e+00> : vector<16x64xf32>
    %1456 = tpu.matmul %1455, %1453, %cst_745 {dimension_numbers = #tpu.dot_dimension_numbers<[1], [0], [0], [1], [0, 0, 1, 1], [], []>} : vector<16x16xbf16>, vector<16x64xbf16>, vector<16x64xf32> -> vector<16x64xf32>
    %1457 = arith.addf %1428, %1456 : vector<16x64xf32>
    %c0_746 = arith.constant 0 : index
    %c8_747 = arith.constant 8 : index
    %1458 = vector.load %arg24[%c0_746, %c8_747] : memref<32x290xf32, #tpu.memory_space<vmem>>, vector<16x64xf32>
    %c0_i32_748 = arith.constant 0 : i32
    %1459 = vector.broadcast %c0_i32_748 : i32 to vector<1x64xi32>
    %1460 = arith.addi %1104, %1459 : vector<1x64xi32>
    %c0_i32_749 = arith.constant 0 : i32
    %1461 = vector.broadcast %c0_i32_749 : i32 to vector<1x64xi32>
    %1462 = arith.cmpi sge, %1460, %1461 : vector<1x64xi32>
    %c0_i32_750 = arith.constant 0 : i32
    %1463 = vector.broadcast %c0_i32_750 : i32 to vector<1x64xi32>
    %1464 = arith.addi %1104, %1463 : vector<1x64xi32>
    %c8_i32_751 = arith.constant 8 : i32
    %1465 = vector.broadcast %c8_i32_751 : i32 to vector<1x64xi32>
    %1466 = arith.cmpi slt, %1464, %1465 : vector<1x64xi32>
    %1467 = arith.andi %1462, %1466 : vector<1x64xi1>
    %c-1_i32_752 = arith.constant -1 : i32
    %1468 = vector.broadcast %c-1_i32_752 : i32 to vector<1x64xi32>
    %1469 = arith.addi %1106, %1468 : vector<1x64xi32>
    %c0_i32_753 = arith.constant 0 : i32
    %1470 = vector.broadcast %c0_i32_753 : i32 to vector<1x64xi32>
    %1471 = arith.cmpi sge, %1469, %1470 : vector<1x64xi32>
    %1472 = arith.andi %1467, %1471 : vector<1x64xi1>
    %c-1_i32_754 = arith.constant -1 : i32
    %1473 = vector.broadcast %c-1_i32_754 : i32 to vector<1x64xi32>
    %1474 = arith.addi %1106, %1473 : vector<1x64xi32>
    %c8_i32_755 = arith.constant 8 : i32
    %1475 = vector.broadcast %c8_i32_755 : i32 to vector<1x64xi32>
    %1476 = arith.cmpi slt, %1474, %1475 : vector<1x64xi32>
    %1477 = arith.andi %1472, %1476 : vector<1x64xi1>
    %cst_756 = arith.constant 0.000000e+00 : f32
    %1478 = vector.shape_cast %1477 : vector<1x64xi1> to vector<1x64xi1>
    %1479 = vector.broadcast %1478 : vector<1x64xi1> to vector<16x64xi1>
    %1480 = vector.broadcast %cst_756 : f32 to vector<16x64xf32>
    %1481 = arith.select %1479, %1458, %1480 : vector<16x64xi1>, vector<16x64xf32>
    %1482 = arith.truncf %1481 : vector<16x64xf32> to vector<16x64xbf16>
    %c3_757 = arith.constant 3 : index
    %c0_758 = arith.constant 0 : index
    %c0_759 = arith.constant 0 : index
    %1483 = vector.load %arg11[%c3_757, %c0_758, %c0_759] : memref<9x16x16xbf16, #tpu.memory_space<vmem>>, vector<1x16x16xbf16>
    %1484 = vector.shape_cast %1483 : vector<1x16x16xbf16> to vector<16x16xbf16>
    %cst_760 = arith.constant dense<0.000000e+00> : vector<16x64xf32>
    %1485 = tpu.matmul %1484, %1482, %cst_760 {dimension_numbers = #tpu.dot_dimension_numbers<[1], [0], [0], [1], [0, 0, 1, 1], [], []>} : vector<16x16xbf16>, vector<16x64xbf16>, vector<16x64xf32> -> vector<16x64xf32>
    %1486 = arith.addf %1457, %1485 : vector<16x64xf32>
    %c0_761 = arith.constant 0 : index
    %c9_762 = arith.constant 9 : index
    %1487 = vector.load %arg24[%c0_761, %c9_762] : memref<32x290xf32, #tpu.memory_space<vmem>>, vector<16x64xf32>
    %c0_i32_763 = arith.constant 0 : i32
    %1488 = vector.broadcast %c0_i32_763 : i32 to vector<1x64xi32>
    %1489 = arith.addi %1104, %1488 : vector<1x64xi32>
    %c0_i32_764 = arith.constant 0 : i32
    %1490 = vector.broadcast %c0_i32_764 : i32 to vector<1x64xi32>
    %1491 = arith.cmpi sge, %1489, %1490 : vector<1x64xi32>
    %c0_i32_765 = arith.constant 0 : i32
    %1492 = vector.broadcast %c0_i32_765 : i32 to vector<1x64xi32>
    %1493 = arith.addi %1104, %1492 : vector<1x64xi32>
    %c8_i32_766 = arith.constant 8 : i32
    %1494 = vector.broadcast %c8_i32_766 : i32 to vector<1x64xi32>
    %1495 = arith.cmpi slt, %1493, %1494 : vector<1x64xi32>
    %1496 = arith.andi %1491, %1495 : vector<1x64xi1>
    %c0_i32_767 = arith.constant 0 : i32
    %1497 = vector.broadcast %c0_i32_767 : i32 to vector<1x64xi32>
    %1498 = arith.addi %1106, %1497 : vector<1x64xi32>
    %c0_i32_768 = arith.constant 0 : i32
    %1499 = vector.broadcast %c0_i32_768 : i32 to vector<1x64xi32>
    %1500 = arith.cmpi sge, %1498, %1499 : vector<1x64xi32>
    %1501 = arith.andi %1496, %1500 : vector<1x64xi1>
    %c0_i32_769 = arith.constant 0 : i32
    %1502 = vector.broadcast %c0_i32_769 : i32 to vector<1x64xi32>
    %1503 = arith.addi %1106, %1502 : vector<1x64xi32>
    %c8_i32_770 = arith.constant 8 : i32
    %1504 = vector.broadcast %c8_i32_770 : i32 to vector<1x64xi32>
    %1505 = arith.cmpi slt, %1503, %1504 : vector<1x64xi32>
    %1506 = arith.andi %1501, %1505 : vector<1x64xi1>
    %cst_771 = arith.constant 0.000000e+00 : f32
    %1507 = vector.shape_cast %1506 : vector<1x64xi1> to vector<1x64xi1>
    %1508 = vector.broadcast %1507 : vector<1x64xi1> to vector<16x64xi1>
    %1509 = vector.broadcast %cst_771 : f32 to vector<16x64xf32>
    %1510 = arith.select %1508, %1487, %1509 : vector<16x64xi1>, vector<16x64xf32>
    %1511 = arith.truncf %1510 : vector<16x64xf32> to vector<16x64xbf16>
    %c4_772 = arith.constant 4 : index
    %c0_773 = arith.constant 0 : index
    %c0_774 = arith.constant 0 : index
    %1512 = vector.load %arg11[%c4_772, %c0_773, %c0_774] : memref<9x16x16xbf16, #tpu.memory_space<vmem>>, vector<1x16x16xbf16>
    %1513 = vector.shape_cast %1512 : vector<1x16x16xbf16> to vector<16x16xbf16>
    %cst_775 = arith.constant dense<0.000000e+00> : vector<16x64xf32>
    %1514 = tpu.matmul %1513, %1511, %cst_775 {dimension_numbers = #tpu.dot_dimension_numbers<[1], [0], [0], [1], [0, 0, 1, 1], [], []>} : vector<16x16xbf16>, vector<16x64xbf16>, vector<16x64xf32> -> vector<16x64xf32>
    %1515 = arith.addf %1486, %1514 : vector<16x64xf32>
    %c0_776 = arith.constant 0 : index
    %c10_777 = arith.constant 10 : index
    %1516 = vector.load %arg24[%c0_776, %c10_777] : memref<32x290xf32, #tpu.memory_space<vmem>>, vector<16x64xf32>
    %c0_i32_778 = arith.constant 0 : i32
    %1517 = vector.broadcast %c0_i32_778 : i32 to vector<1x64xi32>
    %1518 = arith.addi %1104, %1517 : vector<1x64xi32>
    %c0_i32_779 = arith.constant 0 : i32
    %1519 = vector.broadcast %c0_i32_779 : i32 to vector<1x64xi32>
    %1520 = arith.cmpi sge, %1518, %1519 : vector<1x64xi32>
    %c0_i32_780 = arith.constant 0 : i32
    %1521 = vector.broadcast %c0_i32_780 : i32 to vector<1x64xi32>
    %1522 = arith.addi %1104, %1521 : vector<1x64xi32>
    %c8_i32_781 = arith.constant 8 : i32
    %1523 = vector.broadcast %c8_i32_781 : i32 to vector<1x64xi32>
    %1524 = arith.cmpi slt, %1522, %1523 : vector<1x64xi32>
    %1525 = arith.andi %1520, %1524 : vector<1x64xi1>
    %c1_i32_782 = arith.constant 1 : i32
    %1526 = vector.broadcast %c1_i32_782 : i32 to vector<1x64xi32>
    %1527 = arith.addi %1106, %1526 : vector<1x64xi32>
    %c0_i32_783 = arith.constant 0 : i32
    %1528 = vector.broadcast %c0_i32_783 : i32 to vector<1x64xi32>
    %1529 = arith.cmpi sge, %1527, %1528 : vector<1x64xi32>
    %1530 = arith.andi %1525, %1529 : vector<1x64xi1>
    %c1_i32_784 = arith.constant 1 : i32
    %1531 = vector.broadcast %c1_i32_784 : i32 to vector<1x64xi32>
    %1532 = arith.addi %1106, %1531 : vector<1x64xi32>
    %c8_i32_785 = arith.constant 8 : i32
    %1533 = vector.broadcast %c8_i32_785 : i32 to vector<1x64xi32>
    %1534 = arith.cmpi slt, %1532, %1533 : vector<1x64xi32>
    %1535 = arith.andi %1530, %1534 : vector<1x64xi1>
    %cst_786 = arith.constant 0.000000e+00 : f32
    %1536 = vector.shape_cast %1535 : vector<1x64xi1> to vector<1x64xi1>
    %1537 = vector.broadcast %1536 : vector<1x64xi1> to vector<16x64xi1>
    %1538 = vector.broadcast %cst_786 : f32 to vector<16x64xf32>
    %1539 = arith.select %1537, %1516, %1538 : vector<16x64xi1>, vector<16x64xf32>
    %1540 = arith.truncf %1539 : vector<16x64xf32> to vector<16x64xbf16>
    %c5_787 = arith.constant 5 : index
    %c0_788 = arith.constant 0 : index
    %c0_789 = arith.constant 0 : index
    %1541 = vector.load %arg11[%c5_787, %c0_788, %c0_789] : memref<9x16x16xbf16, #tpu.memory_space<vmem>>, vector<1x16x16xbf16>
    %1542 = vector.shape_cast %1541 : vector<1x16x16xbf16> to vector<16x16xbf16>
    %cst_790 = arith.constant dense<0.000000e+00> : vector<16x64xf32>
    %1543 = tpu.matmul %1542, %1540, %cst_790 {dimension_numbers = #tpu.dot_dimension_numbers<[1], [0], [0], [1], [0, 0, 1, 1], [], []>} : vector<16x16xbf16>, vector<16x64xbf16>, vector<16x64xf32> -> vector<16x64xf32>
    %1544 = arith.addf %1515, %1543 : vector<16x64xf32>
    %c0_791 = arith.constant 0 : index
    %c16_792 = arith.constant 16 : index
    %1545 = vector.load %arg24[%c0_791, %c16_792] : memref<32x290xf32, #tpu.memory_space<vmem>>, vector<16x64xf32>
    %c1_i32_793 = arith.constant 1 : i32
    %1546 = vector.broadcast %c1_i32_793 : i32 to vector<1x64xi32>
    %1547 = arith.addi %1104, %1546 : vector<1x64xi32>
    %c0_i32_794 = arith.constant 0 : i32
    %1548 = vector.broadcast %c0_i32_794 : i32 to vector<1x64xi32>
    %1549 = arith.cmpi sge, %1547, %1548 : vector<1x64xi32>
    %c1_i32_795 = arith.constant 1 : i32
    %1550 = vector.broadcast %c1_i32_795 : i32 to vector<1x64xi32>
    %1551 = arith.addi %1104, %1550 : vector<1x64xi32>
    %c8_i32_796 = arith.constant 8 : i32
    %1552 = vector.broadcast %c8_i32_796 : i32 to vector<1x64xi32>
    %1553 = arith.cmpi slt, %1551, %1552 : vector<1x64xi32>
    %1554 = arith.andi %1549, %1553 : vector<1x64xi1>
    %c-1_i32_797 = arith.constant -1 : i32
    %1555 = vector.broadcast %c-1_i32_797 : i32 to vector<1x64xi32>
    %1556 = arith.addi %1106, %1555 : vector<1x64xi32>
    %c0_i32_798 = arith.constant 0 : i32
    %1557 = vector.broadcast %c0_i32_798 : i32 to vector<1x64xi32>
    %1558 = arith.cmpi sge, %1556, %1557 : vector<1x64xi32>
    %1559 = arith.andi %1554, %1558 : vector<1x64xi1>
    %c-1_i32_799 = arith.constant -1 : i32
    %1560 = vector.broadcast %c-1_i32_799 : i32 to vector<1x64xi32>
    %1561 = arith.addi %1106, %1560 : vector<1x64xi32>
    %c8_i32_800 = arith.constant 8 : i32
    %1562 = vector.broadcast %c8_i32_800 : i32 to vector<1x64xi32>
    %1563 = arith.cmpi slt, %1561, %1562 : vector<1x64xi32>
    %1564 = arith.andi %1559, %1563 : vector<1x64xi1>
    %cst_801 = arith.constant 0.000000e+00 : f32
    %1565 = vector.shape_cast %1564 : vector<1x64xi1> to vector<1x64xi1>
    %1566 = vector.broadcast %1565 : vector<1x64xi1> to vector<16x64xi1>
    %1567 = vector.broadcast %cst_801 : f32 to vector<16x64xf32>
    %1568 = arith.select %1566, %1545, %1567 : vector<16x64xi1>, vector<16x64xf32>
    %1569 = arith.truncf %1568 : vector<16x64xf32> to vector<16x64xbf16>
    %c6_802 = arith.constant 6 : index
    %c0_803 = arith.constant 0 : index
    %c0_804 = arith.constant 0 : index
    %1570 = vector.load %arg11[%c6_802, %c0_803, %c0_804] : memref<9x16x16xbf16, #tpu.memory_space<vmem>>, vector<1x16x16xbf16>
    %1571 = vector.shape_cast %1570 : vector<1x16x16xbf16> to vector<16x16xbf16>
    %cst_805 = arith.constant dense<0.000000e+00> : vector<16x64xf32>
    %1572 = tpu.matmul %1571, %1569, %cst_805 {dimension_numbers = #tpu.dot_dimension_numbers<[1], [0], [0], [1], [0, 0, 1, 1], [], []>} : vector<16x16xbf16>, vector<16x64xbf16>, vector<16x64xf32> -> vector<16x64xf32>
    %1573 = arith.addf %1544, %1572 : vector<16x64xf32>
    %c0_806 = arith.constant 0 : index
    %c17_807 = arith.constant 17 : index
    %1574 = vector.load %arg24[%c0_806, %c17_807] : memref<32x290xf32, #tpu.memory_space<vmem>>, vector<16x64xf32>
    %c1_i32_808 = arith.constant 1 : i32
    %1575 = vector.broadcast %c1_i32_808 : i32 to vector<1x64xi32>
    %1576 = arith.addi %1104, %1575 : vector<1x64xi32>
    %c0_i32_809 = arith.constant 0 : i32
    %1577 = vector.broadcast %c0_i32_809 : i32 to vector<1x64xi32>
    %1578 = arith.cmpi sge, %1576, %1577 : vector<1x64xi32>
    %c1_i32_810 = arith.constant 1 : i32
    %1579 = vector.broadcast %c1_i32_810 : i32 to vector<1x64xi32>
    %1580 = arith.addi %1104, %1579 : vector<1x64xi32>
    %c8_i32_811 = arith.constant 8 : i32
    %1581 = vector.broadcast %c8_i32_811 : i32 to vector<1x64xi32>
    %1582 = arith.cmpi slt, %1580, %1581 : vector<1x64xi32>
    %1583 = arith.andi %1578, %1582 : vector<1x64xi1>
    %c0_i32_812 = arith.constant 0 : i32
    %1584 = vector.broadcast %c0_i32_812 : i32 to vector<1x64xi32>
    %1585 = arith.addi %1106, %1584 : vector<1x64xi32>
    %c0_i32_813 = arith.constant 0 : i32
    %1586 = vector.broadcast %c0_i32_813 : i32 to vector<1x64xi32>
    %1587 = arith.cmpi sge, %1585, %1586 : vector<1x64xi32>
    %1588 = arith.andi %1583, %1587 : vector<1x64xi1>
    %c0_i32_814 = arith.constant 0 : i32
    %1589 = vector.broadcast %c0_i32_814 : i32 to vector<1x64xi32>
    %1590 = arith.addi %1106, %1589 : vector<1x64xi32>
    %c8_i32_815 = arith.constant 8 : i32
    %1591 = vector.broadcast %c8_i32_815 : i32 to vector<1x64xi32>
    %1592 = arith.cmpi slt, %1590, %1591 : vector<1x64xi32>
    %1593 = arith.andi %1588, %1592 : vector<1x64xi1>
    %cst_816 = arith.constant 0.000000e+00 : f32
    %1594 = vector.shape_cast %1593 : vector<1x64xi1> to vector<1x64xi1>
    %1595 = vector.broadcast %1594 : vector<1x64xi1> to vector<16x64xi1>
    %1596 = vector.broadcast %cst_816 : f32 to vector<16x64xf32>
    %1597 = arith.select %1595, %1574, %1596 : vector<16x64xi1>, vector<16x64xf32>
    %1598 = arith.truncf %1597 : vector<16x64xf32> to vector<16x64xbf16>
    %c7_817 = arith.constant 7 : index
    %c0_818 = arith.constant 0 : index
    %c0_819 = arith.constant 0 : index
    %1599 = vector.load %arg11[%c7_817, %c0_818, %c0_819] : memref<9x16x16xbf16, #tpu.memory_space<vmem>>, vector<1x16x16xbf16>
    %1600 = vector.shape_cast %1599 : vector<1x16x16xbf16> to vector<16x16xbf16>
    %cst_820 = arith.constant dense<0.000000e+00> : vector<16x64xf32>
    %1601 = tpu.matmul %1600, %1598, %cst_820 {dimension_numbers = #tpu.dot_dimension_numbers<[1], [0], [0], [1], [0, 0, 1, 1], [], []>} : vector<16x16xbf16>, vector<16x64xbf16>, vector<16x64xf32> -> vector<16x64xf32>
    %1602 = arith.addf %1573, %1601 : vector<16x64xf32>
    %c0_821 = arith.constant 0 : index
    %c18_822 = arith.constant 18 : index
    %1603 = vector.load %arg24[%c0_821, %c18_822] : memref<32x290xf32, #tpu.memory_space<vmem>>, vector<16x64xf32>
    %c1_i32_823 = arith.constant 1 : i32
    %1604 = vector.broadcast %c1_i32_823 : i32 to vector<1x64xi32>
    %1605 = arith.addi %1104, %1604 : vector<1x64xi32>
    %c0_i32_824 = arith.constant 0 : i32
    %1606 = vector.broadcast %c0_i32_824 : i32 to vector<1x64xi32>
    %1607 = arith.cmpi sge, %1605, %1606 : vector<1x64xi32>
    %c1_i32_825 = arith.constant 1 : i32
    %1608 = vector.broadcast %c1_i32_825 : i32 to vector<1x64xi32>
    %1609 = arith.addi %1104, %1608 : vector<1x64xi32>
    %c8_i32_826 = arith.constant 8 : i32
    %1610 = vector.broadcast %c8_i32_826 : i32 to vector<1x64xi32>
    %1611 = arith.cmpi slt, %1609, %1610 : vector<1x64xi32>
    %1612 = arith.andi %1607, %1611 : vector<1x64xi1>
    %c1_i32_827 = arith.constant 1 : i32
    %1613 = vector.broadcast %c1_i32_827 : i32 to vector<1x64xi32>
    %1614 = arith.addi %1106, %1613 : vector<1x64xi32>
    %c0_i32_828 = arith.constant 0 : i32
    %1615 = vector.broadcast %c0_i32_828 : i32 to vector<1x64xi32>
    %1616 = arith.cmpi sge, %1614, %1615 : vector<1x64xi32>
    %1617 = arith.andi %1612, %1616 : vector<1x64xi1>
    %c1_i32_829 = arith.constant 1 : i32
    %1618 = vector.broadcast %c1_i32_829 : i32 to vector<1x64xi32>
    %1619 = arith.addi %1106, %1618 : vector<1x64xi32>
    %c8_i32_830 = arith.constant 8 : i32
    %1620 = vector.broadcast %c8_i32_830 : i32 to vector<1x64xi32>
    %1621 = arith.cmpi slt, %1619, %1620 : vector<1x64xi32>
    %1622 = arith.andi %1617, %1621 : vector<1x64xi1>
    %cst_831 = arith.constant 0.000000e+00 : f32
    %1623 = vector.shape_cast %1622 : vector<1x64xi1> to vector<1x64xi1>
    %1624 = vector.broadcast %1623 : vector<1x64xi1> to vector<16x64xi1>
    %1625 = vector.broadcast %cst_831 : f32 to vector<16x64xf32>
    %1626 = arith.select %1624, %1603, %1625 : vector<16x64xi1>, vector<16x64xf32>
    %1627 = arith.truncf %1626 : vector<16x64xf32> to vector<16x64xbf16>
    %c8_832 = arith.constant 8 : index
    %c0_833 = arith.constant 0 : index
    %c0_834 = arith.constant 0 : index
    %1628 = vector.load %arg11[%c8_832, %c0_833, %c0_834] : memref<9x16x16xbf16, #tpu.memory_space<vmem>>, vector<1x16x16xbf16>
    %1629 = vector.shape_cast %1628 : vector<1x16x16xbf16> to vector<16x16xbf16>
    %cst_835 = arith.constant dense<0.000000e+00> : vector<16x64xf32>
    %1630 = tpu.matmul %1629, %1627, %cst_835 {dimension_numbers = #tpu.dot_dimension_numbers<[1], [0], [0], [1], [0, 0, 1, 1], [], []>} : vector<16x16xbf16>, vector<16x64xbf16>, vector<16x64xf32> -> vector<16x64xf32>
    %1631 = arith.addf %1602, %1630 : vector<16x64xf32>
    %c0_836 = arith.constant 0 : index
    %c0_837 = arith.constant 0 : index
    %1632 = vector.load %arg12[%c0_836, %c0_837] : memref<16x1xf32, #tpu.memory_space<vmem>>, vector<16x1xf32>
    %1633 = vector.broadcast %1632 : vector<16x1xf32> to vector<16x64xf32>
    %1634 = arith.addf %1631, %1633 : vector<16x64xf32>
    %cst_838 = arith.constant 0.000000e+00 : f32
    %1635 = vector.broadcast %cst_838 : f32 to vector<16x64xf32>
    %1636 = arith.maximumf %1634, %1635 : vector<16x64xf32>
    %c0_839 = arith.constant 0 : index
    %c0_840 = arith.constant 0 : index
    %1637 = vector.load %arg22[%c0_839, %c0_840] : memref<64x256xf32, #tpu.memory_space<vmem>>, vector<64x256xf32>
    %cst_841 = arith.constant dense<0.000000e+00> : vector<16x256xf32>
    %1638 = tpu.matmul %1636, %1637, %cst_841 {dimension_numbers = #tpu.dot_dimension_numbers<[1], [0], [0], [1], [0, 0, 1, 1], [], []>} : vector<16x64xf32>, vector<64x256xf32>, vector<16x256xf32> -> vector<16x256xf32>
    %1639 = tpu.iota {dimensions = array<i32: 1>} : vector<1x256xi32>
    %c4_i32_842 = arith.constant 4 : i32
    %1640 = vector.broadcast %c4_i32_842 : i32 to vector<1x256xi32>
    %1641 = arith.shrsi %1639, %1640 : vector<1x256xi32>
    %c15_i32_843 = arith.constant 15 : i32
    %1642 = vector.broadcast %c15_i32_843 : i32 to vector<1x256xi32>
    %1643 = arith.andi %1639, %1642 : vector<1x256xi32>
    %cst_844 = arith.constant 0.000000e+00 : f32
    %1644 = vector.broadcast %cst_844 : f32 to vector<8x256xf32>
    %c0_845 = arith.constant 0 : index
    %c17_846 = arith.constant 17 : index
    %1645 = vector.load %arg24[%c0_845, %c17_846] : memref<32x290xf32, #tpu.memory_space<vmem>>, vector<16x256xf32>
    tpu.vector_store %arg24[%c0_845, %c17_846], %1638 {strides = array<i32>} : memref<32x290xf32, #tpu.memory_space<vmem>>, vector<16x256xf32>,
    %c0_847 = arith.constant 0 : index
    %c0_848 = arith.constant 0 : index
    %1646 = vector.load %arg24[%c0_847, %c0_848] : memref<32x290xf32, #tpu.memory_space<vmem>>, vector<16x256xf32>
    %c-1_i32_849 = arith.constant -1 : i32
    %1647 = vector.broadcast %c-1_i32_849 : i32 to vector<1x256xi32>
    %1648 = arith.addi %1641, %1647 : vector<1x256xi32>
    %c0_i32_850 = arith.constant 0 : i32
    %1649 = vector.broadcast %c0_i32_850 : i32 to vector<1x256xi32>
    %1650 = arith.cmpi sge, %1648, %1649 : vector<1x256xi32>
    %c-1_i32_851 = arith.constant -1 : i32
    %1651 = vector.broadcast %c-1_i32_851 : i32 to vector<1x256xi32>
    %1652 = arith.addi %1641, %1651 : vector<1x256xi32>
    %c16_i32_852 = arith.constant 16 : i32
    %1653 = vector.broadcast %c16_i32_852 : i32 to vector<1x256xi32>
    %1654 = arith.cmpi slt, %1652, %1653 : vector<1x256xi32>
    %1655 = arith.andi %1650, %1654 : vector<1x256xi1>
    %c-1_i32_853 = arith.constant -1 : i32
    %1656 = vector.broadcast %c-1_i32_853 : i32 to vector<1x256xi32>
    %1657 = arith.addi %1643, %1656 : vector<1x256xi32>
    %c0_i32_854 = arith.constant 0 : i32
    %1658 = vector.broadcast %c0_i32_854 : i32 to vector<1x256xi32>
    %1659 = arith.cmpi sge, %1657, %1658 : vector<1x256xi32>
    %1660 = arith.andi %1655, %1659 : vector<1x256xi1>
    %c-1_i32_855 = arith.constant -1 : i32
    %1661 = vector.broadcast %c-1_i32_855 : i32 to vector<1x256xi32>
    %1662 = arith.addi %1643, %1661 : vector<1x256xi32>
    %c16_i32_856 = arith.constant 16 : i32
    %1663 = vector.broadcast %c16_i32_856 : i32 to vector<1x256xi32>
    %1664 = arith.cmpi slt, %1662, %1663 : vector<1x256xi32>
    %1665 = arith.andi %1660, %1664 : vector<1x256xi1>
    %cst_857 = arith.constant 0.000000e+00 : f32
    %1666 = vector.shape_cast %1665 : vector<1x256xi1> to vector<1x256xi1>
    %1667 = vector.broadcast %1666 : vector<1x256xi1> to vector<16x256xi1>
    %1668 = vector.broadcast %cst_857 : f32 to vector<16x256xf32>
    %1669 = arith.select %1667, %1646, %1668 : vector<16x256xi1>, vector<16x256xf32>
    %1670 = arith.truncf %1669 : vector<16x256xf32> to vector<16x256xbf16>
    %c0_858 = arith.constant 0 : index
    %c0_859 = arith.constant 0 : index
    %c0_860 = arith.constant 0 : index
    %1671 = vector.load %arg13[%c0_858, %c0_859, %c0_860] : memref<9x8x16xbf16, #tpu.memory_space<vmem>>, vector<1x8x16xbf16>
    %1672 = vector.shape_cast %1671 : vector<1x8x16xbf16> to vector<8x16xbf16>
    %cst_861 = arith.constant dense<0.000000e+00> : vector<8x256xf32>
    %1673 = tpu.matmul %1672, %1670, %cst_861 {dimension_numbers = #tpu.dot_dimension_numbers<[1], [0], [0], [1], [0, 0, 1, 1], [], []>} : vector<8x16xbf16>, vector<16x256xbf16>, vector<8x256xf32> -> vector<8x256xf32>
    %1674 = arith.addf %1644, %1673 : vector<8x256xf32>
    %c0_862 = arith.constant 0 : index
    %c1_863 = arith.constant 1 : index
    %1675 = vector.load %arg24[%c0_862, %c1_863] : memref<32x290xf32, #tpu.memory_space<vmem>>, vector<16x256xf32>
    %c-1_i32_864 = arith.constant -1 : i32
    %1676 = vector.broadcast %c-1_i32_864 : i32 to vector<1x256xi32>
    %1677 = arith.addi %1641, %1676 : vector<1x256xi32>
    %c0_i32_865 = arith.constant 0 : i32
    %1678 = vector.broadcast %c0_i32_865 : i32 to vector<1x256xi32>
    %1679 = arith.cmpi sge, %1677, %1678 : vector<1x256xi32>
    %c-1_i32_866 = arith.constant -1 : i32
    %1680 = vector.broadcast %c-1_i32_866 : i32 to vector<1x256xi32>
    %1681 = arith.addi %1641, %1680 : vector<1x256xi32>
    %c16_i32_867 = arith.constant 16 : i32
    %1682 = vector.broadcast %c16_i32_867 : i32 to vector<1x256xi32>
    %1683 = arith.cmpi slt, %1681, %1682 : vector<1x256xi32>
    %1684 = arith.andi %1679, %1683 : vector<1x256xi1>
    %c0_i32_868 = arith.constant 0 : i32
    %1685 = vector.broadcast %c0_i32_868 : i32 to vector<1x256xi32>
    %1686 = arith.addi %1643, %1685 : vector<1x256xi32>
    %c0_i32_869 = arith.constant 0 : i32
    %1687 = vector.broadcast %c0_i32_869 : i32 to vector<1x256xi32>
    %1688 = arith.cmpi sge, %1686, %1687 : vector<1x256xi32>
    %1689 = arith.andi %1684, %1688 : vector<1x256xi1>
    %c0_i32_870 = arith.constant 0 : i32
    %1690 = vector.broadcast %c0_i32_870 : i32 to vector<1x256xi32>
    %1691 = arith.addi %1643, %1690 : vector<1x256xi32>
    %c16_i32_871 = arith.constant 16 : i32
    %1692 = vector.broadcast %c16_i32_871 : i32 to vector<1x256xi32>
    %1693 = arith.cmpi slt, %1691, %1692 : vector<1x256xi32>
    %1694 = arith.andi %1689, %1693 : vector<1x256xi1>
    %cst_872 = arith.constant 0.000000e+00 : f32
    %1695 = vector.shape_cast %1694 : vector<1x256xi1> to vector<1x256xi1>
    %1696 = vector.broadcast %1695 : vector<1x256xi1> to vector<16x256xi1>
    %1697 = vector.broadcast %cst_872 : f32 to vector<16x256xf32>
    %1698 = arith.select %1696, %1675, %1697 : vector<16x256xi1>, vector<16x256xf32>
    %1699 = arith.truncf %1698 : vector<16x256xf32> to vector<16x256xbf16>
    %c1_873 = arith.constant 1 : index
    %c0_874 = arith.constant 0 : index
    %c0_875 = arith.constant 0 : index
    %1700 = vector.load %arg13[%c1_873, %c0_874, %c0_875] : memref<9x8x16xbf16, #tpu.memory_space<vmem>>, vector<1x8x16xbf16>
    %1701 = vector.shape_cast %1700 : vector<1x8x16xbf16> to vector<8x16xbf16>
    %cst_876 = arith.constant dense<0.000000e+00> : vector<8x256xf32>
    %1702 = tpu.matmul %1701, %1699, %cst_876 {dimension_numbers = #tpu.dot_dimension_numbers<[1], [0], [0], [1], [0, 0, 1, 1], [], []>} : vector<8x16xbf16>, vector<16x256xbf16>, vector<8x256xf32> -> vector<8x256xf32>
    %1703 = arith.addf %1674, %1702 : vector<8x256xf32>
    %c0_877 = arith.constant 0 : index
    %c2_878 = arith.constant 2 : index
    %1704 = vector.load %arg24[%c0_877, %c2_878] : memref<32x290xf32, #tpu.memory_space<vmem>>, vector<16x256xf32>
    %c-1_i32_879 = arith.constant -1 : i32
    %1705 = vector.broadcast %c-1_i32_879 : i32 to vector<1x256xi32>
    %1706 = arith.addi %1641, %1705 : vector<1x256xi32>
    %c0_i32_880 = arith.constant 0 : i32
    %1707 = vector.broadcast %c0_i32_880 : i32 to vector<1x256xi32>
    %1708 = arith.cmpi sge, %1706, %1707 : vector<1x256xi32>
    %c-1_i32_881 = arith.constant -1 : i32
    %1709 = vector.broadcast %c-1_i32_881 : i32 to vector<1x256xi32>
    %1710 = arith.addi %1641, %1709 : vector<1x256xi32>
    %c16_i32_882 = arith.constant 16 : i32
    %1711 = vector.broadcast %c16_i32_882 : i32 to vector<1x256xi32>
    %1712 = arith.cmpi slt, %1710, %1711 : vector<1x256xi32>
    %1713 = arith.andi %1708, %1712 : vector<1x256xi1>
    %c1_i32_883 = arith.constant 1 : i32
    %1714 = vector.broadcast %c1_i32_883 : i32 to vector<1x256xi32>
    %1715 = arith.addi %1643, %1714 : vector<1x256xi32>
    %c0_i32_884 = arith.constant 0 : i32
    %1716 = vector.broadcast %c0_i32_884 : i32 to vector<1x256xi32>
    %1717 = arith.cmpi sge, %1715, %1716 : vector<1x256xi32>
    %1718 = arith.andi %1713, %1717 : vector<1x256xi1>
    %c1_i32_885 = arith.constant 1 : i32
    %1719 = vector.broadcast %c1_i32_885 : i32 to vector<1x256xi32>
    %1720 = arith.addi %1643, %1719 : vector<1x256xi32>
    %c16_i32_886 = arith.constant 16 : i32
    %1721 = vector.broadcast %c16_i32_886 : i32 to vector<1x256xi32>
    %1722 = arith.cmpi slt, %1720, %1721 : vector<1x256xi32>
    %1723 = arith.andi %1718, %1722 : vector<1x256xi1>
    %cst_887 = arith.constant 0.000000e+00 : f32
    %1724 = vector.shape_cast %1723 : vector<1x256xi1> to vector<1x256xi1>
    %1725 = vector.broadcast %1724 : vector<1x256xi1> to vector<16x256xi1>
    %1726 = vector.broadcast %cst_887 : f32 to vector<16x256xf32>
    %1727 = arith.select %1725, %1704, %1726 : vector<16x256xi1>, vector<16x256xf32>
    %1728 = arith.truncf %1727 : vector<16x256xf32> to vector<16x256xbf16>
    %c2_888 = arith.constant 2 : index
    %c0_889 = arith.constant 0 : index
    %c0_890 = arith.constant 0 : index
    %1729 = vector.load %arg13[%c2_888, %c0_889, %c0_890] : memref<9x8x16xbf16, #tpu.memory_space<vmem>>, vector<1x8x16xbf16>
    %1730 = vector.shape_cast %1729 : vector<1x8x16xbf16> to vector<8x16xbf16>
    %cst_891 = arith.constant dense<0.000000e+00> : vector<8x256xf32>
    %1731 = tpu.matmul %1730, %1728, %cst_891 {dimension_numbers = #tpu.dot_dimension_numbers<[1], [0], [0], [1], [0, 0, 1, 1], [], []>} : vector<8x16xbf16>, vector<16x256xbf16>, vector<8x256xf32> -> vector<8x256xf32>
    %1732 = arith.addf %1703, %1731 : vector<8x256xf32>
    %c0_892 = arith.constant 0 : index
    %c16_893 = arith.constant 16 : index
    %1733 = vector.load %arg24[%c0_892, %c16_893] : memref<32x290xf32, #tpu.memory_space<vmem>>, vector<16x256xf32>
    %c0_i32_894 = arith.constant 0 : i32
    %1734 = vector.broadcast %c0_i32_894 : i32 to vector<1x256xi32>
    %1735 = arith.addi %1641, %1734 : vector<1x256xi32>
    %c0_i32_895 = arith.constant 0 : i32
    %1736 = vector.broadcast %c0_i32_895 : i32 to vector<1x256xi32>
    %1737 = arith.cmpi sge, %1735, %1736 : vector<1x256xi32>
    %c0_i32_896 = arith.constant 0 : i32
    %1738 = vector.broadcast %c0_i32_896 : i32 to vector<1x256xi32>
    %1739 = arith.addi %1641, %1738 : vector<1x256xi32>
    %c16_i32_897 = arith.constant 16 : i32
    %1740 = vector.broadcast %c16_i32_897 : i32 to vector<1x256xi32>
    %1741 = arith.cmpi slt, %1739, %1740 : vector<1x256xi32>
    %1742 = arith.andi %1737, %1741 : vector<1x256xi1>
    %c-1_i32_898 = arith.constant -1 : i32
    %1743 = vector.broadcast %c-1_i32_898 : i32 to vector<1x256xi32>
    %1744 = arith.addi %1643, %1743 : vector<1x256xi32>
    %c0_i32_899 = arith.constant 0 : i32
    %1745 = vector.broadcast %c0_i32_899 : i32 to vector<1x256xi32>
    %1746 = arith.cmpi sge, %1744, %1745 : vector<1x256xi32>
    %1747 = arith.andi %1742, %1746 : vector<1x256xi1>
    %c-1_i32_900 = arith.constant -1 : i32
    %1748 = vector.broadcast %c-1_i32_900 : i32 to vector<1x256xi32>
    %1749 = arith.addi %1643, %1748 : vector<1x256xi32>
    %c16_i32_901 = arith.constant 16 : i32
    %1750 = vector.broadcast %c16_i32_901 : i32 to vector<1x256xi32>
    %1751 = arith.cmpi slt, %1749, %1750 : vector<1x256xi32>
    %1752 = arith.andi %1747, %1751 : vector<1x256xi1>
    %cst_902 = arith.constant 0.000000e+00 : f32
    %1753 = vector.shape_cast %1752 : vector<1x256xi1> to vector<1x256xi1>
    %1754 = vector.broadcast %1753 : vector<1x256xi1> to vector<16x256xi1>
    %1755 = vector.broadcast %cst_902 : f32 to vector<16x256xf32>
    %1756 = arith.select %1754, %1733, %1755 : vector<16x256xi1>, vector<16x256xf32>
    %1757 = arith.truncf %1756 : vector<16x256xf32> to vector<16x256xbf16>
    %c3_903 = arith.constant 3 : index
    %c0_904 = arith.constant 0 : index
    %c0_905 = arith.constant 0 : index
    %1758 = vector.load %arg13[%c3_903, %c0_904, %c0_905] : memref<9x8x16xbf16, #tpu.memory_space<vmem>>, vector<1x8x16xbf16>
    %1759 = vector.shape_cast %1758 : vector<1x8x16xbf16> to vector<8x16xbf16>
    %cst_906 = arith.constant dense<0.000000e+00> : vector<8x256xf32>
    %1760 = tpu.matmul %1759, %1757, %cst_906 {dimension_numbers = #tpu.dot_dimension_numbers<[1], [0], [0], [1], [0, 0, 1, 1], [], []>} : vector<8x16xbf16>, vector<16x256xbf16>, vector<8x256xf32> -> vector<8x256xf32>
    %1761 = arith.addf %1732, %1760 : vector<8x256xf32>
    %c0_907 = arith.constant 0 : index
    %c17_908 = arith.constant 17 : index
    %1762 = vector.load %arg24[%c0_907, %c17_908] : memref<32x290xf32, #tpu.memory_space<vmem>>, vector<16x256xf32>
    %c0_i32_909 = arith.constant 0 : i32
    %1763 = vector.broadcast %c0_i32_909 : i32 to vector<1x256xi32>
    %1764 = arith.addi %1641, %1763 : vector<1x256xi32>
    %c0_i32_910 = arith.constant 0 : i32
    %1765 = vector.broadcast %c0_i32_910 : i32 to vector<1x256xi32>
    %1766 = arith.cmpi sge, %1764, %1765 : vector<1x256xi32>
    %c0_i32_911 = arith.constant 0 : i32
    %1767 = vector.broadcast %c0_i32_911 : i32 to vector<1x256xi32>
    %1768 = arith.addi %1641, %1767 : vector<1x256xi32>
    %c16_i32_912 = arith.constant 16 : i32
    %1769 = vector.broadcast %c16_i32_912 : i32 to vector<1x256xi32>
    %1770 = arith.cmpi slt, %1768, %1769 : vector<1x256xi32>
    %1771 = arith.andi %1766, %1770 : vector<1x256xi1>
    %c0_i32_913 = arith.constant 0 : i32
    %1772 = vector.broadcast %c0_i32_913 : i32 to vector<1x256xi32>
    %1773 = arith.addi %1643, %1772 : vector<1x256xi32>
    %c0_i32_914 = arith.constant 0 : i32
    %1774 = vector.broadcast %c0_i32_914 : i32 to vector<1x256xi32>
    %1775 = arith.cmpi sge, %1773, %1774 : vector<1x256xi32>
    %1776 = arith.andi %1771, %1775 : vector<1x256xi1>
    %c0_i32_915 = arith.constant 0 : i32
    %1777 = vector.broadcast %c0_i32_915 : i32 to vector<1x256xi32>
    %1778 = arith.addi %1643, %1777 : vector<1x256xi32>
    %c16_i32_916 = arith.constant 16 : i32
    %1779 = vector.broadcast %c16_i32_916 : i32 to vector<1x256xi32>
    %1780 = arith.cmpi slt, %1778, %1779 : vector<1x256xi32>
    %1781 = arith.andi %1776, %1780 : vector<1x256xi1>
    %cst_917 = arith.constant 0.000000e+00 : f32
    %1782 = vector.shape_cast %1781 : vector<1x256xi1> to vector<1x256xi1>
    %1783 = vector.broadcast %1782 : vector<1x256xi1> to vector<16x256xi1>
    %1784 = vector.broadcast %cst_917 : f32 to vector<16x256xf32>
    %1785 = arith.select %1783, %1762, %1784 : vector<16x256xi1>, vector<16x256xf32>
    %1786 = arith.truncf %1785 : vector<16x256xf32> to vector<16x256xbf16>
    %c4_918 = arith.constant 4 : index
    %c0_919 = arith.constant 0 : index
    %c0_920 = arith.constant 0 : index
    %1787 = vector.load %arg13[%c4_918, %c0_919, %c0_920] : memref<9x8x16xbf16, #tpu.memory_space<vmem>>, vector<1x8x16xbf16>
    %1788 = vector.shape_cast %1787 : vector<1x8x16xbf16> to vector<8x16xbf16>
    %cst_921 = arith.constant dense<0.000000e+00> : vector<8x256xf32>
    %1789 = tpu.matmul %1788, %1786, %cst_921 {dimension_numbers = #tpu.dot_dimension_numbers<[1], [0], [0], [1], [0, 0, 1, 1], [], []>} : vector<8x16xbf16>, vector<16x256xbf16>, vector<8x256xf32> -> vector<8x256xf32>
    %1790 = arith.addf %1761, %1789 : vector<8x256xf32>
    %c0_922 = arith.constant 0 : index
    %c18_923 = arith.constant 18 : index
    %1791 = vector.load %arg24[%c0_922, %c18_923] : memref<32x290xf32, #tpu.memory_space<vmem>>, vector<16x256xf32>
    %c0_i32_924 = arith.constant 0 : i32
    %1792 = vector.broadcast %c0_i32_924 : i32 to vector<1x256xi32>
    %1793 = arith.addi %1641, %1792 : vector<1x256xi32>
    %c0_i32_925 = arith.constant 0 : i32
    %1794 = vector.broadcast %c0_i32_925 : i32 to vector<1x256xi32>
    %1795 = arith.cmpi sge, %1793, %1794 : vector<1x256xi32>
    %c0_i32_926 = arith.constant 0 : i32
    %1796 = vector.broadcast %c0_i32_926 : i32 to vector<1x256xi32>
    %1797 = arith.addi %1641, %1796 : vector<1x256xi32>
    %c16_i32_927 = arith.constant 16 : i32
    %1798 = vector.broadcast %c16_i32_927 : i32 to vector<1x256xi32>
    %1799 = arith.cmpi slt, %1797, %1798 : vector<1x256xi32>
    %1800 = arith.andi %1795, %1799 : vector<1x256xi1>
    %c1_i32_928 = arith.constant 1 : i32
    %1801 = vector.broadcast %c1_i32_928 : i32 to vector<1x256xi32>
    %1802 = arith.addi %1643, %1801 : vector<1x256xi32>
    %c0_i32_929 = arith.constant 0 : i32
    %1803 = vector.broadcast %c0_i32_929 : i32 to vector<1x256xi32>
    %1804 = arith.cmpi sge, %1802, %1803 : vector<1x256xi32>
    %1805 = arith.andi %1800, %1804 : vector<1x256xi1>
    %c1_i32_930 = arith.constant 1 : i32
    %1806 = vector.broadcast %c1_i32_930 : i32 to vector<1x256xi32>
    %1807 = arith.addi %1643, %1806 : vector<1x256xi32>
    %c16_i32_931 = arith.constant 16 : i32
    %1808 = vector.broadcast %c16_i32_931 : i32 to vector<1x256xi32>
    %1809 = arith.cmpi slt, %1807, %1808 : vector<1x256xi32>
    %1810 = arith.andi %1805, %1809 : vector<1x256xi1>
    %cst_932 = arith.constant 0.000000e+00 : f32
    %1811 = vector.shape_cast %1810 : vector<1x256xi1> to vector<1x256xi1>
    %1812 = vector.broadcast %1811 : vector<1x256xi1> to vector<16x256xi1>
    %1813 = vector.broadcast %cst_932 : f32 to vector<16x256xf32>
    %1814 = arith.select %1812, %1791, %1813 : vector<16x256xi1>, vector<16x256xf32>
    %1815 = arith.truncf %1814 : vector<16x256xf32> to vector<16x256xbf16>
    %c5_933 = arith.constant 5 : index
    %c0_934 = arith.constant 0 : index
    %c0_935 = arith.constant 0 : index
    %1816 = vector.load %arg13[%c5_933, %c0_934, %c0_935] : memref<9x8x16xbf16, #tpu.memory_space<vmem>>, vector<1x8x16xbf16>
    %1817 = vector.shape_cast %1816 : vector<1x8x16xbf16> to vector<8x16xbf16>
    %cst_936 = arith.constant dense<0.000000e+00> : vector<8x256xf32>
    %1818 = tpu.matmul %1817, %1815, %cst_936 {dimension_numbers = #tpu.dot_dimension_numbers<[1], [0], [0], [1], [0, 0, 1, 1], [], []>} : vector<8x16xbf16>, vector<16x256xbf16>, vector<8x256xf32> -> vector<8x256xf32>
    %1819 = arith.addf %1790, %1818 : vector<8x256xf32>
    %c0_937 = arith.constant 0 : index
    %c32_938 = arith.constant 32 : index
    %1820 = vector.load %arg24[%c0_937, %c32_938] : memref<32x290xf32, #tpu.memory_space<vmem>>, vector<16x256xf32>
    %c1_i32_939 = arith.constant 1 : i32
    %1821 = vector.broadcast %c1_i32_939 : i32 to vector<1x256xi32>
    %1822 = arith.addi %1641, %1821 : vector<1x256xi32>
    %c0_i32_940 = arith.constant 0 : i32
    %1823 = vector.broadcast %c0_i32_940 : i32 to vector<1x256xi32>
    %1824 = arith.cmpi sge, %1822, %1823 : vector<1x256xi32>
    %c1_i32_941 = arith.constant 1 : i32
    %1825 = vector.broadcast %c1_i32_941 : i32 to vector<1x256xi32>
    %1826 = arith.addi %1641, %1825 : vector<1x256xi32>
    %c16_i32_942 = arith.constant 16 : i32
    %1827 = vector.broadcast %c16_i32_942 : i32 to vector<1x256xi32>
    %1828 = arith.cmpi slt, %1826, %1827 : vector<1x256xi32>
    %1829 = arith.andi %1824, %1828 : vector<1x256xi1>
    %c-1_i32_943 = arith.constant -1 : i32
    %1830 = vector.broadcast %c-1_i32_943 : i32 to vector<1x256xi32>
    %1831 = arith.addi %1643, %1830 : vector<1x256xi32>
    %c0_i32_944 = arith.constant 0 : i32
    %1832 = vector.broadcast %c0_i32_944 : i32 to vector<1x256xi32>
    %1833 = arith.cmpi sge, %1831, %1832 : vector<1x256xi32>
    %1834 = arith.andi %1829, %1833 : vector<1x256xi1>
    %c-1_i32_945 = arith.constant -1 : i32
    %1835 = vector.broadcast %c-1_i32_945 : i32 to vector<1x256xi32>
    %1836 = arith.addi %1643, %1835 : vector<1x256xi32>
    %c16_i32_946 = arith.constant 16 : i32
    %1837 = vector.broadcast %c16_i32_946 : i32 to vector<1x256xi32>
    %1838 = arith.cmpi slt, %1836, %1837 : vector<1x256xi32>
    %1839 = arith.andi %1834, %1838 : vector<1x256xi1>
    %cst_947 = arith.constant 0.000000e+00 : f32
    %1840 = vector.shape_cast %1839 : vector<1x256xi1> to vector<1x256xi1>
    %1841 = vector.broadcast %1840 : vector<1x256xi1> to vector<16x256xi1>
    %1842 = vector.broadcast %cst_947 : f32 to vector<16x256xf32>
    %1843 = arith.select %1841, %1820, %1842 : vector<16x256xi1>, vector<16x256xf32>
    %1844 = arith.truncf %1843 : vector<16x256xf32> to vector<16x256xbf16>
    %c6_948 = arith.constant 6 : index
    %c0_949 = arith.constant 0 : index
    %c0_950 = arith.constant 0 : index
    %1845 = vector.load %arg13[%c6_948, %c0_949, %c0_950] : memref<9x8x16xbf16, #tpu.memory_space<vmem>>, vector<1x8x16xbf16>
    %1846 = vector.shape_cast %1845 : vector<1x8x16xbf16> to vector<8x16xbf16>
    %cst_951 = arith.constant dense<0.000000e+00> : vector<8x256xf32>
    %1847 = tpu.matmul %1846, %1844, %cst_951 {dimension_numbers = #tpu.dot_dimension_numbers<[1], [0], [0], [1], [0, 0, 1, 1], [], []>} : vector<8x16xbf16>, vector<16x256xbf16>, vector<8x256xf32> -> vector<8x256xf32>
    %1848 = arith.addf %1819, %1847 : vector<8x256xf32>
    %c0_952 = arith.constant 0 : index
    %c33_953 = arith.constant 33 : index
    %1849 = vector.load %arg24[%c0_952, %c33_953] : memref<32x290xf32, #tpu.memory_space<vmem>>, vector<16x256xf32>
    %c1_i32_954 = arith.constant 1 : i32
    %1850 = vector.broadcast %c1_i32_954 : i32 to vector<1x256xi32>
    %1851 = arith.addi %1641, %1850 : vector<1x256xi32>
    %c0_i32_955 = arith.constant 0 : i32
    %1852 = vector.broadcast %c0_i32_955 : i32 to vector<1x256xi32>
    %1853 = arith.cmpi sge, %1851, %1852 : vector<1x256xi32>
    %c1_i32_956 = arith.constant 1 : i32
    %1854 = vector.broadcast %c1_i32_956 : i32 to vector<1x256xi32>
    %1855 = arith.addi %1641, %1854 : vector<1x256xi32>
    %c16_i32_957 = arith.constant 16 : i32
    %1856 = vector.broadcast %c16_i32_957 : i32 to vector<1x256xi32>
    %1857 = arith.cmpi slt, %1855, %1856 : vector<1x256xi32>
    %1858 = arith.andi %1853, %1857 : vector<1x256xi1>
    %c0_i32_958 = arith.constant 0 : i32
    %1859 = vector.broadcast %c0_i32_958 : i32 to vector<1x256xi32>
    %1860 = arith.addi %1643, %1859 : vector<1x256xi32>
    %c0_i32_959 = arith.constant 0 : i32
    %1861 = vector.broadcast %c0_i32_959 : i32 to vector<1x256xi32>
    %1862 = arith.cmpi sge, %1860, %1861 : vector<1x256xi32>
    %1863 = arith.andi %1858, %1862 : vector<1x256xi1>
    %c0_i32_960 = arith.constant 0 : i32
    %1864 = vector.broadcast %c0_i32_960 : i32 to vector<1x256xi32>
    %1865 = arith.addi %1643, %1864 : vector<1x256xi32>
    %c16_i32_961 = arith.constant 16 : i32
    %1866 = vector.broadcast %c16_i32_961 : i32 to vector<1x256xi32>
    %1867 = arith.cmpi slt, %1865, %1866 : vector<1x256xi32>
    %1868 = arith.andi %1863, %1867 : vector<1x256xi1>
    %cst_962 = arith.constant 0.000000e+00 : f32
    %1869 = vector.shape_cast %1868 : vector<1x256xi1> to vector<1x256xi1>
    %1870 = vector.broadcast %1869 : vector<1x256xi1> to vector<16x256xi1>
    %1871 = vector.broadcast %cst_962 : f32 to vector<16x256xf32>
    %1872 = arith.select %1870, %1849, %1871 : vector<16x256xi1>, vector<16x256xf32>
    %1873 = arith.truncf %1872 : vector<16x256xf32> to vector<16x256xbf16>
    %c7_963 = arith.constant 7 : index
    %c0_964 = arith.constant 0 : index
    %c0_965 = arith.constant 0 : index
    %1874 = vector.load %arg13[%c7_963, %c0_964, %c0_965] : memref<9x8x16xbf16, #tpu.memory_space<vmem>>, vector<1x8x16xbf16>
    %1875 = vector.shape_cast %1874 : vector<1x8x16xbf16> to vector<8x16xbf16>
    %cst_966 = arith.constant dense<0.000000e+00> : vector<8x256xf32>
    %1876 = tpu.matmul %1875, %1873, %cst_966 {dimension_numbers = #tpu.dot_dimension_numbers<[1], [0], [0], [1], [0, 0, 1, 1], [], []>} : vector<8x16xbf16>, vector<16x256xbf16>, vector<8x256xf32> -> vector<8x256xf32>
    %1877 = arith.addf %1848, %1876 : vector<8x256xf32>
    %c0_967 = arith.constant 0 : index
    %c34_968 = arith.constant 34 : index
    %1878 = vector.load %arg24[%c0_967, %c34_968] : memref<32x290xf32, #tpu.memory_space<vmem>>, vector<16x256xf32>
    %c1_i32_969 = arith.constant 1 : i32
    %1879 = vector.broadcast %c1_i32_969 : i32 to vector<1x256xi32>
    %1880 = arith.addi %1641, %1879 : vector<1x256xi32>
    %c0_i32_970 = arith.constant 0 : i32
    %1881 = vector.broadcast %c0_i32_970 : i32 to vector<1x256xi32>
    %1882 = arith.cmpi sge, %1880, %1881 : vector<1x256xi32>
    %c1_i32_971 = arith.constant 1 : i32
    %1883 = vector.broadcast %c1_i32_971 : i32 to vector<1x256xi32>
    %1884 = arith.addi %1641, %1883 : vector<1x256xi32>
    %c16_i32_972 = arith.constant 16 : i32
    %1885 = vector.broadcast %c16_i32_972 : i32 to vector<1x256xi32>
    %1886 = arith.cmpi slt, %1884, %1885 : vector<1x256xi32>
    %1887 = arith.andi %1882, %1886 : vector<1x256xi1>
    %c1_i32_973 = arith.constant 1 : i32
    %1888 = vector.broadcast %c1_i32_973 : i32 to vector<1x256xi32>
    %1889 = arith.addi %1643, %1888 : vector<1x256xi32>
    %c0_i32_974 = arith.constant 0 : i32
    %1890 = vector.broadcast %c0_i32_974 : i32 to vector<1x256xi32>
    %1891 = arith.cmpi sge, %1889, %1890 : vector<1x256xi32>
    %1892 = arith.andi %1887, %1891 : vector<1x256xi1>
    %c1_i32_975 = arith.constant 1 : i32
    %1893 = vector.broadcast %c1_i32_975 : i32 to vector<1x256xi32>
    %1894 = arith.addi %1643, %1893 : vector<1x256xi32>
    %c16_i32_976 = arith.constant 16 : i32
    %1895 = vector.broadcast %c16_i32_976 : i32 to vector<1x256xi32>
    %1896 = arith.cmpi slt, %1894, %1895 : vector<1x256xi32>
    %1897 = arith.andi %1892, %1896 : vector<1x256xi1>
    %cst_977 = arith.constant 0.000000e+00 : f32
    %1898 = vector.shape_cast %1897 : vector<1x256xi1> to vector<1x256xi1>
    %1899 = vector.broadcast %1898 : vector<1x256xi1> to vector<16x256xi1>
    %1900 = vector.broadcast %cst_977 : f32 to vector<16x256xf32>
    %1901 = arith.select %1899, %1878, %1900 : vector<16x256xi1>, vector<16x256xf32>
    %1902 = arith.truncf %1901 : vector<16x256xf32> to vector<16x256xbf16>
    %c8_978 = arith.constant 8 : index
    %c0_979 = arith.constant 0 : index
    %c0_980 = arith.constant 0 : index
    %1903 = vector.load %arg13[%c8_978, %c0_979, %c0_980] : memref<9x8x16xbf16, #tpu.memory_space<vmem>>, vector<1x8x16xbf16>
    %1904 = vector.shape_cast %1903 : vector<1x8x16xbf16> to vector<8x16xbf16>
    %cst_981 = arith.constant dense<0.000000e+00> : vector<8x256xf32>
    %1905 = tpu.matmul %1904, %1902, %cst_981 {dimension_numbers = #tpu.dot_dimension_numbers<[1], [0], [0], [1], [0, 0, 1, 1], [], []>} : vector<8x16xbf16>, vector<16x256xbf16>, vector<8x256xf32> -> vector<8x256xf32>
    %1906 = arith.addf %1877, %1905 : vector<8x256xf32>
    %c0_982 = arith.constant 0 : index
    %c17_983 = arith.constant 17 : index
    %1907 = vector.load %arg24[%c0_982, %c17_983] : memref<32x290xf32, #tpu.memory_space<vmem>>, vector<8x256xf32>
    tpu.vector_store %arg24[%c0_982, %c17_983], %276 {strides = array<i32>} : memref<32x290xf32, #tpu.memory_space<vmem>>, vector<8x256xf32>,
    %c0_984 = arith.constant 0 : index
    %c0_985 = arith.constant 0 : index
    %1908 = vector.load %arg24[%c0_984, %c0_985] : memref<32x290xf32, #tpu.memory_space<vmem>>, vector<8x256xf32>
    %c-1_i32_986 = arith.constant -1 : i32
    %1909 = vector.broadcast %c-1_i32_986 : i32 to vector<1x256xi32>
    %1910 = arith.addi %1641, %1909 : vector<1x256xi32>
    %c0_i32_987 = arith.constant 0 : i32
    %1911 = vector.broadcast %c0_i32_987 : i32 to vector<1x256xi32>
    %1912 = arith.cmpi sge, %1910, %1911 : vector<1x256xi32>
    %c-1_i32_988 = arith.constant -1 : i32
    %1913 = vector.broadcast %c-1_i32_988 : i32 to vector<1x256xi32>
    %1914 = arith.addi %1641, %1913 : vector<1x256xi32>
    %c16_i32_989 = arith.constant 16 : i32
    %1915 = vector.broadcast %c16_i32_989 : i32 to vector<1x256xi32>
    %1916 = arith.cmpi slt, %1914, %1915 : vector<1x256xi32>
    %1917 = arith.andi %1912, %1916 : vector<1x256xi1>
    %c-1_i32_990 = arith.constant -1 : i32
    %1918 = vector.broadcast %c-1_i32_990 : i32 to vector<1x256xi32>
    %1919 = arith.addi %1643, %1918 : vector<1x256xi32>
    %c0_i32_991 = arith.constant 0 : i32
    %1920 = vector.broadcast %c0_i32_991 : i32 to vector<1x256xi32>
    %1921 = arith.cmpi sge, %1919, %1920 : vector<1x256xi32>
    %1922 = arith.andi %1917, %1921 : vector<1x256xi1>
    %c-1_i32_992 = arith.constant -1 : i32
    %1923 = vector.broadcast %c-1_i32_992 : i32 to vector<1x256xi32>
    %1924 = arith.addi %1643, %1923 : vector<1x256xi32>
    %c16_i32_993 = arith.constant 16 : i32
    %1925 = vector.broadcast %c16_i32_993 : i32 to vector<1x256xi32>
    %1926 = arith.cmpi slt, %1924, %1925 : vector<1x256xi32>
    %1927 = arith.andi %1922, %1926 : vector<1x256xi1>
    %cst_994 = arith.constant 0.000000e+00 : f32
    %1928 = vector.shape_cast %1927 : vector<1x256xi1> to vector<1x256xi1>
    %1929 = vector.broadcast %1928 : vector<1x256xi1> to vector<8x256xi1>
    %1930 = vector.broadcast %cst_994 : f32 to vector<8x256xf32>
    %1931 = arith.select %1929, %1908, %1930 : vector<8x256xi1>, vector<8x256xf32>
    %1932 = arith.truncf %1931 : vector<8x256xf32> to vector<8x256xbf16>
    %c0_995 = arith.constant 0 : index
    %c0_996 = arith.constant 0 : index
    %c0_997 = arith.constant 0 : index
    %1933 = vector.load %arg14[%c0_995, %c0_996, %c0_997] : memref<9x8x8xbf16, #tpu.memory_space<vmem>>, vector<1x8x8xbf16>
    %1934 = vector.shape_cast %1933 : vector<1x8x8xbf16> to vector<8x8xbf16>
    %cst_998 = arith.constant dense<0.000000e+00> : vector<8x256xf32>
    %1935 = tpu.matmul %1934, %1932, %cst_998 {dimension_numbers = #tpu.dot_dimension_numbers<[1], [0], [0], [1], [0, 0, 1, 1], [], []>} : vector<8x8xbf16>, vector<8x256xbf16>, vector<8x256xf32> -> vector<8x256xf32>
    %1936 = arith.addf %1906, %1935 : vector<8x256xf32>
    %c0_999 = arith.constant 0 : index
    %c1_1000 = arith.constant 1 : index
    %1937 = vector.load %arg24[%c0_999, %c1_1000] : memref<32x290xf32, #tpu.memory_space<vmem>>, vector<8x256xf32>
    %c-1_i32_1001 = arith.constant -1 : i32
    %1938 = vector.broadcast %c-1_i32_1001 : i32 to vector<1x256xi32>
    %1939 = arith.addi %1641, %1938 : vector<1x256xi32>
    %c0_i32_1002 = arith.constant 0 : i32
    %1940 = vector.broadcast %c0_i32_1002 : i32 to vector<1x256xi32>
    %1941 = arith.cmpi sge, %1939, %1940 : vector<1x256xi32>
    %c-1_i32_1003 = arith.constant -1 : i32
    %1942 = vector.broadcast %c-1_i32_1003 : i32 to vector<1x256xi32>
    %1943 = arith.addi %1641, %1942 : vector<1x256xi32>
    %c16_i32_1004 = arith.constant 16 : i32
    %1944 = vector.broadcast %c16_i32_1004 : i32 to vector<1x256xi32>
    %1945 = arith.cmpi slt, %1943, %1944 : vector<1x256xi32>
    %1946 = arith.andi %1941, %1945 : vector<1x256xi1>
    %c0_i32_1005 = arith.constant 0 : i32
    %1947 = vector.broadcast %c0_i32_1005 : i32 to vector<1x256xi32>
    %1948 = arith.addi %1643, %1947 : vector<1x256xi32>
    %c0_i32_1006 = arith.constant 0 : i32
    %1949 = vector.broadcast %c0_i32_1006 : i32 to vector<1x256xi32>
    %1950 = arith.cmpi sge, %1948, %1949 : vector<1x256xi32>
    %1951 = arith.andi %1946, %1950 : vector<1x256xi1>
    %c0_i32_1007 = arith.constant 0 : i32
    %1952 = vector.broadcast %c0_i32_1007 : i32 to vector<1x256xi32>
    %1953 = arith.addi %1643, %1952 : vector<1x256xi32>
    %c16_i32_1008 = arith.constant 16 : i32
    %1954 = vector.broadcast %c16_i32_1008 : i32 to vector<1x256xi32>
    %1955 = arith.cmpi slt, %1953, %1954 : vector<1x256xi32>
    %1956 = arith.andi %1951, %1955 : vector<1x256xi1>
    %cst_1009 = arith.constant 0.000000e+00 : f32
    %1957 = vector.shape_cast %1956 : vector<1x256xi1> to vector<1x256xi1>
    %1958 = vector.broadcast %1957 : vector<1x256xi1> to vector<8x256xi1>
    %1959 = vector.broadcast %cst_1009 : f32 to vector<8x256xf32>
    %1960 = arith.select %1958, %1937, %1959 : vector<8x256xi1>, vector<8x256xf32>
    %1961 = arith.truncf %1960 : vector<8x256xf32> to vector<8x256xbf16>
    %c1_1010 = arith.constant 1 : index
    %c0_1011 = arith.constant 0 : index
    %c0_1012 = arith.constant 0 : index
    %1962 = vector.load %arg14[%c1_1010, %c0_1011, %c0_1012] : memref<9x8x8xbf16, #tpu.memory_space<vmem>>, vector<1x8x8xbf16>
    %1963 = vector.shape_cast %1962 : vector<1x8x8xbf16> to vector<8x8xbf16>
    %cst_1013 = arith.constant dense<0.000000e+00> : vector<8x256xf32>
    %1964 = tpu.matmul %1963, %1961, %cst_1013 {dimension_numbers = #tpu.dot_dimension_numbers<[1], [0], [0], [1], [0, 0, 1, 1], [], []>} : vector<8x8xbf16>, vector<8x256xbf16>, vector<8x256xf32> -> vector<8x256xf32>
    %1965 = arith.addf %1936, %1964 : vector<8x256xf32>
    %c0_1014 = arith.constant 0 : index
    %c2_1015 = arith.constant 2 : index
    %1966 = vector.load %arg24[%c0_1014, %c2_1015] : memref<32x290xf32, #tpu.memory_space<vmem>>, vector<8x256xf32>
    %c-1_i32_1016 = arith.constant -1 : i32
    %1967 = vector.broadcast %c-1_i32_1016 : i32 to vector<1x256xi32>
    %1968 = arith.addi %1641, %1967 : vector<1x256xi32>
    %c0_i32_1017 = arith.constant 0 : i32
    %1969 = vector.broadcast %c0_i32_1017 : i32 to vector<1x256xi32>
    %1970 = arith.cmpi sge, %1968, %1969 : vector<1x256xi32>
    %c-1_i32_1018 = arith.constant -1 : i32
    %1971 = vector.broadcast %c-1_i32_1018 : i32 to vector<1x256xi32>
    %1972 = arith.addi %1641, %1971 : vector<1x256xi32>
    %c16_i32_1019 = arith.constant 16 : i32
    %1973 = vector.broadcast %c16_i32_1019 : i32 to vector<1x256xi32>
    %1974 = arith.cmpi slt, %1972, %1973 : vector<1x256xi32>
    %1975 = arith.andi %1970, %1974 : vector<1x256xi1>
    %c1_i32_1020 = arith.constant 1 : i32
    %1976 = vector.broadcast %c1_i32_1020 : i32 to vector<1x256xi32>
    %1977 = arith.addi %1643, %1976 : vector<1x256xi32>
    %c0_i32_1021 = arith.constant 0 : i32
    %1978 = vector.broadcast %c0_i32_1021 : i32 to vector<1x256xi32>
    %1979 = arith.cmpi sge, %1977, %1978 : vector<1x256xi32>
    %1980 = arith.andi %1975, %1979 : vector<1x256xi1>
    %c1_i32_1022 = arith.constant 1 : i32
    %1981 = vector.broadcast %c1_i32_1022 : i32 to vector<1x256xi32>
    %1982 = arith.addi %1643, %1981 : vector<1x256xi32>
    %c16_i32_1023 = arith.constant 16 : i32
    %1983 = vector.broadcast %c16_i32_1023 : i32 to vector<1x256xi32>
    %1984 = arith.cmpi slt, %1982, %1983 : vector<1x256xi32>
    %1985 = arith.andi %1980, %1984 : vector<1x256xi1>
    %cst_1024 = arith.constant 0.000000e+00 : f32
    %1986 = vector.shape_cast %1985 : vector<1x256xi1> to vector<1x256xi1>
    %1987 = vector.broadcast %1986 : vector<1x256xi1> to vector<8x256xi1>
    %1988 = vector.broadcast %cst_1024 : f32 to vector<8x256xf32>
    %1989 = arith.select %1987, %1966, %1988 : vector<8x256xi1>, vector<8x256xf32>
    %1990 = arith.truncf %1989 : vector<8x256xf32> to vector<8x256xbf16>
    %c2_1025 = arith.constant 2 : index
    %c0_1026 = arith.constant 0 : index
    %c0_1027 = arith.constant 0 : index
    %1991 = vector.load %arg14[%c2_1025, %c0_1026, %c0_1027] : memref<9x8x8xbf16, #tpu.memory_space<vmem>>, vector<1x8x8xbf16>
    %1992 = vector.shape_cast %1991 : vector<1x8x8xbf16> to vector<8x8xbf16>
    %cst_1028 = arith.constant dense<0.000000e+00> : vector<8x256xf32>
    %1993 = tpu.matmul %1992, %1990, %cst_1028 {dimension_numbers = #tpu.dot_dimension_numbers<[1], [0], [0], [1], [0, 0, 1, 1], [], []>} : vector<8x8xbf16>, vector<8x256xbf16>, vector<8x256xf32> -> vector<8x256xf32>
    %1994 = arith.addf %1965, %1993 : vector<8x256xf32>
    %c0_1029 = arith.constant 0 : index
    %c16_1030 = arith.constant 16 : index
    %1995 = vector.load %arg24[%c0_1029, %c16_1030] : memref<32x290xf32, #tpu.memory_space<vmem>>, vector<8x256xf32>
    %c0_i32_1031 = arith.constant 0 : i32
    %1996 = vector.broadcast %c0_i32_1031 : i32 to vector<1x256xi32>
    %1997 = arith.addi %1641, %1996 : vector<1x256xi32>
    %c0_i32_1032 = arith.constant 0 : i32
    %1998 = vector.broadcast %c0_i32_1032 : i32 to vector<1x256xi32>
    %1999 = arith.cmpi sge, %1997, %1998 : vector<1x256xi32>
    %c0_i32_1033 = arith.constant 0 : i32
    %2000 = vector.broadcast %c0_i32_1033 : i32 to vector<1x256xi32>
    %2001 = arith.addi %1641, %2000 : vector<1x256xi32>
    %c16_i32_1034 = arith.constant 16 : i32
    %2002 = vector.broadcast %c16_i32_1034 : i32 to vector<1x256xi32>
    %2003 = arith.cmpi slt, %2001, %2002 : vector<1x256xi32>
    %2004 = arith.andi %1999, %2003 : vector<1x256xi1>
    %c-1_i32_1035 = arith.constant -1 : i32
    %2005 = vector.broadcast %c-1_i32_1035 : i32 to vector<1x256xi32>
    %2006 = arith.addi %1643, %2005 : vector<1x256xi32>
    %c0_i32_1036 = arith.constant 0 : i32
    %2007 = vector.broadcast %c0_i32_1036 : i32 to vector<1x256xi32>
    %2008 = arith.cmpi sge, %2006, %2007 : vector<1x256xi32>
    %2009 = arith.andi %2004, %2008 : vector<1x256xi1>
    %c-1_i32_1037 = arith.constant -1 : i32
    %2010 = vector.broadcast %c-1_i32_1037 : i32 to vector<1x256xi32>
    %2011 = arith.addi %1643, %2010 : vector<1x256xi32>
    %c16_i32_1038 = arith.constant 16 : i32
    %2012 = vector.broadcast %c16_i32_1038 : i32 to vector<1x256xi32>
    %2013 = arith.cmpi slt, %2011, %2012 : vector<1x256xi32>
    %2014 = arith.andi %2009, %2013 : vector<1x256xi1>
    %cst_1039 = arith.constant 0.000000e+00 : f32
    %2015 = vector.shape_cast %2014 : vector<1x256xi1> to vector<1x256xi1>
    %2016 = vector.broadcast %2015 : vector<1x256xi1> to vector<8x256xi1>
    %2017 = vector.broadcast %cst_1039 : f32 to vector<8x256xf32>
    %2018 = arith.select %2016, %1995, %2017 : vector<8x256xi1>, vector<8x256xf32>
    %2019 = arith.truncf %2018 : vector<8x256xf32> to vector<8x256xbf16>
    %c3_1040 = arith.constant 3 : index
    %c0_1041 = arith.constant 0 : index
    %c0_1042 = arith.constant 0 : index
    %2020 = vector.load %arg14[%c3_1040, %c0_1041, %c0_1042] : memref<9x8x8xbf16, #tpu.memory_space<vmem>>, vector<1x8x8xbf16>
    %2021 = vector.shape_cast %2020 : vector<1x8x8xbf16> to vector<8x8xbf16>
    %cst_1043 = arith.constant dense<0.000000e+00> : vector<8x256xf32>
    %2022 = tpu.matmul %2021, %2019, %cst_1043 {dimension_numbers = #tpu.dot_dimension_numbers<[1], [0], [0], [1], [0, 0, 1, 1], [], []>} : vector<8x8xbf16>, vector<8x256xbf16>, vector<8x256xf32> -> vector<8x256xf32>
    %2023 = arith.addf %1994, %2022 : vector<8x256xf32>
    %c0_1044 = arith.constant 0 : index
    %c17_1045 = arith.constant 17 : index
    %2024 = vector.load %arg24[%c0_1044, %c17_1045] : memref<32x290xf32, #tpu.memory_space<vmem>>, vector<8x256xf32>
    %c0_i32_1046 = arith.constant 0 : i32
    %2025 = vector.broadcast %c0_i32_1046 : i32 to vector<1x256xi32>
    %2026 = arith.addi %1641, %2025 : vector<1x256xi32>
    %c0_i32_1047 = arith.constant 0 : i32
    %2027 = vector.broadcast %c0_i32_1047 : i32 to vector<1x256xi32>
    %2028 = arith.cmpi sge, %2026, %2027 : vector<1x256xi32>
    %c0_i32_1048 = arith.constant 0 : i32
    %2029 = vector.broadcast %c0_i32_1048 : i32 to vector<1x256xi32>
    %2030 = arith.addi %1641, %2029 : vector<1x256xi32>
    %c16_i32_1049 = arith.constant 16 : i32
    %2031 = vector.broadcast %c16_i32_1049 : i32 to vector<1x256xi32>
    %2032 = arith.cmpi slt, %2030, %2031 : vector<1x256xi32>
    %2033 = arith.andi %2028, %2032 : vector<1x256xi1>
    %c0_i32_1050 = arith.constant 0 : i32
    %2034 = vector.broadcast %c0_i32_1050 : i32 to vector<1x256xi32>
    %2035 = arith.addi %1643, %2034 : vector<1x256xi32>
    %c0_i32_1051 = arith.constant 0 : i32
    %2036 = vector.broadcast %c0_i32_1051 : i32 to vector<1x256xi32>
    %2037 = arith.cmpi sge, %2035, %2036 : vector<1x256xi32>
    %2038 = arith.andi %2033, %2037 : vector<1x256xi1>
    %c0_i32_1052 = arith.constant 0 : i32
    %2039 = vector.broadcast %c0_i32_1052 : i32 to vector<1x256xi32>
    %2040 = arith.addi %1643, %2039 : vector<1x256xi32>
    %c16_i32_1053 = arith.constant 16 : i32
    %2041 = vector.broadcast %c16_i32_1053 : i32 to vector<1x256xi32>
    %2042 = arith.cmpi slt, %2040, %2041 : vector<1x256xi32>
    %2043 = arith.andi %2038, %2042 : vector<1x256xi1>
    %cst_1054 = arith.constant 0.000000e+00 : f32
    %2044 = vector.shape_cast %2043 : vector<1x256xi1> to vector<1x256xi1>
    %2045 = vector.broadcast %2044 : vector<1x256xi1> to vector<8x256xi1>
    %2046 = vector.broadcast %cst_1054 : f32 to vector<8x256xf32>
    %2047 = arith.select %2045, %2024, %2046 : vector<8x256xi1>, vector<8x256xf32>
    %2048 = arith.truncf %2047 : vector<8x256xf32> to vector<8x256xbf16>
    %c4_1055 = arith.constant 4 : index
    %c0_1056 = arith.constant 0 : index
    %c0_1057 = arith.constant 0 : index
    %2049 = vector.load %arg14[%c4_1055, %c0_1056, %c0_1057] : memref<9x8x8xbf16, #tpu.memory_space<vmem>>, vector<1x8x8xbf16>
    %2050 = vector.shape_cast %2049 : vector<1x8x8xbf16> to vector<8x8xbf16>
    %cst_1058 = arith.constant dense<0.000000e+00> : vector<8x256xf32>
    %2051 = tpu.matmul %2050, %2048, %cst_1058 {dimension_numbers = #tpu.dot_dimension_numbers<[1], [0], [0], [1], [0, 0, 1, 1], [], []>} : vector<8x8xbf16>, vector<8x256xbf16>, vector<8x256xf32> -> vector<8x256xf32>
    %2052 = arith.addf %2023, %2051 : vector<8x256xf32>
    %c0_1059 = arith.constant 0 : index
    %c18_1060 = arith.constant 18 : index
    %2053 = vector.load %arg24[%c0_1059, %c18_1060] : memref<32x290xf32, #tpu.memory_space<vmem>>, vector<8x256xf32>
    %c0_i32_1061 = arith.constant 0 : i32
    %2054 = vector.broadcast %c0_i32_1061 : i32 to vector<1x256xi32>
    %2055 = arith.addi %1641, %2054 : vector<1x256xi32>
    %c0_i32_1062 = arith.constant 0 : i32
    %2056 = vector.broadcast %c0_i32_1062 : i32 to vector<1x256xi32>
    %2057 = arith.cmpi sge, %2055, %2056 : vector<1x256xi32>
    %c0_i32_1063 = arith.constant 0 : i32
    %2058 = vector.broadcast %c0_i32_1063 : i32 to vector<1x256xi32>
    %2059 = arith.addi %1641, %2058 : vector<1x256xi32>
    %c16_i32_1064 = arith.constant 16 : i32
    %2060 = vector.broadcast %c16_i32_1064 : i32 to vector<1x256xi32>
    %2061 = arith.cmpi slt, %2059, %2060 : vector<1x256xi32>
    %2062 = arith.andi %2057, %2061 : vector<1x256xi1>
    %c1_i32_1065 = arith.constant 1 : i32
    %2063 = vector.broadcast %c1_i32_1065 : i32 to vector<1x256xi32>
    %2064 = arith.addi %1643, %2063 : vector<1x256xi32>
    %c0_i32_1066 = arith.constant 0 : i32
    %2065 = vector.broadcast %c0_i32_1066 : i32 to vector<1x256xi32>
    %2066 = arith.cmpi sge, %2064, %2065 : vector<1x256xi32>
    %2067 = arith.andi %2062, %2066 : vector<1x256xi1>
    %c1_i32_1067 = arith.constant 1 : i32
    %2068 = vector.broadcast %c1_i32_1067 : i32 to vector<1x256xi32>
    %2069 = arith.addi %1643, %2068 : vector<1x256xi32>
    %c16_i32_1068 = arith.constant 16 : i32
    %2070 = vector.broadcast %c16_i32_1068 : i32 to vector<1x256xi32>
    %2071 = arith.cmpi slt, %2069, %2070 : vector<1x256xi32>
    %2072 = arith.andi %2067, %2071 : vector<1x256xi1>
    %cst_1069 = arith.constant 0.000000e+00 : f32
    %2073 = vector.shape_cast %2072 : vector<1x256xi1> to vector<1x256xi1>
    %2074 = vector.broadcast %2073 : vector<1x256xi1> to vector<8x256xi1>
    %2075 = vector.broadcast %cst_1069 : f32 to vector<8x256xf32>
    %2076 = arith.select %2074, %2053, %2075 : vector<8x256xi1>, vector<8x256xf32>
    %2077 = arith.truncf %2076 : vector<8x256xf32> to vector<8x256xbf16>
    %c5_1070 = arith.constant 5 : index
    %c0_1071 = arith.constant 0 : index
    %c0_1072 = arith.constant 0 : index
    %2078 = vector.load %arg14[%c5_1070, %c0_1071, %c0_1072] : memref<9x8x8xbf16, #tpu.memory_space<vmem>>, vector<1x8x8xbf16>
    %2079 = vector.shape_cast %2078 : vector<1x8x8xbf16> to vector<8x8xbf16>
    %cst_1073 = arith.constant dense<0.000000e+00> : vector<8x256xf32>
    %2080 = tpu.matmul %2079, %2077, %cst_1073 {dimension_numbers = #tpu.dot_dimension_numbers<[1], [0], [0], [1], [0, 0, 1, 1], [], []>} : vector<8x8xbf16>, vector<8x256xbf16>, vector<8x256xf32> -> vector<8x256xf32>
    %2081 = arith.addf %2052, %2080 : vector<8x256xf32>
    %c0_1074 = arith.constant 0 : index
    %c32_1075 = arith.constant 32 : index
    %2082 = vector.load %arg24[%c0_1074, %c32_1075] : memref<32x290xf32, #tpu.memory_space<vmem>>, vector<8x256xf32>
    %c1_i32_1076 = arith.constant 1 : i32
    %2083 = vector.broadcast %c1_i32_1076 : i32 to vector<1x256xi32>
    %2084 = arith.addi %1641, %2083 : vector<1x256xi32>
    %c0_i32_1077 = arith.constant 0 : i32
    %2085 = vector.broadcast %c0_i32_1077 : i32 to vector<1x256xi32>
    %2086 = arith.cmpi sge, %2084, %2085 : vector<1x256xi32>
    %c1_i32_1078 = arith.constant 1 : i32
    %2087 = vector.broadcast %c1_i32_1078 : i32 to vector<1x256xi32>
    %2088 = arith.addi %1641, %2087 : vector<1x256xi32>
    %c16_i32_1079 = arith.constant 16 : i32
    %2089 = vector.broadcast %c16_i32_1079 : i32 to vector<1x256xi32>
    %2090 = arith.cmpi slt, %2088, %2089 : vector<1x256xi32>
    %2091 = arith.andi %2086, %2090 : vector<1x256xi1>
    %c-1_i32_1080 = arith.constant -1 : i32
    %2092 = vector.broadcast %c-1_i32_1080 : i32 to vector<1x256xi32>
    %2093 = arith.addi %1643, %2092 : vector<1x256xi32>
    %c0_i32_1081 = arith.constant 0 : i32
    %2094 = vector.broadcast %c0_i32_1081 : i32 to vector<1x256xi32>
    %2095 = arith.cmpi sge, %2093, %2094 : vector<1x256xi32>
    %2096 = arith.andi %2091, %2095 : vector<1x256xi1>
    %c-1_i32_1082 = arith.constant -1 : i32
    %2097 = vector.broadcast %c-1_i32_1082 : i32 to vector<1x256xi32>
    %2098 = arith.addi %1643, %2097 : vector<1x256xi32>
    %c16_i32_1083 = arith.constant 16 : i32
    %2099 = vector.broadcast %c16_i32_1083 : i32 to vector<1x256xi32>
    %2100 = arith.cmpi slt, %2098, %2099 : vector<1x256xi32>
    %2101 = arith.andi %2096, %2100 : vector<1x256xi1>
    %cst_1084 = arith.constant 0.000000e+00 : f32
    %2102 = vector.shape_cast %2101 : vector<1x256xi1> to vector<1x256xi1>
    %2103 = vector.broadcast %2102 : vector<1x256xi1> to vector<8x256xi1>
    %2104 = vector.broadcast %cst_1084 : f32 to vector<8x256xf32>
    %2105 = arith.select %2103, %2082, %2104 : vector<8x256xi1>, vector<8x256xf32>
    %2106 = arith.truncf %2105 : vector<8x256xf32> to vector<8x256xbf16>
    %c6_1085 = arith.constant 6 : index
    %c0_1086 = arith.constant 0 : index
    %c0_1087 = arith.constant 0 : index
    %2107 = vector.load %arg14[%c6_1085, %c0_1086, %c0_1087] : memref<9x8x8xbf16, #tpu.memory_space<vmem>>, vector<1x8x8xbf16>
    %2108 = vector.shape_cast %2107 : vector<1x8x8xbf16> to vector<8x8xbf16>
    %cst_1088 = arith.constant dense<0.000000e+00> : vector<8x256xf32>
    %2109 = tpu.matmul %2108, %2106, %cst_1088 {dimension_numbers = #tpu.dot_dimension_numbers<[1], [0], [0], [1], [0, 0, 1, 1], [], []>} : vector<8x8xbf16>, vector<8x256xbf16>, vector<8x256xf32> -> vector<8x256xf32>
    %2110 = arith.addf %2081, %2109 : vector<8x256xf32>
    %c0_1089 = arith.constant 0 : index
    %c33_1090 = arith.constant 33 : index
    %2111 = vector.load %arg24[%c0_1089, %c33_1090] : memref<32x290xf32, #tpu.memory_space<vmem>>, vector<8x256xf32>
    %c1_i32_1091 = arith.constant 1 : i32
    %2112 = vector.broadcast %c1_i32_1091 : i32 to vector<1x256xi32>
    %2113 = arith.addi %1641, %2112 : vector<1x256xi32>
    %c0_i32_1092 = arith.constant 0 : i32
    %2114 = vector.broadcast %c0_i32_1092 : i32 to vector<1x256xi32>
    %2115 = arith.cmpi sge, %2113, %2114 : vector<1x256xi32>
    %c1_i32_1093 = arith.constant 1 : i32
    %2116 = vector.broadcast %c1_i32_1093 : i32 to vector<1x256xi32>
    %2117 = arith.addi %1641, %2116 : vector<1x256xi32>
    %c16_i32_1094 = arith.constant 16 : i32
    %2118 = vector.broadcast %c16_i32_1094 : i32 to vector<1x256xi32>
    %2119 = arith.cmpi slt, %2117, %2118 : vector<1x256xi32>
    %2120 = arith.andi %2115, %2119 : vector<1x256xi1>
    %c0_i32_1095 = arith.constant 0 : i32
    %2121 = vector.broadcast %c0_i32_1095 : i32 to vector<1x256xi32>
    %2122 = arith.addi %1643, %2121 : vector<1x256xi32>
    %c0_i32_1096 = arith.constant 0 : i32
    %2123 = vector.broadcast %c0_i32_1096 : i32 to vector<1x256xi32>
    %2124 = arith.cmpi sge, %2122, %2123 : vector<1x256xi32>
    %2125 = arith.andi %2120, %2124 : vector<1x256xi1>
    %c0_i32_1097 = arith.constant 0 : i32
    %2126 = vector.broadcast %c0_i32_1097 : i32 to vector<1x256xi32>
    %2127 = arith.addi %1643, %2126 : vector<1x256xi32>
    %c16_i32_1098 = arith.constant 16 : i32
    %2128 = vector.broadcast %c16_i32_1098 : i32 to vector<1x256xi32>
    %2129 = arith.cmpi slt, %2127, %2128 : vector<1x256xi32>
    %2130 = arith.andi %2125, %2129 : vector<1x256xi1>
    %cst_1099 = arith.constant 0.000000e+00 : f32
    %2131 = vector.shape_cast %2130 : vector<1x256xi1> to vector<1x256xi1>
    %2132 = vector.broadcast %2131 : vector<1x256xi1> to vector<8x256xi1>
    %2133 = vector.broadcast %cst_1099 : f32 to vector<8x256xf32>
    %2134 = arith.select %2132, %2111, %2133 : vector<8x256xi1>, vector<8x256xf32>
    %2135 = arith.truncf %2134 : vector<8x256xf32> to vector<8x256xbf16>
    %c7_1100 = arith.constant 7 : index
    %c0_1101 = arith.constant 0 : index
    %c0_1102 = arith.constant 0 : index
    %2136 = vector.load %arg14[%c7_1100, %c0_1101, %c0_1102] : memref<9x8x8xbf16, #tpu.memory_space<vmem>>, vector<1x8x8xbf16>
    %2137 = vector.shape_cast %2136 : vector<1x8x8xbf16> to vector<8x8xbf16>
    %cst_1103 = arith.constant dense<0.000000e+00> : vector<8x256xf32>
    %2138 = tpu.matmul %2137, %2135, %cst_1103 {dimension_numbers = #tpu.dot_dimension_numbers<[1], [0], [0], [1], [0, 0, 1, 1], [], []>} : vector<8x8xbf16>, vector<8x256xbf16>, vector<8x256xf32> -> vector<8x256xf32>
    %2139 = arith.addf %2110, %2138 : vector<8x256xf32>
    %c0_1104 = arith.constant 0 : index
    %c34_1105 = arith.constant 34 : index
    %2140 = vector.load %arg24[%c0_1104, %c34_1105] : memref<32x290xf32, #tpu.memory_space<vmem>>, vector<8x256xf32>
    %c1_i32_1106 = arith.constant 1 : i32
    %2141 = vector.broadcast %c1_i32_1106 : i32 to vector<1x256xi32>
    %2142 = arith.addi %1641, %2141 : vector<1x256xi32>
    %c0_i32_1107 = arith.constant 0 : i32
    %2143 = vector.broadcast %c0_i32_1107 : i32 to vector<1x256xi32>
    %2144 = arith.cmpi sge, %2142, %2143 : vector<1x256xi32>
    %c1_i32_1108 = arith.constant 1 : i32
    %2145 = vector.broadcast %c1_i32_1108 : i32 to vector<1x256xi32>
    %2146 = arith.addi %1641, %2145 : vector<1x256xi32>
    %c16_i32_1109 = arith.constant 16 : i32
    %2147 = vector.broadcast %c16_i32_1109 : i32 to vector<1x256xi32>
    %2148 = arith.cmpi slt, %2146, %2147 : vector<1x256xi32>
    %2149 = arith.andi %2144, %2148 : vector<1x256xi1>
    %c1_i32_1110 = arith.constant 1 : i32
    %2150 = vector.broadcast %c1_i32_1110 : i32 to vector<1x256xi32>
    %2151 = arith.addi %1643, %2150 : vector<1x256xi32>
    %c0_i32_1111 = arith.constant 0 : i32
    %2152 = vector.broadcast %c0_i32_1111 : i32 to vector<1x256xi32>
    %2153 = arith.cmpi sge, %2151, %2152 : vector<1x256xi32>
    %2154 = arith.andi %2149, %2153 : vector<1x256xi1>
    %c1_i32_1112 = arith.constant 1 : i32
    %2155 = vector.broadcast %c1_i32_1112 : i32 to vector<1x256xi32>
    %2156 = arith.addi %1643, %2155 : vector<1x256xi32>
    %c16_i32_1113 = arith.constant 16 : i32
    %2157 = vector.broadcast %c16_i32_1113 : i32 to vector<1x256xi32>
    %2158 = arith.cmpi slt, %2156, %2157 : vector<1x256xi32>
    %2159 = arith.andi %2154, %2158 : vector<1x256xi1>
    %cst_1114 = arith.constant 0.000000e+00 : f32
    %2160 = vector.shape_cast %2159 : vector<1x256xi1> to vector<1x256xi1>
    %2161 = vector.broadcast %2160 : vector<1x256xi1> to vector<8x256xi1>
    %2162 = vector.broadcast %cst_1114 : f32 to vector<8x256xf32>
    %2163 = arith.select %2161, %2140, %2162 : vector<8x256xi1>, vector<8x256xf32>
    %2164 = arith.truncf %2163 : vector<8x256xf32> to vector<8x256xbf16>
    %c8_1115 = arith.constant 8 : index
    %c0_1116 = arith.constant 0 : index
    %c0_1117 = arith.constant 0 : index
    %2165 = vector.load %arg14[%c8_1115, %c0_1116, %c0_1117] : memref<9x8x8xbf16, #tpu.memory_space<vmem>>, vector<1x8x8xbf16>
    %2166 = vector.shape_cast %2165 : vector<1x8x8xbf16> to vector<8x8xbf16>
    %cst_1118 = arith.constant dense<0.000000e+00> : vector<8x256xf32>
    %2167 = tpu.matmul %2166, %2164, %cst_1118 {dimension_numbers = #tpu.dot_dimension_numbers<[1], [0], [0], [1], [0, 0, 1, 1], [], []>} : vector<8x8xbf16>, vector<8x256xbf16>, vector<8x256xf32> -> vector<8x256xf32>
    %2168 = arith.addf %2139, %2167 : vector<8x256xf32>
    %c0_1119 = arith.constant 0 : index
    %c0_1120 = arith.constant 0 : index
    %2169 = vector.load %arg15[%c0_1119, %c0_1120] : memref<8x1xf32, #tpu.memory_space<vmem>>, vector<8x1xf32>
    %2170 = vector.broadcast %2169 : vector<8x1xf32> to vector<8x256xf32>
    %2171 = arith.addf %2168, %2170 : vector<8x256xf32>
    %cst_1121 = arith.constant 0.000000e+00 : f32
    %2172 = vector.broadcast %cst_1121 : f32 to vector<8x256xf32>
    %2173 = arith.maximumf %2171, %2172 : vector<8x256xf32>
    %2174 = tpu.iota {dimensions = array<i32: 1>} : vector<1x256xi32>
    %c4_i32_1122 = arith.constant 4 : i32
    %2175 = vector.broadcast %c4_i32_1122 : i32 to vector<1x256xi32>
    %2176 = arith.shrsi %2174, %2175 : vector<1x256xi32>
    %c15_i32_1123 = arith.constant 15 : i32
    %2177 = vector.broadcast %c15_i32_1123 : i32 to vector<1x256xi32>
    %2178 = arith.andi %2174, %2177 : vector<1x256xi32>
    %cst_1124 = arith.constant 0.000000e+00 : f32
    %2179 = vector.broadcast %cst_1124 : f32 to vector<3x256xf32>
    %c0_1125 = arith.constant 0 : index
    %c17_1126 = arith.constant 17 : index
    %2180 = vector.load %arg24[%c0_1125, %c17_1126] : memref<32x290xf32, #tpu.memory_space<vmem>>, vector<8x256xf32>
    tpu.vector_store %arg24[%c0_1125, %c17_1126], %2173 {strides = array<i32>} : memref<32x290xf32, #tpu.memory_space<vmem>>, vector<8x256xf32>,
    %c0_1127 = arith.constant 0 : index
    %c0_1128 = arith.constant 0 : index
    %2181 = vector.load %arg24[%c0_1127, %c0_1128] : memref<32x290xf32, #tpu.memory_space<vmem>>, vector<8x256xf32>
    %c-1_i32_1129 = arith.constant -1 : i32
    %2182 = vector.broadcast %c-1_i32_1129 : i32 to vector<1x256xi32>
    %2183 = arith.addi %2176, %2182 : vector<1x256xi32>
    %c0_i32_1130 = arith.constant 0 : i32
    %2184 = vector.broadcast %c0_i32_1130 : i32 to vector<1x256xi32>
    %2185 = arith.cmpi sge, %2183, %2184 : vector<1x256xi32>
    %c-1_i32_1131 = arith.constant -1 : i32
    %2186 = vector.broadcast %c-1_i32_1131 : i32 to vector<1x256xi32>
    %2187 = arith.addi %2176, %2186 : vector<1x256xi32>
    %c16_i32_1132 = arith.constant 16 : i32
    %2188 = vector.broadcast %c16_i32_1132 : i32 to vector<1x256xi32>
    %2189 = arith.cmpi slt, %2187, %2188 : vector<1x256xi32>
    %2190 = arith.andi %2185, %2189 : vector<1x256xi1>
    %c-1_i32_1133 = arith.constant -1 : i32
    %2191 = vector.broadcast %c-1_i32_1133 : i32 to vector<1x256xi32>
    %2192 = arith.addi %2178, %2191 : vector<1x256xi32>
    %c0_i32_1134 = arith.constant 0 : i32
    %2193 = vector.broadcast %c0_i32_1134 : i32 to vector<1x256xi32>
    %2194 = arith.cmpi sge, %2192, %2193 : vector<1x256xi32>
    %2195 = arith.andi %2190, %2194 : vector<1x256xi1>
    %c-1_i32_1135 = arith.constant -1 : i32
    %2196 = vector.broadcast %c-1_i32_1135 : i32 to vector<1x256xi32>
    %2197 = arith.addi %2178, %2196 : vector<1x256xi32>
    %c16_i32_1136 = arith.constant 16 : i32
    %2198 = vector.broadcast %c16_i32_1136 : i32 to vector<1x256xi32>
    %2199 = arith.cmpi slt, %2197, %2198 : vector<1x256xi32>
    %2200 = arith.andi %2195, %2199 : vector<1x256xi1>
    %cst_1137 = arith.constant 0.000000e+00 : f32
    %2201 = vector.shape_cast %2200 : vector<1x256xi1> to vector<1x256xi1>
    %2202 = vector.broadcast %2201 : vector<1x256xi1> to vector<8x256xi1>
    %2203 = vector.broadcast %cst_1137 : f32 to vector<8x256xf32>
    %2204 = arith.select %2202, %2181, %2203 : vector<8x256xi1>, vector<8x256xf32>
    %2205 = arith.truncf %2204 : vector<8x256xf32> to vector<8x256xbf16>
    %c0_1138 = arith.constant 0 : index
    %c0_1139 = arith.constant 0 : index
    %c0_1140 = arith.constant 0 : index
    %2206 = vector.load %arg16[%c0_1138, %c0_1139, %c0_1140] : memref<9x3x8xbf16, #tpu.memory_space<vmem>>, vector<1x3x8xbf16>
    %2207 = vector.shape_cast %2206 : vector<1x3x8xbf16> to vector<3x8xbf16>
    %cst_1141 = arith.constant dense<0.000000e+00> : vector<3x256xf32>
    %2208 = tpu.matmul %2207, %2205, %cst_1141 {dimension_numbers = #tpu.dot_dimension_numbers<[1], [0], [0], [1], [0, 0, 1, 1], [], []>} : vector<3x8xbf16>, vector<8x256xbf16>, vector<3x256xf32> -> vector<3x256xf32>
    %2209 = arith.addf %2179, %2208 : vector<3x256xf32>
    %c0_1142 = arith.constant 0 : index
    %c1_1143 = arith.constant 1 : index
    %2210 = vector.load %arg24[%c0_1142, %c1_1143] : memref<32x290xf32, #tpu.memory_space<vmem>>, vector<8x256xf32>
    %c-1_i32_1144 = arith.constant -1 : i32
    %2211 = vector.broadcast %c-1_i32_1144 : i32 to vector<1x256xi32>
    %2212 = arith.addi %2176, %2211 : vector<1x256xi32>
    %c0_i32_1145 = arith.constant 0 : i32
    %2213 = vector.broadcast %c0_i32_1145 : i32 to vector<1x256xi32>
    %2214 = arith.cmpi sge, %2212, %2213 : vector<1x256xi32>
    %c-1_i32_1146 = arith.constant -1 : i32
    %2215 = vector.broadcast %c-1_i32_1146 : i32 to vector<1x256xi32>
    %2216 = arith.addi %2176, %2215 : vector<1x256xi32>
    %c16_i32_1147 = arith.constant 16 : i32
    %2217 = vector.broadcast %c16_i32_1147 : i32 to vector<1x256xi32>
    %2218 = arith.cmpi slt, %2216, %2217 : vector<1x256xi32>
    %2219 = arith.andi %2214, %2218 : vector<1x256xi1>
    %c0_i32_1148 = arith.constant 0 : i32
    %2220 = vector.broadcast %c0_i32_1148 : i32 to vector<1x256xi32>
    %2221 = arith.addi %2178, %2220 : vector<1x256xi32>
    %c0_i32_1149 = arith.constant 0 : i32
    %2222 = vector.broadcast %c0_i32_1149 : i32 to vector<1x256xi32>
    %2223 = arith.cmpi sge, %2221, %2222 : vector<1x256xi32>
    %2224 = arith.andi %2219, %2223 : vector<1x256xi1>
    %c0_i32_1150 = arith.constant 0 : i32
    %2225 = vector.broadcast %c0_i32_1150 : i32 to vector<1x256xi32>
    %2226 = arith.addi %2178, %2225 : vector<1x256xi32>
    %c16_i32_1151 = arith.constant 16 : i32
    %2227 = vector.broadcast %c16_i32_1151 : i32 to vector<1x256xi32>
    %2228 = arith.cmpi slt, %2226, %2227 : vector<1x256xi32>
    %2229 = arith.andi %2224, %2228 : vector<1x256xi1>
    %cst_1152 = arith.constant 0.000000e+00 : f32
    %2230 = vector.shape_cast %2229 : vector<1x256xi1> to vector<1x256xi1>
    %2231 = vector.broadcast %2230 : vector<1x256xi1> to vector<8x256xi1>
    %2232 = vector.broadcast %cst_1152 : f32 to vector<8x256xf32>
    %2233 = arith.select %2231, %2210, %2232 : vector<8x256xi1>, vector<8x256xf32>
    %2234 = arith.truncf %2233 : vector<8x256xf32> to vector<8x256xbf16>
    %c1_1153 = arith.constant 1 : index
    %c0_1154 = arith.constant 0 : index
    %c0_1155 = arith.constant 0 : index
    %2235 = vector.load %arg16[%c1_1153, %c0_1154, %c0_1155] : memref<9x3x8xbf16, #tpu.memory_space<vmem>>, vector<1x3x8xbf16>
    %2236 = vector.shape_cast %2235 : vector<1x3x8xbf16> to vector<3x8xbf16>
    %cst_1156 = arith.constant dense<0.000000e+00> : vector<3x256xf32>
    %2237 = tpu.matmul %2236, %2234, %cst_1156 {dimension_numbers = #tpu.dot_dimension_numbers<[1], [0], [0], [1], [0, 0, 1, 1], [], []>} : vector<3x8xbf16>, vector<8x256xbf16>, vector<3x256xf32> -> vector<3x256xf32>
    %2238 = arith.addf %2209, %2237 : vector<3x256xf32>
    %c0_1157 = arith.constant 0 : index
    %c2_1158 = arith.constant 2 : index
    %2239 = vector.load %arg24[%c0_1157, %c2_1158] : memref<32x290xf32, #tpu.memory_space<vmem>>, vector<8x256xf32>
    %c-1_i32_1159 = arith.constant -1 : i32
    %2240 = vector.broadcast %c-1_i32_1159 : i32 to vector<1x256xi32>
    %2241 = arith.addi %2176, %2240 : vector<1x256xi32>
    %c0_i32_1160 = arith.constant 0 : i32
    %2242 = vector.broadcast %c0_i32_1160 : i32 to vector<1x256xi32>
    %2243 = arith.cmpi sge, %2241, %2242 : vector<1x256xi32>
    %c-1_i32_1161 = arith.constant -1 : i32
    %2244 = vector.broadcast %c-1_i32_1161 : i32 to vector<1x256xi32>
    %2245 = arith.addi %2176, %2244 : vector<1x256xi32>
    %c16_i32_1162 = arith.constant 16 : i32
    %2246 = vector.broadcast %c16_i32_1162 : i32 to vector<1x256xi32>
    %2247 = arith.cmpi slt, %2245, %2246 : vector<1x256xi32>
    %2248 = arith.andi %2243, %2247 : vector<1x256xi1>
    %c1_i32_1163 = arith.constant 1 : i32
    %2249 = vector.broadcast %c1_i32_1163 : i32 to vector<1x256xi32>
    %2250 = arith.addi %2178, %2249 : vector<1x256xi32>
    %c0_i32_1164 = arith.constant 0 : i32
    %2251 = vector.broadcast %c0_i32_1164 : i32 to vector<1x256xi32>
    %2252 = arith.cmpi sge, %2250, %2251 : vector<1x256xi32>
    %2253 = arith.andi %2248, %2252 : vector<1x256xi1>
    %c1_i32_1165 = arith.constant 1 : i32
    %2254 = vector.broadcast %c1_i32_1165 : i32 to vector<1x256xi32>
    %2255 = arith.addi %2178, %2254 : vector<1x256xi32>
    %c16_i32_1166 = arith.constant 16 : i32
    %2256 = vector.broadcast %c16_i32_1166 : i32 to vector<1x256xi32>
    %2257 = arith.cmpi slt, %2255, %2256 : vector<1x256xi32>
    %2258 = arith.andi %2253, %2257 : vector<1x256xi1>
    %cst_1167 = arith.constant 0.000000e+00 : f32
    %2259 = vector.shape_cast %2258 : vector<1x256xi1> to vector<1x256xi1>
    %2260 = vector.broadcast %2259 : vector<1x256xi1> to vector<8x256xi1>
    %2261 = vector.broadcast %cst_1167 : f32 to vector<8x256xf32>
    %2262 = arith.select %2260, %2239, %2261 : vector<8x256xi1>, vector<8x256xf32>
    %2263 = arith.truncf %2262 : vector<8x256xf32> to vector<8x256xbf16>
    %c2_1168 = arith.constant 2 : index
    %c0_1169 = arith.constant 0 : index
    %c0_1170 = arith.constant 0 : index
    %2264 = vector.load %arg16[%c2_1168, %c0_1169, %c0_1170] : memref<9x3x8xbf16, #tpu.memory_space<vmem>>, vector<1x3x8xbf16>
    %2265 = vector.shape_cast %2264 : vector<1x3x8xbf16> to vector<3x8xbf16>
    %cst_1171 = arith.constant dense<0.000000e+00> : vector<3x256xf32>
    %2266 = tpu.matmul %2265, %2263, %cst_1171 {dimension_numbers = #tpu.dot_dimension_numbers<[1], [0], [0], [1], [0, 0, 1, 1], [], []>} : vector<3x8xbf16>, vector<8x256xbf16>, vector<3x256xf32> -> vector<3x256xf32>
    %2267 = arith.addf %2238, %2266 : vector<3x256xf32>
    %c0_1172 = arith.constant 0 : index
    %c16_1173 = arith.constant 16 : index
    %2268 = vector.load %arg24[%c0_1172, %c16_1173] : memref<32x290xf32, #tpu.memory_space<vmem>>, vector<8x256xf32>
    %c0_i32_1174 = arith.constant 0 : i32
    %2269 = vector.broadcast %c0_i32_1174 : i32 to vector<1x256xi32>
    %2270 = arith.addi %2176, %2269 : vector<1x256xi32>
    %c0_i32_1175 = arith.constant 0 : i32
    %2271 = vector.broadcast %c0_i32_1175 : i32 to vector<1x256xi32>
    %2272 = arith.cmpi sge, %2270, %2271 : vector<1x256xi32>
    %c0_i32_1176 = arith.constant 0 : i32
    %2273 = vector.broadcast %c0_i32_1176 : i32 to vector<1x256xi32>
    %2274 = arith.addi %2176, %2273 : vector<1x256xi32>
    %c16_i32_1177 = arith.constant 16 : i32
    %2275 = vector.broadcast %c16_i32_1177 : i32 to vector<1x256xi32>
    %2276 = arith.cmpi slt, %2274, %2275 : vector<1x256xi32>
    %2277 = arith.andi %2272, %2276 : vector<1x256xi1>
    %c-1_i32_1178 = arith.constant -1 : i32
    %2278 = vector.broadcast %c-1_i32_1178 : i32 to vector<1x256xi32>
    %2279 = arith.addi %2178, %2278 : vector<1x256xi32>
    %c0_i32_1179 = arith.constant 0 : i32
    %2280 = vector.broadcast %c0_i32_1179 : i32 to vector<1x256xi32>
    %2281 = arith.cmpi sge, %2279, %2280 : vector<1x256xi32>
    %2282 = arith.andi %2277, %2281 : vector<1x256xi1>
    %c-1_i32_1180 = arith.constant -1 : i32
    %2283 = vector.broadcast %c-1_i32_1180 : i32 to vector<1x256xi32>
    %2284 = arith.addi %2178, %2283 : vector<1x256xi32>
    %c16_i32_1181 = arith.constant 16 : i32
    %2285 = vector.broadcast %c16_i32_1181 : i32 to vector<1x256xi32>
    %2286 = arith.cmpi slt, %2284, %2285 : vector<1x256xi32>
    %2287 = arith.andi %2282, %2286 : vector<1x256xi1>
    %cst_1182 = arith.constant 0.000000e+00 : f32
    %2288 = vector.shape_cast %2287 : vector<1x256xi1> to vector<1x256xi1>
    %2289 = vector.broadcast %2288 : vector<1x256xi1> to vector<8x256xi1>
    %2290 = vector.broadcast %cst_1182 : f32 to vector<8x256xf32>
    %2291 = arith.select %2289, %2268, %2290 : vector<8x256xi1>, vector<8x256xf32>
    %2292 = arith.truncf %2291 : vector<8x256xf32> to vector<8x256xbf16>
    %c3_1183 = arith.constant 3 : index
    %c0_1184 = arith.constant 0 : index
    %c0_1185 = arith.constant 0 : index
    %2293 = vector.load %arg16[%c3_1183, %c0_1184, %c0_1185] : memref<9x3x8xbf16, #tpu.memory_space<vmem>>, vector<1x3x8xbf16>
    %2294 = vector.shape_cast %2293 : vector<1x3x8xbf16> to vector<3x8xbf16>
    %cst_1186 = arith.constant dense<0.000000e+00> : vector<3x256xf32>
    %2295 = tpu.matmul %2294, %2292, %cst_1186 {dimension_numbers = #tpu.dot_dimension_numbers<[1], [0], [0], [1], [0, 0, 1, 1], [], []>} : vector<3x8xbf16>, vector<8x256xbf16>, vector<3x256xf32> -> vector<3x256xf32>
    %2296 = arith.addf %2267, %2295 : vector<3x256xf32>
    %c0_1187 = arith.constant 0 : index
    %c17_1188 = arith.constant 17 : index
    %2297 = vector.load %arg24[%c0_1187, %c17_1188] : memref<32x290xf32, #tpu.memory_space<vmem>>, vector<8x256xf32>
    %c0_i32_1189 = arith.constant 0 : i32
    %2298 = vector.broadcast %c0_i32_1189 : i32 to vector<1x256xi32>
    %2299 = arith.addi %2176, %2298 : vector<1x256xi32>
    %c0_i32_1190 = arith.constant 0 : i32
    %2300 = vector.broadcast %c0_i32_1190 : i32 to vector<1x256xi32>
    %2301 = arith.cmpi sge, %2299, %2300 : vector<1x256xi32>
    %c0_i32_1191 = arith.constant 0 : i32
    %2302 = vector.broadcast %c0_i32_1191 : i32 to vector<1x256xi32>
    %2303 = arith.addi %2176, %2302 : vector<1x256xi32>
    %c16_i32_1192 = arith.constant 16 : i32
    %2304 = vector.broadcast %c16_i32_1192 : i32 to vector<1x256xi32>
    %2305 = arith.cmpi slt, %2303, %2304 : vector<1x256xi32>
    %2306 = arith.andi %2301, %2305 : vector<1x256xi1>
    %c0_i32_1193 = arith.constant 0 : i32
    %2307 = vector.broadcast %c0_i32_1193 : i32 to vector<1x256xi32>
    %2308 = arith.addi %2178, %2307 : vector<1x256xi32>
    %c0_i32_1194 = arith.constant 0 : i32
    %2309 = vector.broadcast %c0_i32_1194 : i32 to vector<1x256xi32>
    %2310 = arith.cmpi sge, %2308, %2309 : vector<1x256xi32>
    %2311 = arith.andi %2306, %2310 : vector<1x256xi1>
    %c0_i32_1195 = arith.constant 0 : i32
    %2312 = vector.broadcast %c0_i32_1195 : i32 to vector<1x256xi32>
    %2313 = arith.addi %2178, %2312 : vector<1x256xi32>
    %c16_i32_1196 = arith.constant 16 : i32
    %2314 = vector.broadcast %c16_i32_1196 : i32 to vector<1x256xi32>
    %2315 = arith.cmpi slt, %2313, %2314 : vector<1x256xi32>
    %2316 = arith.andi %2311, %2315 : vector<1x256xi1>
    %cst_1197 = arith.constant 0.000000e+00 : f32
    %2317 = vector.shape_cast %2316 : vector<1x256xi1> to vector<1x256xi1>
    %2318 = vector.broadcast %2317 : vector<1x256xi1> to vector<8x256xi1>
    %2319 = vector.broadcast %cst_1197 : f32 to vector<8x256xf32>
    %2320 = arith.select %2318, %2297, %2319 : vector<8x256xi1>, vector<8x256xf32>
    %2321 = arith.truncf %2320 : vector<8x256xf32> to vector<8x256xbf16>
    %c4_1198 = arith.constant 4 : index
    %c0_1199 = arith.constant 0 : index
    %c0_1200 = arith.constant 0 : index
    %2322 = vector.load %arg16[%c4_1198, %c0_1199, %c0_1200] : memref<9x3x8xbf16, #tpu.memory_space<vmem>>, vector<1x3x8xbf16>
    %2323 = vector.shape_cast %2322 : vector<1x3x8xbf16> to vector<3x8xbf16>
    %cst_1201 = arith.constant dense<0.000000e+00> : vector<3x256xf32>
    %2324 = tpu.matmul %2323, %2321, %cst_1201 {dimension_numbers = #tpu.dot_dimension_numbers<[1], [0], [0], [1], [0, 0, 1, 1], [], []>} : vector<3x8xbf16>, vector<8x256xbf16>, vector<3x256xf32> -> vector<3x256xf32>
    %2325 = arith.addf %2296, %2324 : vector<3x256xf32>
    %c0_1202 = arith.constant 0 : index
    %c18_1203 = arith.constant 18 : index
    %2326 = vector.load %arg24[%c0_1202, %c18_1203] : memref<32x290xf32, #tpu.memory_space<vmem>>, vector<8x256xf32>
    %c0_i32_1204 = arith.constant 0 : i32
    %2327 = vector.broadcast %c0_i32_1204 : i32 to vector<1x256xi32>
    %2328 = arith.addi %2176, %2327 : vector<1x256xi32>
    %c0_i32_1205 = arith.constant 0 : i32
    %2329 = vector.broadcast %c0_i32_1205 : i32 to vector<1x256xi32>
    %2330 = arith.cmpi sge, %2328, %2329 : vector<1x256xi32>
    %c0_i32_1206 = arith.constant 0 : i32
    %2331 = vector.broadcast %c0_i32_1206 : i32 to vector<1x256xi32>
    %2332 = arith.addi %2176, %2331 : vector<1x256xi32>
    %c16_i32_1207 = arith.constant 16 : i32
    %2333 = vector.broadcast %c16_i32_1207 : i32 to vector<1x256xi32>
    %2334 = arith.cmpi slt, %2332, %2333 : vector<1x256xi32>
    %2335 = arith.andi %2330, %2334 : vector<1x256xi1>
    %c1_i32_1208 = arith.constant 1 : i32
    %2336 = vector.broadcast %c1_i32_1208 : i32 to vector<1x256xi32>
    %2337 = arith.addi %2178, %2336 : vector<1x256xi32>
    %c0_i32_1209 = arith.constant 0 : i32
    %2338 = vector.broadcast %c0_i32_1209 : i32 to vector<1x256xi32>
    %2339 = arith.cmpi sge, %2337, %2338 : vector<1x256xi32>
    %2340 = arith.andi %2335, %2339 : vector<1x256xi1>
    %c1_i32_1210 = arith.constant 1 : i32
    %2341 = vector.broadcast %c1_i32_1210 : i32 to vector<1x256xi32>
    %2342 = arith.addi %2178, %2341 : vector<1x256xi32>
    %c16_i32_1211 = arith.constant 16 : i32
    %2343 = vector.broadcast %c16_i32_1211 : i32 to vector<1x256xi32>
    %2344 = arith.cmpi slt, %2342, %2343 : vector<1x256xi32>
    %2345 = arith.andi %2340, %2344 : vector<1x256xi1>
    %cst_1212 = arith.constant 0.000000e+00 : f32
    %2346 = vector.shape_cast %2345 : vector<1x256xi1> to vector<1x256xi1>
    %2347 = vector.broadcast %2346 : vector<1x256xi1> to vector<8x256xi1>
    %2348 = vector.broadcast %cst_1212 : f32 to vector<8x256xf32>
    %2349 = arith.select %2347, %2326, %2348 : vector<8x256xi1>, vector<8x256xf32>
    %2350 = arith.truncf %2349 : vector<8x256xf32> to vector<8x256xbf16>
    %c5_1213 = arith.constant 5 : index
    %c0_1214 = arith.constant 0 : index
    %c0_1215 = arith.constant 0 : index
    %2351 = vector.load %arg16[%c5_1213, %c0_1214, %c0_1215] : memref<9x3x8xbf16, #tpu.memory_space<vmem>>, vector<1x3x8xbf16>
    %2352 = vector.shape_cast %2351 : vector<1x3x8xbf16> to vector<3x8xbf16>
    %cst_1216 = arith.constant dense<0.000000e+00> : vector<3x256xf32>
    %2353 = tpu.matmul %2352, %2350, %cst_1216 {dimension_numbers = #tpu.dot_dimension_numbers<[1], [0], [0], [1], [0, 0, 1, 1], [], []>} : vector<3x8xbf16>, vector<8x256xbf16>, vector<3x256xf32> -> vector<3x256xf32>
    %2354 = arith.addf %2325, %2353 : vector<3x256xf32>
    %c0_1217 = arith.constant 0 : index
    %c32_1218 = arith.constant 32 : index
    %2355 = vector.load %arg24[%c0_1217, %c32_1218] : memref<32x290xf32, #tpu.memory_space<vmem>>, vector<8x256xf32>
    %c1_i32_1219 = arith.constant 1 : i32
    %2356 = vector.broadcast %c1_i32_1219 : i32 to vector<1x256xi32>
    %2357 = arith.addi %2176, %2356 : vector<1x256xi32>
    %c0_i32_1220 = arith.constant 0 : i32
    %2358 = vector.broadcast %c0_i32_1220 : i32 to vector<1x256xi32>
    %2359 = arith.cmpi sge, %2357, %2358 : vector<1x256xi32>
    %c1_i32_1221 = arith.constant 1 : i32
    %2360 = vector.broadcast %c1_i32_1221 : i32 to vector<1x256xi32>
    %2361 = arith.addi %2176, %2360 : vector<1x256xi32>
    %c16_i32_1222 = arith.constant 16 : i32
    %2362 = vector.broadcast %c16_i32_1222 : i32 to vector<1x256xi32>
    %2363 = arith.cmpi slt, %2361, %2362 : vector<1x256xi32>
    %2364 = arith.andi %2359, %2363 : vector<1x256xi1>
    %c-1_i32_1223 = arith.constant -1 : i32
    %2365 = vector.broadcast %c-1_i32_1223 : i32 to vector<1x256xi32>
    %2366 = arith.addi %2178, %2365 : vector<1x256xi32>
    %c0_i32_1224 = arith.constant 0 : i32
    %2367 = vector.broadcast %c0_i32_1224 : i32 to vector<1x256xi32>
    %2368 = arith.cmpi sge, %2366, %2367 : vector<1x256xi32>
    %2369 = arith.andi %2364, %2368 : vector<1x256xi1>
    %c-1_i32_1225 = arith.constant -1 : i32
    %2370 = vector.broadcast %c-1_i32_1225 : i32 to vector<1x256xi32>
    %2371 = arith.addi %2178, %2370 : vector<1x256xi32>
    %c16_i32_1226 = arith.constant 16 : i32
    %2372 = vector.broadcast %c16_i32_1226 : i32 to vector<1x256xi32>
    %2373 = arith.cmpi slt, %2371, %2372 : vector<1x256xi32>
    %2374 = arith.andi %2369, %2373 : vector<1x256xi1>
    %cst_1227 = arith.constant 0.000000e+00 : f32
    %2375 = vector.shape_cast %2374 : vector<1x256xi1> to vector<1x256xi1>
    %2376 = vector.broadcast %2375 : vector<1x256xi1> to vector<8x256xi1>
    %2377 = vector.broadcast %cst_1227 : f32 to vector<8x256xf32>
    %2378 = arith.select %2376, %2355, %2377 : vector<8x256xi1>, vector<8x256xf32>
    %2379 = arith.truncf %2378 : vector<8x256xf32> to vector<8x256xbf16>
    %c6_1228 = arith.constant 6 : index
    %c0_1229 = arith.constant 0 : index
    %c0_1230 = arith.constant 0 : index
    %2380 = vector.load %arg16[%c6_1228, %c0_1229, %c0_1230] : memref<9x3x8xbf16, #tpu.memory_space<vmem>>, vector<1x3x8xbf16>
    %2381 = vector.shape_cast %2380 : vector<1x3x8xbf16> to vector<3x8xbf16>
    %cst_1231 = arith.constant dense<0.000000e+00> : vector<3x256xf32>
    %2382 = tpu.matmul %2381, %2379, %cst_1231 {dimension_numbers = #tpu.dot_dimension_numbers<[1], [0], [0], [1], [0, 0, 1, 1], [], []>} : vector<3x8xbf16>, vector<8x256xbf16>, vector<3x256xf32> -> vector<3x256xf32>
    %2383 = arith.addf %2354, %2382 : vector<3x256xf32>
    %c0_1232 = arith.constant 0 : index
    %c33_1233 = arith.constant 33 : index
    %2384 = vector.load %arg24[%c0_1232, %c33_1233] : memref<32x290xf32, #tpu.memory_space<vmem>>, vector<8x256xf32>
    %c1_i32_1234 = arith.constant 1 : i32
    %2385 = vector.broadcast %c1_i32_1234 : i32 to vector<1x256xi32>
    %2386 = arith.addi %2176, %2385 : vector<1x256xi32>
    %c0_i32_1235 = arith.constant 0 : i32
    %2387 = vector.broadcast %c0_i32_1235 : i32 to vector<1x256xi32>
    %2388 = arith.cmpi sge, %2386, %2387 : vector<1x256xi32>
    %c1_i32_1236 = arith.constant 1 : i32
    %2389 = vector.broadcast %c1_i32_1236 : i32 to vector<1x256xi32>
    %2390 = arith.addi %2176, %2389 : vector<1x256xi32>
    %c16_i32_1237 = arith.constant 16 : i32
    %2391 = vector.broadcast %c16_i32_1237 : i32 to vector<1x256xi32>
    %2392 = arith.cmpi slt, %2390, %2391 : vector<1x256xi32>
    %2393 = arith.andi %2388, %2392 : vector<1x256xi1>
    %c0_i32_1238 = arith.constant 0 : i32
    %2394 = vector.broadcast %c0_i32_1238 : i32 to vector<1x256xi32>
    %2395 = arith.addi %2178, %2394 : vector<1x256xi32>
    %c0_i32_1239 = arith.constant 0 : i32
    %2396 = vector.broadcast %c0_i32_1239 : i32 to vector<1x256xi32>
    %2397 = arith.cmpi sge, %2395, %2396 : vector<1x256xi32>
    %2398 = arith.andi %2393, %2397 : vector<1x256xi1>
    %c0_i32_1240 = arith.constant 0 : i32
    %2399 = vector.broadcast %c0_i32_1240 : i32 to vector<1x256xi32>
    %2400 = arith.addi %2178, %2399 : vector<1x256xi32>
    %c16_i32_1241 = arith.constant 16 : i32
    %2401 = vector.broadcast %c16_i32_1241 : i32 to vector<1x256xi32>
    %2402 = arith.cmpi slt, %2400, %2401 : vector<1x256xi32>
    %2403 = arith.andi %2398, %2402 : vector<1x256xi1>
    %cst_1242 = arith.constant 0.000000e+00 : f32
    %2404 = vector.shape_cast %2403 : vector<1x256xi1> to vector<1x256xi1>
    %2405 = vector.broadcast %2404 : vector<1x256xi1> to vector<8x256xi1>
    %2406 = vector.broadcast %cst_1242 : f32 to vector<8x256xf32>
    %2407 = arith.select %2405, %2384, %2406 : vector<8x256xi1>, vector<8x256xf32>
    %2408 = arith.truncf %2407 : vector<8x256xf32> to vector<8x256xbf16>
    %c7_1243 = arith.constant 7 : index
    %c0_1244 = arith.constant 0 : index
    %c0_1245 = arith.constant 0 : index
    %2409 = vector.load %arg16[%c7_1243, %c0_1244, %c0_1245] : memref<9x3x8xbf16, #tpu.memory_space<vmem>>, vector<1x3x8xbf16>
    %2410 = vector.shape_cast %2409 : vector<1x3x8xbf16> to vector<3x8xbf16>
    %cst_1246 = arith.constant dense<0.000000e+00> : vector<3x256xf32>
    %2411 = tpu.matmul %2410, %2408, %cst_1246 {dimension_numbers = #tpu.dot_dimension_numbers<[1], [0], [0], [1], [0, 0, 1, 1], [], []>} : vector<3x8xbf16>, vector<8x256xbf16>, vector<3x256xf32> -> vector<3x256xf32>
    %2412 = arith.addf %2383, %2411 : vector<3x256xf32>
    %c0_1247 = arith.constant 0 : index
    %c34_1248 = arith.constant 34 : index
    %2413 = vector.load %arg24[%c0_1247, %c34_1248] : memref<32x290xf32, #tpu.memory_space<vmem>>, vector<8x256xf32>
    %c1_i32_1249 = arith.constant 1 : i32
    %2414 = vector.broadcast %c1_i32_1249 : i32 to vector<1x256xi32>
    %2415 = arith.addi %2176, %2414 : vector<1x256xi32>
    %c0_i32_1250 = arith.constant 0 : i32
    %2416 = vector.broadcast %c0_i32_1250 : i32 to vector<1x256xi32>
    %2417 = arith.cmpi sge, %2415, %2416 : vector<1x256xi32>
    %c1_i32_1251 = arith.constant 1 : i32
    %2418 = vector.broadcast %c1_i32_1251 : i32 to vector<1x256xi32>
    %2419 = arith.addi %2176, %2418 : vector<1x256xi32>
    %c16_i32_1252 = arith.constant 16 : i32
    %2420 = vector.broadcast %c16_i32_1252 : i32 to vector<1x256xi32>
    %2421 = arith.cmpi slt, %2419, %2420 : vector<1x256xi32>
    %2422 = arith.andi %2417, %2421 : vector<1x256xi1>
    %c1_i32_1253 = arith.constant 1 : i32
    %2423 = vector.broadcast %c1_i32_1253 : i32 to vector<1x256xi32>
    %2424 = arith.addi %2178, %2423 : vector<1x256xi32>
    %c0_i32_1254 = arith.constant 0 : i32
    %2425 = vector.broadcast %c0_i32_1254 : i32 to vector<1x256xi32>
    %2426 = arith.cmpi sge, %2424, %2425 : vector<1x256xi32>
    %2427 = arith.andi %2422, %2426 : vector<1x256xi1>
    %c1_i32_1255 = arith.constant 1 : i32
    %2428 = vector.broadcast %c1_i32_1255 : i32 to vector<1x256xi32>
    %2429 = arith.addi %2178, %2428 : vector<1x256xi32>
    %c16_i32_1256 = arith.constant 16 : i32
    %2430 = vector.broadcast %c16_i32_1256 : i32 to vector<1x256xi32>
    %2431 = arith.cmpi slt, %2429, %2430 : vector<1x256xi32>
    %2432 = arith.andi %2427, %2431 : vector<1x256xi1>
    %cst_1257 = arith.constant 0.000000e+00 : f32
    %2433 = vector.shape_cast %2432 : vector<1x256xi1> to vector<1x256xi1>
    %2434 = vector.broadcast %2433 : vector<1x256xi1> to vector<8x256xi1>
    %2435 = vector.broadcast %cst_1257 : f32 to vector<8x256xf32>
    %2436 = arith.select %2434, %2413, %2435 : vector<8x256xi1>, vector<8x256xf32>
    %2437 = arith.truncf %2436 : vector<8x256xf32> to vector<8x256xbf16>
    %c8_1258 = arith.constant 8 : index
    %c0_1259 = arith.constant 0 : index
    %c0_1260 = arith.constant 0 : index
    %2438 = vector.load %arg16[%c8_1258, %c0_1259, %c0_1260] : memref<9x3x8xbf16, #tpu.memory_space<vmem>>, vector<1x3x8xbf16>
    %2439 = vector.shape_cast %2438 : vector<1x3x8xbf16> to vector<3x8xbf16>
    %cst_1261 = arith.constant dense<0.000000e+00> : vector<3x256xf32>
    %2440 = tpu.matmul %2439, %2437, %cst_1261 {dimension_numbers = #tpu.dot_dimension_numbers<[1], [0], [0], [1], [0, 0, 1, 1], [], []>} : vector<3x8xbf16>, vector<8x256xbf16>, vector<3x256xf32> -> vector<3x256xf32>
    %2441 = arith.addf %2412, %2440 : vector<3x256xf32>
    %c0_1262 = arith.constant 0 : index
    %c17_1263 = arith.constant 17 : index
    %2442 = vector.load %arg24[%c0_1262, %c17_1263] : memref<32x290xf32, #tpu.memory_space<vmem>>, vector<3x256xf32>
    tpu.vector_store %arg24[%c0_1262, %c17_1263], %3 {strides = array<i32>} : memref<32x290xf32, #tpu.memory_space<vmem>>, vector<3x256xf32>,
    %c0_1264 = arith.constant 0 : index
    %c0_1265 = arith.constant 0 : index
    %2443 = vector.load %arg24[%c0_1264, %c0_1265] : memref<32x290xf32, #tpu.memory_space<vmem>>, vector<3x256xf32>
    %c-1_i32_1266 = arith.constant -1 : i32
    %2444 = vector.broadcast %c-1_i32_1266 : i32 to vector<1x256xi32>
    %2445 = arith.addi %2176, %2444 : vector<1x256xi32>
    %c0_i32_1267 = arith.constant 0 : i32
    %2446 = vector.broadcast %c0_i32_1267 : i32 to vector<1x256xi32>
    %2447 = arith.cmpi sge, %2445, %2446 : vector<1x256xi32>
    %c-1_i32_1268 = arith.constant -1 : i32
    %2448 = vector.broadcast %c-1_i32_1268 : i32 to vector<1x256xi32>
    %2449 = arith.addi %2176, %2448 : vector<1x256xi32>
    %c16_i32_1269 = arith.constant 16 : i32
    %2450 = vector.broadcast %c16_i32_1269 : i32 to vector<1x256xi32>
    %2451 = arith.cmpi slt, %2449, %2450 : vector<1x256xi32>
    %2452 = arith.andi %2447, %2451 : vector<1x256xi1>
    %c-1_i32_1270 = arith.constant -1 : i32
    %2453 = vector.broadcast %c-1_i32_1270 : i32 to vector<1x256xi32>
    %2454 = arith.addi %2178, %2453 : vector<1x256xi32>
    %c0_i32_1271 = arith.constant 0 : i32
    %2455 = vector.broadcast %c0_i32_1271 : i32 to vector<1x256xi32>
    %2456 = arith.cmpi sge, %2454, %2455 : vector<1x256xi32>
    %2457 = arith.andi %2452, %2456 : vector<1x256xi1>
    %c-1_i32_1272 = arith.constant -1 : i32
    %2458 = vector.broadcast %c-1_i32_1272 : i32 to vector<1x256xi32>
    %2459 = arith.addi %2178, %2458 : vector<1x256xi32>
    %c16_i32_1273 = arith.constant 16 : i32
    %2460 = vector.broadcast %c16_i32_1273 : i32 to vector<1x256xi32>
    %2461 = arith.cmpi slt, %2459, %2460 : vector<1x256xi32>
    %2462 = arith.andi %2457, %2461 : vector<1x256xi1>
    %cst_1274 = arith.constant 0.000000e+00 : f32
    %2463 = vector.shape_cast %2462 : vector<1x256xi1> to vector<1x256xi1>
    %2464 = vector.broadcast %2463 : vector<1x256xi1> to vector<3x256xi1>
    %2465 = vector.broadcast %cst_1274 : f32 to vector<3x256xf32>
    %2466 = arith.select %2464, %2443, %2465 : vector<3x256xi1>, vector<3x256xf32>
    %2467 = arith.truncf %2466 : vector<3x256xf32> to vector<3x256xbf16>
    %c0_1275 = arith.constant 0 : index
    %c0_1276 = arith.constant 0 : index
    %c0_1277 = arith.constant 0 : index
    %2468 = vector.load %arg17[%c0_1275, %c0_1276, %c0_1277] : memref<9x3x3xbf16, #tpu.memory_space<vmem>>, vector<1x3x3xbf16>
    %2469 = vector.shape_cast %2468 : vector<1x3x3xbf16> to vector<3x3xbf16>
    %cst_1278 = arith.constant dense<0.000000e+00> : vector<3x256xf32>
    %2470 = tpu.matmul %2469, %2467, %cst_1278 {dimension_numbers = #tpu.dot_dimension_numbers<[1], [0], [0], [1], [0, 0, 1, 1], [], []>} : vector<3x3xbf16>, vector<3x256xbf16>, vector<3x256xf32> -> vector<3x256xf32>
    %2471 = arith.addf %2441, %2470 : vector<3x256xf32>
    %c0_1279 = arith.constant 0 : index
    %c1_1280 = arith.constant 1 : index
    %2472 = vector.load %arg24[%c0_1279, %c1_1280] : memref<32x290xf32, #tpu.memory_space<vmem>>, vector<3x256xf32>
    %c-1_i32_1281 = arith.constant -1 : i32
    %2473 = vector.broadcast %c-1_i32_1281 : i32 to vector<1x256xi32>
    %2474 = arith.addi %2176, %2473 : vector<1x256xi32>
    %c0_i32_1282 = arith.constant 0 : i32
    %2475 = vector.broadcast %c0_i32_1282 : i32 to vector<1x256xi32>
    %2476 = arith.cmpi sge, %2474, %2475 : vector<1x256xi32>
    %c-1_i32_1283 = arith.constant -1 : i32
    %2477 = vector.broadcast %c-1_i32_1283 : i32 to vector<1x256xi32>
    %2478 = arith.addi %2176, %2477 : vector<1x256xi32>
    %c16_i32_1284 = arith.constant 16 : i32
    %2479 = vector.broadcast %c16_i32_1284 : i32 to vector<1x256xi32>
    %2480 = arith.cmpi slt, %2478, %2479 : vector<1x256xi32>
    %2481 = arith.andi %2476, %2480 : vector<1x256xi1>
    %c0_i32_1285 = arith.constant 0 : i32
    %2482 = vector.broadcast %c0_i32_1285 : i32 to vector<1x256xi32>
    %2483 = arith.addi %2178, %2482 : vector<1x256xi32>
    %c0_i32_1286 = arith.constant 0 : i32
    %2484 = vector.broadcast %c0_i32_1286 : i32 to vector<1x256xi32>
    %2485 = arith.cmpi sge, %2483, %2484 : vector<1x256xi32>
    %2486 = arith.andi %2481, %2485 : vector<1x256xi1>
    %c0_i32_1287 = arith.constant 0 : i32
    %2487 = vector.broadcast %c0_i32_1287 : i32 to vector<1x256xi32>
    %2488 = arith.addi %2178, %2487 : vector<1x256xi32>
    %c16_i32_1288 = arith.constant 16 : i32
    %2489 = vector.broadcast %c16_i32_1288 : i32 to vector<1x256xi32>
    %2490 = arith.cmpi slt, %2488, %2489 : vector<1x256xi32>
    %2491 = arith.andi %2486, %2490 : vector<1x256xi1>
    %cst_1289 = arith.constant 0.000000e+00 : f32
    %2492 = vector.shape_cast %2491 : vector<1x256xi1> to vector<1x256xi1>
    %2493 = vector.broadcast %2492 : vector<1x256xi1> to vector<3x256xi1>
    %2494 = vector.broadcast %cst_1289 : f32 to vector<3x256xf32>
    %2495 = arith.select %2493, %2472, %2494 : vector<3x256xi1>, vector<3x256xf32>
    %2496 = arith.truncf %2495 : vector<3x256xf32> to vector<3x256xbf16>
    %c1_1290 = arith.constant 1 : index
    %c0_1291 = arith.constant 0 : index
    %c0_1292 = arith.constant 0 : index
    %2497 = vector.load %arg17[%c1_1290, %c0_1291, %c0_1292] : memref<9x3x3xbf16, #tpu.memory_space<vmem>>, vector<1x3x3xbf16>
    %2498 = vector.shape_cast %2497 : vector<1x3x3xbf16> to vector<3x3xbf16>
    %cst_1293 = arith.constant dense<0.000000e+00> : vector<3x256xf32>
    %2499 = tpu.matmul %2498, %2496, %cst_1293 {dimension_numbers = #tpu.dot_dimension_numbers<[1], [0], [0], [1], [0, 0, 1, 1], [], []>} : vector<3x3xbf16>, vector<3x256xbf16>, vector<3x256xf32> -> vector<3x256xf32>
    %2500 = arith.addf %2471, %2499 : vector<3x256xf32>
    %c0_1294 = arith.constant 0 : index
    %c2_1295 = arith.constant 2 : index
    %2501 = vector.load %arg24[%c0_1294, %c2_1295] : memref<32x290xf32, #tpu.memory_space<vmem>>, vector<3x256xf32>
    %c-1_i32_1296 = arith.constant -1 : i32
    %2502 = vector.broadcast %c-1_i32_1296 : i32 to vector<1x256xi32>
    %2503 = arith.addi %2176, %2502 : vector<1x256xi32>
    %c0_i32_1297 = arith.constant 0 : i32
    %2504 = vector.broadcast %c0_i32_1297 : i32 to vector<1x256xi32>
    %2505 = arith.cmpi sge, %2503, %2504 : vector<1x256xi32>
    %c-1_i32_1298 = arith.constant -1 : i32
    %2506 = vector.broadcast %c-1_i32_1298 : i32 to vector<1x256xi32>
    %2507 = arith.addi %2176, %2506 : vector<1x256xi32>
    %c16_i32_1299 = arith.constant 16 : i32
    %2508 = vector.broadcast %c16_i32_1299 : i32 to vector<1x256xi32>
    %2509 = arith.cmpi slt, %2507, %2508 : vector<1x256xi32>
    %2510 = arith.andi %2505, %2509 : vector<1x256xi1>
    %c1_i32_1300 = arith.constant 1 : i32
    %2511 = vector.broadcast %c1_i32_1300 : i32 to vector<1x256xi32>
    %2512 = arith.addi %2178, %2511 : vector<1x256xi32>
    %c0_i32_1301 = arith.constant 0 : i32
    %2513 = vector.broadcast %c0_i32_1301 : i32 to vector<1x256xi32>
    %2514 = arith.cmpi sge, %2512, %2513 : vector<1x256xi32>
    %2515 = arith.andi %2510, %2514 : vector<1x256xi1>
    %c1_i32_1302 = arith.constant 1 : i32
    %2516 = vector.broadcast %c1_i32_1302 : i32 to vector<1x256xi32>
    %2517 = arith.addi %2178, %2516 : vector<1x256xi32>
    %c16_i32_1303 = arith.constant 16 : i32
    %2518 = vector.broadcast %c16_i32_1303 : i32 to vector<1x256xi32>
    %2519 = arith.cmpi slt, %2517, %2518 : vector<1x256xi32>
    %2520 = arith.andi %2515, %2519 : vector<1x256xi1>
    %cst_1304 = arith.constant 0.000000e+00 : f32
    %2521 = vector.shape_cast %2520 : vector<1x256xi1> to vector<1x256xi1>
    %2522 = vector.broadcast %2521 : vector<1x256xi1> to vector<3x256xi1>
    %2523 = vector.broadcast %cst_1304 : f32 to vector<3x256xf32>
    %2524 = arith.select %2522, %2501, %2523 : vector<3x256xi1>, vector<3x256xf32>
    %2525 = arith.truncf %2524 : vector<3x256xf32> to vector<3x256xbf16>
    %c2_1305 = arith.constant 2 : index
    %c0_1306 = arith.constant 0 : index
    %c0_1307 = arith.constant 0 : index
    %2526 = vector.load %arg17[%c2_1305, %c0_1306, %c0_1307] : memref<9x3x3xbf16, #tpu.memory_space<vmem>>, vector<1x3x3xbf16>
    %2527 = vector.shape_cast %2526 : vector<1x3x3xbf16> to vector<3x3xbf16>
    %cst_1308 = arith.constant dense<0.000000e+00> : vector<3x256xf32>
    %2528 = tpu.matmul %2527, %2525, %cst_1308 {dimension_numbers = #tpu.dot_dimension_numbers<[1], [0], [0], [1], [0, 0, 1, 1], [], []>} : vector<3x3xbf16>, vector<3x256xbf16>, vector<3x256xf32> -> vector<3x256xf32>
    %2529 = arith.addf %2500, %2528 : vector<3x256xf32>
    %c0_1309 = arith.constant 0 : index
    %c16_1310 = arith.constant 16 : index
    %2530 = vector.load %arg24[%c0_1309, %c16_1310] : memref<32x290xf32, #tpu.memory_space<vmem>>, vector<3x256xf32>
    %c0_i32_1311 = arith.constant 0 : i32
    %2531 = vector.broadcast %c0_i32_1311 : i32 to vector<1x256xi32>
    %2532 = arith.addi %2176, %2531 : vector<1x256xi32>
    %c0_i32_1312 = arith.constant 0 : i32
    %2533 = vector.broadcast %c0_i32_1312 : i32 to vector<1x256xi32>
    %2534 = arith.cmpi sge, %2532, %2533 : vector<1x256xi32>
    %c0_i32_1313 = arith.constant 0 : i32
    %2535 = vector.broadcast %c0_i32_1313 : i32 to vector<1x256xi32>
    %2536 = arith.addi %2176, %2535 : vector<1x256xi32>
    %c16_i32_1314 = arith.constant 16 : i32
    %2537 = vector.broadcast %c16_i32_1314 : i32 to vector<1x256xi32>
    %2538 = arith.cmpi slt, %2536, %2537 : vector<1x256xi32>
    %2539 = arith.andi %2534, %2538 : vector<1x256xi1>
    %c-1_i32_1315 = arith.constant -1 : i32
    %2540 = vector.broadcast %c-1_i32_1315 : i32 to vector<1x256xi32>
    %2541 = arith.addi %2178, %2540 : vector<1x256xi32>
    %c0_i32_1316 = arith.constant 0 : i32
    %2542 = vector.broadcast %c0_i32_1316 : i32 to vector<1x256xi32>
    %2543 = arith.cmpi sge, %2541, %2542 : vector<1x256xi32>
    %2544 = arith.andi %2539, %2543 : vector<1x256xi1>
    %c-1_i32_1317 = arith.constant -1 : i32
    %2545 = vector.broadcast %c-1_i32_1317 : i32 to vector<1x256xi32>
    %2546 = arith.addi %2178, %2545 : vector<1x256xi32>
    %c16_i32_1318 = arith.constant 16 : i32
    %2547 = vector.broadcast %c16_i32_1318 : i32 to vector<1x256xi32>
    %2548 = arith.cmpi slt, %2546, %2547 : vector<1x256xi32>
    %2549 = arith.andi %2544, %2548 : vector<1x256xi1>
    %cst_1319 = arith.constant 0.000000e+00 : f32
    %2550 = vector.shape_cast %2549 : vector<1x256xi1> to vector<1x256xi1>
    %2551 = vector.broadcast %2550 : vector<1x256xi1> to vector<3x256xi1>
    %2552 = vector.broadcast %cst_1319 : f32 to vector<3x256xf32>
    %2553 = arith.select %2551, %2530, %2552 : vector<3x256xi1>, vector<3x256xf32>
    %2554 = arith.truncf %2553 : vector<3x256xf32> to vector<3x256xbf16>
    %c3_1320 = arith.constant 3 : index
    %c0_1321 = arith.constant 0 : index
    %c0_1322 = arith.constant 0 : index
    %2555 = vector.load %arg17[%c3_1320, %c0_1321, %c0_1322] : memref<9x3x3xbf16, #tpu.memory_space<vmem>>, vector<1x3x3xbf16>
    %2556 = vector.shape_cast %2555 : vector<1x3x3xbf16> to vector<3x3xbf16>
    %cst_1323 = arith.constant dense<0.000000e+00> : vector<3x256xf32>
    %2557 = tpu.matmul %2556, %2554, %cst_1323 {dimension_numbers = #tpu.dot_dimension_numbers<[1], [0], [0], [1], [0, 0, 1, 1], [], []>} : vector<3x3xbf16>, vector<3x256xbf16>, vector<3x256xf32> -> vector<3x256xf32>
    %2558 = arith.addf %2529, %2557 : vector<3x256xf32>
    %c0_1324 = arith.constant 0 : index
    %c17_1325 = arith.constant 17 : index
    %2559 = vector.load %arg24[%c0_1324, %c17_1325] : memref<32x290xf32, #tpu.memory_space<vmem>>, vector<3x256xf32>
    %c0_i32_1326 = arith.constant 0 : i32
    %2560 = vector.broadcast %c0_i32_1326 : i32 to vector<1x256xi32>
    %2561 = arith.addi %2176, %2560 : vector<1x256xi32>
    %c0_i32_1327 = arith.constant 0 : i32
    %2562 = vector.broadcast %c0_i32_1327 : i32 to vector<1x256xi32>
    %2563 = arith.cmpi sge, %2561, %2562 : vector<1x256xi32>
    %c0_i32_1328 = arith.constant 0 : i32
    %2564 = vector.broadcast %c0_i32_1328 : i32 to vector<1x256xi32>
    %2565 = arith.addi %2176, %2564 : vector<1x256xi32>
    %c16_i32_1329 = arith.constant 16 : i32
    %2566 = vector.broadcast %c16_i32_1329 : i32 to vector<1x256xi32>
    %2567 = arith.cmpi slt, %2565, %2566 : vector<1x256xi32>
    %2568 = arith.andi %2563, %2567 : vector<1x256xi1>
    %c0_i32_1330 = arith.constant 0 : i32
    %2569 = vector.broadcast %c0_i32_1330 : i32 to vector<1x256xi32>
    %2570 = arith.addi %2178, %2569 : vector<1x256xi32>
    %c0_i32_1331 = arith.constant 0 : i32
    %2571 = vector.broadcast %c0_i32_1331 : i32 to vector<1x256xi32>
    %2572 = arith.cmpi sge, %2570, %2571 : vector<1x256xi32>
    %2573 = arith.andi %2568, %2572 : vector<1x256xi1>
    %c0_i32_1332 = arith.constant 0 : i32
    %2574 = vector.broadcast %c0_i32_1332 : i32 to vector<1x256xi32>
    %2575 = arith.addi %2178, %2574 : vector<1x256xi32>
    %c16_i32_1333 = arith.constant 16 : i32
    %2576 = vector.broadcast %c16_i32_1333 : i32 to vector<1x256xi32>
    %2577 = arith.cmpi slt, %2575, %2576 : vector<1x256xi32>
    %2578 = arith.andi %2573, %2577 : vector<1x256xi1>
    %cst_1334 = arith.constant 0.000000e+00 : f32
    %2579 = vector.shape_cast %2578 : vector<1x256xi1> to vector<1x256xi1>
    %2580 = vector.broadcast %2579 : vector<1x256xi1> to vector<3x256xi1>
    %2581 = vector.broadcast %cst_1334 : f32 to vector<3x256xf32>
    %2582 = arith.select %2580, %2559, %2581 : vector<3x256xi1>, vector<3x256xf32>
    %2583 = arith.truncf %2582 : vector<3x256xf32> to vector<3x256xbf16>
    %c4_1335 = arith.constant 4 : index
    %c0_1336 = arith.constant 0 : index
    %c0_1337 = arith.constant 0 : index
    %2584 = vector.load %arg17[%c4_1335, %c0_1336, %c0_1337] : memref<9x3x3xbf16, #tpu.memory_space<vmem>>, vector<1x3x3xbf16>
    %2585 = vector.shape_cast %2584 : vector<1x3x3xbf16> to vector<3x3xbf16>
    %cst_1338 = arith.constant dense<0.000000e+00> : vector<3x256xf32>
    %2586 = tpu.matmul %2585, %2583, %cst_1338 {dimension_numbers = #tpu.dot_dimension_numbers<[1], [0], [0], [1], [0, 0, 1, 1], [], []>} : vector<3x3xbf16>, vector<3x256xbf16>, vector<3x256xf32> -> vector<3x256xf32>
    %2587 = arith.addf %2558, %2586 : vector<3x256xf32>
    %c0_1339 = arith.constant 0 : index
    %c18_1340 = arith.constant 18 : index
    %2588 = vector.load %arg24[%c0_1339, %c18_1340] : memref<32x290xf32, #tpu.memory_space<vmem>>, vector<3x256xf32>
    %c0_i32_1341 = arith.constant 0 : i32
    %2589 = vector.broadcast %c0_i32_1341 : i32 to vector<1x256xi32>
    %2590 = arith.addi %2176, %2589 : vector<1x256xi32>
    %c0_i32_1342 = arith.constant 0 : i32
    %2591 = vector.broadcast %c0_i32_1342 : i32 to vector<1x256xi32>
    %2592 = arith.cmpi sge, %2590, %2591 : vector<1x256xi32>
    %c0_i32_1343 = arith.constant 0 : i32
    %2593 = vector.broadcast %c0_i32_1343 : i32 to vector<1x256xi32>
    %2594 = arith.addi %2176, %2593 : vector<1x256xi32>
    %c16_i32_1344 = arith.constant 16 : i32
    %2595 = vector.broadcast %c16_i32_1344 : i32 to vector<1x256xi32>
    %2596 = arith.cmpi slt, %2594, %2595 : vector<1x256xi32>
    %2597 = arith.andi %2592, %2596 : vector<1x256xi1>
    %c1_i32_1345 = arith.constant 1 : i32
    %2598 = vector.broadcast %c1_i32_1345 : i32 to vector<1x256xi32>
    %2599 = arith.addi %2178, %2598 : vector<1x256xi32>
    %c0_i32_1346 = arith.constant 0 : i32
    %2600 = vector.broadcast %c0_i32_1346 : i32 to vector<1x256xi32>
    %2601 = arith.cmpi sge, %2599, %2600 : vector<1x256xi32>
    %2602 = arith.andi %2597, %2601 : vector<1x256xi1>
    %c1_i32_1347 = arith.constant 1 : i32
    %2603 = vector.broadcast %c1_i32_1347 : i32 to vector<1x256xi32>
    %2604 = arith.addi %2178, %2603 : vector<1x256xi32>
    %c16_i32_1348 = arith.constant 16 : i32
    %2605 = vector.broadcast %c16_i32_1348 : i32 to vector<1x256xi32>
    %2606 = arith.cmpi slt, %2604, %2605 : vector<1x256xi32>
    %2607 = arith.andi %2602, %2606 : vector<1x256xi1>
    %cst_1349 = arith.constant 0.000000e+00 : f32
    %2608 = vector.shape_cast %2607 : vector<1x256xi1> to vector<1x256xi1>
    %2609 = vector.broadcast %2608 : vector<1x256xi1> to vector<3x256xi1>
    %2610 = vector.broadcast %cst_1349 : f32 to vector<3x256xf32>
    %2611 = arith.select %2609, %2588, %2610 : vector<3x256xi1>, vector<3x256xf32>
    %2612 = arith.truncf %2611 : vector<3x256xf32> to vector<3x256xbf16>
    %c5_1350 = arith.constant 5 : index
    %c0_1351 = arith.constant 0 : index
    %c0_1352 = arith.constant 0 : index
    %2613 = vector.load %arg17[%c5_1350, %c0_1351, %c0_1352] : memref<9x3x3xbf16, #tpu.memory_space<vmem>>, vector<1x3x3xbf16>
    %2614 = vector.shape_cast %2613 : vector<1x3x3xbf16> to vector<3x3xbf16>
    %cst_1353 = arith.constant dense<0.000000e+00> : vector<3x256xf32>
    %2615 = tpu.matmul %2614, %2612, %cst_1353 {dimension_numbers = #tpu.dot_dimension_numbers<[1], [0], [0], [1], [0, 0, 1, 1], [], []>} : vector<3x3xbf16>, vector<3x256xbf16>, vector<3x256xf32> -> vector<3x256xf32>
    %2616 = arith.addf %2587, %2615 : vector<3x256xf32>
    %c0_1354 = arith.constant 0 : index
    %c32_1355 = arith.constant 32 : index
    %2617 = vector.load %arg24[%c0_1354, %c32_1355] : memref<32x290xf32, #tpu.memory_space<vmem>>, vector<3x256xf32>
    %c1_i32_1356 = arith.constant 1 : i32
    %2618 = vector.broadcast %c1_i32_1356 : i32 to vector<1x256xi32>
    %2619 = arith.addi %2176, %2618 : vector<1x256xi32>
    %c0_i32_1357 = arith.constant 0 : i32
    %2620 = vector.broadcast %c0_i32_1357 : i32 to vector<1x256xi32>
    %2621 = arith.cmpi sge, %2619, %2620 : vector<1x256xi32>
    %c1_i32_1358 = arith.constant 1 : i32
    %2622 = vector.broadcast %c1_i32_1358 : i32 to vector<1x256xi32>
    %2623 = arith.addi %2176, %2622 : vector<1x256xi32>
    %c16_i32_1359 = arith.constant 16 : i32
    %2624 = vector.broadcast %c16_i32_1359 : i32 to vector<1x256xi32>
    %2625 = arith.cmpi slt, %2623, %2624 : vector<1x256xi32>
    %2626 = arith.andi %2621, %2625 : vector<1x256xi1>
    %c-1_i32_1360 = arith.constant -1 : i32
    %2627 = vector.broadcast %c-1_i32_1360 : i32 to vector<1x256xi32>
    %2628 = arith.addi %2178, %2627 : vector<1x256xi32>
    %c0_i32_1361 = arith.constant 0 : i32
    %2629 = vector.broadcast %c0_i32_1361 : i32 to vector<1x256xi32>
    %2630 = arith.cmpi sge, %2628, %2629 : vector<1x256xi32>
    %2631 = arith.andi %2626, %2630 : vector<1x256xi1>
    %c-1_i32_1362 = arith.constant -1 : i32
    %2632 = vector.broadcast %c-1_i32_1362 : i32 to vector<1x256xi32>
    %2633 = arith.addi %2178, %2632 : vector<1x256xi32>
    %c16_i32_1363 = arith.constant 16 : i32
    %2634 = vector.broadcast %c16_i32_1363 : i32 to vector<1x256xi32>
    %2635 = arith.cmpi slt, %2633, %2634 : vector<1x256xi32>
    %2636 = arith.andi %2631, %2635 : vector<1x256xi1>
    %cst_1364 = arith.constant 0.000000e+00 : f32
    %2637 = vector.shape_cast %2636 : vector<1x256xi1> to vector<1x256xi1>
    %2638 = vector.broadcast %2637 : vector<1x256xi1> to vector<3x256xi1>
    %2639 = vector.broadcast %cst_1364 : f32 to vector<3x256xf32>
    %2640 = arith.select %2638, %2617, %2639 : vector<3x256xi1>, vector<3x256xf32>
    %2641 = arith.truncf %2640 : vector<3x256xf32> to vector<3x256xbf16>
    %c6_1365 = arith.constant 6 : index
    %c0_1366 = arith.constant 0 : index
    %c0_1367 = arith.constant 0 : index
    %2642 = vector.load %arg17[%c6_1365, %c0_1366, %c0_1367] : memref<9x3x3xbf16, #tpu.memory_space<vmem>>, vector<1x3x3xbf16>
    %2643 = vector.shape_cast %2642 : vector<1x3x3xbf16> to vector<3x3xbf16>
    %cst_1368 = arith.constant dense<0.000000e+00> : vector<3x256xf32>
    %2644 = tpu.matmul %2643, %2641, %cst_1368 {dimension_numbers = #tpu.dot_dimension_numbers<[1], [0], [0], [1], [0, 0, 1, 1], [], []>} : vector<3x3xbf16>, vector<3x256xbf16>, vector<3x256xf32> -> vector<3x256xf32>
    %2645 = arith.addf %2616, %2644 : vector<3x256xf32>
    %c0_1369 = arith.constant 0 : index
    %c33_1370 = arith.constant 33 : index
    %2646 = vector.load %arg24[%c0_1369, %c33_1370] : memref<32x290xf32, #tpu.memory_space<vmem>>, vector<3x256xf32>
    %c1_i32_1371 = arith.constant 1 : i32
    %2647 = vector.broadcast %c1_i32_1371 : i32 to vector<1x256xi32>
    %2648 = arith.addi %2176, %2647 : vector<1x256xi32>
    %c0_i32_1372 = arith.constant 0 : i32
    %2649 = vector.broadcast %c0_i32_1372 : i32 to vector<1x256xi32>
    %2650 = arith.cmpi sge, %2648, %2649 : vector<1x256xi32>
    %c1_i32_1373 = arith.constant 1 : i32
    %2651 = vector.broadcast %c1_i32_1373 : i32 to vector<1x256xi32>
    %2652 = arith.addi %2176, %2651 : vector<1x256xi32>
    %c16_i32_1374 = arith.constant 16 : i32
    %2653 = vector.broadcast %c16_i32_1374 : i32 to vector<1x256xi32>
    %2654 = arith.cmpi slt, %2652, %2653 : vector<1x256xi32>
    %2655 = arith.andi %2650, %2654 : vector<1x256xi1>
    %c0_i32_1375 = arith.constant 0 : i32
    %2656 = vector.broadcast %c0_i32_1375 : i32 to vector<1x256xi32>
    %2657 = arith.addi %2178, %2656 : vector<1x256xi32>
    %c0_i32_1376 = arith.constant 0 : i32
    %2658 = vector.broadcast %c0_i32_1376 : i32 to vector<1x256xi32>
    %2659 = arith.cmpi sge, %2657, %2658 : vector<1x256xi32>
    %2660 = arith.andi %2655, %2659 : vector<1x256xi1>
    %c0_i32_1377 = arith.constant 0 : i32
    %2661 = vector.broadcast %c0_i32_1377 : i32 to vector<1x256xi32>
    %2662 = arith.addi %2178, %2661 : vector<1x256xi32>
    %c16_i32_1378 = arith.constant 16 : i32
    %2663 = vector.broadcast %c16_i32_1378 : i32 to vector<1x256xi32>
    %2664 = arith.cmpi slt, %2662, %2663 : vector<1x256xi32>
    %2665 = arith.andi %2660, %2664 : vector<1x256xi1>
    %cst_1379 = arith.constant 0.000000e+00 : f32
    %2666 = vector.shape_cast %2665 : vector<1x256xi1> to vector<1x256xi1>
    %2667 = vector.broadcast %2666 : vector<1x256xi1> to vector<3x256xi1>
    %2668 = vector.broadcast %cst_1379 : f32 to vector<3x256xf32>
    %2669 = arith.select %2667, %2646, %2668 : vector<3x256xi1>, vector<3x256xf32>
    %2670 = arith.truncf %2669 : vector<3x256xf32> to vector<3x256xbf16>
    %c7_1380 = arith.constant 7 : index
    %c0_1381 = arith.constant 0 : index
    %c0_1382 = arith.constant 0 : index
    %2671 = vector.load %arg17[%c7_1380, %c0_1381, %c0_1382] : memref<9x3x3xbf16, #tpu.memory_space<vmem>>, vector<1x3x3xbf16>
    %2672 = vector.shape_cast %2671 : vector<1x3x3xbf16> to vector<3x3xbf16>
    %cst_1383 = arith.constant dense<0.000000e+00> : vector<3x256xf32>
    %2673 = tpu.matmul %2672, %2670, %cst_1383 {dimension_numbers = #tpu.dot_dimension_numbers<[1], [0], [0], [1], [0, 0, 1, 1], [], []>} : vector<3x3xbf16>, vector<3x256xbf16>, vector<3x256xf32> -> vector<3x256xf32>
    %2674 = arith.addf %2645, %2673 : vector<3x256xf32>
    %c0_1384 = arith.constant 0 : index
    %c34_1385 = arith.constant 34 : index
    %2675 = vector.load %arg24[%c0_1384, %c34_1385] : memref<32x290xf32, #tpu.memory_space<vmem>>, vector<3x256xf32>
    %c1_i32_1386 = arith.constant 1 : i32
    %2676 = vector.broadcast %c1_i32_1386 : i32 to vector<1x256xi32>
    %2677 = arith.addi %2176, %2676 : vector<1x256xi32>
    %c0_i32_1387 = arith.constant 0 : i32
    %2678 = vector.broadcast %c0_i32_1387 : i32 to vector<1x256xi32>
    %2679 = arith.cmpi sge, %2677, %2678 : vector<1x256xi32>
    %c1_i32_1388 = arith.constant 1 : i32
    %2680 = vector.broadcast %c1_i32_1388 : i32 to vector<1x256xi32>
    %2681 = arith.addi %2176, %2680 : vector<1x256xi32>
    %c16_i32_1389 = arith.constant 16 : i32
    %2682 = vector.broadcast %c16_i32_1389 : i32 to vector<1x256xi32>
    %2683 = arith.cmpi slt, %2681, %2682 : vector<1x256xi32>
    %2684 = arith.andi %2679, %2683 : vector<1x256xi1>
    %c1_i32_1390 = arith.constant 1 : i32
    %2685 = vector.broadcast %c1_i32_1390 : i32 to vector<1x256xi32>
    %2686 = arith.addi %2178, %2685 : vector<1x256xi32>
    %c0_i32_1391 = arith.constant 0 : i32
    %2687 = vector.broadcast %c0_i32_1391 : i32 to vector<1x256xi32>
    %2688 = arith.cmpi sge, %2686, %2687 : vector<1x256xi32>
    %2689 = arith.andi %2684, %2688 : vector<1x256xi1>
    %c1_i32_1392 = arith.constant 1 : i32
    %2690 = vector.broadcast %c1_i32_1392 : i32 to vector<1x256xi32>
    %2691 = arith.addi %2178, %2690 : vector<1x256xi32>
    %c16_i32_1393 = arith.constant 16 : i32
    %2692 = vector.broadcast %c16_i32_1393 : i32 to vector<1x256xi32>
    %2693 = arith.cmpi slt, %2691, %2692 : vector<1x256xi32>
    %2694 = arith.andi %2689, %2693 : vector<1x256xi1>
    %cst_1394 = arith.constant 0.000000e+00 : f32
    %2695 = vector.shape_cast %2694 : vector<1x256xi1> to vector<1x256xi1>
    %2696 = vector.broadcast %2695 : vector<1x256xi1> to vector<3x256xi1>
    %2697 = vector.broadcast %cst_1394 : f32 to vector<3x256xf32>
    %2698 = arith.select %2696, %2675, %2697 : vector<3x256xi1>, vector<3x256xf32>
    %2699 = arith.truncf %2698 : vector<3x256xf32> to vector<3x256xbf16>
    %c8_1395 = arith.constant 8 : index
    %c0_1396 = arith.constant 0 : index
    %c0_1397 = arith.constant 0 : index
    %2700 = vector.load %arg17[%c8_1395, %c0_1396, %c0_1397] : memref<9x3x3xbf16, #tpu.memory_space<vmem>>, vector<1x3x3xbf16>
    %2701 = vector.shape_cast %2700 : vector<1x3x3xbf16> to vector<3x3xbf16>
    %cst_1398 = arith.constant dense<0.000000e+00> : vector<3x256xf32>
    %2702 = tpu.matmul %2701, %2699, %cst_1398 {dimension_numbers = #tpu.dot_dimension_numbers<[1], [0], [0], [1], [0, 0, 1, 1], [], []>} : vector<3x3xbf16>, vector<3x256xbf16>, vector<3x256xf32> -> vector<3x256xf32>
    %2703 = arith.addf %2674, %2702 : vector<3x256xf32>
    %c0_1399 = arith.constant 0 : index
    %c0_1400 = arith.constant 0 : index
    %2704 = vector.load %arg18[%c0_1399, %c0_1400] : memref<3x1xf32, #tpu.memory_space<vmem>>, vector<3x1xf32>
    %2705 = vector.broadcast %2704 : vector<3x1xf32> to vector<3x256xf32>
    %2706 = arith.addf %2703, %2705 : vector<3x256xf32>
    %2707 = arith.negf %2706 : vector<3x256xf32>
    %2708 = math.exp %2707 : vector<3x256xf32>
    %cst_1401 = arith.constant 1.000000e+00 : f32
    %2709 = vector.broadcast %cst_1401 : f32 to vector<3x256xf32>
    %2710 = arith.addf %2709, %2708 : vector<3x256xf32>
    %2711 = arith.divf %2709, %2710 : vector<3x256xf32>
    %c0_1402 = arith.constant 0 : index
    %c0_1403 = arith.constant 0 : index
    %c0_1404 = arith.constant 0 : index
    %2712 = vector.load %arg23[%c0_1402, %c0_1403, %c0_1404] : memref<1x3x256xf32, #tpu.memory_space<vmem>>, vector<1x3x256xf32>
    %2713 = vector.shape_cast %2712 : vector<1x3x256xf32> to vector<3x256xf32>
    %2714 = vector.shape_cast %2711 : vector<3x256xf32> to vector<1x3x256xf32>
    tpu.vector_store %arg23[%c0_1402, %c0_1403, %c0_1404], %2714 {strides = array<i32>} : memref<1x3x256xf32, #tpu.memory_space<vmem>>, vector<1x3x256xf32>,
    return
  }
  func.func @transform_0(%arg0: i32) -> (i32, i32, i32) {
    %c0_i32 = arith.constant 0 : i32
    %c0_i32_0 = arith.constant 0 : i32
    %c0_i32_1 = arith.constant 0 : i32
    return %arg0, %c0_i32, %c0_i32_0 : i32, i32, i32
  }
  func.func @transform_1(%arg0: i32) -> (i32, i32, i32) {
    %c0_i32 = arith.constant 0 : i32
    %c0_i32_0 = arith.constant 0 : i32
    %c0_i32_1 = arith.constant 0 : i32
    %c0_i32_2 = arith.constant 0 : i32
    return %c0_i32, %c0_i32_0, %c0_i32_1 : i32, i32, i32
  }
  func.func @transform_2(%arg0: i32) -> (i32, i32) {
    %c0_i32 = arith.constant 0 : i32
    %c0_i32_0 = arith.constant 0 : i32
    %c0_i32_1 = arith.constant 0 : i32
    return %c0_i32, %c0_i32_0 : i32, i32
  }
  func.func @transform_3(%arg0: i32) -> (i32, i32, i32) {
    %c0_i32 = arith.constant 0 : i32
    %c0_i32_0 = arith.constant 0 : i32
    %c0_i32_1 = arith.constant 0 : i32
    %c0_i32_2 = arith.constant 0 : i32
    return %c0_i32, %c0_i32_0, %c0_i32_1 : i32, i32, i32
  }
  func.func @transform_4(%arg0: i32) -> (i32, i32) {
    %c0_i32 = arith.constant 0 : i32
    %c0_i32_0 = arith.constant 0 : i32
    %c0_i32_1 = arith.constant 0 : i32
    return %c0_i32, %c0_i32_0 : i32, i32
  }
  func.func @transform_5(%arg0: i32) -> (i32, i32, i32) {
    %c0_i32 = arith.constant 0 : i32
    %c0_i32_0 = arith.constant 0 : i32
    %c0_i32_1 = arith.constant 0 : i32
    %c0_i32_2 = arith.constant 0 : i32
    return %c0_i32, %c0_i32_0, %c0_i32_1 : i32, i32, i32
  }
  func.func @transform_6(%arg0: i32) -> (i32, i32) {
    %c0_i32 = arith.constant 0 : i32
    %c0_i32_0 = arith.constant 0 : i32
    %c0_i32_1 = arith.constant 0 : i32
    return %c0_i32, %c0_i32_0 : i32, i32
  }
  func.func @transform_7(%arg0: i32) -> (i32, i32, i32) {
    %c0_i32 = arith.constant 0 : i32
    %c0_i32_0 = arith.constant 0 : i32
    %c0_i32_1 = arith.constant 0 : i32
    %c0_i32_2 = arith.constant 0 : i32
    return %c0_i32, %c0_i32_0, %c0_i32_1 : i32, i32, i32
  }
  func.func @transform_8(%arg0: i32) -> (i32, i32) {
    %c0_i32 = arith.constant 0 : i32
    %c0_i32_0 = arith.constant 0 : i32
    %c0_i32_1 = arith.constant 0 : i32
    return %c0_i32, %c0_i32_0 : i32, i32
  }
  func.func @transform_9(%arg0: i32) -> (i32, i32, i32) {
    %c0_i32 = arith.constant 0 : i32
    %c0_i32_0 = arith.constant 0 : i32
    %c0_i32_1 = arith.constant 0 : i32
    %c0_i32_2 = arith.constant 0 : i32
    return %c0_i32, %c0_i32_0, %c0_i32_1 : i32, i32, i32
  }
  func.func @transform_10(%arg0: i32) -> (i32, i32, i32) {
    %c0_i32 = arith.constant 0 : i32
    %c0_i32_0 = arith.constant 0 : i32
    %c0_i32_1 = arith.constant 0 : i32
    %c0_i32_2 = arith.constant 0 : i32
    return %c0_i32, %c0_i32_0, %c0_i32_1 : i32, i32, i32
  }
  func.func @transform_11(%arg0: i32) -> (i32, i32) {
    %c0_i32 = arith.constant 0 : i32
    %c0_i32_0 = arith.constant 0 : i32
    %c0_i32_1 = arith.constant 0 : i32
    return %c0_i32, %c0_i32_0 : i32, i32
  }
  func.func @transform_12(%arg0: i32) -> (i32, i32, i32) {
    %c0_i32 = arith.constant 0 : i32
    %c0_i32_0 = arith.constant 0 : i32
    %c0_i32_1 = arith.constant 0 : i32
    %c0_i32_2 = arith.constant 0 : i32
    return %c0_i32, %c0_i32_0, %c0_i32_1 : i32, i32, i32
  }
  func.func @transform_13(%arg0: i32) -> (i32, i32, i32) {
    %c0_i32 = arith.constant 0 : i32
    %c0_i32_0 = arith.constant 0 : i32
    %c0_i32_1 = arith.constant 0 : i32
    %c0_i32_2 = arith.constant 0 : i32
    return %c0_i32, %c0_i32_0, %c0_i32_1 : i32, i32, i32
  }
  func.func @transform_14(%arg0: i32) -> (i32, i32) {
    %c0_i32 = arith.constant 0 : i32
    %c0_i32_0 = arith.constant 0 : i32
    %c0_i32_1 = arith.constant 0 : i32
    return %c0_i32, %c0_i32_0 : i32, i32
  }
  func.func @transform_15(%arg0: i32) -> (i32, i32, i32) {
    %c0_i32 = arith.constant 0 : i32
    %c0_i32_0 = arith.constant 0 : i32
    %c0_i32_1 = arith.constant 0 : i32
    %c0_i32_2 = arith.constant 0 : i32
    return %c0_i32, %c0_i32_0, %c0_i32_1 : i32, i32, i32
  }
  func.func @transform_16(%arg0: i32) -> (i32, i32, i32) {
    %c0_i32 = arith.constant 0 : i32
    %c0_i32_0 = arith.constant 0 : i32
    %c0_i32_1 = arith.constant 0 : i32
    %c0_i32_2 = arith.constant 0 : i32
    return %c0_i32, %c0_i32_0, %c0_i32_1 : i32, i32, i32
  }
  func.func @transform_17(%arg0: i32) -> (i32, i32) {
    %c0_i32 = arith.constant 0 : i32
    %c0_i32_0 = arith.constant 0 : i32
    %c0_i32_1 = arith.constant 0 : i32
    return %c0_i32, %c0_i32_0 : i32, i32
  }
  func.func @transform_18(%arg0: i32) -> (i32, i32) {
    %c0_i32 = arith.constant 0 : i32
    %c0_i32_0 = arith.constant 0 : i32
    %c0_i32_1 = arith.constant 0 : i32
    return %c0_i32, %c0_i32_0 : i32, i32
  }
  func.func @transform_19(%arg0: i32) -> (i32, i32) {
    %c0_i32 = arith.constant 0 : i32
    %c0_i32_0 = arith.constant 0 : i32
    %c0_i32_1 = arith.constant 0 : i32
    return %c0_i32, %c0_i32_0 : i32, i32
  }
  func.func @transform_20(%arg0: i32) -> (i32, i32) {
    %c0_i32 = arith.constant 0 : i32
    %c0_i32_0 = arith.constant 0 : i32
    %c0_i32_1 = arith.constant 0 : i32
    return %c0_i32, %c0_i32_0 : i32, i32
  }
  func.func @transform_21(%arg0: i32) -> (i32, i32) {
    %c0_i32 = arith.constant 0 : i32
    %c0_i32_0 = arith.constant 0 : i32
    %c0_i32_1 = arith.constant 0 : i32
    return %c0_i32, %c0_i32_0 : i32, i32
  }
  func.func @transform_22(%arg0: i32) -> (i32, i32, i32) {
    %c0_i32 = arith.constant 0 : i32
    %c0_i32_0 = arith.constant 0 : i32
    %c0_i32_1 = arith.constant 0 : i32
    return %arg0, %c0_i32, %c0_i32_0 : i32, i32, i32
  }
}

</mosaic_0001>

<llo_original>
// kernel: deoldify_generator_forward.1
$region0: #{deoldify_generator_forward.1}
  #allocation0 [shape = 'u32[]', space=smem, size = 0x4, offset = 0x4, fixed_abs, tag = 'smem constant byte address 0x4 - core index']
  #allocation1 [shape = 'u32[72,128]{1,0:T(1,128)}', space=vmem, size = 0x9000, scoped, tag = 'internal scratch']
  #allocation2 [shape = 'f32[32,290]{1,0:T(8,128)}', space=vmem, size = 0xc000, scoped, tag = 'scratch operand']
  %s0 = inlined_call_operand.vmem [shape: f32[2,3,256], index: 0, kind: input, shape index: {}]
  %s1 = inlined_call_operand.vmem [shape: bf16[9,8,3], index: 1, kind: input, shape index: {}]
  %s2 = inlined_call_operand.vmem [shape: f32[8,1], index: 2, kind: input, shape index: {}]
  %s3 = inlined_call_operand.vmem [shape: bf16[9,16,8], index: 3, kind: input, shape index: {}]
  %s4 = inlined_call_operand.vmem [shape: f32[16,1], index: 4, kind: input, shape index: {}]
  %s5 = inlined_call_operand.vmem [shape: bf16[9,32,16], index: 5, kind: input, shape index: {}]
  %s6 = inlined_call_operand.vmem [shape: f32[32,1], index: 6, kind: input, shape index: {}]
  %s7 = inlined_call_operand.vmem [shape: bf16[9,16,32], index: 7, kind: input, shape index: {}]
  %s8 = inlined_call_operand.vmem [shape: f32[16,1], index: 8, kind: input, shape index: {}]
  %s9 = inlined_call_operand.vmem [shape: bf16[9,16,16], index: 9, kind: input, shape index: {}]
  %s10 = inlined_call_operand.vmem [shape: bf16[9,16,16], index: 10, kind: input, shape index: {}]
  %s11 = inlined_call_operand.vmem [shape: f32[16,1], index: 11, kind: input, shape index: {}]
  %s12 = inlined_call_operand.vmem [shape: bf16[9,8,16], index: 12, kind: input, shape index: {}]
  %s13 = inlined_call_operand.vmem [shape: bf16[9,8,8], index: 13, kind: input, shape index: {}]
  %s14 = inlined_call_operand.vmem [shape: f32[8,1], index: 14, kind: input, shape index: {}]
  %s15 = inlined_call_operand.vmem [shape: bf16[9,3,8], index: 15, kind: input, shape index: {}]
  %s16 = inlined_call_operand.vmem [shape: bf16[9,3,3], index: 16, kind: input, shape index: {}]
  %s17 = inlined_call_operand.vmem [shape: f32[3,1], index: 17, kind: input, shape index: {}]
  %s18 = inlined_call_operand.vmem [shape: f32[256,64], index: 18, kind: input, shape index: {}]
  %s19 = inlined_call_operand.vmem [shape: f32[64,16], index: 19, kind: input, shape index: {}]
  %s20 = inlined_call_operand.vmem [shape: f32[16,64], index: 20, kind: input, shape index: {}]
  %s21 = inlined_call_operand.vmem [shape: f32[64,256], index: 21, kind: input, shape index: {}]
  %s22 = inlined_call_operand.vmem [shape: f32[2,3,256], index: 22, kind: output, shape index: {}]
  %s23 = sld [smem:[#allocation0]]
  $region121: #{deoldify_generator_forward.1} parent=0
    _
  %s25 = ssub.s32 1, %s23
  %s26 = scalar_select 0, %s25, %s23
  loop: start=0, step=1, limit=4
  $region2: #{deoldify_generator_forward.1} parent=0 // loop_pre_header
    _
  $region3: #{deoldify_generator_forward.1} parent=0 // loop_header
    %s28 = sphi 0, %s32
    %p29 = scmp.ge.s32.totalorder %s28, 4
    %s38 = sphi 0, %s40
    %s41 = sphi 0, %s38
    %s42 = sphi 0, %s41
    %s58 = sphi 0, %s42
    %s62 = sphi 0, %s62
    %s64 = sphi 0, %s62
    %s65 = sphi 0, %s64
    %s79 = sphi 0, %s65
    %s83 = sphi 0, %s83
    %s85 = sphi 0, %s83
    %s86 = sphi 0, %s85
    %s100 = sphi 0, %s86
    %s104 = sphi 0, %s104
    %s106 = sphi 0, %s104
    %s107 = sphi 0, %s106
    %s121 = sphi 0, %s107
    %s125 = sphi 0, %s125
    %s127 = sphi 0, %s125
    %s128 = sphi 0, %s127
    %s142 = sphi 0, %s128
    %s146 = sphi 0, %s146
    %s148 = sphi 0, %s146
    %s149 = sphi 0, %s148
    %s163 = sphi 0, %s149
    %s167 = sphi 0, %s167
    %s169 = sphi 0, %s167
    %s170 = sphi 0, %s169
    %s184 = sphi 0, %s170
    %s188 = sphi 0, %s188
    %s190 = sphi 0, %s188
    %s191 = sphi 0, %s190
    %s205 = sphi 0, %s191
    %s209 = sphi 0, %s209
    %s211 = sphi 0, %s209
    %s212 = sphi 0, %s211
    %s226 = sphi 0, %s212
    %s230 = sphi 0, %s230
    %s232 = sphi 0, %s230
    %s233 = sphi 0, %s232
    %s247 = sphi 0, %s233
    %s251 = sphi 0, %s251
    %s253 = sphi 0, %s251
    %s254 = sphi 0, %s253
    %s268 = sphi 0, %s254
    %s272 = sphi 0, %s272
    %s274 = sphi 0, %s272
    %s275 = sphi 0, %s274
    %s289 = sphi 0, %s275
    %s293 = sphi 0, %s293
    %s295 = sphi 0, %s293
    %s296 = sphi 0, %s295
    %s310 = sphi 0, %s296
    %s314 = sphi 0, %s314
    %s316 = sphi 0, %s314
    %s317 = sphi 0, %s316
    %s331 = sphi 0, %s317
    %s335 = sphi 0, %s335
    %s337 = sphi 0, %s335
    %s338 = sphi 0, %s337
    %s352 = sphi 0, %s338
    %s356 = sphi 0, %s356
    %s358 = sphi 0, %s356
    %s359 = sphi 0, %s358
    %s373 = sphi 0, %s359
    %s377 = sphi 0, %s377
    %s379 = sphi 0, %s377
    %s380 = sphi 0, %s379
    %s394 = sphi 0, %s380
    %s398 = sphi 0, %s398
    %s400 = sphi 0, %s398
    %s401 = sphi 0, %s400
    %s415 = sphi 0, %s401
    %s419 = sphi 0, %s419
    %s421 = sphi 0, %s419
    %s422 = sphi 0, %s421
    %s436 = sphi 0, %s422
    %s440 = sphi 0, %s440
    %s442 = sphi 0, %s440
    %s443 = sphi 0, %s442
    %s457 = sphi 0, %s443
    %s461 = sphi 0, %s461
    %s463 = sphi 0, %s461
    %s464 = sphi 0, %s463
    %s478 = sphi 0, %s464
    %s482 = sphi 0, %s482
    %s484 = sphi 0, %s482
    %s485 = sphi 0, %s484
    %s499 = sphi 0, %s485
    %s505 = sphi 0, %s507
    %s508 = sphi 0, %s505
    %s509 = sphi 0, %s508
    %s525 = sphi 0, %s509
  $region4: #{deoldify_generator_forward.1} parent=0 // loop_header_branch
    %31 = sbr.rel (%p29) target = $region8
  $region5: #{deoldify_generator_forward.1} parent=0 // loop_body
    %s33 = ssub.s32 %s28, 1
    %s34 = ssub.s32 %s28, 2
    %s35 = sadd.s32 %s28, 1
    %s36 = ssub.s32 %s28, %s35
    %p37 = scmp.eq.s32.totalorder %s36, 0
    %s39 = sadd.s32 %s38, 1
    %s40 = scalar_select %p37, %s38, %s39
    %p43 = pneg %p37
    %p44 = scmp.eq.s32.totalorder %s28, 1
    %p45 = por %p43, %p44
    %p46 = scmp.ne.s32.totalorder %s38, %s41
    %p47 = scmp.eq.s32.totalorder %s28, 0
    %p48 = por %p46, %p47
    %p49 = scmp.ne.s32.totalorder %s38, %s41
    %p50 = scmp.eq.s32.totalorder %s33, 1
    %p51 = por %p49, %p50
    %p52 = scmp.ne.s32.totalorder %s41, %s42
    %p53 = scmp.eq.s32.totalorder %s33, 0
    %p54 = por %p52, %p53
    %p55 = scmp.ne.s32.totalorder %s41, %s42
    %p56 = scmp.eq.s32.totalorder %s34, 1
    %p57 = por %p55, %p56
    %p59 = scmp.ne.s32.totalorder %s42, %s58
    %p60 = scmp.eq.s32.totalorder %s34, 0
    %p61 = por %p59, %p60
    %s63 = sadd.s32 %s62, 1
    %p66 = scmp.eq.s32.totalorder %s28, 1
    %p67 = scmp.ne.s32.totalorder %s62, %s64
    %p68 = scmp.eq.s32.totalorder %s28, 0
    %p69 = por %p67, %p68
    %p70 = scmp.ne.s32.totalorder %s62, %s64
    %p71 = scmp.eq.s32.totalorder %s33, 1
    %p72 = por %p70, %p71
    %p73 = scmp.ne.s32.totalorder %s64, %s65
    %p74 = scmp.eq.s32.totalorder %s33, 0
    %p75 = por %p73, %p74
    %p76 = scmp.ne.s32.totalorder %s64, %s65
    %p77 = scmp.eq.s32.totalorder %s34, 1
    %p78 = por %p76, %p77
    %p80 = scmp.ne.s32.totalorder %s65, %s79
    %p81 = scmp.eq.s32.totalorder %s34, 0
    %p82 = por %p80, %p81
    %s84 = sadd.s32 %s83, 1
    %p87 = scmp.eq.s32.totalorder %s28, 1
    %p88 = scmp.ne.s32.totalorder %s83, %s85
    %p89 = scmp.eq.s32.totalorder %s28, 0
    %p90 = por %p88, %p89
    %p91 = scmp.ne.s32.totalorder %s83, %s85
    %p92 = scmp.eq.s32.totalorder %s33, 1
    %p93 = por %p91, %p92
    %p94 = scmp.ne.s32.totalorder %s85, %s86
    %p95 = scmp.eq.s32.totalorder %s33, 0
    %p96 = por %p94, %p95
    %p97 = scmp.ne.s32.totalorder %s85, %s86
    %p98 = scmp.eq.s32.totalorder %s34, 1
    %p99 = por %p97, %p98
    %p101 = scmp.ne.s32.totalorder %s86, %s100
    %p102 = scmp.eq.s32.totalorder %s34, 0
    %p103 = por %p101, %p102
    %s105 = sadd.s32 %s104, 1
    %p108 = scmp.eq.s32.totalorder %s28, 1
    %p109 = scmp.ne.s32.totalorder %s104, %s106
    %p110 = scmp.eq.s32.totalorder %s28, 0
    %p111 = por %p109, %p110
    %p112 = scmp.ne.s32.totalorder %s104, %s106
    %p113 = scmp.eq.s32.totalorder %s33, 1
    %p114 = por %p112, %p113
    %p115 = scmp.ne.s32.totalorder %s106, %s107
    %p116 = scmp.eq.s32.totalorder %s33, 0
    %p117 = por %p115, %p116
    %p118 = scmp.ne.s32.totalorder %s106, %s107
    %p119 = scmp.eq.s32.totalorder %s34, 1
    %p120 = por %p118, %p119
    %p122 = scmp.ne.s32.totalorder %s107, %s121
    %p123 = scmp.eq.s32.totalorder %s34, 0
    %p124 = por %p122, %p123
    %s126 = sadd.s32 %s125, 1
    %p129 = scmp.eq.s32.totalorder %s28, 1
    %p130 = scmp.ne.s32.totalorder %s125, %s127
    %p131 = scmp.eq.s32.totalorder %s28, 0
    %p132 = por %p130, %p131
    %p133 = scmp.ne.s32.totalorder %s125, %s127
    %p134 = scmp.eq.s32.totalorder %s33, 1
    %p135 = por %p133, %p134
    %p136 = scmp.ne.s32.totalorder %s127, %s128
    %p137 = scmp.eq.s32.totalorder %s33, 0
    %p138 = por %p136, %p137
    %p139 = scmp.ne.s32.totalorder %s127, %s128
    %p140 = scmp.eq.s32.totalorder %s34, 1
    %p141 = por %p139, %p140
    %p143 = scmp.ne.s32.totalorder %s128, %s142
    %p144 = scmp.eq.s32.totalorder %s34, 0
    %p145 = por %p143, %p144
    %s147 = sadd.s32 %s146, 1
    %p150 = scmp.eq.s32.totalorder %s28, 1
    %p151 = scmp.ne.s32.totalorder %s146, %s148
    %p152 = scmp.eq.s32.totalorder %s28, 0
    %p153 = por %p151, %p152
    %p154 = scmp.ne.s32.totalorder %s146, %s148
    %p155 = scmp.eq.s32.totalorder %s33, 1
    %p156 = por %p154, %p155
    %p157 = scmp.ne.s32.totalorder %s148, %s149
    %p158 = scmp.eq.s32.totalorder %s33, 0
    %p159 = por %p157, %p158
    %p160 = scmp.ne.s32.totalorder %s148, %s149
    %p161 = scmp.eq.s32.totalorder %s34, 1
    %p162 = por %p160, %p161
    %p164 = scmp.ne.s32.totalorder %s149, %s163
    %p165 = scmp.eq.s32.totalorder %s34, 0
    %p166 = por %p164, %p165
    %s168 = sadd.s32 %s167, 1
    %p171 = scmp.eq.s32.totalorder %s28, 1
    %p172 = scmp.ne.s32.totalorder %s167, %s169
    %p173 = scmp.eq.s32.totalorder %s28, 0
    %p174 = por %p172, %p173
    %p175 = scmp.ne.s32.totalorder %s167, %s169
    %p176 = scmp.eq.s32.totalorder %s33, 1
    %p177 = por %p175, %p176
    %p178 = scmp.ne.s32.totalorder %s169, %s170
    %p179 = scmp.eq.s32.totalorder %s33, 0
    %p180 = por %p178, %p179
    %p181 = scmp.ne.s32.totalorder %s169, %s170
    %p182 = scmp.eq.s32.totalorder %s34, 1
    %p183 = por %p181, %p182
    %p185 = scmp.ne.s32.totalorder %s170, %s184
    %p186 = scmp.eq.s32.totalorder %s34, 0
    %p187 = por %p185, %p186
    %s189 = sadd.s32 %s188, 1
    %p192 = scmp.eq.s32.totalorder %s28, 1
    %p193 = scmp.ne.s32.totalorder %s188, %s190
    %p194 = scmp.eq.s32.totalorder %s28, 0
    %p195 = por %p193, %p194
    %p196 = scmp.ne.s32.totalorder %s188, %s190
    %p197 = scmp.eq.s32.totalorder %s33, 1
    %p198 = por %p196, %p197
    %p199 = scmp.ne.s32.totalorder %s190, %s191
    %p200 = scmp.eq.s32.totalorder %s33, 0
    %p201 = por %p199, %p200
    %p202 = scmp.ne.s32.totalorder %s190, %s191
    %p203 = scmp.eq.s32.totalorder %s34, 1
    %p204 = por %p202, %p203
    %p206 = scmp.ne.s32.totalorder %s191, %s205
    %p207 = scmp.eq.s32.totalorder %s34, 0
    %p208 = por %p206, %p207
    %s210 = sadd.s32 %s209, 1
    %p213 = scmp.eq.s32.totalorder %s28, 1
    %p214 = scmp.ne.s32.totalorder %s209, %s211
    %p215 = scmp.eq.s32.totalorder %s28, 0
    %p216 = por %p214, %p215
    %p217 = scmp.ne.s32.totalorder %s209, %s211
    %p218 = scmp.eq.s32.totalorder %s33, 1
    %p219 = por %p217, %p218
    %p220 = scmp.ne.s32.totalorder %s211, %s212
    %p221 = scmp.eq.s32.totalorder %s33, 0
    %p222 = por %p220, %p221
    %p223 = scmp.ne.s32.totalorder %s211, %s212
    %p224 = scmp.eq.s32.totalorder %s34, 1
    %p225 = por %p223, %p224
    %p227 = scmp.ne.s32.totalorder %s212, %s226
    %p228 = scmp.eq.s32.totalorder %s34, 0
    %p229 = por %p227, %p228
    %s231 = sadd.s32 %s230, 1
    %p234 = scmp.eq.s32.totalorder %s28, 1
    %p235 = scmp.ne.s32.totalorder %s230, %s232
    %p236 = scmp.eq.s32.totalorder %s28, 0
    %p237 = por %p235, %p236
    %p238 = scmp.ne.s32.totalorder %s230, %s232
    %p239 = scmp.eq.s32.totalorder %s33, 1
    %p240 = por %p238, %p239
    %p241 = scmp.ne.s32.totalorder %s232, %s233
    %p242 = scmp.eq.s32.totalorder %s33, 0
    %p243 = por %p241, %p242
    %p244 = scmp.ne.s32.totalorder %s232, %s233
    %p245 = scmp.eq.s32.totalorder %s34, 1
    %p246 = por %p244, %p245
    %p248 = scmp.ne.s32.totalorder %s233, %s247
    %p249 = scmp.eq.s32.totalorder %s34, 0
    %p250 = por %p248, %p249
    %s252 = sadd.s32 %s251, 1
    %p255 = scmp.eq.s32.totalorder %s28, 1
    %p256 = scmp.ne.s32.totalorder %s251, %s253
    %p257 = scmp.eq.s32.totalorder %s28, 0
    %p258 = por %p256, %p257
    %p259 = scmp.ne.s32.totalorder %s251, %s253
    %p260 = scmp.eq.s32.totalorder %s33, 1
    %p261 = por %p259, %p260
    %p262 = scmp.ne.s32.totalorder %s253, %s254
    %p263 = scmp.eq.s32.totalorder %s33, 0
    %p264 = por %p262, %p263
    %p265 = scmp.ne.s32.totalorder %s253, %s254
    %p266 = scmp.eq.s32.totalorder %s34, 1
    %p267 = por %p265, %p266
    %p269 = scmp.ne.s32.totalorder %s254, %s268
    %p270 = scmp.eq.s32.totalorder %s34, 0
    %p271 = por %p269, %p270
    %s273 = sadd.s32 %s272, 1
    %p276 = scmp.eq.s32.totalorder %s28, 1
    %p277 = scmp.ne.s32.totalorder %s272, %s274
    %p278 = scmp.eq.s32.totalorder %s28, 0
    %p279 = por %p277, %p278
    %p280 = scmp.ne.s32.totalorder %s272, %s274
    %p281 = scmp.eq.s32.totalorder %s33, 1
    %p282 = por %p280, %p281
    %p283 = scmp.ne.s32.totalorder %s274, %s275
    %p284 = scmp.eq.s32.totalorder %s33, 0
    %p285 = por %p283, %p284
    %p286 = scmp.ne.s32.totalorder %s274, %s275
    %p287 = scmp.eq.s32.totalorder %s34, 1
    %p288 = por %p286, %p287
    %p290 = scmp.ne.s32.totalorder %s275, %s289
    %p291 = scmp.eq.s32.totalorder %s34, 0
    %p292 = por %p290, %p291
    %s294 = sadd.s32 %s293, 1
    %p297 = scmp.eq.s32.totalorder %s28, 1
    %p298 = scmp.ne.s32.totalorder %s293, %s295
    %p299 = scmp.eq.s32.totalorder %s28, 0
    %p300 = por %p298, %p299
    %p301 = scmp.ne.s32.totalorder %s293, %s295
    %p302 = scmp.eq.s32.totalorder %s33, 1
    %p303 = por %p301, %p302
    %p304 = scmp.ne.s32.totalorder %s295, %s296
    %p305 = scmp.eq.s32.totalorder %s33, 0
    %p306 = por %p304, %p305
    %p307 = scmp.ne.s32.totalorder %s295, %s296
    %p308 = scmp.eq.s32.totalorder %s34, 1
    %p309 = por %p307, %p308
    %p311 = scmp.ne.s32.totalorder %s296, %s310
    %p312 = scmp.eq.s32.totalorder %s34, 0
    %p313 = por %p311, %p312
    %s315 = sadd.s32 %s314, 1
    %p318 = scmp.eq.s32.totalorder %s28, 1
    %p319 = scmp.ne.s32.totalorder %s314, %s316
    %p320 = scmp.eq.s32.totalorder %s28, 0
    %p321 = por %p319, %p320
    %p322 = scmp.ne.s32.totalorder %s314, %s316
    %p323 = scmp.eq.s32.totalorder %s33, 1
    %p324 = por %p322, %p323
    %p325 = scmp.ne.s32.totalorder %s316, %s317
    %p326 = scmp.eq.s32.totalorder %s33, 0
    %p327 = por %p325, %p326
    %p328 = scmp.ne.s32.totalorder %s316, %s317
    %p329 = scmp.eq.s32.totalorder %s34, 1
    %p330 = por %p328, %p329
    %p332 = scmp.ne.s32.totalorder %s317, %s331
    %p333 = scmp.eq.s32.totalorder %s34, 0
    %p334 = por %p332, %p333
    %s336 = sadd.s32 %s335, 1
    %p339 = scmp.eq.s32.totalorder %s28, 1
    %p340 = scmp.ne.s32.totalorder %s335, %s337
    %p341 = scmp.eq.s32.totalorder %s28, 0
    %p342 = por %p340, %p341
    %p343 = scmp.ne.s32.totalorder %s335, %s337
    %p344 = scmp.eq.s32.totalorder %s33, 1
    %p345 = por %p343, %p344
    %p346 = scmp.ne.s32.totalorder %s337, %s338
    %p347 = scmp.eq.s32.totalorder %s33, 0
    %p348 = por %p346, %p347
    %p349 = scmp.ne.s32.totalorder %s337, %s338
    %p350 = scmp.eq.s32.totalorder %s34, 1
    %p351 = por %p349, %p350
    %p353 = scmp.ne.s32.totalorder %s338, %s352
    %p354 = scmp.eq.s32.totalorder %s34, 0
    %p355 = por %p353, %p354
    %s357 = sadd.s32 %s356, 1
    %p360 = scmp.eq.s32.totalorder %s28, 1
    %p361 = scmp.ne.s32.totalorder %s356, %s358
    %p362 = scmp.eq.s32.totalorder %s28, 0
    %p363 = por %p361, %p362
    %p364 = scmp.ne.s32.totalorder %s356, %s358
    %p365 = scmp.eq.s32.totalorder %s33, 1
    %p366 = por %p364, %p365
    %p367 = scmp.ne.s32.totalorder %s358, %s359
    %p368 = scmp.eq.s32.totalorder %s33, 0
    %p369 = por %p367, %p368
    %p370 = scmp.ne.s32.totalorder %s358, %s359
    %p371 = scmp.eq.s32.totalorder %s34, 1
    %p372 = por %p370, %p371
    %p374 = scmp.ne.s32.totalorder %s359, %s373
    %p375 = scmp.eq.s32.totalorder %s34, 0
    %p376 = por %p374, %p375
    %s378 = sadd.s32 %s377, 1
    %p381 = scmp.eq.s32.totalorder %s28, 1
    %p382 = scmp.ne.s32.totalorder %s377, %s379
    %p383 = scmp.eq.s32.totalorder %s28, 0
    %p384 = por %p382, %p383
    %p385 = scmp.ne.s32.totalorder %s377, %s379
    %p386 = scmp.eq.s32.totalorder %s33, 1
    %p387 = por %p385, %p386
    %p388 = scmp.ne.s32.totalorder %s379, %s380
    %p389 = scmp.eq.s32.totalorder %s33, 0
    %p390 = por %p388, %p389
    %p391 = scmp.ne.s32.totalorder %s379, %s380
    %p392 = scmp.eq.s32.totalorder %s34, 1
    %p393 = por %p391, %p392
    %p395 = scmp.ne.s32.totalorder %s380, %s394
    %p396 = scmp.eq.s32.totalorder %s34, 0
    %p397 = por %p395, %p396
    %s399 = sadd.s32 %s398, 1
    %p402 = scmp.eq.s32.totalorder %s28, 1
    %p403 = scmp.ne.s32.totalorder %s398, %s400
    %p404 = scmp.eq.s32.totalorder %s28, 0
    %p405 = por %p403, %p404
    %p406 = scmp.ne.s32.totalorder %s398, %s400
    %p407 = scmp.eq.s32.totalorder %s33, 1
    %p408 = por %p406, %p407
    %p409 = scmp.ne.s32.totalorder %s400, %s401
    %p410 = scmp.eq.s32.totalorder %s33, 0
    %p411 = por %p409, %p410
    %p412 = scmp.ne.s32.totalorder %s400, %s401
    %p413 = scmp.eq.s32.totalorder %s34, 1
    %p414 = por %p412, %p413
    %p416 = scmp.ne.s32.totalorder %s401, %s415
    %p417 = scmp.eq.s32.totalorder %s34, 0
    %p418 = por %p416, %p417
    %s420 = sadd.s32 %s419, 1
    %p423 = scmp.eq.s32.totalorder %s28, 1
    %p424 = scmp.ne.s32.totalorder %s419, %s421
    %p425 = scmp.eq.s32.totalorder %s28, 0
    %p426 = por %p424, %p425
    %p427 = scmp.ne.s32.totalorder %s419, %s421
    %p428 = scmp.eq.s32.totalorder %s33, 1
    %p429 = por %p427, %p428
    %p430 = scmp.ne.s32.totalorder %s421, %s422
    %p431 = scmp.eq.s32.totalorder %s33, 0
    %p432 = por %p430, %p431
    %p433 = scmp.ne.s32.totalorder %s421, %s422
    %p434 = scmp.eq.s32.totalorder %s34, 1
    %p435 = por %p433, %p434
    %p437 = scmp.ne.s32.totalorder %s422, %s436
    %p438 = scmp.eq.s32.totalorder %s34, 0
    %p439 = por %p437, %p438
    %s441 = sadd.s32 %s440, 1
    %p444 = scmp.eq.s32.totalorder %s28, 1
    %p445 = scmp.ne.s32.totalorder %s440, %s442
    %p446 = scmp.eq.s32.totalorder %s28, 0
    %p447 = por %p445, %p446
    %p448 = scmp.ne.s32.totalorder %s440, %s442
    %p449 = scmp.eq.s32.totalorder %s33, 1
    %p450 = por %p448, %p449
    %p451 = scmp.ne.s32.totalorder %s442, %s443
    %p452 = scmp.eq.s32.totalorder %s33, 0
    %p453 = por %p451, %p452
    %p454 = scmp.ne.s32.totalorder %s442, %s443
    %p455 = scmp.eq.s32.totalorder %s34, 1
    %p456 = por %p454, %p455
    %p458 = scmp.ne.s32.totalorder %s443, %s457
    %p459 = scmp.eq.s32.totalorder %s34, 0
    %p460 = por %p458, %p459
    %s462 = sadd.s32 %s461, 1
    %p465 = scmp.eq.s32.totalorder %s28, 1
    %p466 = scmp.ne.s32.totalorder %s461, %s463
    %p467 = scmp.eq.s32.totalorder %s28, 0
    %p468 = por %p466, %p467
    %p469 = scmp.ne.s32.totalorder %s461, %s463
    %p470 = scmp.eq.s32.totalorder %s33, 1
    %p471 = por %p469, %p470
    %p472 = scmp.ne.s32.totalorder %s463, %s464
    %p473 = scmp.eq.s32.totalorder %s33, 0
    %p474 = por %p472, %p473
    %p475 = scmp.ne.s32.totalorder %s463, %s464
    %p476 = scmp.eq.s32.totalorder %s34, 1
    %p477 = por %p475, %p476
    %p479 = scmp.ne.s32.totalorder %s464, %s478
    %p480 = scmp.eq.s32.totalorder %s34, 0
    %p481 = por %p479, %p480
    %s483 = sadd.s32 %s482, 1
    %p486 = scmp.eq.s32.totalorder %s28, 1
    %p487 = scmp.ne.s32.totalorder %s482, %s484
    %p488 = scmp.eq.s32.totalorder %s28, 0
    %p489 = por %p487, %p488
    %p490 = scmp.ne.s32.totalorder %s482, %s484
    %p491 = scmp.eq.s32.totalorder %s33, 1
    %p492 = por %p490, %p491
    %p493 = scmp.ne.s32.totalorder %s484, %s485
    %p494 = scmp.eq.s32.totalorder %s33, 0
    %p495 = por %p493, %p494
    %p496 = scmp.ne.s32.totalorder %s484, %s485
    %p497 = scmp.eq.s32.totalorder %s34, 1
    %p498 = por %p496, %p497
    %p500 = scmp.ne.s32.totalorder %s485, %s499
    %p501 = scmp.eq.s32.totalorder %s34, 0
    %p502 = por %p500, %p501
    %s503 = ssub.s32 %s28, %s35
    %p504 = scmp.eq.s32.totalorder %s503, 0
    %s506 = sadd.s32 %s505, 1
    %s507 = scalar_select %p504, %s505, %s506
    %p510 = pneg %p504
    %p511 = scmp.eq.s32.totalorder %s28, 1
    %p512 = por %p510, %p511
    %p513 = scmp.ne.s32.totalorder %s505, %s508
    %p514 = scmp.eq.s32.totalorder %s28, 0
    %p515 = por %p513, %p514
    %p516 = scmp.ne.s32.totalorder %s505, %s508
    %p517 = scmp.eq.s32.totalorder %s33, 1
    %p518 = por %p516, %p517
    %p519 = scmp.ne.s32.totalorder %s508, %s509
    %p520 = scmp.eq.s32.totalorder %s33, 0
    %p521 = por %p519, %p520
    %p522 = scmp.ne.s32.totalorder %s508, %s509
    %p523 = scmp.eq.s32.totalorder %s34, 1
    %p524 = por %p522, %p523
    %p526 = scmp.ne.s32.totalorder %s509, %s525
    %p527 = scmp.eq.s32.totalorder %s34, 0
    %p528 = por %p526, %p527
    %p529 = scmp.le.s32.totalorder 1, %s28
    %p530 = scmp.lt.s32.totalorder %s28, 3
    %p531 = pnand %p529, %p530
    %p532 = pneg %p531
    // Predicated region
    $region9: #{deoldify_generator_forward.1} parent=5 // pred_check
      _
    $region10: #{deoldify_generator_forward.1} parent=5 // pred_check_branch
      %534 = sbr.rel (%p531) target = $region12
    $region11: #{deoldify_generator_forward.1} parent=5 // pred_region
      %s535 = ssub.s32 %s28, 1
      // Predicated region
      $region13: #{deoldify_generator_forward.1} parent=11 // pred_check
        %p536 = pneg %p75
      $region14: #{deoldify_generator_forward.1} parent=11 // pred_check_branch
        %538 = sbr.rel (%p536) target = $region16
      $region15: #{deoldify_generator_forward.1} parent=11 // pred_region
        _
      $region16: #{deoldify_generator_forward.1} parent=11 // pred_fallthru
        _
      // Predicated region
      $region17: #{deoldify_generator_forward.1} parent=11 // pred_check
        %p539 = pneg %p96
      $region18: #{deoldify_generator_forward.1} parent=11 // pred_check_branch
        %541 = sbr.rel (%p539) target = $region20
      $region19: #{deoldify_generator_forward.1} parent=11 // pred_region
        _
      $region20: #{deoldify_generator_forward.1} parent=11 // pred_fallthru
        _
      // Predicated region
      $region21: #{deoldify_generator_forward.1} parent=11 // pred_check
        %p542 = pneg %p117
      $region22: #{deoldify_generator_forward.1} parent=11 // pred_check_branch
        %544 = sbr.rel (%p542) target = $region24
      $region23: #{deoldify_generator_forward.1} parent=11 // pred_region
        _
      $region24: #{deoldify_generator_forward.1} parent=11 // pred_fallthru
        _
      // Predicated region
      $region25: #{deoldify_generator_forward.1} parent=11 // pred_check
        %p545 = pneg %p138
      $region26: #{deoldify_generator_forward.1} parent=11 // pred_check_branch
        %547 = sbr.rel (%p545) target = $region28
      $region27: #{deoldify_generator_forward.1} parent=11 // pred_region
        _
      $region28: #{deoldify_generator_forward.1} parent=11 // pred_fallthru
        _
      // Predicated region
      $region29: #{deoldify_generator_forward.1} parent=11 // pred_check
        %p548 = pneg %p159
      $region30: #{deoldify_generator_forward.1} parent=11 // pred_check_branch
        %550 = sbr.rel (%p548) target = $region32
      $region31: #{deoldify_generator_forward.1} parent=11 // pred_region
        _
      $region32: #{deoldify_generator_forward.1} parent=11 // pred_fallthru
        _
      // Predicated region
      $region33: #{deoldify_generator_forward.1} parent=11 // pred_check
        %p551 = pneg %p180
      $region34: #{deoldify_generator_forward.1} parent=11 // pred_check_branch
        %553 = sbr.rel (%p551) target = $region36
      $region35: #{deoldify_generator_forward.1} parent=11 // pred_region
        _
      $region36: #{deoldify_generator_forward.1} parent=11 // pred_fallthru
        _
      // Predicated region
      $region37: #{deoldify_generator_forward.1} parent=11 // pred_check
        %p554 = pneg %p201
      $region38: #{deoldify_generator_forward.1} parent=11 // pred_check_branch
        %556 = sbr.rel (%p554) target = $region40
      $region39: #{deoldify_generator_forward.1} parent=11 // pred_region
        _
      $region40: #{deoldify_generator_forward.1} parent=11 // pred_fallthru
        _
      // Predicated region
      $region41: #{deoldify_generator_forward.1} parent=11 // pred_check
        %p557 = pneg %p222
      $region42: #{deoldify_generator_forward.1} parent=11 // pred_check_branch
        %559 = sbr.rel (%p557) target = $region44
      $region43: #{deoldify_generator_forward.1} parent=11 // pred_region
        _
      $region44: #{deoldify_generator_forward.1} parent=11 // pred_fallthru
        _
      // Predicated region
      $region45: #{deoldify_generator_forward.1} parent=11 // pred_check
        %p560 = pneg %p243
      $region46: #{deoldify_generator_forward.1} parent=11 // pred_check_branch
        %562 = sbr.rel (%p560) target = $region48
      $region47: #{deoldify_generator_forward.1} parent=11 // pred_region
        _
      $region48: #{deoldify_generator_forward.1} parent=11 // pred_fallthru
        _
      // Predicated region
      $region49: #{deoldify_generator_forward.1} parent=11 // pred_check
        %p563 = pneg %p264
      $region50: #{deoldify_generator_forward.1} parent=11 // pred_check_branch
        %565 = sbr.rel (%p563) target = $region52
      $region51: #{deoldify_generator_forward.1} parent=11 // pred_region
        _
      $region52: #{deoldify_generator_forward.1} parent=11 // pred_fallthru
        _
      // Predicated region
      $region53: #{deoldify_generator_forward.1} parent=11 // pred_check
        %p566 = pneg %p285
      $region54: #{deoldify_generator_forward.1} parent=11 // pred_check_branch
        %568 = sbr.rel (%p566) target = $region56
      $region55: #{deoldify_generator_forward.1} parent=11 // pred_region
        _
      $region56: #{deoldify_generator_forward.1} parent=11 // pred_fallthru
        _
      // Predicated region
      $region57: #{deoldify_generator_forward.1} parent=11 // pred_check
        %p569 = pneg %p306
      $region58: #{deoldify_generator_forward.1} parent=11 // pred_check_branch
        %571 = sbr.rel (%p569) target = $region60
      $region59: #{deoldify_generator_forward.1} parent=11 // pred_region
        _
      $region60: #{deoldify_generator_forward.1} parent=11 // pred_fallthru
        _
      // Predicated region
      $region61: #{deoldify_generator_forward.1} parent=11 // pred_check
        %p572 = pneg %p327
      $region62: #{deoldify_generator_forward.1} parent=11 // pred_check_branch
        %574 = sbr.rel (%p572) target = $region64
      $region63: #{deoldify_generator_forward.1} parent=11 // pred_region
        _
      $region64: #{deoldify_generator_forward.1} parent=11 // pred_fallthru
        _
      // Predicated region
      $region65: #{deoldify_generator_forward.1} parent=11 // pred_check
        %p575 = pneg %p348
      $region66: #{deoldify_generator_forward.1} parent=11 // pred_check_branch
        %577 = sbr.rel (%p575) target = $region68
      $region67: #{deoldify_generator_forward.1} parent=11 // pred_region
        _
      $region68: #{deoldify_generator_forward.1} parent=11 // pred_fallthru
        _
      // Predicated region
      $region69: #{deoldify_generator_forward.1} parent=11 // pred_check
        %p578 = pneg %p369
      $region70: #{deoldify_generator_forward.1} parent=11 // pred_check_branch
        %580 = sbr.rel (%p578) target = $region72
      $region71: #{deoldify_generator_forward.1} parent=11 // pred_region
        _
      $region72: #{deoldify_generator_forward.1} parent=11 // pred_fallthru
        _
      // Predicated region
      $region73: #{deoldify_generator_forward.1} parent=11 // pred_check
        %p581 = pneg %p390
      $region74: #{deoldify_generator_forward.1} parent=11 // pred_check_branch
        %583 = sbr.rel (%p581) target = $region76
      $region75: #{deoldify_generator_forward.1} parent=11 // pred_region
        _
      $region76: #{deoldify_generator_forward.1} parent=11 // pred_fallthru
        _
      // Predicated region
      $region77: #{deoldify_generator_forward.1} parent=11 // pred_check
        %p584 = pneg %p411
      $region78: #{deoldify_generator_forward.1} parent=11 // pred_check_branch
        %586 = sbr.rel (%p584) target = $region80
      $region79: #{deoldify_generator_forward.1} parent=11 // pred_region
        _
      $region80: #{deoldify_generator_forward.1} parent=11 // pred_fallthru
        _
      // Predicated region
      $region81: #{deoldify_generator_forward.1} parent=11 // pred_check
        %p587 = pneg %p432
      $region82: #{deoldify_generator_forward.1} parent=11 // pred_check_branch
        %589 = sbr.rel (%p587) target = $region84
      $region83: #{deoldify_generator_forward.1} parent=11 // pred_region
        _
      $region84: #{deoldify_generator_forward.1} parent=11 // pred_fallthru
        _
      // Predicated region
      $region85: #{deoldify_generator_forward.1} parent=11 // pred_check
        %p590 = pneg %p453
      $region86: #{deoldify_generator_forward.1} parent=11 // pred_check_branch
        %592 = sbr.rel (%p590) target = $region88
      $region87: #{deoldify_generator_forward.1} parent=11 // pred_region
        _
      $region88: #{deoldify_generator_forward.1} parent=11 // pred_fallthru
        _
      // Predicated region
      $region89: #{deoldify_generator_forward.1} parent=11 // pred_check
        %p593 = pneg %p474
      $region90: #{deoldify_generator_forward.1} parent=11 // pred_check_branch
        %595 = sbr.rel (%p593) target = $region92
      $region91: #{deoldify_generator_forward.1} parent=11 // pred_region
        _
      $region92: #{deoldify_generator_forward.1} parent=11 // pred_fallthru
        _
      // Predicated region
      $region93: #{deoldify_generator_forward.1} parent=11 // pred_check
        %p596 = pneg %p495
      $region94: #{deoldify_generator_forward.1} parent=11 // pred_check_branch
        %598 = sbr.rel (%p596) target = $region96
      $region95: #{deoldify_generator_forward.1} parent=11 // pred_region
        _
      $region96: #{deoldify_generator_forward.1} parent=11 // pred_fallthru
        _
    $region12: #{deoldify_generator_forward.1} parent=5 // pred_fallthru
      _
    %p599 = scmp.lt.s32.totalorder %s28, 2
    // Predicated region
    $region97: #{deoldify_generator_forward.1} parent=5 // pred_check
      %p600 = pneg %p599
    $region98: #{deoldify_generator_forward.1} parent=5 // pred_check_branch
      %602 = sbr.rel (%p600) target = $region100
    $region99: #{deoldify_generator_forward.1} parent=5 // pred_region
      // Predicated region
      $region101: #{deoldify_generator_forward.1} parent=99 // pred_check
        %p603 = pneg %p48
      $region102: #{deoldify_generator_forward.1} parent=99 // pred_check_branch
        %605 = sbr.rel (%p603) target = $region104
      $region103: #{deoldify_generator_forward.1} parent=99 // pred_region
        %p606 = scmp.lt.s32.totalorder %s28, 1
        %s607 = scalar_select %p606, %s28, 1
        %s608 = smul.addr %s607, 2
        %s609 = smul.addr %s608, 4
        %s610 = scalar_lea.vmem %s0, %s609
      $region104: #{deoldify_generator_forward.1} parent=99 // pred_fallthru
        _
    $region100: #{deoldify_generator_forward.1} parent=5 // pred_fallthru
      _
    %p611 = scmp.le.s32.totalorder 1, %s28
    %p612 = scmp.lt.s32.totalorder %s28, 3
    %p613 = pnand %p611, %p612
    %p614 = pneg %p613
    // Predicated region
    $region105: #{deoldify_generator_forward.1} parent=5 // pred_check
      _
    $region106: #{deoldify_generator_forward.1} parent=5 // pred_check_branch
      %616 = sbr.rel (%p613) target = $region108
    $region107: #{deoldify_generator_forward.1} parent=5 // pred_region
      %s617 = ssub.s32 %s28, 1
      %p618 = scmp.lt.s32.totalorder %s33, 1
      %s619 = scalar_select %p618, %s33, 1
      %s620 = smul.addr %s619, 2
      %s621 = smul.addr %s620, 4
      %s622 = scalar_lea.vmem %s0, %s621
      %p623 = pneg %p54
      %p624 = pneg %p51
      %p625 = pneg %p75
      %p626 = pneg %p72
      %p627 = pneg %p96
      %p628 = pneg %p93
      %p629 = pneg %p117
      %p630 = pneg %p114
      %p631 = pneg %p138
      %p632 = pneg %p135
      %p633 = pneg %p159
      %p634 = pneg %p156
      %p635 = pneg %p180
      %p636 = pneg %p177
      %p637 = pneg %p201
      %p638 = pneg %p198
      %p639 = pneg %p222
      %p640 = pneg %p219
      %p641 = pneg %p243
      %p642 = pneg %p240
      %p643 = pneg %p264
      %p644 = pneg %p261
      %p645 = pneg %p285
      %p646 = pneg %p282
      %p647 = pneg %p306
      %p648 = pneg %p303
      %p649 = pneg %p327
      %p650 = pneg %p324
      %p651 = pneg %p348
      %p652 = pneg %p345
      %p653 = pneg %p369
      %p654 = pneg %p366
      %p655 = pneg %p390
      %p656 = pneg %p387
      %p657 = pneg %p411
      %p658 = pneg %p408
      %p659 = pneg %p432
      %p660 = pneg %p429
      %p661 = pneg %p453
      %p662 = pneg %p450
      %p663 = pneg %p474
      %p664 = pneg %p471
      %p665 = pneg %p495
      %p666 = pneg %p492
      %p667 = pneg %p521
      %p668 = pneg %p518
      %p669 = scmp.lt.s32.totalorder %s33, 1
      %s670 = scalar_select %p669, %s33, 1
      %s671 = smul.addr %s670, 2
      %s672 = smul.addr %s671, 4
      %s673 = scalar_lea.vmem %s22, %s672
      %p674 = scmp.lt.s32.totalorder %s33, 1
      %s675 = scalar_select %p674, %s33, 1
      %s676 = smul.addr %s675, 2
      %s677 = smul.addr %s676, 4
      %s678 = scalar_lea.vmem %s0, %s677
      %p679 = scmp.lt.s32.totalorder %s33, 1
      %s680 = scalar_select %p679, %s33, 1
      %s681 = smul.addr %s680, 2
      %s682 = smul.addr %s681, 4
      %s683 = scalar_lea.vmem %s22, %s682
      %685 = vst [vmem:[#allocation2] sm:$0xff] 0.0
      %686 = vst [vmem:[#allocation2 + $0x8] sm:$0xff] 0.0
      %vm687 = vcmask 277504
      %688 = vst.msk [vmem:[#allocation2 + $0x10] sm:$0xff] %vm687, 0.0
      %689 = vst [vmem:[#allocation2 + $0x18] sm:$0xff] 0.0
      %690 = vst [vmem:[#allocation2 + $0x20] sm:$0xff] 0.0
      %691 = vst.msk [vmem:[#allocation2 + $0x28] sm:$0xff] %vm687, 0.0
      %692 = vst [vmem:[#allocation2 + $0x30] sm:$0xff] 0.0
      %693 = vst [vmem:[#allocation2 + $0x38] sm:$0xff] 0.0
      %694 = vst.msk [vmem:[#allocation2 + $0x40] sm:$0xff] %vm687, 0.0
      %695 = vst [vmem:[#allocation2 + $0x48] sm:$0xff] 0.0
      %696 = vst [vmem:[#allocation2 + $0x50] sm:$0xff] 0.0
      %697 = vst.msk [vmem:[#allocation2 + $0x58] sm:$0xff] %vm687, 0.0
      %v698 = vld [vmem:[%s678] sm:$0x77]
      %v699 = vlaneseq
      %v700 = vand.u32 %v699, 127
      %v701 = vadd.s32 %v700, 128
      %v702 = vshra.s32 %v700, 4
      %v703 = vshra.s32 %v701, 4
      %v704 = vand.u32 %v700, 15
      %v705 = vand.u32 %v701, 15
      %707 = vst [vmem:[#allocation1] ss:$2 sm:$0xff] %v698
      %v708 = vld.sshfl [vmem:[#allocation1] sm:$0xff pattern:$0x75316420]
      %v709 = vld.sshfl [vmem:[#allocation1 + $0x8] sm:$0xff pattern:$0x75316420]
      %710 = vrot.lane.b32.xlu0 %v708, 17
      %v711 = vpop.permute.xlu0 %710
      %712 = vrot.lane.b32.xlu0 %v709, 17
      %v713 = vpop.permute.xlu0 %712
      %vm714 = vcmask 138240
      %v715 = vsel %vm714, %v711, %v713
      %vm719 = vcmask 1042568
      %720 = vst.msk [vmem:[#allocation2] sm:$0x7] %vm719, %v711
      %721 = vst [vmem:[#allocation2 + $0x8] sm:$0x7] %v715
      %vm722 = vcmask 133120
      %723 = vst.msk [vmem:[#allocation2 + $0x10] sm:$0x7] %vm722, %v713
      %v724 = vld [vmem:[#allocation2] sm:$0x7]
      %v725 = vld [vmem:[#allocation2 + $0x8] sm:$0x7]
      %v726 = vadd.s32 %v702, 4294967295
      %v727 = vadd.s32 %v703, 4294967295
      %vm728 = vcmp.ge.s32.totalorder %v726, 0
      %vm729 = vcmp.ge.s32.totalorder %v727, 0
      %vm730 = vcmp.lt.s32.totalorder %v726, 16
      %vm731 = vcmp.lt.s32.totalorder %v727, 16
      %vm732 = vmand %vm728, %vm730
      %vm733 = vmand %vm729, %vm731
      %v734 = vadd.s32 %v704, 4294967295
      %v735 = vadd.s32 %v705, 4294967295
      %vm736 = vcmp.ge.s32.totalorder %v734, 0
      %vm737 = vcmp.ge.s32.totalorder %v735, 0
      %vm738 = vmand %vm732, %vm736
      %vm739 = vmand %vm733, %vm737
      %vm740 = vcmp.lt.s32.totalorder %v734, 16
      %vm741 = vcmp.lt.s32.totalorder %v735, 16
      %vm742 = vmand %vm738, %vm740
      %vm743 = vmand %vm739, %vm741
      %v744 = vsel %vm742, 1, 0
      %v745 = vsel %vm743, 1, 0
      %vm746 = vcmp.eq.s32.totalorder %v744, 1
      %vm747 = vcmp.eq.s32.totalorder %v745, 1
      %v748 = vsel %vm746, %v724, 0.0
      %v749 = vsel %vm747, %v725, 0.0
      %v750 = vpack.c.bf16 %v748, %v748
      %v751 = vpack.c.bf16 %v749, %v749
      %v752 = vld [vmem:[%s1] sm:$0xf]
      %v753 = vld [vmem:[#allocation2 + $0x10] sm:$0x7]
      %vm754 = vcmp.ge.s32.totalorder %v704, 0
      %vm755 = vcmp.ge.s32.totalorder %v705, 0
      %vm756 = vmand %vm732, %vm754
      %vm757 = vmand %vm733, %vm755
      %vm758 = vcmp.lt.s32.totalorder %v704, 16
      %vm759 = vcmp.lt.s32.totalorder %v705, 16
      %vm760 = vmand %vm756, %vm758
      %vm761 = vmand %vm757, %vm759
      %v762 = vsel %vm760, 1, 0
      %v763 = vsel %vm761, 1, 0
      %vm764 = vcmp.eq.s32.totalorder %v762, 1
      %vm765 = vcmp.eq.s32.totalorder %v763, 1
      %769 = vrot.lane.b32.xlu0 %v724, 127
      %v770 = vpop.permute.xlu0 %769
      %771 = vrot.lane.b32.xlu0 %v725, 127
      %v772 = vpop.permute.xlu0 %771
      %773 = vrot.lane.b32.xlu0 %v753, 127
      %v774 = vpop.permute.xlu0 %773
      %vm775 = vcmask 1039360
      %v776 = vsel %vm775, %v770, %v772
      %v777 = vsel %vm775, %v772, %v774
      %v780 = vsel %vm764, %v776, 0.0
      %v781 = vsel %vm765, %v777, 0.0
      %v782 = vpack.c.bf16 %v780, %v780
      %v783 = vpack.c.bf16 %v781, %v781
      %s784 = scalar_lea.vmem %s1, 4
      %v785 = vld [vmem:[%s784] sm:$0xf]
      %vm786 = vcmask 23552
      %v788 = vsel %vm786, %v785, 0
      %vm790 = vcmask 1040384
      %vm791 = vcmask 1041408
      %v792 = vsel %vm790, 4294967295, 65535
      %v793 = vsel %vm791, %v792, 0
      %v795 = vand.u32 %v782, %v793
      %v798 = vand.u32 %v783, %v793
      %800 = vmatpush.bf16.msra.mxu0 0
      %801 = vmatpush.bf16.msra.mxu0 0
      %802 = vmatpush.bf16.msra.mxu0 0
      %803 = vmatpush.bf16.msra.mxu0 0
      %804 = vmatpush.bf16.msra.mxu0 0
      %805 = vmatpush.bf16.msra.mxu0 0
      %806 = vmatpush.bf16.msra.mxu0 0
      %807 = vmatpush.bf16.msra.mxu0 %v795
      %808 = vmatmul.bf16.gmra.mxu0 %v788
      %v809 = vpop.f32.mrf.mxu0
      %v810 = vadd.f32 0.0, %v809
      %v811 = vpop.f32.mrf.mxu0
      %812 = vdwg.mxu0
      %813 = vmatpush.bf16.msra.mxu0 0
      %814 = vmatpush.bf16.msra.mxu0 0
      %815 = vmatpush.bf16.msra.mxu0 0
      %816 = vmatpush.bf16.msra.mxu0 0
      %817 = vmatpush.bf16.msra.mxu0 0
      %818 = vmatpush.bf16.msra.mxu0 0
      %819 = vmatpush.bf16.msra.mxu0 0
      %820 = vmatpush.bf16.msra.mxu0 %v798
      %821 = vmatmul.bf16.gmra.mxu0 %v788
      %v822 = vpop.f32.mrf.mxu0
      %v823 = vadd.f32 0.0, %v822
      %v824 = vpop.f32.mrf.mxu0
      %825 = vdwg.mxu0
      %v827 = vsel %vm786, %v752, 0
      %v830 = vand.u32 %v750, %v793
      %v833 = vand.u32 %v751, %v793
      %835 = vmatpush.bf16.msra.mxu0 0
      %836 = vmatpush.bf16.msra.mxu0 0
      %837 = vmatpush.bf16.msra.mxu0 0
      %838 = vmatpush.bf16.msra.mxu0 0
      %839 = vmatpush.bf16.msra.mxu0 0
      %840 = vmatpush.bf16.msra.mxu0 0
      %841 = vmatpush.bf16.msra.mxu0 0
      %842 = vmatpush.bf16.msra.mxu0 %v830
      %843 = vmatmul.bf16.gmra.mxu0 %v827
      %v844 = vpop.f32.mrf.mxu0
      %v845 = vadd.f32 %v810, %v844
      %v846 = vpop.f32.mrf.mxu0
      %847 = vdwg.mxu0
      %848 = vmatpush.bf16.msra.mxu0 0
      %849 = vmatpush.bf16.msra.mxu0 0
      %850 = vmatpush.bf16.msra.mxu0 0
      %851 = vmatpush.bf16.msra.mxu0 0
      %852 = vmatpush.bf16.msra.mxu0 0
      %853 = vmatpush.bf16.msra.mxu0 0
      %854 = vmatpush.bf16.msra.mxu0 0
      %855 = vmatpush.bf16.msra.mxu0 %v833
      %856 = vmatmul.bf16.gmra.mxu0 %v827
      %v857 = vpop.f32.mrf.mxu0
      %v858 = vadd.f32 %v823, %v857
      %v859 = vpop.f32.mrf.mxu0
      %860 = vdwg.mxu0
      %v861 = vadd.s32 %v704, 1
      %v862 = vadd.s32 %v705, 1
      %vm863 = vcmp.ge.s32.totalorder %v861, 0
      %vm864 = vcmp.ge.s32.totalorder %v862, 0
      %vm865 = vmand %vm732, %vm863
      %vm866 = vmand %vm733, %vm864
      %vm867 = vcmp.lt.s32.totalorder %v861, 16
      %vm868 = vcmp.lt.s32.totalorder %v862, 16
      %vm869 = vmand %vm865, %vm867
      %vm870 = vmand %vm866, %vm868
      %v871 = vsel %vm869, 1, 0
      %v872 = vsel %vm870, 1, 0
      %vm873 = vcmp.eq.s32.totalorder %v871, 1
      %vm874 = vcmp.eq.s32.totalorder %v872, 1
      %875 = vrot.lane.b32.xlu0 %v724, 126
      %v876 = vpop.permute.xlu0 %875
      %877 = vrot.lane.b32.xlu0 %v725, 126
      %v878 = vpop.permute.xlu0 %877
      %879 = vrot.lane.b32.xlu0 %v753, 126
      %v880 = vpop.permute.xlu0 %879
      %vm881 = vcmask 1031168
      %v882 = vsel %vm881, %v876, %v878
      %v883 = vsel %vm881, %v878, %v880
      %v886 = vsel %vm873, %v882, 0.0
      %v887 = vsel %vm874, %v883, 0.0
      %v888 = vpack.c.bf16 %v886, %v886
      %v889 = vpack.c.bf16 %v887, %v887
      %s890 = scalar_lea.vmem %s1, 8
      %v891 = vld [vmem:[%s890] sm:$0xf]
      %v893 = vsel %vm786, %v891, 0
      %v896 = vand.u32 %v888, %v793
      %v899 = vand.u32 %v889, %v793
      %901 = vmatpush.bf16.msra.mxu0 0
      %902 = vmatpush.bf16.msra.mxu0 0
      %903 = vmatpush.bf16.msra.mxu0 0
      %904 = vmatpush.bf16.msra.mxu0 0
      %905 = vmatpush.bf16.msra.mxu0 0
      %906 = vmatpush.bf16.msra.mxu0 0
      %907 = vmatpush.bf16.msra.mxu0 0
      %908 = vmatpush.bf16.msra.mxu0 %v896
      %909 = vmatmul.bf16.gmra.mxu0 %v893
      %v910 = vpop.f32.mrf.mxu0
      %v911 = vadd.f32 0.0, %v910
      %v912 = vpop.f32.mrf.mxu0
      %913 = vdwg.mxu0
      %914 = vmatpush.bf16.msra.mxu0 0
      %915 = vmatpush.bf16.msra.mxu0 0
      %916 = vmatpush.bf16.msra.mxu0 0
      %917 = vmatpush.bf16.msra.mxu0 0
      %918 = vmatpush.bf16.msra.mxu0 0
      %919 = vmatpush.bf16.msra.mxu0 0
      %920 = vmatpush.bf16.msra.mxu0 0
      %921 = vmatpush.bf16.msra.mxu0 %v899
      %922 = vmatmul.bf16.gmra.mxu0 %v893
      %v923 = vpop.f32.mrf.mxu0
      %v924 = vadd.f32 0.0, %v923
      %v925 = vpop.f32.mrf.mxu0
      %926 = vdwg.mxu0
      %v927 = vadd.f32 %v845, %v911
      %v928 = vadd.f32 %v858, %v924
      %vm929 = vcmp.ge.s32.totalorder %v702, 0
      %vm930 = vcmp.ge.s32.totalorder %v703, 0
      %vm931 = vcmp.lt.s32.totalorder %v702, 16
      %vm932 = vcmp.lt.s32.totalorder %v703, 16
      %vm933 = vmand %vm929, %vm931
      %vm934 = vmand %vm930, %vm932
      %vm935 = vmand %vm933, %vm736
      %vm936 = vmand %vm934, %vm737
      %vm937 = vmand %vm935, %vm740
      %vm938 = vmand %vm936, %vm741
      %v939 = vsel %vm937, 1, 0
      %v940 = vsel %vm938, 1, 0
      %vm941 = vcmp.eq.s32.totalorder %v939, 1
      %vm942 = vcmp.eq.s32.totalorder %v940, 1
      %943 = vrot.lane.b32.xlu0 %v724, 112
      %v944 = vpop.permute.xlu0 %943
      %945 = vrot.lane.b32.xlu0 %v725, 112
      %v946 = vpop.permute.xlu0 %945
      %947 = vrot.lane.b32.xlu0 %v753, 112
      %v948 = vpop.permute.xlu0 %947
      %vm949 = vcmask 916480
      %v950 = vsel %vm949, %v944, %v946
      %v951 = vsel %vm949, %v946, %v948
      %v954 = vsel %vm941, %v950, 0.0
      %v955 = vsel %vm942, %v951, 0.0
      %v956 = vpack.c.bf16 %v954, %v954
      %v957 = vpack.c.bf16 %v955, %v955
      %s958 = scalar_lea.vmem %s1, 12
      %v959 = vld [vmem:[%s958] sm:$0xf]
      %v961 = vsel %vm786, %v959, 0
      %v964 = vand.u32 %v956, %v793
      %v967 = vand.u32 %v957, %v793
      %969 = vmatpush.bf16.msra.mxu0 0
      %970 = vmatpush.bf16.msra.mxu0 0
      %971 = vmatpush.bf16.msra.mxu0 0
      %972 = vmatpush.bf16.msra.mxu0 0
      %973 = vmatpush.bf16.msra.mxu0 0
      %974 = vmatpush.bf16.msra.mxu0 0
      %975 = vmatpush.bf16.msra.mxu0 0
      %976 = vmatpush.bf16.msra.mxu0 %v964
      %977 = vmatmul.bf16.gmra.mxu0 %v961
      %v978 = vpop.f32.mrf.mxu0
      %v979 = vadd.f32 0.0, %v978
      %v980 = vpop.f32.mrf.mxu0
      %981 = vdwg.mxu0
      %982 = vmatpush.bf16.msra.mxu0 0
      %983 = vmatpush.bf16.msra.mxu0 0
      %984 = vmatpush.bf16.msra.mxu0 0
      %985 = vmatpush.bf16.msra.mxu0 0
      %986 = vmatpush.bf16.msra.mxu0 0
      %987 = vmatpush.bf16.msra.mxu0 0
      %988 = vmatpush.bf16.msra.mxu0 0
      %989 = vmatpush.bf16.msra.mxu0 %v967
      %990 = vmatmul.bf16.gmra.mxu0 %v961
      %v991 = vpop.f32.mrf.mxu0
      %v992 = vadd.f32 0.0, %v991
      %v993 = vpop.f32.mrf.mxu0
      %994 = vdwg.mxu0
      %v995 = vadd.f32 %v927, %v979
      %v996 = vadd.f32 %v928, %v992
      %vm997 = vmand %vm933, %vm754
      %vm998 = vmand %vm934, %vm755
      %vm999 = vmand %vm997, %vm758
      %vm1000 = vmand %vm998, %vm759
      %v1001 = vsel %vm999, 1, 0
      %v1002 = vsel %vm1000, 1, 0
      %vm1003 = vcmp.eq.s32.totalorder %v1001, 1
      %vm1004 = vcmp.eq.s32.totalorder %v1002, 1
      %1005 = vrot.lane.b32.xlu0 %v724, 111
      %v1006 = vpop.permute.xlu0 %1005
      %1007 = vrot.lane.b32.xlu0 %v725, 111
      %v1008 = vpop.permute.xlu0 %1007
      %1009 = vrot.lane.b32.xlu0 %v753, 111
      %v1010 = vpop.permute.xlu0 %1009
      %vm1011 = vcmask 908288
      %v1012 = vsel %vm1011, %v1006, %v1008
      %v1013 = vsel %vm1011, %v1008, %v1010
      %v1016 = vsel %vm1003, %v1012, 0.0
      %v1017 = vsel %vm1004, %v1013, 0.0
      %v1018 = vpack.c.bf16 %v1016, %v1016
      %v1019 = vpack.c.bf16 %v1017, %v1017
      %s1020 = scalar_lea.vmem %s1, 16
      %v1021 = vld [vmem:[%s1020] sm:$0xf]
      %v1023 = vsel %vm786, %v1021, 0
      %v1026 = vand.u32 %v1018, %v793
      %v1029 = vand.u32 %v1019, %v793
      %1031 = vmatpush.bf16.msra.mxu0 0
      %1032 = vmatpush.bf16.msra.mxu0 0
      %1033 = vmatpush.bf16.msra.mxu0 0
      %1034 = vmatpush.bf16.msra.mxu0 0
      %1035 = vmatpush.bf16.msra.mxu0 0
      %1036 = vmatpush.bf16.msra.mxu0 0
      %1037 = vmatpush.bf16.msra.mxu0 0
      %1038 = vmatpush.bf16.msra.mxu0 %v1026
      %1039 = vmatmul.bf16.gmra.mxu0 %v1023
      %v1040 = vpop.f32.mrf.mxu0
      %v1041 = vadd.f32 0.0, %v1040
      %v1042 = vpop.f32.mrf.mxu0
      %1043 = vdwg.mxu0
      %1044 = vmatpush.bf16.msra.mxu0 0
      %1045 = vmatpush.bf16.msra.mxu0 0
      %1046 = vmatpush.bf16.msra.mxu0 0
      %1047 = vmatpush.bf16.msra.mxu0 0
      %1048 = vmatpush.bf16.msra.mxu0 0
      %1049 = vmatpush.bf16.msra.mxu0 0
      %1050 = vmatpush.bf16.msra.mxu0 0
      %1051 = vmatpush.bf16.msra.mxu0 %v1029
      %1052 = vmatmul.bf16.gmra.mxu0 %v1023
      %v1053 = vpop.f32.mrf.mxu0
      %v1054 = vadd.f32 0.0, %v1053
      %v1055 = vpop.f32.mrf.mxu0
      %1056 = vdwg.mxu0
      %v1057 = vadd.f32 %v995, %v1041
      %v1058 = vadd.f32 %v996, %v1054
      %vm1059 = vmand %vm933, %vm863
      %vm1060 = vmand %vm934, %vm864
      %vm1061 = vmand %vm1059, %vm867
      %vm1062 = vmand %vm1060, %vm868
      %v1063 = vsel %vm1061, 1, 0
      %v1064 = vsel %vm1062, 1, 0
      %vm1065 = vcmp.eq.s32.totalorder %v1063, 1
      %vm1066 = vcmp.eq.s32.totalorder %v1064, 1
      %1067 = vrot.lane.b32.xlu0 %v724, 110
      %v1068 = vpop.permute.xlu0 %1067
      %1069 = vrot.lane.b32.xlu0 %v725, 110
      %v1070 = vpop.permute.xlu0 %1069
      %1071 = vrot.lane.b32.xlu0 %v753, 110
      %v1072 = vpop.permute.xlu0 %1071
      %vm1073 = vcmask 900096
      %v1074 = vsel %vm1073, %v1068, %v1070
      %v1075 = vsel %vm1073, %v1070, %v1072
      %v1078 = vsel %vm1065, %v1074, 0.0
      %v1079 = vsel %vm1066, %v1075, 0.0
      %v1080 = vpack.c.bf16 %v1078, %v1078
      %v1081 = vpack.c.bf16 %v1079, %v1079
      %s1082 = scalar_lea.vmem %s1, 20
      %v1083 = vld [vmem:[%s1082] sm:$0xf]
      %v1085 = vsel %vm786, %v1083, 0
      %v1088 = vand.u32 %v1080, %v793
      %v1091 = vand.u32 %v1081, %v793
      %1093 = vmatpush.bf16.msra.mxu0 0
      %1094 = vmatpush.bf16.msra.mxu0 0
      %1095 = vmatpush.bf16.msra.mxu0 0
      %1096 = vmatpush.bf16.msra.mxu0 0
      %1097 = vmatpush.bf16.msra.mxu0 0
      %1098 = vmatpush.bf16.msra.mxu0 0
      %1099 = vmatpush.bf16.msra.mxu0 0
      %1100 = vmatpush.bf16.msra.mxu0 %v1088
      %1101 = vmatmul.bf16.gmra.mxu0 %v1085
      %v1102 = vpop.f32.mrf.mxu0
      %v1103 = vadd.f32 0.0, %v1102
      %v1104 = vpop.f32.mrf.mxu0
      %1105 = vdwg.mxu0
      %1106 = vmatpush.bf16.msra.mxu0 0
      %1107 = vmatpush.bf16.msra.mxu0 0
      %1108 = vmatpush.bf16.msra.mxu0 0
      %1109 = vmatpush.bf16.msra.mxu0 0
      %1110 = vmatpush.bf16.msra.mxu0 0
      %1111 = vmatpush.bf16.msra.mxu0 0
      %1112 = vmatpush.bf16.msra.mxu0 0
      %1113 = vmatpush.bf16.msra.mxu0 %v1091
      %1114 = vmatmul.bf16.gmra.mxu0 %v1085
      %v1115 = vpop.f32.mrf.mxu0
      %v1116 = vadd.f32 0.0, %v1115
      %v1117 = vpop.f32.mrf.mxu0
      %1118 = vdwg.mxu0
      %v1119 = vadd.f32 %v1057, %v1103
      %v1120 = vadd.f32 %v1058, %v1116
      %v1121 = vadd.s32 %v702, 1
      %v1122 = vadd.s32 %v703, 1
      %vm1123 = vcmp.ge.s32.totalorder %v1121, 0
      %vm1124 = vcmp.ge.s32.totalorder %v1122, 0
      %vm1125 = vcmp.lt.s32.totalorder %v1121, 16
      %vm1126 = vcmp.lt.s32.totalorder %v1122, 16
      %vm1127 = vmand %vm1123, %vm1125
      %vm1128 = vmand %vm1124, %vm1126
      %vm1129 = vmand %vm1127, %vm736
      %vm1130 = vmand %vm1128, %vm737
      %vm1131 = vmand %vm1129, %vm740
      %vm1132 = vmand %vm1130, %vm741
      %v1133 = vsel %vm1131, 1, 0
      %v1134 = vsel %vm1132, 1, 0
      %vm1135 = vcmp.eq.s32.totalorder %v1133, 1
      %vm1136 = vcmp.eq.s32.totalorder %v1134, 1
      %1137 = vrot.lane.b32.xlu0 %v724, 96
      %v1138 = vpop.permute.xlu0 %1137
      %1139 = vrot.lane.b32.xlu0 %v725, 96
      %v1140 = vpop.permute.xlu0 %1139
      %1141 = vrot.lane.b32.xlu0 %v753, 96
      %v1142 = vpop.permute.xlu0 %1141
      %vm1143 = vcmask 785408
      %v1144 = vsel %vm1143, %v1138, %v1140
      %v1145 = vsel %vm1143, %v1140, %v1142
      %v1148 = vsel %vm1135, %v1144, 0.0
      %v1149 = vsel %vm1136, %v1145, 0.0
      %v1150 = vpack.c.bf16 %v1148, %v1148
      %v1151 = vpack.c.bf16 %v1149, %v1149
      %s1152 = scalar_lea.vmem %s1, 24
      %v1153 = vld [vmem:[%s1152] sm:$0xf]
      %v1155 = vsel %vm786, %v1153, 0
      %v1158 = vand.u32 %v1150, %v793
      %v1161 = vand.u32 %v1151, %v793
      %1163 = vmatpush.bf16.msra.mxu0 0
      %1164 = vmatpush.bf16.msra.mxu0 0
      %1165 = vmatpush.bf16.msra.mxu0 0
      %1166 = vmatpush.bf16.msra.mxu0 0
      %1167 = vmatpush.bf16.msra.mxu0 0
      %1168 = vmatpush.bf16.msra.mxu0 0
      %1169 = vmatpush.bf16.msra.mxu0 0
      %1170 = vmatpush.bf16.msra.mxu0 %v1158
      %1171 = vmatmul.bf16.gmra.mxu0 %v1155
      %v1172 = vpop.f32.mrf.mxu0
      %v1173 = vadd.f32 0.0, %v1172
      %v1174 = vpop.f32.mrf.mxu0
      %1175 = vdwg.mxu0
      %1176 = vmatpush.bf16.msra.mxu0 0
      %1177 = vmatpush.bf16.msra.mxu0 0
      %1178 = vmatpush.bf16.msra.mxu0 0
      %1179 = vmatpush.bf16.msra.mxu0 0
      %1180 = vmatpush.bf16.msra.mxu0 0
      %1181 = vmatpush.bf16.msra.mxu0 0
      %1182 = vmatpush.bf16.msra.mxu0 0
      %1183 = vmatpush.bf16.msra.mxu0 %v1161
      %1184 = vmatmul.bf16.gmra.mxu0 %v1155
      %v1185 = vpop.f32.mrf.mxu0
      %v1186 = vadd.f32 0.0, %v1185
      %v1187 = vpop.f32.mrf.mxu0
      %1188 = vdwg.mxu0
      %v1189 = vadd.f32 %v1119, %v1173
      %v1190 = vadd.f32 %v1120, %v1186
      %vm1191 = vmand %vm1127, %vm754
      %vm1192 = vmand %vm1128, %vm755
      %vm1193 = vmand %vm1191, %vm758
      %vm1194 = vmand %vm1192, %vm759
      %v1195 = vsel %vm1193, 1, 0
      %v1196 = vsel %vm1194, 1, 0
      %vm1197 = vcmp.eq.s32.totalorder %v1195, 1
      %vm1198 = vcmp.eq.s32.totalorder %v1196, 1
      %1199 = vrot.lane.b32.xlu0 %v724, 95
      %v1200 = vpop.permute.xlu0 %1199
      %1201 = vrot.lane.b32.xlu0 %v725, 95
      %v1202 = vpop.permute.xlu0 %1201
      %1203 = vrot.lane.b32.xlu0 %v753, 95
      %v1204 = vpop.permute.xlu0 %1203
      %vm1205 = vcmask 777216
      %v1206 = vsel %vm1205, %v1200, %v1202
      %v1207 = vsel %vm1205, %v1202, %v1204
      %v1210 = vsel %vm1197, %v1206, 0.0
      %v1211 = vsel %vm1198, %v1207, 0.0
      %v1212 = vpack.c.bf16 %v1210, %v1210
      %v1213 = vpack.c.bf16 %v1211, %v1211
      %s1214 = scalar_lea.vmem %s1, 28
      %v1215 = vld [vmem:[%s1214] sm:$0xf]
      %v1217 = vsel %vm786, %v1215, 0
      %v1220 = vand.u32 %v1212, %v793
      %v1223 = vand.u32 %v1213, %v793
      %1225 = vmatpush.bf16.msra.mxu0 0
      %1226 = vmatpush.bf16.msra.mxu0 0
      %1227 = vmatpush.bf16.msra.mxu0 0
      %1228 = vmatpush.bf16.msra.mxu0 0
      %1229 = vmatpush.bf16.msra.mxu0 0
      %1230 = vmatpush.bf16.msra.mxu0 0
      %1231 = vmatpush.bf16.msra.mxu0 0
      %1232 = vmatpush.bf16.msra.mxu0 %v1220
      %1233 = vmatmul.bf16.gmra.mxu0 %v1217
      %v1234 = vpop.f32.mrf.mxu0
      %v1235 = vadd.f32 0.0, %v1234
      %v1236 = vpop.f32.mrf.mxu0
      %1237 = vdwg.mxu0
      %1238 = vmatpush.bf16.msra.mxu0 0
      %1239 = vmatpush.bf16.msra.mxu0 0
      %1240 = vmatpush.bf16.msra.mxu0 0
      %1241 = vmatpush.bf16.msra.mxu0 0
      %1242 = vmatpush.bf16.msra.mxu0 0
      %1243 = vmatpush.bf16.msra.mxu0 0
      %1244 = vmatpush.bf16.msra.mxu0 0
      %1245 = vmatpush.bf16.msra.mxu0 %v1223
      %1246 = vmatmul.bf16.gmra.mxu0 %v1217
      %v1247 = vpop.f32.mrf.mxu0
      %v1248 = vadd.f32 0.0, %v1247
      %v1249 = vpop.f32.mrf.mxu0
      %1250 = vdwg.mxu0
      %v1251 = vadd.f32 %v1189, %v1235
      %v1252 = vadd.f32 %v1190, %v1248
      %vm1253 = vmand %vm1127, %vm863
      %vm1254 = vmand %vm1128, %vm864
      %vm1255 = vmand %vm1253, %vm867
      %vm1256 = vmand %vm1254, %vm868
      %v1257 = vsel %vm1255, 1, 0
      %v1258 = vsel %vm1256, 1, 0
      %vm1259 = vcmp.eq.s32.totalorder %v1257, 1
      %vm1260 = vcmp.eq.s32.totalorder %v1258, 1
      %1261 = vrot.lane.b32.xlu0 %v724, 94
      %v1262 = vpop.permute.xlu0 %1261
      %1263 = vrot.lane.b32.xlu0 %v725, 94
      %v1264 = vpop.permute.xlu0 %1263
      %1265 = vrot.lane.b32.xlu0 %v753, 94
      %v1266 = vpop.permute.xlu0 %1265
      %vm1267 = vcmask 769024
      %v1268 = vsel %vm1267, %v1262, %v1264
      %v1269 = vsel %vm1267, %v1264, %v1266
      %v1272 = vsel %vm1259, %v1268, 0.0
      %v1273 = vsel %vm1260, %v1269, 0.0
      %v1274 = vpack.c.bf16 %v1272, %v1272
      %v1275 = vpack.c.bf16 %v1273, %v1273
      %s1276 = scalar_lea.vmem %s1, 32
      %v1277 = vld [vmem:[%s1276] sm:$0xf]
      %v1279 = vsel %vm786, %v1277, 0
      %v1282 = vand.u32 %v1274, %v793
      %v1285 = vand.u32 %v1275, %v793
      %1287 = vmatpush.bf16.msra.mxu0 0
      %1288 = vmatpush.bf16.msra.mxu0 0
      %1289 = vmatpush.bf16.msra.mxu0 0
      %1290 = vmatpush.bf16.msra.mxu0 0
      %1291 = vmatpush.bf16.msra.mxu0 0
      %1292 = vmatpush.bf16.msra.mxu0 0
      %1293 = vmatpush.bf16.msra.mxu0 0
      %1294 = vmatpush.bf16.msra.mxu0 %v1282
      %1295 = vmatmul.bf16.gmra.mxu0 %v1279
      %v1296 = vpop.f32.mrf.mxu0
      %v1297 = vadd.f32 0.0, %v1296
      %v1298 = vpop.f32.mrf.mxu0
      %1299 = vdwg.mxu0
      %1300 = vmatpush.bf16.msra.mxu0 0
      %1301 = vmatpush.bf16.msra.mxu0 0
      %1302 = vmatpush.bf16.msra.mxu0 0
      %1303 = vmatpush.bf16.msra.mxu0 0
      %1304 = vmatpush.bf16.msra.mxu0 0
      %1305 = vmatpush.bf16.msra.mxu0 0
      %1306 = vmatpush.bf16.msra.mxu0 0
      %1307 = vmatpush.bf16.msra.mxu0 %v1285
      %1308 = vmatmul.bf16.gmra.mxu0 %v1279
      %v1309 = vpop.f32.mrf.mxu0
      %v1310 = vadd.f32 0.0, %v1309
      %v1311 = vpop.f32.mrf.mxu0
      %1312 = vdwg.mxu0
      %v1313 = vadd.f32 %v1251, %v1297
      %v1314 = vadd.f32 %v1252, %v1310
      %v1315 = vld [vmem:[%s2] sm:$0xff]
      %1317 = vset.pattern.permute.xlu0 0
      %1318 = vperm.xlu0 %1317, %v1315
      %v1319 = vpop.permute.xlu0 %1318
      %v1321 = vadd.f32 %v1313, %v1319
      %v1322 = vadd.f32 %v1314, %v1319
      %v1323 = vmax.f32 %v1321, 0.0
      %v1324 = vmax.f32 %v1322, 0.0
      %v1325 = vld [vmem:[%s18] sm:$0xff]
      %v1326 = vld [vmem:[%s18 + $0x8] sm:$0xff]
      %v1327 = vld [vmem:[%s18 + $0x10] sm:$0xff]
      %v1328 = vld [vmem:[%s18 + $0x18] sm:$0xff]
      %v1329 = vld [vmem:[%s18 + $0x20] sm:$0xff]
      %v1330 = vld [vmem:[%s18 + $0x28] sm:$0xff]
      %v1331 = vld [vmem:[%s18 + $0x30] sm:$0xff]
      %v1332 = vld [vmem:[%s18 + $0x38] sm:$0xff]
      %v1333 = vld [vmem:[%s18 + $0x40] sm:$0xff]
      %v1334 = vld [vmem:[%s18 + $0x48] sm:$0xff]
      %v1335 = vld [vmem:[%s18 + $0x50] sm:$0xff]
      %v1336 = vld [vmem:[%s18 + $0x58] sm:$0xff]
      %v1337 = vld [vmem:[%s18 + $0x60] sm:$0xff]
      %v1338 = vld [vmem:[%s18 + $0x68] sm:$0xff]
      %v1339 = vld [vmem:[%s18 + $0x70] sm:$0xff]
      %v1340 = vld [vmem:[%s18 + $0x78] sm:$0xff]
      %v1341 = vld [vmem:[%s18 + $0x80] sm:$0xff]
      %v1342 = vld [vmem:[%s18 + $0x88] sm:$0xff]
      %v1343 = vld [vmem:[%s18 + $0x90] sm:$0xff]
      %v1344 = vld [vmem:[%s18 + $0x98] sm:$0xff]
      %v1345 = vld [vmem:[%s18 + $0xa0] sm:$0xff]
      %v1346 = vld [vmem:[%s18 + $0xa8] sm:$0xff]
      %v1347 = vld [vmem:[%s18 + $0xb0] sm:$0xff]
      %v1348 = vld [vmem:[%s18 + $0xb8] sm:$0xff]
      %v1349 = vld [vmem:[%s18 + $0xc0] sm:$0xff]
      %v1350 = vld [vmem:[%s18 + $0xc8] sm:$0xff]
      %v1351 = vld [vmem:[%s18 + $0xd0] sm:$0xff]
      %v1352 = vld [vmem:[%s18 + $0xd8] sm:$0xff]
      %v1353 = vld [vmem:[%s18 + $0xe0] sm:$0xff]
      %v1354 = vld [vmem:[%s18 + $0xe8] sm:$0xff]
      %v1355 = vld [vmem:[%s18 + $0xf0] sm:$0xff]
      %v1356 = vld [vmem:[%s18 + $0xf8] sm:$0xff]
      %1357 = vmatpush.msra.mxu0 %v1340
      %1358 = vmatpush.msra.mxu0 %v1339
      %1359 = vmatpush.msra.mxu0 %v1338
      %1360 = vmatpush.msra.mxu0 %v1337
      %1361 = vmatpush.msra.mxu0 %v1336
      %1362 = vmatpush.msra.mxu0 %v1335
      %1363 = vmatpush.msra.mxu0 %v1334
      %1364 = vmatpush.msra.mxu0 %v1333
      %1365 = vmatpush.msra.mxu0 %v1332
      %1366 = vmatpush.msra.mxu0 %v1331
      %1367 = vmatpush.msra.mxu0 %v1330
      %1368 = vmatpush.msra.mxu0 %v1329
      %1369 = vmatpush.msra.mxu0 %v1328
      %1370 = vmatpush.msra.mxu0 %v1327
      %1371 = vmatpush.msra.mxu0 %v1326
      %1372 = vmatpush.msra.mxu0 %v1325
      %1373 = vmatmul.f32.gmra.mxu0 %v1323
      %v1374 = vpop.f32.mrf.mxu0
      %v1375 = vadd.f32 0.0, %v1374
      %1376 = vdwg.mxu0
      %1377 = vmatpush.msra.mxu0 %v1356
      %1378 = vmatpush.msra.mxu0 %v1355
      %1379 = vmatpush.msra.mxu0 %v1354
      %1380 = vmatpush.msra.mxu0 %v1353
      %1381 = vmatpush.msra.mxu0 %v1352
      %1382 = vmatpush.msra.mxu0 %v1351
      %1383 = vmatpush.msra.mxu0 %v1350
      %1384 = vmatpush.msra.mxu0 %v1349
      %1385 = vmatpush.msra.mxu0 %v1348
      %1386 = vmatpush.msra.mxu0 %v1347
      %1387 = vmatpush.msra.mxu0 %v1346
      %1388 = vmatpush.msra.mxu0 %v1345
      %1389 = vmatpush.msra.mxu0 %v1344
      %1390 = vmatpush.msra.mxu0 %v1343
      %1391 = vmatpush.msra.mxu0 %v1342
      %1392 = vmatpush.msra.mxu0 %v1341
      %1393 = vmatmul.f32.gmra.mxu0 %v1324
      %v1394 = vpop.f32.mrf.mxu0
      %v1395 = vadd.f32 %v1375, %v1394
      %1396 = vdwg.mxu0
      %v1397 = vshra.s32 %v700, 3
      %v1398 = vand.u32 %v700, 7
      %1400 = vrot.lane.b32.xlu0 %v1395, 9
      %v1401 = vpop.permute.xlu0 %1400
      %vm1403 = vcmask 597064
      %1404 = vst.msk [vmem:[#allocation2] sm:$0xff] %vm1403, %v1401
      %v1405 = vld [vmem:[#allocation2] sm:$0xff]
      %v1406 = vadd.s32 %v1397, 4294967295
      %vm1407 = vcmp.ge.s32.totalorder %v1406, 0
      %vm1408 = vcmp.lt.s32.totalorder %v1406, 8
      %vm1409 = vmand %vm1407, %vm1408
      %v1410 = vadd.s32 %v1398, 4294967295
      %vm1411 = vcmp.ge.s32.totalorder %v1410, 0
      %vm1412 = vmand %vm1409, %vm1411
      %vm1413 = vcmp.lt.s32.totalorder %v1410, 8
      %vm1414 = vmand %vm1412, %vm1413
      %v1415 = vsel %vm1414, 1, 0
      %vm1416 = vcmp.eq.s32.totalorder %v1415, 1
      %v1417 = vsel %vm1416, %v1405, 0.0
      %v1418 = vpack.c.bf16 %v1417, %v1417
      %v1419 = vld [vmem:[%s3] sm:$0xf]
      %v1420 = vld [vmem:[%s3 + $0x4] sm:$0xf]
      %vm1421 = vcmp.ge.s32.totalorder %v1398, 0
      %vm1422 = vmand %vm1409, %vm1421
      %vm1423 = vcmp.lt.s32.totalorder %v1398, 8
      %vm1424 = vmand %vm1422, %vm1423
      %v1425 = vsel %vm1424, 1, 0
      %vm1426 = vcmp.eq.s32.totalorder %v1425, 1
      %1428 = vrot.lane.b32.xlu0 %v1405, 127
      %v1429 = vpop.permute.xlu0 %1428
      %v1431 = vsel %vm1426, %v1429, 0.0
      %v1432 = vpack.c.bf16 %v1431, %v1431
      %s1433 = scalar_lea.vmem %s3, 8
      %v1434 = vld [vmem:[%s1433] sm:$0xf]
      %v1435 = vld [vmem:[%s1433 + $0x4] sm:$0xf]
      %v1438 = vunpack.c.l.b16 %v1434
      %v1439 = vunpack.c.l.b16 %v1435
      %v1440 = vpack.c.b16 %v1439, %v1438
      %vm1441 = vcmask 64512
      %v1443 = vsel %vm1441, %v1440, 0
      %vm1445 = vcmask 1043456
      %v1447 = vsel %vm1445, %v1432, 0
      %1449 = vmatpush.bf16.msra.mxu0 0
      %1450 = vmatpush.bf16.msra.mxu0 0
      %1451 = vmatpush.bf16.msra.mxu0 0
      %1452 = vmatpush.bf16.msra.mxu0 0
      %1453 = vmatpush.bf16.msra.mxu0 0
      %1454 = vmatpush.bf16.msra.mxu0 0
      %1455 = vmatpush.bf16.msra.mxu0 0
      %1456 = vmatpush.bf16.msra.mxu0 %v1447
      %1457 = vmatmul.bf16.gmra.mxu0 %v1443
      %v1458 = vpop.f32.mrf.mxu0
      %v1459 = vadd.f32 0.0, %v1458
      %v1460 = vpop.f32.mrf.mxu0
      %v1461 = vadd.f32 0.0, %v1460
      %1462 = vdwg.mxu0
      %v1465 = vunpack.c.l.b16 %v1419
      %v1466 = vunpack.c.l.b16 %v1420
      %v1467 = vpack.c.b16 %v1466, %v1465
      %v1469 = vsel %vm1441, %v1467, 0
      %v1472 = vsel %vm1445, %v1418, 0
      %1474 = vmatpush.bf16.msra.mxu0 0
      %1475 = vmatpush.bf16.msra.mxu0 0
      %1476 = vmatpush.bf16.msra.mxu0 0
      %1477 = vmatpush.bf16.msra.mxu0 0
      %1478 = vmatpush.bf16.msra.mxu0 0
      %1479 = vmatpush.bf16.msra.mxu0 0
      %1480 = vmatpush.bf16.msra.mxu0 0
      %1481 = vmatpush.bf16.msra.mxu0 %v1472
      %1482 = vmatmul.bf16.gmra.mxu0 %v1469
      %v1483 = vpop.f32.mrf.mxu0
      %v1484 = vadd.f32 %v1459, %v1483
      %v1485 = vpop.f32.mrf.mxu0
      %v1486 = vadd.f32 %v1461, %v1485
      %1487 = vdwg.mxu0
      %v1488 = vadd.s32 %v1398, 1
      %vm1489 = vcmp.ge.s32.totalorder %v1488, 0
      %vm1490 = vmand %vm1409, %vm1489
      %vm1491 = vcmp.lt.s32.totalorder %v1488, 8
      %vm1492 = vmand %vm1490, %vm1491
      %v1493 = vsel %vm1492, 1, 0
      %vm1494 = vcmp.eq.s32.totalorder %v1493, 1
      %1495 = vrot.lane.b32.xlu0 %v1405, 126
      %v1496 = vpop.permute.xlu0 %1495
      %v1498 = vsel %vm1494, %v1496, 0.0
      %v1499 = vpack.c.bf16 %v1498, %v1498
      %s1500 = scalar_lea.vmem %s3, 16
      %v1501 = vld [vmem:[%s1500] sm:$0xf]
      %v1502 = vld [vmem:[%s1500 + $0x4] sm:$0xf]
      %v1505 = vunpack.c.l.b16 %v1501
      %v1506 = vunpack.c.l.b16 %v1502
      %v1507 = vpack.c.b16 %v1506, %v1505
      %v1509 = vsel %vm1441, %v1507, 0
      %v1512 = vsel %vm1445, %v1499, 0
      %1514 = vmatpush.bf16.msra.mxu0 0
      %1515 = vmatpush.bf16.msra.mxu0 0
      %1516 = vmatpush.bf16.msra.mxu0 0
      %1517 = vmatpush.bf16.msra.mxu0 0
      %1518 = vmatpush.bf16.msra.mxu0 0
      %1519 = vmatpush.bf16.msra.mxu0 0
      %1520 = vmatpush.bf16.msra.mxu0 0
      %1521 = vmatpush.bf16.msra.mxu0 %v1512
      %1522 = vmatmul.bf16.gmra.mxu0 %v1509
      %v1523 = vpop.f32.mrf.mxu0
      %v1524 = vadd.f32 0.0, %v1523
      %v1525 = vpop.f32.mrf.mxu0
      %v1526 = vadd.f32 0.0, %v1525
      %1527 = vdwg.mxu0
      %v1528 = vadd.f32 %v1484, %v1524
      %v1529 = vadd.f32 %v1486, %v1526
      %vm1530 = vcmp.ge.s32.totalorder %v1397, 0
      %vm1531 = vcmp.lt.s32.totalorder %v1397, 8
      %vm1532 = vmand %vm1530, %vm1531
      %vm1533 = vmand %vm1532, %vm1411
      %vm1534 = vmand %vm1533, %vm1413
      %v1535 = vsel %vm1534, 1, 0
      %vm1536 = vcmp.eq.s32.totalorder %v1535, 1
      %1537 = vrot.lane.b32.xlu0 %v1405, 120
      %v1538 = vpop.permute.xlu0 %1537
      %v1540 = vsel %vm1536, %v1538, 0.0
      %v1541 = vpack.c.bf16 %v1540, %v1540
      %s1542 = scalar_lea.vmem %s3, 24
      %v1543 = vld [vmem:[%s1542] sm:$0xf]
      %v1544 = vld [vmem:[%s1542 + $0x4] sm:$0xf]
      %v1547 = vunpack.c.l.b16 %v1543
      %v1548 = vunpack.c.l.b16 %v1544
      %v1549 = vpack.c.b16 %v1548, %v1547
      %v1551 = vsel %vm1441, %v1549, 0
      %v1554 = vsel %vm1445, %v1541, 0
      %1556 = vmatpush.bf16.msra.mxu0 0
      %1557 = vmatpush.bf16.msra.mxu0 0
      %1558 = vmatpush.bf16.msra.mxu0 0
      %1559 = vmatpush.bf16.msra.mxu0 0
      %1560 = vmatpush.bf16.msra.mxu0 0
      %1561 = vmatpush.bf16.msra.mxu0 0
      %1562 = vmatpush.bf16.msra.mxu0 0
      %1563 = vmatpush.bf16.msra.mxu0 %v1554
      %1564 = vmatmul.bf16.gmra.mxu0 %v1551
      %v1565 = vpop.f32.mrf.mxu0
      %v1566 = vadd.f32 0.0, %v1565
      %v1567 = vpop.f32.mrf.mxu0
      %v1568 = vadd.f32 0.0, %v1567
      %1569 = vdwg.mxu0
      %v1570 = vadd.f32 %v1528, %v1566
      %v1571 = vadd.f32 %v1529, %v1568
      %vm1572 = vmand %vm1532, %vm1421
      %vm1573 = vmand %vm1572, %vm1423
      %v1574 = vsel %vm1573, 1, 0
      %vm1575 = vcmp.eq.s32.totalorder %v1574, 1
      %1576 = vrot.lane.b32.xlu0 %v1405, 119
      %v1577 = vpop.permute.xlu0 %1576
      %v1579 = vsel %vm1575, %v1577, 0.0
      %v1580 = vpack.c.bf16 %v1579, %v1579
      %s1581 = scalar_lea.vmem %s3, 32
      %v1582 = vld [vmem:[%s1581] sm:$0xf]
      %v1583 = vld [vmem:[%s1581 + $0x4] sm:$0xf]
      %v1586 = vunpack.c.l.b16 %v1582
      %v1587 = vunpack.c.l.b16 %v1583
      %v1588 = vpack.c.b16 %v1587, %v1586
      %v1590 = vsel %vm1441, %v1588, 0
      %v1593 = vsel %vm1445, %v1580, 0
      %1595 = vmatpush.bf16.msra.mxu0 0
      %1596 = vmatpush.bf16.msra.mxu0 0
      %1597 = vmatpush.bf16.msra.mxu0 0
      %1598 = vmatpush.bf16.msra.mxu0 0
      %1599 = vmatpush.bf16.msra.mxu0 0
      %1600 = vmatpush.bf16.msra.mxu0 0
      %1601 = vmatpush.bf16.msra.mxu0 0
      %1602 = vmatpush.bf16.msra.mxu0 %v1593
      %1603 = vmatmul.bf16.gmra.mxu0 %v1590
      %v1604 = vpop.f32.mrf.mxu0
      %v1605 = vadd.f32 0.0, %v1604
      %v1606 = vpop.f32.mrf.mxu0
      %v1607 = vadd.f32 0.0, %v1606
      %1608 = vdwg.mxu0
      %v1609 = vadd.f32 %v1570, %v1605
      %v1610 = vadd.f32 %v1571, %v1607
      %vm1611 = vmand %vm1532, %vm1489
      %vm1612 = vmand %vm1611, %vm1491
      %v1613 = vsel %vm1612, 1, 0
      %vm1614 = vcmp.eq.s32.totalorder %v1613, 1
      %1615 = vrot.lane.b32.xlu0 %v1405, 118
      %v1616 = vpop.permute.xlu0 %1615
      %v1618 = vsel %vm1614, %v1616, 0.0
      %v1619 = vpack.c.bf16 %v1618, %v1618
      %s1620 = scalar_lea.vmem %s3, 40
      %v1621 = vld [vmem:[%s1620] sm:$0xf]
      %v1622 = vld [vmem:[%s1620 + $0x4] sm:$0xf]
      %v1625 = vunpack.c.l.b16 %v1621
      %v1626 = vunpack.c.l.b16 %v1622
      %v1627 = vpack.c.b16 %v1626, %v1625
      %v1629 = vsel %vm1441, %v1627, 0
      %v1632 = vsel %vm1445, %v1619, 0
      %1634 = vmatpush.bf16.msra.mxu0 0
      %1635 = vmatpush.bf16.msra.mxu0 0
      %1636 = vmatpush.bf16.msra.mxu0 0
      %1637 = vmatpush.bf16.msra.mxu0 0
      %1638 = vmatpush.bf16.msra.mxu0 0
      %1639 = vmatpush.bf16.msra.mxu0 0
      %1640 = vmatpush.bf16.msra.mxu0 0
      %1641 = vmatpush.bf16.msra.mxu0 %v1632
      %1642 = vmatmul.bf16.gmra.mxu0 %v1629
      %v1643 = vpop.f32.mrf.mxu0
      %v1644 = vadd.f32 0.0, %v1643
      %v1645 = vpop.f32.mrf.mxu0
      %v1646 = vadd.f32 0.0, %v1645
      %1647 = vdwg.mxu0
      %v1648 = vadd.f32 %v1609, %v1644
      %v1649 = vadd.f32 %v1610, %v1646
      %v1650 = vadd.s32 %v1397, 1
      %vm1651 = vcmp.ge.s32.totalorder %v1650, 0
      %vm1652 = vcmp.lt.s32.totalorder %v1650, 8
      %vm1653 = vmand %vm1651, %vm1652
      %vm1654 = vmand %vm1653, %vm1411
      %vm1655 = vmand %vm1654, %vm1413
      %v1656 = vsel %vm1655, 1, 0
      %vm1657 = vcmp.eq.s32.totalorder %v1656, 1
      %1658 = vrot.lane.b32.xlu0 %v1405, 112
      %v1659 = vpop.permute.xlu0 %1658
      %v1661 = vsel %vm1657, %v1659, 0.0
      %v1662 = vpack.c.bf16 %v1661, %v1661
      %s1663 = scalar_lea.vmem %s3, 48
      %v1664 = vld [vmem:[%s1663] sm:$0xf]
      %v1665 = vld [vmem:[%s1663 + $0x4] sm:$0xf]
      %v1668 = vunpack.c.l.b16 %v1664
      %v1669 = vunpack.c.l.b16 %v1665
      %v1670 = vpack.c.b16 %v1669, %v1668
      %v1672 = vsel %vm1441, %v1670, 0
      %v1675 = vsel %vm1445, %v1662, 0
      %1677 = vmatpush.bf16.msra.mxu0 0
      %1678 = vmatpush.bf16.msra.mxu0 0
      %1679 = vmatpush.bf16.msra.mxu0 0
      %1680 = vmatpush.bf16.msra.mxu0 0
      %1681 = vmatpush.bf16.msra.mxu0 0
      %1682 = vmatpush.bf16.msra.mxu0 0
      %1683 = vmatpush.bf16.msra.mxu0 0
      %1684 = vmatpush.bf16.msra.mxu0 %v1675
      %1685 = vmatmul.bf16.gmra.mxu0 %v1672
      %v1686 = vpop.f32.mrf.mxu0
      %v1687 = vadd.f32 0.0, %v1686
      %v1688 = vpop.f32.mrf.mxu0
      %v1689 = vadd.f32 0.0, %v1688
      %1690 = vdwg.mxu0
      %v1691 = vadd.f32 %v1648, %v1687
      %v1692 = vadd.f32 %v1649, %v1689
      %vm1693 = vmand %vm1653, %vm1421
      %vm1694 = vmand %vm1693, %vm1423
      %v1695 = vsel %vm1694, 1, 0
      %vm1696 = vcmp.eq.s32.totalorder %v1695, 1
      %1697 = vrot.lane.b32.xlu0 %v1405, 111
      %v1698 = vpop.permute.xlu0 %1697
      %v1700 = vsel %vm1696, %v1698, 0.0
      %v1701 = vpack.c.bf16 %v1700, %v1700
      %s1702 = scalar_lea.vmem %s3, 56
      %v1703 = vld [vmem:[%s1702] sm:$0xf]
      %v1704 = vld [vmem:[%s1702 + $0x4] sm:$0xf]
      %v1707 = vunpack.c.l.b16 %v1703
      %v1708 = vunpack.c.l.b16 %v1704
      %v1709 = vpack.c.b16 %v1708, %v1707
      %v1711 = vsel %vm1441, %v1709, 0
      %v1714 = vsel %vm1445, %v1701, 0
      %1716 = vmatpush.bf16.msra.mxu0 0
      %1717 = vmatpush.bf16.msra.mxu0 0
      %1718 = vmatpush.bf16.msra.mxu0 0
      %1719 = vmatpush.bf16.msra.mxu0 0
      %1720 = vmatpush.bf16.msra.mxu0 0
      %1721 = vmatpush.bf16.msra.mxu0 0
      %1722 = vmatpush.bf16.msra.mxu0 0
      %1723 = vmatpush.bf16.msra.mxu0 %v1714
      %1724 = vmatmul.bf16.gmra.mxu0 %v1711
      %v1725 = vpop.f32.mrf.mxu0
      %v1726 = vadd.f32 0.0, %v1725
      %v1727 = vpop.f32.mrf.mxu0
      %v1728 = vadd.f32 0.0, %v1727
      %1729 = vdwg.mxu0
      %v1730 = vadd.f32 %v1691, %v1726
      %v1731 = vadd.f32 %v1692, %v1728
      %vm1732 = vmand %vm1653, %vm1489
      %vm1733 = vmand %vm1732, %vm1491
      %v1734 = vsel %vm1733, 1, 0
      %vm1735 = vcmp.eq.s32.totalorder %v1734, 1
      %1736 = vrot.lane.b32.xlu0 %v1405, 110
      %v1737 = vpop.permute.xlu0 %1736
      %v1739 = vsel %vm1735, %v1737, 0.0
      %v1740 = vpack.c.bf16 %v1739, %v1739
      %s1741 = scalar_lea.vmem %s3, 64
      %v1742 = vld [vmem:[%s1741] sm:$0xf]
      %v1743 = vld [vmem:[%s1741 + $0x4] sm:$0xf]
      %v1746 = vunpack.c.l.b16 %v1742
      %v1747 = vunpack.c.l.b16 %v1743
      %v1748 = vpack.c.b16 %v1747, %v1746
      %v1750 = vsel %vm1441, %v1748, 0
      %v1753 = vsel %vm1445, %v1740, 0
      %1755 = vmatpush.bf16.msra.mxu0 0
      %1756 = vmatpush.bf16.msra.mxu0 0
      %1757 = vmatpush.bf16.msra.mxu0 0
      %1758 = vmatpush.bf16.msra.mxu0 0
      %1759 = vmatpush.bf16.msra.mxu0 0
      %1760 = vmatpush.bf16.msra.mxu0 0
      %1761 = vmatpush.bf16.msra.mxu0 0
      %1762 = vmatpush.bf16.msra.mxu0 %v1753
      %1763 = vmatmul.bf16.gmra.mxu0 %v1750
      %v1764 = vpop.f32.mrf.mxu0
      %v1765 = vadd.f32 0.0, %v1764
      %v1766 = vpop.f32.mrf.mxu0
      %v1767 = vadd.f32 0.0, %v1766
      %1768 = vdwg.mxu0
      %v1769 = vadd.f32 %v1730, %v1765
      %v1770 = vadd.f32 %v1731, %v1767
      %v1771 = vld [vmem:[%s4] sm:$0xff]
      %v1772 = vld [vmem:[%s4 + $0x8] sm:$0xff]
      %1774 = vset.pattern.permute.xlu0 0
      %1775 = vperm.xlu0 %1774, %v1771
      %v1776 = vpop.permute.xlu0 %1775
      %1779 = vset.pattern.permute.xlu0 0
      %1780 = vperm.xlu0 %1779, %v1772
      %v1781 = vpop.permute.xlu0 %1780
      %v1783 = vadd.f32 %v1769, %v1776
      %v1784 = vadd.f32 %v1770, %v1781
      %v1785 = vmax.f32 %v1783, 0.0
      %v1786 = vmax.f32 %v1784, 0.0
      %v1787 = vld [vmem:[%s19] sm:$0xff]
      %v1788 = vld [vmem:[%s19 + $0x8] sm:$0xff]
      %v1789 = vld [vmem:[%s19 + $0x10] sm:$0xff]
      %v1790 = vld [vmem:[%s19 + $0x18] sm:$0xff]
      %v1791 = vld [vmem:[%s19 + $0x20] sm:$0xff]
      %v1792 = vld [vmem:[%s19 + $0x28] sm:$0xff]
      %v1793 = vld [vmem:[%s19 + $0x30] sm:$0xff]
      %v1794 = vld [vmem:[%s19 + $0x38] sm:$0xff]
      %vm1795 = vcmask 523264
      %v1797 = vsel %vm1795, %v1785, 0
      %v1800 = vsel %vm1795, %v1786, 0
      %1802 = vmatpush.msra.mxu0 0.0
      %1803 = vmatpush.msra.mxu0 0.0
      %1804 = vmatpush.msra.mxu0 0.0
      %1805 = vmatpush.msra.mxu0 0.0
      %1806 = vmatpush.msra.mxu0 0.0
      %1807 = vmatpush.msra.mxu0 0.0
      %1808 = vmatpush.msra.mxu0 0.0
      %1809 = vmatpush.msra.mxu0 0.0
      %1810 = vmatpush.msra.mxu0 %v1794
      %1811 = vmatpush.msra.mxu0 %v1793
      %1812 = vmatpush.msra.mxu0 %v1792
      %1813 = vmatpush.msra.mxu0 %v1791
      %1814 = vmatpush.msra.mxu0 %v1790
      %1815 = vmatpush.msra.mxu0 %v1789
      %1816 = vmatpush.msra.mxu0 %v1788
      %1817 = vmatpush.msra.mxu0 %v1787
      %1818 = vmatmul.f32.gmra.mxu0 %v1797
      %v1819 = vpop.f32.mrf.mxu0
      %v1820 = vadd.f32 0.0, %v1819
      %1821 = vmatmul.f32.gmra.mxu0 %v1800
      %v1822 = vpop.f32.mrf.mxu0
      %v1823 = vadd.f32 0.0, %v1822
      %1824 = vdwg.mxu0
      %v1825 = vshra.s32 %v700, 2
      %v1826 = vand.u32 %v700, 3
      %1829 = vrot.lane.b32.xlu0 %v1820, 5
      %v1830 = vpop.permute.xlu0 %1829
      %1831 = vrot.lane.b32.xlu0 %v1823, 5
      %v1832 = vpop.permute.xlu0 %1831
      %vm1835 = vcmask 171048
      %1836 = vst.msk [vmem:[#allocation2] sm:$0xff] %vm1835, %v1830
      %1837 = vst.msk [vmem:[#allocation2 + $0x18] sm:$0xff] %vm1835, %v1832
      %v1838 = vld [vmem:[#allocation2] sm:$0xff]
      %v1839 = vld [vmem:[#allocation2 + $0x18] sm:$0xff]
      %v1840 = vadd.s32 %v1825, 4294967295
      %vm1841 = vcmp.ge.s32.totalorder %v1840, 0
      %vm1842 = vcmp.lt.s32.totalorder %v1840, 4
      %vm1843 = vmand %vm1841, %vm1842
      %v1844 = vadd.s32 %v1826, 4294967295
      %vm1845 = vcmp.ge.s32.totalorder %v1844, 0
      %vm1846 = vmand %vm1843, %vm1845
      %vm1847 = vcmp.lt.s32.totalorder %v1844, 4
      %vm1848 = vmand %vm1846, %vm1847
      %v1849 = vsel %vm1848, 1, 0
      %vm1850 = vcmp.eq.s32.totalorder %v1849, 1
      %v1851 = vsel %vm1850, %v1838, 0.0
      %v1852 = vsel %vm1850, %v1839, 0.0
      %v1853 = vpack.c.bf16 %v1852, %v1851
      %v1854 = vld [vmem:[%s5] sm:$0xf]
      %v1855 = vld [vmem:[%s5 + $0x4] sm:$0xf]
      %v1856 = vld [vmem:[%s5 + $0x8] sm:$0xf]
      %v1857 = vld [vmem:[%s5 + $0xc] sm:$0xf]
      %vm1858 = vcmp.ge.s32.totalorder %v1826, 0
      %vm1859 = vmand %vm1843, %vm1858
      %vm1860 = vcmp.lt.s32.totalorder %v1826, 4
      %vm1861 = vmand %vm1859, %vm1860
      %v1862 = vsel %vm1861, 1, 0
      %vm1863 = vcmp.eq.s32.totalorder %v1862, 1
      %1866 = vrot.lane.b32.xlu0 %v1838, 127
      %v1867 = vpop.permute.xlu0 %1866
      %1868 = vrot.lane.b32.xlu0 %v1839, 127
      %v1869 = vpop.permute.xlu0 %1868
      %v1872 = vsel %vm1863, %v1867, 0.0
      %v1873 = vsel %vm1863, %v1869, 0.0
      %v1874 = vpack.c.bf16 %v1873, %v1872
      %s1875 = scalar_lea.vmem %s5, 16
      %v1876 = vld [vmem:[%s1875] sm:$0xf]
      %v1877 = vld [vmem:[%s1875 + $0x4] sm:$0xf]
      %v1878 = vld [vmem:[%s1875 + $0x8] sm:$0xf]
      %v1879 = vld [vmem:[%s1875 + $0xc] sm:$0xf]
      %v1884 = vunpack.c.l.b16 %v1876
      %v1885 = vunpack.c.l.b16 %v1877
      %v1886 = vunpack.c.l.b16 %v1878
      %v1887 = vunpack.c.l.b16 %v1879
      %v1888 = vpack.c.b16 %v1885, %v1884
      %v1889 = vpack.c.b16 %v1887, %v1886
      %vm1890 = vcmask 130048
      %v1892 = vsel %vm1890, %v1888, 0
      %v1895 = vsel %vm1890, %v1889, 0
      %1897 = vmatpush.bf16.msra.mxu0 0
      %1898 = vmatpush.bf16.msra.mxu0 0
      %1899 = vmatpush.bf16.msra.mxu0 0
      %1900 = vmatpush.bf16.msra.mxu0 0
      %1901 = vmatpush.bf16.msra.mxu0 0
      %1902 = vmatpush.bf16.msra.mxu0 0
      %1903 = vmatpush.bf16.msra.mxu0 0
      %1904 = vmatpush.bf16.msra.mxu0 %v1874
      %1905 = vmatmul.bf16.gmra.mxu0 %v1892
      %v1906 = vpop.f32.mrf.mxu0
      %v1907 = vadd.f32 0.0, %v1906
      %v1908 = vpop.f32.mrf.mxu0
      %v1909 = vadd.f32 0.0, %v1908
      %1910 = vmatmul.bf16.gmra.mxu0 %v1895
      %v1911 = vpop.f32.mrf.mxu0
      %v1912 = vadd.f32 0.0, %v1911
      %v1913 = vpop.f32.mrf.mxu0
      %v1914 = vadd.f32 0.0, %v1913
      %1915 = vdwg.mxu0
      %v1920 = vunpack.c.l.b16 %v1854
      %v1921 = vunpack.c.l.b16 %v1855
      %v1922 = vunpack.c.l.b16 %v1856
      %v1923 = vunpack.c.l.b16 %v1857
      %v1924 = vpack.c.b16 %v1921, %v1920
      %v1925 = vpack.c.b16 %v1923, %v1922
      %v1927 = vsel %vm1890, %v1924, 0
      %v1930 = vsel %vm1890, %v1925, 0
      %1932 = vmatpush.bf16.msra.mxu0 0
      %1933 = vmatpush.bf16.msra.mxu0 0
      %1934 = vmatpush.bf16.msra.mxu0 0
      %1935 = vmatpush.bf16.msra.mxu0 0
      %1936 = vmatpush.bf16.msra.mxu0 0
      %1937 = vmatpush.bf16.msra.mxu0 0
      %1938 = vmatpush.bf16.msra.mxu0 0
      %1939 = vmatpush.bf16.msra.mxu0 %v1853
      %1940 = vmatmul.bf16.gmra.mxu0 %v1927
      %v1941 = vpop.f32.mrf.mxu0
      %v1942 = vadd.f32 %v1907, %v1941
      %v1943 = vpop.f32.mrf.mxu0
      %v1944 = vadd.f32 %v1909, %v1943
      %1945 = vmatmul.bf16.gmra.mxu0 %v1930
      %v1946 = vpop.f32.mrf.mxu0
      %v1947 = vadd.f32 %v1912, %v1946
      %v1948 = vpop.f32.mrf.mxu0
      %v1949 = vadd.f32 %v1914, %v1948
      %1950 = vdwg.mxu0
      %v1951 = vadd.s32 %v1826, 1
      %vm1952 = vcmp.ge.s32.totalorder %v1951, 0
      %vm1953 = vmand %vm1843, %vm1952
      %vm1954 = vcmp.lt.s32.totalorder %v1951, 4
      %vm1955 = vmand %vm1953, %vm1954
      %v1956 = vsel %vm1955, 1, 0
      %vm1957 = vcmp.eq.s32.totalorder %v1956, 1
      %1958 = vrot.lane.b32.xlu0 %v1838, 126
      %v1959 = vpop.permute.xlu0 %1958
      %1960 = vrot.lane.b32.xlu0 %v1839, 126
      %v1961 = vpop.permute.xlu0 %1960
      %v1964 = vsel %vm1957, %v1959, 0.0
      %v1965 = vsel %vm1957, %v1961, 0.0
      %v1966 = vpack.c.bf16 %v1965, %v1964
      %s1967 = scalar_lea.vmem %s5, 32
      %v1968 = vld [vmem:[%s1967] sm:$0xf]
      %v1969 = vld [vmem:[%s1967 + $0x4] sm:$0xf]
      %v1970 = vld [vmem:[%s1967 + $0x8] sm:$0xf]
      %v1971 = vld [vmem:[%s1967 + $0xc] sm:$0xf]
      %v1976 = vunpack.c.l.b16 %v1968
      %v1977 = vunpack.c.l.b16 %v1969
      %v1978 = vunpack.c.l.b16 %v1970
      %v1979 = vunpack.c.l.b16 %v1971
      %v1980 = vpack.c.b16 %v1977, %v1976
      %v1981 = vpack.c.b16 %v1979, %v1978
      %v1983 = vsel %vm1890, %v1980, 0
      %v1986 = vsel %vm1890, %v1981, 0
      %1988 = vmatpush.bf16.msra.mxu0 0
      %1989 = vmatpush.bf16.msra.mxu0 0
      %1990 = vmatpush.bf16.msra.mxu0 0
      %1991 = vmatpush.bf16.msra.mxu0 0
      %1992 = vmatpush.bf16.msra.mxu0 0
      %1993 = vmatpush.bf16.msra.mxu0 0
      %1994 = vmatpush.bf16.msra.mxu0 0
      %1995 = vmatpush.bf16.msra.mxu0 %v1966
      %1996 = vmatmul.bf16.gmra.mxu0 %v1983
      %v1997 = vpop.f32.mrf.mxu0
      %v1998 = vadd.f32 0.0, %v1997
      %v1999 = vpop.f32.mrf.mxu0
      %v2000 = vadd.f32 0.0, %v1999
      %2001 = vmatmul.bf16.gmra.mxu0 %v1986
      %v2002 = vpop.f32.mrf.mxu0
      %v2003 = vadd.f32 0.0, %v2002
      %v2004 = vpop.f32.mrf.mxu0
      %v2005 = vadd.f32 0.0, %v2004
      %2006 = vdwg.mxu0
      %v2007 = vadd.f32 %v1942, %v1998
      %v2008 = vadd.f32 %v1944, %v2000
      %v2009 = vadd.f32 %v1947, %v2003
      %v2010 = vadd.f32 %v1949, %v2005
      %vm2011 = vcmp.ge.s32.totalorder %v1825, 0
      %vm2012 = vcmp.lt.s32.totalorder %v1825, 4
      %vm2013 = vmand %vm2011, %vm2012
      %vm2014 = vmand %vm2013, %vm1845
      %vm2015 = vmand %vm2014, %vm1847
      %v2016 = vsel %vm2015, 1, 0
      %vm2017 = vcmp.eq.s32.totalorder %v2016, 1
      %2018 = vrot.lane.b32.xlu0 %v1838, 124
      %v2019 = vpop.permute.xlu0 %2018
      %2020 = vrot.lane.b32.xlu0 %v1839, 124
      %v2021 = vpop.permute.xlu0 %2020
      %v2024 = vsel %vm2017, %v2019, 0.0
      %v2025 = vsel %vm2017, %v2021, 0.0
      %v2026 = vpack.c.bf16 %v2025, %v2024
      %s2027 = scalar_lea.vmem %s5, 48
      %v2028 = vld [vmem:[%s2027] sm:$0xf]
      %v2029 = vld [vmem:[%s2027 + $0x4] sm:$0xf]
      %v2030 = vld [vmem:[%s2027 + $0x8] sm:$0xf]
      %v2031 = vld [vmem:[%s2027 + $0xc] sm:$0xf]
      %v2036 = vunpack.c.l.b16 %v2028
      %v2037 = vunpack.c.l.b16 %v2029
      %v2038 = vunpack.c.l.b16 %v2030
      %v2039 = vunpack.c.l.b16 %v2031
      %v2040 = vpack.c.b16 %v2037, %v2036
      %v2041 = vpack.c.b16 %v2039, %v2038
      %v2043 = vsel %vm1890, %v2040, 0
      %v2046 = vsel %vm1890, %v2041, 0
      %2048 = vmatpush.bf16.msra.mxu0 0
      %2049 = vmatpush.bf16.msra.mxu0 0
      %2050 = vmatpush.bf16.msra.mxu0 0
      %2051 = vmatpush.bf16.msra.mxu0 0
      %2052 = vmatpush.bf16.msra.mxu0 0
      %2053 = vmatpush.bf16.msra.mxu0 0
      %2054 = vmatpush.bf16.msra.mxu0 0
      %2055 = vmatpush.bf16.msra.mxu0 %v2026
      %2056 = vmatmul.bf16.gmra.mxu0 %v2043
      %v2057 = vpop.f32.mrf.mxu0
      %v2058 = vadd.f32 0.0, %v2057
      %v2059 = vpop.f32.mrf.mxu0
      %v2060 = vadd.f32 0.0, %v2059
      %2061 = vmatmul.bf16.gmra.mxu0 %v2046
      %v2062 = vpop.f32.mrf.mxu0
      %v2063 = vadd.f32 0.0, %v2062
      %v2064 = vpop.f32.mrf.mxu0
      %v2065 = vadd.f32 0.0, %v2064
      %2066 = vdwg.mxu0
      %v2067 = vadd.f32 %v2007, %v2058
      %v2068 = vadd.f32 %v2008, %v2060
      %v2069 = vadd.f32 %v2009, %v2063
      %v2070 = vadd.f32 %v2010, %v2065
      %vm2071 = vmand %vm2013, %vm1858
      %vm2072 = vmand %vm2071, %vm1860
      %v2073 = vsel %vm2072, 1, 0
      %vm2074 = vcmp.eq.s32.totalorder %v2073, 1
      %2075 = vrot.lane.b32.xlu0 %v1838, 123
      %v2076 = vpop.permute.xlu0 %2075
      %2077 = vrot.lane.b32.xlu0 %v1839, 123
      %v2078 = vpop.permute.xlu0 %2077
      %v2081 = vsel %vm2074, %v2076, 0.0
      %v2082 = vsel %vm2074, %v2078, 0.0
      %v2083 = vpack.c.bf16 %v2082, %v2081
      %s2084 = scalar_lea.vmem %s5, 64
      %v2085 = vld [vmem:[%s2084] sm:$0xf]
      %v2086 = vld [vmem:[%s2084 + $0x4] sm:$0xf]
      %v2087 = vld [vmem:[%s2084 + $0x8] sm:$0xf]
      %v2088 = vld [vmem:[%s2084 + $0xc] sm:$0xf]
      %v2093 = vunpack.c.l.b16 %v2085
      %v2094 = vunpack.c.l.b16 %v2086
      %v2095 = vunpack.c.l.b16 %v2087
      %v2096 = vunpack.c.l.b16 %v2088
      %v2097 = vpack.c.b16 %v2094, %v2093
      %v2098 = vpack.c.b16 %v2096, %v2095
      %v2100 = vsel %vm1890, %v2097, 0
      %v2103 = vsel %vm1890, %v2098, 0
      %2105 = vmatpush.bf16.msra.mxu0 0
      %2106 = vmatpush.bf16.msra.mxu0 0
      %2107 = vmatpush.bf16.msra.mxu0 0
      %2108 = vmatpush.bf16.msra.mxu0 0
      %2109 = vmatpush.bf16.msra.mxu0 0
      %2110 = vmatpush.bf16.msra.mxu0 0
      %2111 = vmatpush.bf16.msra.mxu0 0
      %2112 = vmatpush.bf16.msra.mxu0 %v2083
      %2113 = vmatmul.bf16.gmra.mxu0 %v2100
      %v2114 = vpop.f32.mrf.mxu0
      %v2115 = vadd.f32 0.0, %v2114
      %v2116 = vpop.f32.mrf.mxu0
      %v2117 = vadd.f32 0.0, %v2116
      %2118 = vmatmul.bf16.gmra.mxu0 %v2103
      %v2119 = vpop.f32.mrf.mxu0
      %v2120 = vadd.f32 0.0, %v2119
      %v2121 = vpop.f32.mrf.mxu0
      %v2122 = vadd.f32 0.0, %v2121
      %2123 = vdwg.mxu0
      %v2124 = vadd.f32 %v2067, %v2115
      %v2125 = vadd.f32 %v2068, %v2117
      %v2126 = vadd.f32 %v2069, %v2120
      %v2127 = vadd.f32 %v2070, %v2122
      %vm2128 = vmand %vm2013, %vm1952
      %vm2129 = vmand %vm2128, %vm1954
      %v2130 = vsel %vm2129, 1, 0
      %vm2131 = vcmp.eq.s32.totalorder %v2130, 1
      %2132 = vrot.lane.b32.xlu0 %v1838, 122
      %v2133 = vpop.permute.xlu0 %2132
      %2134 = vrot.lane.b32.xlu0 %v1839, 122
      %v2135 = vpop.permute.xlu0 %2134
      %v2138 = vsel %vm2131, %v2133, 0.0
      %v2139 = vsel %vm2131, %v2135, 0.0
      %v2140 = vpack.c.bf16 %v2139, %v2138
      %s2141 = scalar_lea.vmem %s5, 80
      %v2142 = vld [vmem:[%s2141] sm:$0xf]
      %v2143 = vld [vmem:[%s2141 + $0x4] sm:$0xf]
      %v2144 = vld [vmem:[%s2141 + $0x8] sm:$0xf]
      %v2145 = vld [vmem:[%s2141 + $0xc] sm:$0xf]
      %v2150 = vunpack.c.l.b16 %v2142
      %v2151 = vunpack.c.l.b16 %v2143
      %v2152 = vunpack.c.l.b16 %v2144
      %v2153 = vunpack.c.l.b16 %v2145
      %v2154 = vpack.c.b16 %v2151, %v2150
      %v2155 = vpack.c.b16 %v2153, %v2152
      %v2157 = vsel %vm1890, %v2154, 0
      %v2160 = vsel %vm1890, %v2155, 0
      %2162 = vmatpush.bf16.msra.mxu0 0
      %2163 = vmatpush.bf16.msra.mxu0 0
      %2164 = vmatpush.bf16.msra.mxu0 0
      %2165 = vmatpush.bf16.msra.mxu0 0
      %2166 = vmatpush.bf16.msra.mxu0 0
      %2167 = vmatpush.bf16.msra.mxu0 0
      %2168 = vmatpush.bf16.msra.mxu0 0
      %2169 = vmatpush.bf16.msra.mxu0 %v2140
      %2170 = vmatmul.bf16.gmra.mxu0 %v2157
      %v2171 = vpop.f32.mrf.mxu0
      %v2172 = vadd.f32 0.0, %v2171
      %v2173 = vpop.f32.mrf.mxu0
      %v2174 = vadd.f32 0.0, %v2173
      %2175 = vmatmul.bf16.gmra.mxu0 %v2160
      %v2176 = vpop.f32.mrf.mxu0
      %v2177 = vadd.f32 0.0, %v2176
      %v2178 = vpop.f32.mrf.mxu0
      %v2179 = vadd.f32 0.0, %v2178
      %2180 = vdwg.mxu0
      %v2181 = vadd.f32 %v2124, %v2172
      %v2182 = vadd.f32 %v2125, %v2174
      %v2183 = vadd.f32 %v2126, %v2177
      %v2184 = vadd.f32 %v2127, %v2179
      %v2185 = vadd.s32 %v1825, 1
      %vm2186 = vcmp.ge.s32.totalorder %v2185, 0
      %vm2187 = vcmp.lt.s32.totalorder %v2185, 4
      %vm2188 = vmand %vm2186, %vm2187
      %vm2189 = vmand %vm2188, %vm1845
      %vm2190 = vmand %vm2189, %vm1847
      %v2191 = vsel %vm2190, 1, 0
      %vm2192 = vcmp.eq.s32.totalorder %v2191, 1
      %2193 = vrot.lane.b32.xlu0 %v1838, 120
      %v2194 = vpop.permute.xlu0 %2193
      %2195 = vrot.lane.b32.xlu0 %v1839, 120
      %v2196 = vpop.permute.xlu0 %2195
      %v2199 = vsel %vm2192, %v2194, 0.0
      %v2200 = vsel %vm2192, %v2196, 0.0
      %v2201 = vpack.c.bf16 %v2200, %v2199
      %s2202 = scalar_lea.vmem %s5, 96
      %v2203 = vld [vmem:[%s2202] sm:$0xf]
      %v2204 = vld [vmem:[%s2202 + $0x4] sm:$0xf]
      %v2205 = vld [vmem:[%s2202 + $0x8] sm:$0xf]
      %v2206 = vld [vmem:[%s2202 + $0xc] sm:$0xf]
      %v2211 = vunpack.c.l.b16 %v2203
      %v2212 = vunpack.c.l.b16 %v2204
      %v2213 = vunpack.c.l.b16 %v2205
      %v2214 = vunpack.c.l.b16 %v2206
      %v2215 = vpack.c.b16 %v2212, %v2211
      %v2216 = vpack.c.b16 %v2214, %v2213
      %v2218 = vsel %vm1890, %v2215, 0
      %v2221 = vsel %vm1890, %v2216, 0
      %2223 = vmatpush.bf16.msra.mxu0 0
      %2224 = vmatpush.bf16.msra.mxu0 0
      %2225 = vmatpush.bf16.msra.mxu0 0
      %2226 = vmatpush.bf16.msra.mxu0 0
      %2227 = vmatpush.bf16.msra.mxu0 0
      %2228 = vmatpush.bf16.msra.mxu0 0
      %2229 = vmatpush.bf16.msra.mxu0 0
      %2230 = vmatpush.bf16.msra.mxu0 %v2201
      %2231 = vmatmul.bf16.gmra.mxu0 %v2218
      %v2232 = vpop.f32.mrf.mxu0
      %v2233 = vadd.f32 0.0, %v2232
      %v2234 = vpop.f32.mrf.mxu0
      %v2235 = vadd.f32 0.0, %v2234
      %2236 = vmatmul.bf16.gmra.mxu0 %v2221
      %v2237 = vpop.f32.mrf.mxu0
      %v2238 = vadd.f32 0.0, %v2237
      %v2239 = vpop.f32.mrf.mxu0
      %v2240 = vadd.f32 0.0, %v2239
      %2241 = vdwg.mxu0
      %v2242 = vadd.f32 %v2181, %v2233
      %v2243 = vadd.f32 %v2182, %v2235
      %v2244 = vadd.f32 %v2183, %v2238
      %v2245 = vadd.f32 %v2184, %v2240
      %vm2246 = vmand %vm2188, %vm1858
      %vm2247 = vmand %vm2246, %vm1860
      %v2248 = vsel %vm2247, 1, 0
      %vm2249 = vcmp.eq.s32.totalorder %v2248, 1
      %2250 = vrot.lane.b32.xlu0 %v1838, 119
      %v2251 = vpop.permute.xlu0 %2250
      %2252 = vrot.lane.b32.xlu0 %v1839, 119
      %v2253 = vpop.permute.xlu0 %2252
      %v2256 = vsel %vm2249, %v2251, 0.0
      %v2257 = vsel %vm2249, %v2253, 0.0
      %v2258 = vpack.c.bf16 %v2257, %v2256
      %s2259 = scalar_lea.vmem %s5, 112
      %v2260 = vld [vmem:[%s2259] sm:$0xf]
      %v2261 = vld [vmem:[%s2259 + $0x4] sm:$0xf]
      %v2262 = vld [vmem:[%s2259 + $0x8] sm:$0xf]
      %v2263 = vld [vmem:[%s2259 + $0xc] sm:$0xf]
      %v2268 = vunpack.c.l.b16 %v2260
      %v2269 = vunpack.c.l.b16 %v2261
      %v2270 = vunpack.c.l.b16 %v2262
      %v2271 = vunpack.c.l.b16 %v2263
      %v2272 = vpack.c.b16 %v2269, %v2268
      %v2273 = vpack.c.b16 %v2271, %v2270
      %v2275 = vsel %vm1890, %v2272, 0
      %v2278 = vsel %vm1890, %v2273, 0
      %2280 = vmatpush.bf16.msra.mxu0 0
      %2281 = vmatpush.bf16.msra.mxu0 0
      %2282 = vmatpush.bf16.msra.mxu0 0
      %2283 = vmatpush.bf16.msra.mxu0 0
      %2284 = vmatpush.bf16.msra.mxu0 0
      %2285 = vmatpush.bf16.msra.mxu0 0
      %2286 = vmatpush.bf16.msra.mxu0 0
      %2287 = vmatpush.bf16.msra.mxu0 %v2258
      %2288 = vmatmul.bf16.gmra.mxu0 %v2275
      %v2289 = vpop.f32.mrf.mxu0
      %v2290 = vadd.f32 0.0, %v2289
      %v2291 = vpop.f32.mrf.mxu0
      %v2292 = vadd.f32 0.0, %v2291
      %2293 = vmatmul.bf16.gmra.mxu0 %v2278
      %v2294 = vpop.f32.mrf.mxu0
      %v2295 = vadd.f32 0.0, %v2294
      %v2296 = vpop.f32.mrf.mxu0
      %v2297 = vadd.f32 0.0, %v2296
      %2298 = vdwg.mxu0
      %v2299 = vadd.f32 %v2242, %v2290
      %v2300 = vadd.f32 %v2243, %v2292
      %v2301 = vadd.f32 %v2244, %v2295
      %v2302 = vadd.f32 %v2245, %v2297
      %vm2303 = vmand %vm2188, %vm1952
      %vm2304 = vmand %vm2303, %vm1954
      %v2305 = vsel %vm2304, 1, 0
      %vm2306 = vcmp.eq.s32.totalorder %v2305, 1
      %2307 = vrot.lane.b32.xlu0 %v1838, 118
      %v2308 = vpop.permute.xlu0 %2307
      %2309 = vrot.lane.b32.xlu0 %v1839, 118
      %v2310 = vpop.permute.xlu0 %2309
      %v2313 = vsel %vm2306, %v2308, 0.0
      %v2314 = vsel %vm2306, %v2310, 0.0
      %v2315 = vpack.c.bf16 %v2314, %v2313
      %s2316 = scalar_lea.vmem %s5, 128
      %v2317 = vld [vmem:[%s2316] sm:$0xf]
      %v2318 = vld [vmem:[%s2316 + $0x4] sm:$0xf]
      %v2319 = vld [vmem:[%s2316 + $0x8] sm:$0xf]
      %v2320 = vld [vmem:[%s2316 + $0xc] sm:$0xf]
      %v2325 = vunpack.c.l.b16 %v2317
      %v2326 = vunpack.c.l.b16 %v2318
      %v2327 = vunpack.c.l.b16 %v2319
      %v2328 = vunpack.c.l.b16 %v2320
      %v2329 = vpack.c.b16 %v2326, %v2325
      %v2330 = vpack.c.b16 %v2328, %v2327
      %v2332 = vsel %vm1890, %v2329, 0
      %v2335 = vsel %vm1890, %v2330, 0
      %2337 = vmatpush.bf16.msra.mxu0 0
      %2338 = vmatpush.bf16.msra.mxu0 0
      %2339 = vmatpush.bf16.msra.mxu0 0
      %2340 = vmatpush.bf16.msra.mxu0 0
      %2341 = vmatpush.bf16.msra.mxu0 0
      %2342 = vmatpush.bf16.msra.mxu0 0
      %2343 = vmatpush.bf16.msra.mxu0 0
      %2344 = vmatpush.bf16.msra.mxu0 %v2315
      %2345 = vmatmul.bf16.gmra.mxu0 %v2332
      %v2346 = vpop.f32.mrf.mxu0
      %v2347 = vadd.f32 0.0, %v2346
      %v2348 = vpop.f32.mrf.mxu0
      %v2349 = vadd.f32 0.0, %v2348
      %2350 = vmatmul.bf16.gmra.mxu0 %v2335
      %v2351 = vpop.f32.mrf.mxu0
      %v2352 = vadd.f32 0.0, %v2351
      %v2353 = vpop.f32.mrf.mxu0
      %v2354 = vadd.f32 0.0, %v2353
      %2355 = vdwg.mxu0
      %v2356 = vadd.f32 %v2299, %v2347
      %v2357 = vadd.f32 %v2300, %v2349
      %v2358 = vadd.f32 %v2301, %v2352
      %v2359 = vadd.f32 %v2302, %v2354
      %v2360 = vld [vmem:[%s6] sm:$0xff]
      %v2361 = vld [vmem:[%s6 + $0x8] sm:$0xff]
      %v2362 = vld [vmem:[%s6 + $0x10] sm:$0xff]
      %v2363 = vld [vmem:[%s6 + $0x18] sm:$0xff]
      %2365 = vset.pattern.permute.xlu0 0
      %2366 = vperm.xlu0 %2365, %v2360
      %v2367 = vpop.permute.xlu0 %2366
      %2370 = vset.pattern.permute.xlu0 0
      %2371 = vperm.xlu0 %2370, %v2361
      %v2372 = vpop.permute.xlu0 %2371
      %2375 = vset.pattern.permute.xlu0 0
      %2376 = vperm.xlu0 %2375, %v2362
      %v2377 = vpop.permute.xlu0 %2376
      %2380 = vset.pattern.permute.xlu0 0
      %2381 = vperm.xlu0 %2380, %v2363
      %v2382 = vpop.permute.xlu0 %2381
      %v2384 = vadd.f32 %v2356, %v2367
      %v2385 = vadd.f32 %v2357, %v2372
      %v2386 = vadd.f32 %v2358, %v2377
      %v2387 = vadd.f32 %v2359, %v2382
      %v2388 = vmax.f32 %v2384, 0.0
      %v2389 = vmax.f32 %v2385, 0.0
      %v2390 = vmax.f32 %v2386, 0.0
      %v2391 = vmax.f32 %v2387, 0.0
      %2396 = vrot.lane.b32.xlu0 %v2388, 5
      %v2397 = vpop.permute.xlu0 %2396
      %2398 = vrot.lane.b32.xlu0 %v2389, 5
      %v2399 = vpop.permute.xlu0 %2398
      %2400 = vrot.lane.b32.xlu0 %v2390, 5
      %v2401 = vpop.permute.xlu0 %2400
      %2402 = vrot.lane.b32.xlu0 %v2391, 5
      %v2403 = vpop.permute.xlu0 %2402
      %2408 = vst.msk [vmem:[#allocation2] sm:$0xff] %vm1835, %v2397
      %2409 = vst.msk [vmem:[#allocation2 + $0x18] sm:$0xff] %vm1835, %v2399
      %2410 = vst.msk [vmem:[#allocation2 + $0x30] sm:$0xff] %vm1835, %v2401
      %2411 = vst.msk [vmem:[#allocation2 + $0x48] sm:$0xff] %vm1835, %v2403
      %v2412 = vld [vmem:[#allocation2] sm:$0xff]
      %v2413 = vld [vmem:[#allocation2 + $0x18] sm:$0xff]
      %v2414 = vld [vmem:[#allocation2 + $0x30] sm:$0xff]
      %v2415 = vld [vmem:[#allocation2 + $0x48] sm:$0xff]
      %v2416 = vsel %vm1850, %v2412, 0.0
      %v2417 = vsel %vm1850, %v2413, 0.0
      %v2418 = vsel %vm1850, %v2414, 0.0
      %v2419 = vsel %vm1850, %v2415, 0.0
      %v2420 = vpack.c.bf16 %v2417, %v2416
      %v2421 = vpack.c.bf16 %v2419, %v2418
      %v2422 = vld [vmem:[%s7] sm:$0xf]
      %v2423 = vld [vmem:[%s7 + $0x4] sm:$0xf]
      %2428 = vrot.lane.b32.xlu0 %v2412, 127
      %v2429 = vpop.permute.xlu0 %2428
      %2430 = vrot.lane.b32.xlu0 %v2413, 127
      %v2431 = vpop.permute.xlu0 %2430
      %2432 = vrot.lane.b32.xlu0 %v2414, 127
      %v2433 = vpop.permute.xlu0 %2432
      %2434 = vrot.lane.b32.xlu0 %v2415, 127
      %v2435 = vpop.permute.xlu0 %2434
      %v2440 = vsel %vm1863, %v2429, 0.0
      %v2441 = vsel %vm1863, %v2431, 0.0
      %v2442 = vsel %vm1863, %v2433, 0.0
      %v2443 = vsel %vm1863, %v2435, 0.0
      %v2444 = vpack.c.bf16 %v2441, %v2440
      %v2445 = vpack.c.bf16 %v2443, %v2442
      %s2446 = scalar_lea.vmem %s7, 8
      %v2447 = vld [vmem:[%s2446] sm:$0xf]
      %v2448 = vld [vmem:[%s2446 + $0x4] sm:$0xf]
      %v2451 = vunpack.c.l.b16 %v2447
      %v2452 = vunpack.c.l.b16 %v2448
      %v2453 = vpack.c.b16 %v2452, %v2451
      %vm2454 = vcmask 261120
      %v2456 = vsel %vm2454, %v2453, 0
      %2458 = vmatpush.bf16.msra.mxu0 0
      %2459 = vmatpush.bf16.msra.mxu0 0
      %2460 = vmatpush.bf16.msra.mxu0 0
      %2461 = vmatpush.bf16.msra.mxu0 0
      %2462 = vmatpush.bf16.msra.mxu0 0
      %2463 = vmatpush.bf16.msra.mxu0 0
      %2464 = vmatpush.bf16.msra.mxu0 %v2445
      %2465 = vmatpush.bf16.msra.mxu0 %v2444
      %2466 = vmatmul.bf16.gmra.mxu0 %v2456
      %v2467 = vpop.f32.mrf.mxu0
      %v2468 = vadd.f32 0.0, %v2467
      %v2469 = vpop.f32.mrf.mxu0
      %v2470 = vadd.f32 0.0, %v2469
      %2471 = vdwg.mxu0
      %v2474 = vunpack.c.l.b16 %v2422
      %v2475 = vunpack.c.l.b16 %v2423
      %v2476 = vpack.c.b16 %v2475, %v2474
      %v2478 = vsel %vm2454, %v2476, 0
      %2480 = vmatpush.bf16.msra.mxu0 0
      %2481 = vmatpush.bf16.msra.mxu0 0
      %2482 = vmatpush.bf16.msra.mxu0 0
      %2483 = vmatpush.bf16.msra.mxu0 0
      %2484 = vmatpush.bf16.msra.mxu0 0
      %2485 = vmatpush.bf16.msra.mxu0 0
      %2486 = vmatpush.bf16.msra.mxu0 %v2421
      %2487 = vmatpush.bf16.msra.mxu0 %v2420
      %2488 = vmatmul.bf16.gmra.mxu0 %v2478
      %v2489 = vpop.f32.mrf.mxu0
      %v2490 = vadd.f32 %v2468, %v2489
      %v2491 = vpop.f32.mrf.mxu0
      %v2492 = vadd.f32 %v2470, %v2491
      %2493 = vdwg.mxu0
      %2494 = vrot.lane.b32.xlu0 %v2412, 126
      %v2495 = vpop.permute.xlu0 %2494
      %2496 = vrot.lane.b32.xlu0 %v2413, 126
      %v2497 = vpop.permute.xlu0 %2496
      %2498 = vrot.lane.b32.xlu0 %v2414, 126
      %v2499 = vpop.permute.xlu0 %2498
      %2500 = vrot.lane.b32.xlu0 %v2415, 126
      %v2501 = vpop.permute.xlu0 %2500
      %v2506 = vsel %vm1957, %v2495, 0.0
      %v2507 = vsel %vm1957, %v2497, 0.0
      %v2508 = vsel %vm1957, %v2499, 0.0
      %v2509 = vsel %vm1957, %v2501, 0.0
      %v2510 = vpack.c.bf16 %v2507, %v2506
      %v2511 = vpack.c.bf16 %v2509, %v2508
      %s2512 = scalar_lea.vmem %s7, 16
      %v2513 = vld [vmem:[%s2512] sm:$0xf]
      %v2514 = vld [vmem:[%s2512 + $0x4] sm:$0xf]
      %v2517 = vunpack.c.l.b16 %v2513
      %v2518 = vunpack.c.l.b16 %v2514
      %v2519 = vpack.c.b16 %v2518, %v2517
      %v2521 = vsel %vm2454, %v2519, 0
      %2523 = vmatpush.bf16.msra.mxu0 0
      %2524 = vmatpush.bf16.msra.mxu0 0
      %2525 = vmatpush.bf16.msra.mxu0 0
      %2526 = vmatpush.bf16.msra.mxu0 0
      %2527 = vmatpush.bf16.msra.mxu0 0
      %2528 = vmatpush.bf16.msra.mxu0 0
      %2529 = vmatpush.bf16.msra.mxu0 %v2511
      %2530 = vmatpush.bf16.msra.mxu0 %v2510
      %2531 = vmatmul.bf16.gmra.mxu0 %v2521
      %v2532 = vpop.f32.mrf.mxu0
      %v2533 = vadd.f32 0.0, %v2532
      %v2534 = vpop.f32.mrf.mxu0
      %v2535 = vadd.f32 0.0, %v2534
      %2536 = vdwg.mxu0
      %v2537 = vadd.f32 %v2490, %v2533
      %v2538 = vadd.f32 %v2492, %v2535
      %2539 = vrot.lane.b32.xlu0 %v2412, 124
      %v2540 = vpop.permute.xlu0 %2539
      %2541 = vrot.lane.b32.xlu0 %v2413, 124
      %v2542 = vpop.permute.xlu0 %2541
      %2543 = vrot.lane.b32.xlu0 %v2414, 124
      %v2544 = vpop.permute.xlu0 %2543
      %2545 = vrot.lane.b32.xlu0 %v2415, 124
      %v2546 = vpop.permute.xlu0 %2545
      %v2551 = vsel %vm2017, %v2540, 0.0
      %v2552 = vsel %vm2017, %v2542, 0.0
      %v2553 = vsel %vm2017, %v2544, 0.0
      %v2554 = vsel %vm2017, %v2546, 0.0
      %v2555 = vpack.c.bf16 %v2552, %v2551
      %v2556 = vpack.c.bf16 %v2554, %v2553
      %s2557 = scalar_lea.vmem %s7, 24
      %v2558 = vld [vmem:[%s2557] sm:$0xf]
      %v2559 = vld [vmem:[%s2557 + $0x4] sm:$0xf]
      %v2562 = vunpack.c.l.b16 %v2558
      %v2563 = vunpack.c.l.b16 %v2559
      %v2564 = vpack.c.b16 %v2563, %v2562
      %v2566 = vsel %vm2454, %v2564, 0
      %2568 = vmatpush.bf16.msra.mxu0 0
      %2569 = vmatpush.bf16.msra.mxu0 0
      %2570 = vmatpush.bf16.msra.mxu0 0
      %2571 = vmatpush.bf16.msra.mxu0 0
      %2572 = vmatpush.bf16.msra.mxu0 0
      %2573 = vmatpush.bf16.msra.mxu0 0
      %2574 = vmatpush.bf16.msra.mxu0 %v2556
      %2575 = vmatpush.bf16.msra.mxu0 %v2555
      %2576 = vmatmul.bf16.gmra.mxu0 %v2566
      %v2577 = vpop.f32.mrf.mxu0
      %v2578 = vadd.f32 0.0, %v2577
      %v2579 = vpop.f32.mrf.mxu0
      %v2580 = vadd.f32 0.0, %v2579
      %2581 = vdwg.mxu0
      %v2582 = vadd.f32 %v2537, %v2578
      %v2583 = vadd.f32 %v2538, %v2580
      %2584 = vrot.lane.b32.xlu0 %v2412, 123
      %v2585 = vpop.permute.xlu0 %2584
      %2586 = vrot.lane.b32.xlu0 %v2413, 123
      %v2587 = vpop.permute.xlu0 %2586
      %2588 = vrot.lane.b32.xlu0 %v2414, 123
      %v2589 = vpop.permute.xlu0 %2588
      %2590 = vrot.lane.b32.xlu0 %v2415, 123
      %v2591 = vpop.permute.xlu0 %2590
      %v2596 = vsel %vm2074, %v2585, 0.0
      %v2597 = vsel %vm2074, %v2587, 0.0
      %v2598 = vsel %vm2074, %v2589, 0.0
      %v2599 = vsel %vm2074, %v2591, 0.0
      %v2600 = vpack.c.bf16 %v2597, %v2596
      %v2601 = vpack.c.bf16 %v2599, %v2598
      %s2602 = scalar_lea.vmem %s7, 32
      %v2603 = vld [vmem:[%s2602] sm:$0xf]
      %v2604 = vld [vmem:[%s2602 + $0x4] sm:$0xf]
      %v2607 = vunpack.c.l.b16 %v2603
      %v2608 = vunpack.c.l.b16 %v2604
      %v2609 = vpack.c.b16 %v2608, %v2607
      %v2611 = vsel %vm2454, %v2609, 0
      %2613 = vmatpush.bf16.msra.mxu0 0
      %2614 = vmatpush.bf16.msra.mxu0 0
      %2615 = vmatpush.bf16.msra.mxu0 0
      %2616 = vmatpush.bf16.msra.mxu0 0
      %2617 = vmatpush.bf16.msra.mxu0 0
      %2618 = vmatpush.bf16.msra.mxu0 0
      %2619 = vmatpush.bf16.msra.mxu0 %v2601
      %2620 = vmatpush.bf16.msra.mxu0 %v2600
      %2621 = vmatmul.bf16.gmra.mxu0 %v2611
      %v2622 = vpop.f32.mrf.mxu0
      %v2623 = vadd.f32 0.0, %v2622
      %v2624 = vpop.f32.mrf.mxu0
      %v2625 = vadd.f32 0.0, %v2624
      %2626 = vdwg.mxu0
      %v2627 = vadd.f32 %v2582, %v2623
      %v2628 = vadd.f32 %v2583, %v2625
      %2629 = vrot.lane.b32.xlu0 %v2412, 122
      %v2630 = vpop.permute.xlu0 %2629
      %2631 = vrot.lane.b32.xlu0 %v2413, 122
      %v2632 = vpop.permute.xlu0 %2631
      %2633 = vrot.lane.b32.xlu0 %v2414, 122
      %v2634 = vpop.permute.xlu0 %2633
      %2635 = vrot.lane.b32.xlu0 %v2415, 122
      %v2636 = vpop.permute.xlu0 %2635
      %v2641 = vsel %vm2131, %v2630, 0.0
      %v2642 = vsel %vm2131, %v2632, 0.0
      %v2643 = vsel %vm2131, %v2634, 0.0
      %v2644 = vsel %vm2131, %v2636, 0.0
      %v2645 = vpack.c.bf16 %v2642, %v2641
      %v2646 = vpack.c.bf16 %v2644, %v2643
      %s2647 = scalar_lea.vmem %s7, 40
      %v2648 = vld [vmem:[%s2647] sm:$0xf]
      %v2649 = vld [vmem:[%s2647 + $0x4] sm:$0xf]
      %v2652 = vunpack.c.l.b16 %v2648
      %v2653 = vunpack.c.l.b16 %v2649
      %v2654 = vpack.c.b16 %v2653, %v2652
      %v2656 = vsel %vm2454, %v2654, 0
      %2658 = vmatpush.bf16.msra.mxu0 0
      %2659 = vmatpush.bf16.msra.mxu0 0
      %2660 = vmatpush.bf16.msra.mxu0 0
      %2661 = vmatpush.bf16.msra.mxu0 0
      %2662 = vmatpush.bf16.msra.mxu0 0
      %2663 = vmatpush.bf16.msra.mxu0 0
      %2664 = vmatpush.bf16.msra.mxu0 %v2646
      %2665 = vmatpush.bf16.msra.mxu0 %v2645
      %2666 = vmatmul.bf16.gmra.mxu0 %v2656
      %v2667 = vpop.f32.mrf.mxu0
      %v2668 = vadd.f32 0.0, %v2667
      %v2669 = vpop.f32.mrf.mxu0
      %v2670 = vadd.f32 0.0, %v2669
      %2671 = vdwg.mxu0
      %v2672 = vadd.f32 %v2627, %v2668
      %v2673 = vadd.f32 %v2628, %v2670
      %2674 = vrot.lane.b32.xlu0 %v2412, 120
      %v2675 = vpop.permute.xlu0 %2674
      %2676 = vrot.lane.b32.xlu0 %v2413, 120
      %v2677 = vpop.permute.xlu0 %2676
      %2678 = vrot.lane.b32.xlu0 %v2414, 120
      %v2679 = vpop.permute.xlu0 %2678
      %2680 = vrot.lane.b32.xlu0 %v2415, 120
      %v2681 = vpop.permute.xlu0 %2680
      %v2686 = vsel %vm2192, %v2675, 0.0
      %v2687 = vsel %vm2192, %v2677, 0.0
      %v2688 = vsel %vm2192, %v2679, 0.0
      %v2689 = vsel %vm2192, %v2681, 0.0
      %v2690 = vpack.c.bf16 %v2687, %v2686
      %v2691 = vpack.c.bf16 %v2689, %v2688
      %s2692 = scalar_lea.vmem %s7, 48
      %v2693 = vld [vmem:[%s2692] sm:$0xf]
      %v2694 = vld [vmem:[%s2692 + $0x4] sm:$0xf]
      %v2697 = vunpack.c.l.b16 %v2693
      %v2698 = vunpack.c.l.b16 %v2694
      %v2699 = vpack.c.b16 %v2698, %v2697
      %v2701 = vsel %vm2454, %v2699, 0
      %2703 = vmatpush.bf16.msra.mxu0 0
      %2704 = vmatpush.bf16.msra.mxu0 0
      %2705 = vmatpush.bf16.msra.mxu0 0
      %2706 = vmatpush.bf16.msra.mxu0 0
      %2707 = vmatpush.bf16.msra.mxu0 0
      %2708 = vmatpush.bf16.msra.mxu0 0
      %2709 = vmatpush.bf16.msra.mxu0 %v2691
      %2710 = vmatpush.bf16.msra.mxu0 %v2690
      %2711 = vmatmul.bf16.gmra.mxu0 %v2701
      %v2712 = vpop.f32.mrf.mxu0
      %v2713 = vadd.f32 0.0, %v2712
      %v2714 = vpop.f32.mrf.mxu0
      %v2715 = vadd.f32 0.0, %v2714
      %2716 = vdwg.mxu0
      %v2717 = vadd.f32 %v2672, %v2713
      %v2718 = vadd.f32 %v2673, %v2715
      %2719 = vrot.lane.b32.xlu0 %v2412, 119
      %v2720 = vpop.permute.xlu0 %2719
      %2721 = vrot.lane.b32.xlu0 %v2413, 119
      %v2722 = vpop.permute.xlu0 %2721
      %2723 = vrot.lane.b32.xlu0 %v2414, 119
      %v2724 = vpop.permute.xlu0 %2723
      %2725 = vrot.lane.b32.xlu0 %v2415, 119
      %v2726 = vpop.permute.xlu0 %2725
      %v2731 = vsel %vm2249, %v2720, 0.0
      %v2732 = vsel %vm2249, %v2722, 0.0
      %v2733 = vsel %vm2249, %v2724, 0.0
      %v2734 = vsel %vm2249, %v2726, 0.0
      %v2735 = vpack.c.bf16 %v2732, %v2731
      %v2736 = vpack.c.bf16 %v2734, %v2733
      %s2737 = scalar_lea.vmem %s7, 56
      %v2738 = vld [vmem:[%s2737] sm:$0xf]
      %v2739 = vld [vmem:[%s2737 + $0x4] sm:$0xf]
      %v2742 = vunpack.c.l.b16 %v2738
      %v2743 = vunpack.c.l.b16 %v2739
      %v2744 = vpack.c.b16 %v2743, %v2742
      %v2746 = vsel %vm2454, %v2744, 0
      %2748 = vmatpush.bf16.msra.mxu0 0
      %2749 = vmatpush.bf16.msra.mxu0 0
      %2750 = vmatpush.bf16.msra.mxu0 0
      %2751 = vmatpush.bf16.msra.mxu0 0
      %2752 = vmatpush.bf16.msra.mxu0 0
      %2753 = vmatpush.bf16.msra.mxu0 0
      %2754 = vmatpush.bf16.msra.mxu0 %v2736
      %2755 = vmatpush.bf16.msra.mxu0 %v2735
      %2756 = vmatmul.bf16.gmra.mxu0 %v2746
      %v2757 = vpop.f32.mrf.mxu0
      %v2758 = vadd.f32 0.0, %v2757
      %v2759 = vpop.f32.mrf.mxu0
      %v2760 = vadd.f32 0.0, %v2759
      %2761 = vdwg.mxu0
      %v2762 = vadd.f32 %v2717, %v2758
      %v2763 = vadd.f32 %v2718, %v2760
      %2764 = vrot.lane.b32.xlu0 %v2412, 118
      %v2765 = vpop.permute.xlu0 %2764
      %2766 = vrot.lane.b32.xlu0 %v2413, 118
      %v2767 = vpop.permute.xlu0 %2766
      %2768 = vrot.lane.b32.xlu0 %v2414, 118
      %v2769 = vpop.permute.xlu0 %2768
      %2770 = vrot.lane.b32.xlu0 %v2415, 118
      %v2771 = vpop.permute.xlu0 %2770
      %v2776 = vsel %vm2306, %v2765, 0.0
      %v2777 = vsel %vm2306, %v2767, 0.0
      %v2778 = vsel %vm2306, %v2769, 0.0
      %v2779 = vsel %vm2306, %v2771, 0.0
      %v2780 = vpack.c.bf16 %v2777, %v2776
      %v2781 = vpack.c.bf16 %v2779, %v2778
      %s2782 = scalar_lea.vmem %s7, 64
      %v2783 = vld [vmem:[%s2782] sm:$0xf]
      %v2784 = vld [vmem:[%s2782 + $0x4] sm:$0xf]
      %v2787 = vunpack.c.l.b16 %v2783
      %v2788 = vunpack.c.l.b16 %v2784
      %v2789 = vpack.c.b16 %v2788, %v2787
      %v2791 = vsel %vm2454, %v2789, 0
      %2793 = vmatpush.bf16.msra.mxu0 0
      %2794 = vmatpush.bf16.msra.mxu0 0
      %2795 = vmatpush.bf16.msra.mxu0 0
      %2796 = vmatpush.bf16.msra.mxu0 0
      %2797 = vmatpush.bf16.msra.mxu0 0
      %2798 = vmatpush.bf16.msra.mxu0 0
      %2799 = vmatpush.bf16.msra.mxu0 %v2781
      %2800 = vmatpush.bf16.msra.mxu0 %v2780
      %2801 = vmatmul.bf16.gmra.mxu0 %v2791
      %v2802 = vpop.f32.mrf.mxu0
      %v2803 = vadd.f32 0.0, %v2802
      %v2804 = vpop.f32.mrf.mxu0
      %v2805 = vadd.f32 0.0, %v2804
      %2806 = vdwg.mxu0
      %v2807 = vadd.f32 %v2762, %v2803
      %v2808 = vadd.f32 %v2763, %v2805
      %v2809 = vld [vmem:[%s8] sm:$0xff]
      %v2810 = vld [vmem:[%s8 + $0x8] sm:$0xff]
      %2812 = vset.pattern.permute.xlu0 0
      %2813 = vperm.xlu0 %2812, %v2809
      %v2814 = vpop.permute.xlu0 %2813
      %2817 = vset.pattern.permute.xlu0 0
      %2818 = vperm.xlu0 %2817, %v2810
      %v2819 = vpop.permute.xlu0 %2818
      %v2821 = vadd.f32 %v2807, %v2814
      %v2822 = vadd.f32 %v2808, %v2819
      %v2823 = vmax.f32 %v2821, 0.0
      %v2824 = vmax.f32 %v2822, 0.0
      %v2825 = vld [vmem:[%s20] sm:$0xff]
      %v2826 = vld [vmem:[%s20 + $0x8] sm:$0xff]
      %v2828 = vsel %vm1890, %v2823, 0
      %v2831 = vsel %vm1890, %v2824, 0
      %2833 = vmatpush.msra.mxu0 0.0
      %2834 = vmatpush.msra.mxu0 0.0
      %2835 = vmatpush.msra.mxu0 0.0
      %2836 = vmatpush.msra.mxu0 0.0
      %2837 = vmatpush.msra.mxu0 0.0
      %2838 = vmatpush.msra.mxu0 0.0
      %2839 = vmatpush.msra.mxu0 0.0
      %2840 = vmatpush.msra.mxu0 0.0
      %2841 = vmatpush.msra.mxu0 0.0
      %2842 = vmatpush.msra.mxu0 0.0
      %2843 = vmatpush.msra.mxu0 0.0
      %2844 = vmatpush.msra.mxu0 0.0
      %2845 = vmatpush.msra.mxu0 0.0
      %2846 = vmatpush.msra.mxu0 0.0
      %2847 = vmatpush.msra.mxu0 %v2826
      %2848 = vmatpush.msra.mxu0 %v2825
      %2849 = vmatmul.f32.gmra.mxu0 %v2828
      %v2850 = vpop.f32.mrf.mxu0
      %v2851 = vadd.f32 0.0, %v2850
      %2852 = vmatmul.f32.gmra.mxu0 %v2831
      %v2853 = vpop.f32.mrf.mxu0
      %v2854 = vadd.f32 0.0, %v2853
      %2855 = vdwg.mxu0
      %2858 = vrot.lane.b32.xlu0 %v2851, 9
      %v2859 = vpop.permute.xlu0 %2858
      %2860 = vrot.lane.b32.xlu0 %v2854, 9
      %v2861 = vpop.permute.xlu0 %2860
      %2864 = vst.msk [vmem:[#allocation2] sm:$0xff] %vm1403, %v2859
      %2865 = vst.msk [vmem:[#allocation2 + $0x18] sm:$0xff] %vm1403, %v2861
      %v2866 = vld [vmem:[#allocation2] sm:$0xff]
      %v2867 = vld [vmem:[#allocation2 + $0x18] sm:$0xff]
      %v2868 = vsel %vm1416, %v2866, 0.0
      %v2869 = vsel %vm1416, %v2867, 0.0
      %v2870 = vpack.c.bf16 %v2869, %v2868
      %v2871 = vld [vmem:[%s9] sm:$0xf]
      %v2872 = vld [vmem:[%s9 + $0x4] sm:$0xf]
      %2875 = vrot.lane.b32.xlu0 %v2866, 127
      %v2876 = vpop.permute.xlu0 %2875
      %2877 = vrot.lane.b32.xlu0 %v2867, 127
      %v2878 = vpop.permute.xlu0 %2877
      %v2881 = vsel %vm1426, %v2876, 0.0
      %v2882 = vsel %vm1426, %v2878, 0.0
      %v2883 = vpack.c.bf16 %v2882, %v2881
      %s2884 = scalar_lea.vmem %s9, 8
      %v2885 = vld [vmem:[%s2884] sm:$0xf]
      %v2886 = vld [vmem:[%s2884 + $0x4] sm:$0xf]
      %v2889 = vunpack.c.l.b16 %v2885
      %v2890 = vunpack.c.l.b16 %v2886
      %v2891 = vpack.c.b16 %v2890, %v2889
      %v2893 = vsel %vm1890, %v2891, 0
      %2895 = vmatpush.bf16.msra.mxu0 0
      %2896 = vmatpush.bf16.msra.mxu0 0
      %2897 = vmatpush.bf16.msra.mxu0 0
      %2898 = vmatpush.bf16.msra.mxu0 0
      %2899 = vmatpush.bf16.msra.mxu0 0
      %2900 = vmatpush.bf16.msra.mxu0 0
      %2901 = vmatpush.bf16.msra.mxu0 0
      %2902 = vmatpush.bf16.msra.mxu0 %v2883
      %2903 = vmatmul.bf16.gmra.mxu0 %v2893
      %v2904 = vpop.f32.mrf.mxu0
      %v2905 = vadd.f32 0.0, %v2904
      %v2906 = vpop.f32.mrf.mxu0
      %v2907 = vadd.f32 0.0, %v2906
      %2908 = vdwg.mxu0
      %v2911 = vunpack.c.l.b16 %v2871
      %v2912 = vunpack.c.l.b16 %v2872
      %v2913 = vpack.c.b16 %v2912, %v2911
      %v2915 = vsel %vm1890, %v2913, 0
      %2917 = vmatpush.bf16.msra.mxu0 0
      %2918 = vmatpush.bf16.msra.mxu0 0
      %2919 = vmatpush.bf16.msra.mxu0 0
      %2920 = vmatpush.bf16.msra.mxu0 0
      %2921 = vmatpush.bf16.msra.mxu0 0
      %2922 = vmatpush.bf16.msra.mxu0 0
      %2923 = vmatpush.bf16.msra.mxu0 0
      %2924 = vmatpush.bf16.msra.mxu0 %v2870
      %2925 = vmatmul.bf16.gmra.mxu0 %v2915
      %v2926 = vpop.f32.mrf.mxu0
      %v2927 = vadd.f32 %v2905, %v2926
      %v2928 = vpop.f32.mrf.mxu0
      %v2929 = vadd.f32 %v2907, %v2928
      %2930 = vdwg.mxu0
      %2931 = vrot.lane.b32.xlu0 %v2866, 126
      %v2932 = vpop.permute.xlu0 %2931
      %2933 = vrot.lane.b32.xlu0 %v2867, 126
      %v2934 = vpop.permute.xlu0 %2933
      %v2937 = vsel %vm1494, %v2932, 0.0
      %v2938 = vsel %vm1494, %v2934, 0.0
      %v2939 = vpack.c.bf16 %v2938, %v2937
      %s2940 = scalar_lea.vmem %s9, 16
      %v2941 = vld [vmem:[%s2940] sm:$0xf]
      %v2942 = vld [vmem:[%s2940 + $0x4] sm:$0xf]
      %v2945 = vunpack.c.l.b16 %v2941
      %v2946 = vunpack.c.l.b16 %v2942
      %v2947 = vpack.c.b16 %v2946, %v2945
      %v2949 = vsel %vm1890, %v2947, 0
      %2951 = vmatpush.bf16.msra.mxu0 0
      %2952 = vmatpush.bf16.msra.mxu0 0
      %2953 = vmatpush.bf16.msra.mxu0 0
      %2954 = vmatpush.bf16.msra.mxu0 0
      %2955 = vmatpush.bf16.msra.mxu0 0
      %2956 = vmatpush.bf16.msra.mxu0 0
      %2957 = vmatpush.bf16.msra.mxu0 0
      %2958 = vmatpush.bf16.msra.mxu0 %v2939
      %2959 = vmatmul.bf16.gmra.mxu0 %v2949
      %v2960 = vpop.f32.mrf.mxu0
      %v2961 = vadd.f32 0.0, %v2960
      %v2962 = vpop.f32.mrf.mxu0
      %v2963 = vadd.f32 0.0, %v2962
      %2964 = vdwg.mxu0
      %v2965 = vadd.f32 %v2927, %v2961
      %v2966 = vadd.f32 %v2929, %v2963
      %2967 = vrot.lane.b32.xlu0 %v2866, 120
      %v2968 = vpop.permute.xlu0 %2967
      %2969 = vrot.lane.b32.xlu0 %v2867, 120
      %v2970 = vpop.permute.xlu0 %2969
      %v2973 = vsel %vm1536, %v2968, 0.0
      %v2974 = vsel %vm1536, %v2970, 0.0
      %v2975 = vpack.c.bf16 %v2974, %v2973
      %s2976 = scalar_lea.vmem %s9, 24
      %v2977 = vld [vmem:[%s2976] sm:$0xf]
      %v2978 = vld [vmem:[%s2976 + $0x4] sm:$0xf]
      %v2981 = vunpack.c.l.b16 %v2977
      %v2982 = vunpack.c.l.b16 %v2978
      %v2983 = vpack.c.b16 %v2982, %v2981
      %v2985 = vsel %vm1890, %v2983, 0
      %2987 = vmatpush.bf16.msra.mxu0 0
      %2988 = vmatpush.bf16.msra.mxu0 0
      %2989 = vmatpush.bf16.msra.mxu0 0
      %2990 = vmatpush.bf16.msra.mxu0 0
      %2991 = vmatpush.bf16.msra.mxu0 0
      %2992 = vmatpush.bf16.msra.mxu0 0
      %2993 = vmatpush.bf16.msra.mxu0 0
      %2994 = vmatpush.bf16.msra.mxu0 %v2975
      %2995 = vmatmul.bf16.gmra.mxu0 %v2985
      %v2996 = vpop.f32.mrf.mxu0
      %v2997 = vadd.f32 0.0, %v2996
      %v2998 = vpop.f32.mrf.mxu0
      %v2999 = vadd.f32 0.0, %v2998
      %3000 = vdwg.mxu0
      %v3001 = vadd.f32 %v2965, %v2997
      %v3002 = vadd.f32 %v2966, %v2999
      %3003 = vrot.lane.b32.xlu0 %v2866, 119
      %v3004 = vpop.permute.xlu0 %3003
      %3005 = vrot.lane.b32.xlu0 %v2867, 119
      %v3006 = vpop.permute.xlu0 %3005
      %v3009 = vsel %vm1575, %v3004, 0.0
      %v3010 = vsel %vm1575, %v3006, 0.0
      %v3011 = vpack.c.bf16 %v3010, %v3009
      %s3012 = scalar_lea.vmem %s9, 32
      %v3013 = vld [vmem:[%s3012] sm:$0xf]
      %v3014 = vld [vmem:[%s3012 + $0x4] sm:$0xf]
      %v3017 = vunpack.c.l.b16 %v3013
      %v3018 = vunpack.c.l.b16 %v3014
      %v3019 = vpack.c.b16 %v3018, %v3017
      %v3021 = vsel %vm1890, %v3019, 0
      %3023 = vmatpush.bf16.msra.mxu0 0
      %3024 = vmatpush.bf16.msra.mxu0 0
      %3025 = vmatpush.bf16.msra.mxu0 0
      %3026 = vmatpush.bf16.msra.mxu0 0
      %3027 = vmatpush.bf16.msra.mxu0 0
      %3028 = vmatpush.bf16.msra.mxu0 0
      %3029 = vmatpush.bf16.msra.mxu0 0
      %3030 = vmatpush.bf16.msra.mxu0 %v3011
      %3031 = vmatmul.bf16.gmra.mxu0 %v3021
      %v3032 = vpop.f32.mrf.mxu0
      %v3033 = vadd.f32 0.0, %v3032
      %v3034 = vpop.f32.mrf.mxu0
      %v3035 = vadd.f32 0.0, %v3034
      %3036 = vdwg.mxu0
      %v3037 = vadd.f32 %v3001, %v3033
      %v3038 = vadd.f32 %v3002, %v3035
      %3039 = vrot.lane.b32.xlu0 %v2866, 118
      %v3040 = vpop.permute.xlu0 %3039
      %3041 = vrot.lane.b32.xlu0 %v2867, 118
      %v3042 = vpop.permute.xlu0 %3041
      %v3045 = vsel %vm1614, %v3040, 0.0
      %v3046 = vsel %vm1614, %v3042, 0.0
      %v3047 = vpack.c.bf16 %v3046, %v3045
      %s3048 = scalar_lea.vmem %s9, 40
      %v3049 = vld [vmem:[%s3048] sm:$0xf]
      %v3050 = vld [vmem:[%s3048 + $0x4] sm:$0xf]
      %v3053 = vunpack.c.l.b16 %v3049
      %v3054 = vunpack.c.l.b16 %v3050
      %v3055 = vpack.c.b16 %v3054, %v3053
      %v3057 = vsel %vm1890, %v3055, 0
      %3059 = vmatpush.bf16.msra.mxu0 0
      %3060 = vmatpush.bf16.msra.mxu0 0
      %3061 = vmatpush.bf16.msra.mxu0 0
      %3062 = vmatpush.bf16.msra.mxu0 0
      %3063 = vmatpush.bf16.msra.mxu0 0
      %3064 = vmatpush.bf16.msra.mxu0 0
      %3065 = vmatpush.bf16.msra.mxu0 0
      %3066 = vmatpush.bf16.msra.mxu0 %v3047
      %3067 = vmatmul.bf16.gmra.mxu0 %v3057
      %v3068 = vpop.f32.mrf.mxu0
      %v3069 = vadd.f32 0.0, %v3068
      %v3070 = vpop.f32.mrf.mxu0
      %v3071 = vadd.f32 0.0, %v3070
      %3072 = vdwg.mxu0
      %v3073 = vadd.f32 %v3037, %v3069
      %v3074 = vadd.f32 %v3038, %v3071
      %3075 = vrot.lane.b32.xlu0 %v2866, 112
      %v3076 = vpop.permute.xlu0 %3075
      %3077 = vrot.lane.b32.xlu0 %v2867, 112
      %v3078 = vpop.permute.xlu0 %3077
      %v3081 = vsel %vm1657, %v3076, 0.0
      %v3082 = vsel %vm1657, %v3078, 0.0
      %v3083 = vpack.c.bf16 %v3082, %v3081
      %s3084 = scalar_lea.vmem %s9, 48
      %v3085 = vld [vmem:[%s3084] sm:$0xf]
      %v3086 = vld [vmem:[%s3084 + $0x4] sm:$0xf]
      %v3089 = vunpack.c.l.b16 %v3085
      %v3090 = vunpack.c.l.b16 %v3086
      %v3091 = vpack.c.b16 %v3090, %v3089
      %v3093 = vsel %vm1890, %v3091, 0
      %3095 = vmatpush.bf16.msra.mxu0 0
      %3096 = vmatpush.bf16.msra.mxu0 0
      %3097 = vmatpush.bf16.msra.mxu0 0
      %3098 = vmatpush.bf16.msra.mxu0 0
      %3099 = vmatpush.bf16.msra.mxu0 0
      %3100 = vmatpush.bf16.msra.mxu0 0
      %3101 = vmatpush.bf16.msra.mxu0 0
      %3102 = vmatpush.bf16.msra.mxu0 %v3083
      %3103 = vmatmul.bf16.gmra.mxu0 %v3093
      %v3104 = vpop.f32.mrf.mxu0
      %v3105 = vadd.f32 0.0, %v3104
      %v3106 = vpop.f32.mrf.mxu0
      %v3107 = vadd.f32 0.0, %v3106
      %3108 = vdwg.mxu0
      %v3109 = vadd.f32 %v3073, %v3105
      %v3110 = vadd.f32 %v3074, %v3107
      %3111 = vrot.lane.b32.xlu0 %v2866, 111
      %v3112 = vpop.permute.xlu0 %3111
      %3113 = vrot.lane.b32.xlu0 %v2867, 111
      %v3114 = vpop.permute.xlu0 %3113
      %v3117 = vsel %vm1696, %v3112, 0.0
      %v3118 = vsel %vm1696, %v3114, 0.0
      %v3119 = vpack.c.bf16 %v3118, %v3117
      %s3120 = scalar_lea.vmem %s9, 56
      %v3121 = vld [vmem:[%s3120] sm:$0xf]
      %v3122 = vld [vmem:[%s3120 + $0x4] sm:$0xf]
      %v3125 = vunpack.c.l.b16 %v3121
      %v3126 = vunpack.c.l.b16 %v3122
      %v3127 = vpack.c.b16 %v3126, %v3125
      %v3129 = vsel %vm1890, %v3127, 0
      %3131 = vmatpush.bf16.msra.mxu0 0
      %3132 = vmatpush.bf16.msra.mxu0 0
      %3133 = vmatpush.bf16.msra.mxu0 0
      %3134 = vmatpush.bf16.msra.mxu0 0
      %3135 = vmatpush.bf16.msra.mxu0 0
      %3136 = vmatpush.bf16.msra.mxu0 0
      %3137 = vmatpush.bf16.msra.mxu0 0
      %3138 = vmatpush.bf16.msra.mxu0 %v3119
      %3139 = vmatmul.bf16.gmra.mxu0 %v3129
      %v3140 = vpop.f32.mrf.mxu0
      %v3141 = vadd.f32 0.0, %v3140
      %v3142 = vpop.f32.mrf.mxu0
      %v3143 = vadd.f32 0.0, %v3142
      %3144 = vdwg.mxu0
      %v3145 = vadd.f32 %v3109, %v3141
      %v3146 = vadd.f32 %v3110, %v3143
      %3147 = vrot.lane.b32.xlu0 %v2866, 110
      %v3148 = vpop.permute.xlu0 %3147
      %3149 = vrot.lane.b32.xlu0 %v2867, 110
      %v3150 = vpop.permute.xlu0 %3149
      %v3153 = vsel %vm1735, %v3148, 0.0
      %v3154 = vsel %vm1735, %v3150, 0.0
      %v3155 = vpack.c.bf16 %v3154, %v3153
      %s3156 = scalar_lea.vmem %s9, 64
      %v3157 = vld [vmem:[%s3156] sm:$0xf]
      %v3158 = vld [vmem:[%s3156 + $0x4] sm:$0xf]
      %v3161 = vunpack.c.l.b16 %v3157
      %v3162 = vunpack.c.l.b16 %v3158
      %v3163 = vpack.c.b16 %v3162, %v3161
      %v3165 = vsel %vm1890, %v3163, 0
      %3167 = vmatpush.bf16.msra.mxu0 0
      %3168 = vmatpush.bf16.msra.mxu0 0
      %3169 = vmatpush.bf16.msra.mxu0 0
      %3170 = vmatpush.bf16.msra.mxu0 0
      %3171 = vmatpush.bf16.msra.mxu0 0
      %3172 = vmatpush.bf16.msra.mxu0 0
      %3173 = vmatpush.bf16.msra.mxu0 0
      %3174 = vmatpush.bf16.msra.mxu0 %v3155
      %3175 = vmatmul.bf16.gmra.mxu0 %v3165
      %v3176 = vpop.f32.mrf.mxu0
      %v3177 = vadd.f32 0.0, %v3176
      %v3178 = vpop.f32.mrf.mxu0
      %v3179 = vadd.f32 0.0, %v3178
      %3180 = vdwg.mxu0
      %v3181 = vadd.f32 %v3145, %v3177
      %v3182 = vadd.f32 %v3146, %v3179
      %3183 = vrot.lane.b32.xlu0 %v1785, 9
      %v3184 = vpop.permute.xlu0 %3183
      %3185 = vrot.lane.b32.xlu0 %v1786, 9
      %v3186 = vpop.permute.xlu0 %3185
      %3189 = vst.msk [vmem:[#allocation2] sm:$0xff] %vm1403, %v3184
      %3190 = vst.msk [vmem:[#allocation2 + $0x18] sm:$0xff] %vm1403, %v3186
      %v3191 = vld [vmem:[#allocation2] sm:$0xff]
      %v3192 = vld [vmem:[#allocation2 + $0x18] sm:$0xff]
      %v3193 = vsel %vm1416, %v3191, 0.0
      %v3194 = vsel %vm1416, %v3192, 0.0
      %v3195 = vpack.c.bf16 %v3194, %v3193
      %v3196 = vld [vmem:[%s10] sm:$0xf]
      %v3197 = vld [vmem:[%s10 + $0x4] sm:$0xf]
      %v3200 = vunpack.c.l.b16 %v3196
      %v3201 = vunpack.c.l.b16 %v3197
      %v3202 = vpack.c.b16 %v3201, %v3200
      %v3204 = vsel %vm1890, %v3202, 0
      %3206 = vmatpush.bf16.msra.mxu0 0
      %3207 = vmatpush.bf16.msra.mxu0 0
      %3208 = vmatpush.bf16.msra.mxu0 0
      %3209 = vmatpush.bf16.msra.mxu0 0
      %3210 = vmatpush.bf16.msra.mxu0 0
      %3211 = vmatpush.bf16.msra.mxu0 0
      %3212 = vmatpush.bf16.msra.mxu0 0
      %3213 = vmatpush.bf16.msra.mxu0 %v3195
      %3214 = vmatmul.bf16.gmra.mxu0 %v3204
      %v3215 = vpop.f32.mrf.mxu0
      %v3216 = vadd.f32 0.0, %v3215
      %v3217 = vpop.f32.mrf.mxu0
      %v3218 = vadd.f32 0.0, %v3217
      %3219 = vdwg.mxu0
      %v3220 = vadd.f32 %v3181, %v3216
      %v3221 = vadd.f32 %v3182, %v3218
      %3224 = vrot.lane.b32.xlu0 %v3191, 127
      %v3225 = vpop.permute.xlu0 %3224
      %3226 = vrot.lane.b32.xlu0 %v3192, 127
      %v3227 = vpop.permute.xlu0 %3226
      %v3230 = vsel %vm1426, %v3225, 0.0
      %v3231 = vsel %vm1426, %v3227, 0.0
      %v3232 = vpack.c.bf16 %v3231, %v3230
      %s3233 = scalar_lea.vmem %s10, 8
      %v3234 = vld [vmem:[%s3233] sm:$0xf]
      %v3235 = vld [vmem:[%s3233 + $0x4] sm:$0xf]
      %v3238 = vunpack.c.l.b16 %v3234
      %v3239 = vunpack.c.l.b16 %v3235
      %v3240 = vpack.c.b16 %v3239, %v3238
      %v3242 = vsel %vm1890, %v3240, 0
      %3244 = vmatpush.bf16.msra.mxu0 0
      %3245 = vmatpush.bf16.msra.mxu0 0
      %3246 = vmatpush.bf16.msra.mxu0 0
      %3247 = vmatpush.bf16.msra.mxu0 0
      %3248 = vmatpush.bf16.msra.mxu0 0
      %3249 = vmatpush.bf16.msra.mxu0 0
      %3250 = vmatpush.bf16.msra.mxu0 0
      %3251 = vmatpush.bf16.msra.mxu0 %v3232
      %3252 = vmatmul.bf16.gmra.mxu0 %v3242
      %v3253 = vpop.f32.mrf.mxu0
      %v3254 = vadd.f32 0.0, %v3253
      %v3255 = vpop.f32.mrf.mxu0
      %v3256 = vadd.f32 0.0, %v3255
      %3257 = vdwg.mxu0
      %v3258 = vadd.f32 %v3220, %v3254
      %v3259 = vadd.f32 %v3221, %v3256
      %3260 = vrot.lane.b32.xlu0 %v3191, 126
      %v3261 = vpop.permute.xlu0 %3260
      %3262 = vrot.lane.b32.xlu0 %v3192, 126
      %v3263 = vpop.permute.xlu0 %3262
      %v3266 = vsel %vm1494, %v3261, 0.0
      %v3267 = vsel %vm1494, %v3263, 0.0
      %v3268 = vpack.c.bf16 %v3267, %v3266
      %s3269 = scalar_lea.vmem %s10, 16
      %v3270 = vld [vmem:[%s3269] sm:$0xf]
      %v3271 = vld [vmem:[%s3269 + $0x4] sm:$0xf]
      %v3274 = vunpack.c.l.b16 %v3270
      %v3275 = vunpack.c.l.b16 %v3271
      %v3276 = vpack.c.b16 %v3275, %v3274
      %v3278 = vsel %vm1890, %v3276, 0
      %3280 = vmatpush.bf16.msra.mxu0 0
      %3281 = vmatpush.bf16.msra.mxu0 0
      %3282 = vmatpush.bf16.msra.mxu0 0
      %3283 = vmatpush.bf16.msra.mxu0 0
      %3284 = vmatpush.bf16.msra.mxu0 0
      %3285 = vmatpush.bf16.msra.mxu0 0
      %3286 = vmatpush.bf16.msra.mxu0 0
      %3287 = vmatpush.bf16.msra.mxu0 %v3268
      %3288 = vmatmul.bf16.gmra.mxu0 %v3278
      %v3289 = vpop.f32.mrf.mxu0
      %v3290 = vadd.f32 0.0, %v3289
      %v3291 = vpop.f32.mrf.mxu0
      %v3292 = vadd.f32 0.0, %v3291
      %3293 = vdwg.mxu0
      %v3294 = vadd.f32 %v3258, %v3290
      %v3295 = vadd.f32 %v3259, %v3292
      %3296 = vrot.lane.b32.xlu0 %v3191, 120
      %v3297 = vpop.permute.xlu0 %3296
      %3298 = vrot.lane.b32.xlu0 %v3192, 120
      %v3299 = vpop.permute.xlu0 %3298
      %v3302 = vsel %vm1536, %v3297, 0.0
      %v3303 = vsel %vm1536, %v3299, 0.0
      %v3304 = vpack.c.bf16 %v3303, %v3302
      %s3305 = scalar_lea.vmem %s10, 24
      %v3306 = vld [vmem:[%s3305] sm:$0xf]
      %v3307 = vld [vmem:[%s3305 + $0x4] sm:$0xf]
      %v3310 = vunpack.c.l.b16 %v3306
      %v3311 = vunpack.c.l.b16 %v3307
      %v3312 = vpack.c.b16 %v3311, %v3310
      %v3314 = vsel %vm1890, %v3312, 0
      %3316 = vmatpush.bf16.msra.mxu0 0
      %3317 = vmatpush.bf16.msra.mxu0 0
      %3318 = vmatpush.bf16.msra.mxu0 0
      %3319 = vmatpush.bf16.msra.mxu0 0
      %3320 = vmatpush.bf16.msra.mxu0 0
      %3321 = vmatpush.bf16.msra.mxu0 0
      %3322 = vmatpush.bf16.msra.mxu0 0
      %3323 = vmatpush.bf16.msra.mxu0 %v3304
      %3324 = vmatmul.bf16.gmra.mxu0 %v3314
      %v3325 = vpop.f32.mrf.mxu0
      %v3326 = vadd.f32 0.0, %v3325
      %v3327 = vpop.f32.mrf.mxu0
      %v3328 = vadd.f32 0.0, %v3327
      %3329 = vdwg.mxu0
      %v3330 = vadd.f32 %v3294, %v3326
      %v3331 = vadd.f32 %v3295, %v3328
      %3332 = vrot.lane.b32.xlu0 %v3191, 119
      %v3333 = vpop.permute.xlu0 %3332
      %3334 = vrot.lane.b32.xlu0 %v3192, 119
      %v3335 = vpop.permute.xlu0 %3334
      %v3338 = vsel %vm1575, %v3333, 0.0
      %v3339 = vsel %vm1575, %v3335, 0.0
      %v3340 = vpack.c.bf16 %v3339, %v3338
      %s3341 = scalar_lea.vmem %s10, 32
      %v3342 = vld [vmem:[%s3341] sm:$0xf]
      %v3343 = vld [vmem:[%s3341 + $0x4] sm:$0xf]
      %v3346 = vunpack.c.l.b16 %v3342
      %v3347 = vunpack.c.l.b16 %v3343
      %v3348 = vpack.c.b16 %v3347, %v3346
      %v3350 = vsel %vm1890, %v3348, 0
      %3352 = vmatpush.bf16.msra.mxu0 0
      %3353 = vmatpush.bf16.msra.mxu0 0
      %3354 = vmatpush.bf16.msra.mxu0 0
      %3355 = vmatpush.bf16.msra.mxu0 0
      %3356 = vmatpush.bf16.msra.mxu0 0
      %3357 = vmatpush.bf16.msra.mxu0 0
      %3358 = vmatpush.bf16.msra.mxu0 0
      %3359 = vmatpush.bf16.msra.mxu0 %v3340
      %3360 = vmatmul.bf16.gmra.mxu0 %v3350
      %v3361 = vpop.f32.mrf.mxu0
      %v3362 = vadd.f32 0.0, %v3361
      %v3363 = vpop.f32.mrf.mxu0
      %v3364 = vadd.f32 0.0, %v3363
      %3365 = vdwg.mxu0
      %v3366 = vadd.f32 %v3330, %v3362
      %v3367 = vadd.f32 %v3331, %v3364
      %3368 = vrot.lane.b32.xlu0 %v3191, 118
      %v3369 = vpop.permute.xlu0 %3368
      %3370 = vrot.lane.b32.xlu0 %v3192, 118
      %v3371 = vpop.permute.xlu0 %3370
      %v3374 = vsel %vm1614, %v3369, 0.0
      %v3375 = vsel %vm1614, %v3371, 0.0
      %v3376 = vpack.c.bf16 %v3375, %v3374
      %s3377 = scalar_lea.vmem %s10, 40
      %v3378 = vld [vmem:[%s3377] sm:$0xf]
      %v3379 = vld [vmem:[%s3377 + $0x4] sm:$0xf]
      %v3382 = vunpack.c.l.b16 %v3378
      %v3383 = vunpack.c.l.b16 %v3379
      %v3384 = vpack.c.b16 %v3383, %v3382
      %v3386 = vsel %vm1890, %v3384, 0
      %3388 = vmatpush.bf16.msra.mxu0 0
      %3389 = vmatpush.bf16.msra.mxu0 0
      %3390 = vmatpush.bf16.msra.mxu0 0
      %3391 = vmatpush.bf16.msra.mxu0 0
      %3392 = vmatpush.bf16.msra.mxu0 0
      %3393 = vmatpush.bf16.msra.mxu0 0
      %3394 = vmatpush.bf16.msra.mxu0 0
      %3395 = vmatpush.bf16.msra.mxu0 %v3376
      %3396 = vmatmul.bf16.gmra.mxu0 %v3386
      %v3397 = vpop.f32.mrf.mxu0
      %v3398 = vadd.f32 0.0, %v3397
      %v3399 = vpop.f32.mrf.mxu0
      %v3400 = vadd.f32 0.0, %v3399
      %3401 = vdwg.mxu0
      %v3402 = vadd.f32 %v3366, %v3398
      %v3403 = vadd.f32 %v3367, %v3400
      %3404 = vrot.lane.b32.xlu0 %v3191, 112
      %v3405 = vpop.permute.xlu0 %3404
      %3406 = vrot.lane.b32.xlu0 %v3192, 112
      %v3407 = vpop.permute.xlu0 %3406
      %v3410 = vsel %vm1657, %v3405, 0.0
      %v3411 = vsel %vm1657, %v3407, 0.0
      %v3412 = vpack.c.bf16 %v3411, %v3410
      %s3413 = scalar_lea.vmem %s10, 48
      %v3414 = vld [vmem:[%s3413] sm:$0xf]
      %v3415 = vld [vmem:[%s3413 + $0x4] sm:$0xf]
      %v3418 = vunpack.c.l.b16 %v3414
      %v3419 = vunpack.c.l.b16 %v3415
      %v3420 = vpack.c.b16 %v3419, %v3418
      %v3422 = vsel %vm1890, %v3420, 0
      %3424 = vmatpush.bf16.msra.mxu0 0
      %3425 = vmatpush.bf16.msra.mxu0 0
      %3426 = vmatpush.bf16.msra.mxu0 0
      %3427 = vmatpush.bf16.msra.mxu0 0
      %3428 = vmatpush.bf16.msra.mxu0 0
      %3429 = vmatpush.bf16.msra.mxu0 0
      %3430 = vmatpush.bf16.msra.mxu0 0
      %3431 = vmatpush.bf16.msra.mxu0 %v3412
      %3432 = vmatmul.bf16.gmra.mxu0 %v3422
      %v3433 = vpop.f32.mrf.mxu0
      %v3434 = vadd.f32 0.0, %v3433
      %v3435 = vpop.f32.mrf.mxu0
      %v3436 = vadd.f32 0.0, %v3435
      %3437 = vdwg.mxu0
      %v3438 = vadd.f32 %v3402, %v3434
      %v3439 = vadd.f32 %v3403, %v3436
      %3440 = vrot.lane.b32.xlu0 %v3191, 111
      %v3441 = vpop.permute.xlu0 %3440
      %3442 = vrot.lane.b32.xlu0 %v3192, 111
      %v3443 = vpop.permute.xlu0 %3442
      %v3446 = vsel %vm1696, %v3441, 0.0
      %v3447 = vsel %vm1696, %v3443, 0.0
      %v3448 = vpack.c.bf16 %v3447, %v3446
      %s3449 = scalar_lea.vmem %s10, 56
      %v3450 = vld [vmem:[%s3449] sm:$0xf]
      %v3451 = vld [vmem:[%s3449 + $0x4] sm:$0xf]
      %v3454 = vunpack.c.l.b16 %v3450
      %v3455 = vunpack.c.l.b16 %v3451
      %v3456 = vpack.c.b16 %v3455, %v3454
      %v3458 = vsel %vm1890, %v3456, 0
      %3460 = vmatpush.bf16.msra.mxu0 0
      %3461 = vmatpush.bf16.msra.mxu0 0
      %3462 = vmatpush.bf16.msra.mxu0 0
      %3463 = vmatpush.bf16.msra.mxu0 0
      %3464 = vmatpush.bf16.msra.mxu0 0
      %3465 = vmatpush.bf16.msra.mxu0 0
      %3466 = vmatpush.bf16.msra.mxu0 0
      %3467 = vmatpush.bf16.msra.mxu0 %v3448
      %3468 = vmatmul.bf16.gmra.mxu0 %v3458
      %v3469 = vpop.f32.mrf.mxu0
      %v3470 = vadd.f32 0.0, %v3469
      %v3471 = vpop.f32.mrf.mxu0
      %v3472 = vadd.f32 0.0, %v3471
      %3473 = vdwg.mxu0
      %v3474 = vadd.f32 %v3438, %v3470
      %v3475 = vadd.f32 %v3439, %v3472
      %3476 = vrot.lane.b32.xlu0 %v3191, 110
      %v3477 = vpop.permute.xlu0 %3476
      %3478 = vrot.lane.b32.xlu0 %v3192, 110
      %v3479 = vpop.permute.xlu0 %3478
      %v3482 = vsel %vm1735, %v3477, 0.0
      %v3483 = vsel %vm1735, %v3479, 0.0
      %v3484 = vpack.c.bf16 %v3483, %v3482
      %s3485 = scalar_lea.vmem %s10, 64
      %v3486 = vld [vmem:[%s3485] sm:$0xf]
      %v3487 = vld [vmem:[%s3485 + $0x4] sm:$0xf]
      %v3490 = vunpack.c.l.b16 %v3486
      %v3491 = vunpack.c.l.b16 %v3487
      %v3492 = vpack.c.b16 %v3491, %v3490
      %v3494 = vsel %vm1890, %v3492, 0
      %3496 = vmatpush.bf16.msra.mxu0 0
      %3497 = vmatpush.bf16.msra.mxu0 0
      %3498 = vmatpush.bf16.msra.mxu0 0
      %3499 = vmatpush.bf16.msra.mxu0 0
      %3500 = vmatpush.bf16.msra.mxu0 0
      %3501 = vmatpush.bf16.msra.mxu0 0
      %3502 = vmatpush.bf16.msra.mxu0 0
      %3503 = vmatpush.bf16.msra.mxu0 %v3484
      %3504 = vmatmul.bf16.gmra.mxu0 %v3494
      %v3505 = vpop.f32.mrf.mxu0
      %v3506 = vadd.f32 0.0, %v3505
      %v3507 = vpop.f32.mrf.mxu0
      %v3508 = vadd.f32 0.0, %v3507
      %3509 = vdwg.mxu0
      %v3510 = vadd.f32 %v3474, %v3506
      %v3511 = vadd.f32 %v3475, %v3508
      %v3512 = vld [vmem:[%s11] sm:$0xff]
      %v3513 = vld [vmem:[%s11 + $0x8] sm:$0xff]
      %3515 = vset.pattern.permute.xlu0 0
      %3516 = vperm.xlu0 %3515, %v3512
      %v3517 = vpop.permute.xlu0 %3516
      %3520 = vset.pattern.permute.xlu0 0
      %3521 = vperm.xlu0 %3520, %v3513
      %v3522 = vpop.permute.xlu0 %3521
      %v3524 = vadd.f32 %v3510, %v3517
      %v3525 = vadd.f32 %v3511, %v3522
      %v3526 = vmax.f32 %v3524, 0.0
      %v3527 = vmax.f32 %v3525, 0.0
      %v3528 = vld [vmem:[%s21] sm:$0xff]
      %v3529 = vld [vmem:[%s21 + $0x8] sm:$0xff]
      %v3530 = vld [vmem:[%s21 + $0x10] sm:$0xff]
      %v3531 = vld [vmem:[%s21 + $0x18] sm:$0xff]
      %v3532 = vld [vmem:[%s21 + $0x20] sm:$0xff]
      %v3533 = vld [vmem:[%s21 + $0x28] sm:$0xff]
      %v3534 = vld [vmem:[%s21 + $0x30] sm:$0xff]
      %v3535 = vld [vmem:[%s21 + $0x38] sm:$0xff]
      %v3536 = vld [vmem:[%s21 + $0x40] sm:$0xff]
      %v3537 = vld [vmem:[%s21 + $0x48] sm:$0xff]
      %v3538 = vld [vmem:[%s21 + $0x50] sm:$0xff]
      %v3539 = vld [vmem:[%s21 + $0x58] sm:$0xff]
      %v3540 = vld [vmem:[%s21 + $0x60] sm:$0xff]
      %v3541 = vld [vmem:[%s21 + $0x68] sm:$0xff]
      %v3542 = vld [vmem:[%s21 + $0x70] sm:$0xff]
      %v3543 = vld [vmem:[%s21 + $0x78] sm:$0xff]
      %v3545 = vsel %vm1795, %v3526, 0
      %v3548 = vsel %vm1795, %v3527, 0
      %3550 = vmatpush.msra.mxu0 0.0
      %3551 = vmatpush.msra.mxu0 0.0
      %3552 = vmatpush.msra.mxu0 0.0
      %3553 = vmatpush.msra.mxu0 0.0
      %3554 = vmatpush.msra.mxu0 0.0
      %3555 = vmatpush.msra.mxu0 0.0
      %3556 = vmatpush.msra.mxu0 0.0
      %3557 = vmatpush.msra.mxu0 0.0
      %3558 = vmatpush.msra.mxu0 %v3542
      %3559 = vmatpush.msra.mxu0 %v3540
      %3560 = vmatpush.msra.mxu0 %v3538
      %3561 = vmatpush.msra.mxu0 %v3536
      %3562 = vmatpush.msra.mxu0 %v3534
      %3563 = vmatpush.msra.mxu0 %v3532
      %3564 = vmatpush.msra.mxu0 %v3530
      %3565 = vmatpush.msra.mxu0 %v3528
      %3566 = vmatmul.f32.gmra.mxu0 %v3545
      %v3567 = vpop.f32.mrf.mxu0
      %v3568 = vadd.f32 0.0, %v3567
      %3569 = vmatmul.f32.gmra.mxu0 %v3548
      %v3570 = vpop.f32.mrf.mxu0
      %v3571 = vadd.f32 0.0, %v3570
      %3572 = vdwg.mxu0
      %3573 = vmatpush.msra.mxu0 0.0
      %3574 = vmatpush.msra.mxu0 0.0
      %3575 = vmatpush.msra.mxu0 0.0
      %3576 = vmatpush.msra.mxu0 0.0
      %3577 = vmatpush.msra.mxu0 0.0
      %3578 = vmatpush.msra.mxu0 0.0
      %3579 = vmatpush.msra.mxu0 0.0
      %3580 = vmatpush.msra.mxu0 0.0
      %3581 = vmatpush.msra.mxu0 %v3543
      %3582 = vmatpush.msra.mxu0 %v3541
      %3583 = vmatpush.msra.mxu0 %v3539
      %3584 = vmatpush.msra.mxu0 %v3537
      %3585 = vmatpush.msra.mxu0 %v3535
      %3586 = vmatpush.msra.mxu0 %v3533
      %3587 = vmatpush.msra.mxu0 %v3531
      %3588 = vmatpush.msra.mxu0 %v3529
      %3589 = vmatmul.f32.gmra.mxu0 %v3545
      %v3590 = vpop.f32.mrf.mxu0
      %v3591 = vadd.f32 0.0, %v3590
      %3592 = vmatmul.f32.gmra.mxu0 %v3548
      %v3593 = vpop.f32.mrf.mxu0
      %v3594 = vadd.f32 0.0, %v3593
      %3595 = vdwg.mxu0
      %3600 = vrot.lane.b32.xlu0 %v3568, 17
      %v3601 = vpop.permute.xlu0 %3600
      %3602 = vrot.lane.b32.xlu0 %v3591, 17
      %v3603 = vpop.permute.xlu0 %3602
      %3604 = vrot.lane.b32.xlu0 %v3571, 17
      %v3605 = vpop.permute.xlu0 %3604
      %3606 = vrot.lane.b32.xlu0 %v3594, 17
      %v3607 = vpop.permute.xlu0 %3606
      %v3608 = vsel %vm714, %v3601, %v3603
      %v3609 = vsel %vm714, %v3605, %v3607
      %vm3616 = vcmask 1047688
      %3617 = vst.msk [vmem:[#allocation2] sm:$0xff] %vm3616, %v3601
      %3618 = vst [vmem:[#allocation2 + $0x8] sm:$0xff] %v3608
      %3619 = vst.msk [vmem:[#allocation2 + $0x10] sm:$0xff] %vm714, %v3603
      %3620 = vst.msk [vmem:[#allocation2 + $0x18] sm:$0xff] %vm3616, %v3605
      %3621 = vst [vmem:[#allocation2 + $0x20] sm:$0xff] %v3609
      %3622 = vst.msk [vmem:[#allocation2 + $0x28] sm:$0xff] %vm714, %v3607
      %v3623 = vld [vmem:[#allocation2] sm:$0xff]
      %v3624 = vld [vmem:[#allocation2 + $0x8] sm:$0xff]
      %v3625 = vld [vmem:[#allocation2 + $0x18] sm:$0xff]
      %v3626 = vld [vmem:[#allocation2 + $0x20] sm:$0xff]
      %v3627 = vsel %vm746, %v3623, 0.0
      %v3628 = vsel %vm747, %v3624, 0.0
      %v3629 = vsel %vm746, %v3625, 0.0
      %v3630 = vsel %vm747, %v3626, 0.0
      %v3631 = vpack.c.bf16 %v3629, %v3627
      %v3632 = vpack.c.bf16 %v3630, %v3628
      %v3633 = vld [vmem:[%s12] sm:$0xf]
      %v3634 = vld [vmem:[#allocation2 + $0x10] sm:$0xff]
      %v3635 = vld [vmem:[#allocation2 + $0x28] sm:$0xff]
      %3642 = vrot.lane.b32.xlu0 %v3623, 127
      %v3643 = vpop.permute.xlu0 %3642
      %3644 = vrot.lane.b32.xlu0 %v3624, 127
      %v3645 = vpop.permute.xlu0 %3644
      %3646 = vrot.lane.b32.xlu0 %v3634, 127
      %v3647 = vpop.permute.xlu0 %3646
      %3648 = vrot.lane.b32.xlu0 %v3625, 127
      %v3649 = vpop.permute.xlu0 %3648
      %3650 = vrot.lane.b32.xlu0 %v3626, 127
      %v3651 = vpop.permute.xlu0 %3650
      %3652 = vrot.lane.b32.xlu0 %v3635, 127
      %v3653 = vpop.permute.xlu0 %3652
      %v3654 = vsel %vm775, %v3643, %v3645
      %v3655 = vsel %vm775, %v3645, %v3647
      %v3656 = vsel %vm775, %v3649, %v3651
      %v3657 = vsel %vm775, %v3651, %v3653
      %v3662 = vsel %vm764, %v3654, 0.0
      %v3663 = vsel %vm765, %v3655, 0.0
      %v3664 = vsel %vm764, %v3656, 0.0
      %v3665 = vsel %vm765, %v3657, 0.0
      %v3666 = vpack.c.bf16 %v3664, %v3662
      %v3667 = vpack.c.bf16 %v3665, %v3663
      %s3668 = scalar_lea.vmem %s12, 4
      %v3669 = vld [vmem:[%s3668] sm:$0xf]
      %v3671 = vsel %vm1890, %v3669, 0
      %3673 = vmatpush.bf16.msra.mxu0 0
      %3674 = vmatpush.bf16.msra.mxu0 0
      %3675 = vmatpush.bf16.msra.mxu0 0
      %3676 = vmatpush.bf16.msra.mxu0 0
      %3677 = vmatpush.bf16.msra.mxu0 0
      %3678 = vmatpush.bf16.msra.mxu0 0
      %3679 = vmatpush.bf16.msra.mxu0 0
      %3680 = vmatpush.bf16.msra.mxu0 %v3666
      %3681 = vmatmul.bf16.gmra.mxu0 %v3671
      %v3682 = vpop.f32.mrf.mxu0
      %v3683 = vadd.f32 0.0, %v3682
      %v3684 = vpop.f32.mrf.mxu0
      %3685 = vdwg.mxu0
      %3686 = vmatpush.bf16.msra.mxu0 0
      %3687 = vmatpush.bf16.msra.mxu0 0
      %3688 = vmatpush.bf16.msra.mxu0 0
      %3689 = vmatpush.bf16.msra.mxu0 0
      %3690 = vmatpush.bf16.msra.mxu0 0
      %3691 = vmatpush.bf16.msra.mxu0 0
      %3692 = vmatpush.bf16.msra.mxu0 0
      %3693 = vmatpush.bf16.msra.mxu0 %v3667
      %3694 = vmatmul.bf16.gmra.mxu0 %v3671
      %v3695 = vpop.f32.mrf.mxu0
      %v3696 = vadd.f32 0.0, %v3695
      %v3697 = vpop.f32.mrf.mxu0
      %3698 = vdwg.mxu0
      %v3700 = vsel %vm1890, %v3633, 0
      %3702 = vmatpush.bf16.msra.mxu0 0
      %3703 = vmatpush.bf16.msra.mxu0 0
      %3704 = vmatpush.bf16.msra.mxu0 0
      %3705 = vmatpush.bf16.msra.mxu0 0
      %3706 = vmatpush.bf16.msra.mxu0 0
      %3707 = vmatpush.bf16.msra.mxu0 0
      %3708 = vmatpush.bf16.msra.mxu0 0
      %3709 = vmatpush.bf16.msra.mxu0 %v3631
      %3710 = vmatmul.bf16.gmra.mxu0 %v3700
      %v3711 = vpop.f32.mrf.mxu0
      %v3712 = vadd.f32 %v3683, %v3711
      %v3713 = vpop.f32.mrf.mxu0
      %3714 = vdwg.mxu0
      %3715 = vmatpush.bf16.msra.mxu0 0
      %3716 = vmatpush.bf16.msra.mxu0 0
      %3717 = vmatpush.bf16.msra.mxu0 0
      %3718 = vmatpush.bf16.msra.mxu0 0
      %3719 = vmatpush.bf16.msra.mxu0 0
      %3720 = vmatpush.bf16.msra.mxu0 0
      %3721 = vmatpush.bf16.msra.mxu0 0
      %3722 = vmatpush.bf16.msra.mxu0 %v3632
      %3723 = vmatmul.bf16.gmra.mxu0 %v3700
      %v3724 = vpop.f32.mrf.mxu0
      %v3725 = vadd.f32 %v3696, %v3724
      %v3726 = vpop.f32.mrf.mxu0
      %3727 = vdwg.mxu0
      %3728 = vrot.lane.b32.xlu0 %v3623, 126
      %v3729 = vpop.permute.xlu0 %3728
      %3730 = vrot.lane.b32.xlu0 %v3624, 126
      %v3731 = vpop.permute.xlu0 %3730
      %3732 = vrot.lane.b32.xlu0 %v3634, 126
      %v3733 = vpop.permute.xlu0 %3732
      %3734 = vrot.lane.b32.xlu0 %v3625, 126
      %v3735 = vpop.permute.xlu0 %3734
      %3736 = vrot.lane.b32.xlu0 %v3626, 126
      %v3737 = vpop.permute.xlu0 %3736
      %3738 = vrot.lane.b32.xlu0 %v3635, 126
      %v3739 = vpop.permute.xlu0 %3738
      %v3740 = vsel %vm881, %v3729, %v3731
      %v3741 = vsel %vm881, %v3731, %v3733
      %v3742 = vsel %vm881, %v3735, %v3737
      %v3743 = vsel %vm881, %v3737, %v3739
      %v3748 = vsel %vm873, %v3740, 0.0
      %v3749 = vsel %vm874, %v3741, 0.0
      %v3750 = vsel %vm873, %v3742, 0.0
      %v3751 = vsel %vm874, %v3743, 0.0
      %v3752 = vpack.c.bf16 %v3750, %v3748
      %v3753 = vpack.c.bf16 %v3751, %v3749
      %s3754 = scalar_lea.vmem %s12, 8
      %v3755 = vld [vmem:[%s3754] sm:$0xf]
      %v3757 = vsel %vm1890, %v3755, 0
      %3759 = vmatpush.bf16.msra.mxu0 0
      %3760 = vmatpush.bf16.msra.mxu0 0
      %3761 = vmatpush.bf16.msra.mxu0 0
      %3762 = vmatpush.bf16.msra.mxu0 0
      %3763 = vmatpush.bf16.msra.mxu0 0
      %3764 = vmatpush.bf16.msra.mxu0 0
      %3765 = vmatpush.bf16.msra.mxu0 0
      %3766 = vmatpush.bf16.msra.mxu0 %v3752
      %3767 = vmatmul.bf16.gmra.mxu0 %v3757
      %v3768 = vpop.f32.mrf.mxu0
      %v3769 = vadd.f32 0.0, %v3768
      %v3770 = vpop.f32.mrf.mxu0
      %3771 = vdwg.mxu0
      %3772 = vmatpush.bf16.msra.mxu0 0
      %3773 = vmatpush.bf16.msra.mxu0 0
      %3774 = vmatpush.bf16.msra.mxu0 0
      %3775 = vmatpush.bf16.msra.mxu0 0
      %3776 = vmatpush.bf16.msra.mxu0 0
      %3777 = vmatpush.bf16.msra.mxu0 0
      %3778 = vmatpush.bf16.msra.mxu0 0
      %3779 = vmatpush.bf16.msra.mxu0 %v3753
      %3780 = vmatmul.bf16.gmra.mxu0 %v3757
      %v3781 = vpop.f32.mrf.mxu0
      %v3782 = vadd.f32 0.0, %v3781
      %v3783 = vpop.f32.mrf.mxu0
      %3784 = vdwg.mxu0
      %v3785 = vadd.f32 %v3712, %v3769
      %v3786 = vadd.f32 %v3725, %v3782
      %3787 = vrot.lane.b32.xlu0 %v3623, 112
      %v3788 = vpop.permute.xlu0 %3787
      %3789 = vrot.lane.b32.xlu0 %v3624, 112
      %v3790 = vpop.permute.xlu0 %3789
      %3791 = vrot.lane.b32.xlu0 %v3634, 112
      %v3792 = vpop.permute.xlu0 %3791
      %3793 = vrot.lane.b32.xlu0 %v3625, 112
      %v3794 = vpop.permute.xlu0 %3793
      %3795 = vrot.lane.b32.xlu0 %v3626, 112
      %v3796 = vpop.permute.xlu0 %3795
      %3797 = vrot.lane.b32.xlu0 %v3635, 112
      %v3798 = vpop.permute.xlu0 %3797
      %v3799 = vsel %vm949, %v3788, %v3790
      %v3800 = vsel %vm949, %v3790, %v3792
      %v3801 = vsel %vm949, %v3794, %v3796
      %v3802 = vsel %vm949, %v3796, %v3798
      %v3807 = vsel %vm941, %v3799, 0.0
      %v3808 = vsel %vm942, %v3800, 0.0
      %v3809 = vsel %vm941, %v3801, 0.0
      %v3810 = vsel %vm942, %v3802, 0.0
      %v3811 = vpack.c.bf16 %v3809, %v3807
      %v3812 = vpack.c.bf16 %v3810, %v3808
      %s3813 = scalar_lea.vmem %s12, 12
      %v3814 = vld [vmem:[%s3813] sm:$0xf]
      %v3816 = vsel %vm1890, %v3814, 0
      %3818 = vmatpush.bf16.msra.mxu0 0
      %3819 = vmatpush.bf16.msra.mxu0 0
      %3820 = vmatpush.bf16.msra.mxu0 0
      %3821 = vmatpush.bf16.msra.mxu0 0
      %3822 = vmatpush.bf16.msra.mxu0 0
      %3823 = vmatpush.bf16.msra.mxu0 0
      %3824 = vmatpush.bf16.msra.mxu0 0
      %3825 = vmatpush.bf16.msra.mxu0 %v3811
      %3826 = vmatmul.bf16.gmra.mxu0 %v3816
      %v3827 = vpop.f32.mrf.mxu0
      %v3828 = vadd.f32 0.0, %v3827
      %v3829 = vpop.f32.mrf.mxu0
      %3830 = vdwg.mxu0
      %3831 = vmatpush.bf16.msra.mxu0 0
      %3832 = vmatpush.bf16.msra.mxu0 0
      %3833 = vmatpush.bf16.msra.mxu0 0
      %3834 = vmatpush.bf16.msra.mxu0 0
      %3835 = vmatpush.bf16.msra.mxu0 0
      %3836 = vmatpush.bf16.msra.mxu0 0
      %3837 = vmatpush.bf16.msra.mxu0 0
      %3838 = vmatpush.bf16.msra.mxu0 %v3812
      %3839 = vmatmul.bf16.gmra.mxu0 %v3816
      %v3840 = vpop.f32.mrf.mxu0
      %v3841 = vadd.f32 0.0, %v3840
      %v3842 = vpop.f32.mrf.mxu0
      %3843 = vdwg.mxu0
      %v3844 = vadd.f32 %v3785, %v3828
      %v3845 = vadd.f32 %v3786, %v3841
      %3846 = vrot.lane.b32.xlu0 %v3623, 111
      %v3847 = vpop.permute.xlu0 %3846
      %3848 = vrot.lane.b32.xlu0 %v3624, 111
      %v3849 = vpop.permute.xlu0 %3848
      %3850 = vrot.lane.b32.xlu0 %v3634, 111
      %v3851 = vpop.permute.xlu0 %3850
      %3852 = vrot.lane.b32.xlu0 %v3625, 111
      %v3853 = vpop.permute.xlu0 %3852
      %3854 = vrot.lane.b32.xlu0 %v3626, 111
      %v3855 = vpop.permute.xlu0 %3854
      %3856 = vrot.lane.b32.xlu0 %v3635, 111
      %v3857 = vpop.permute.xlu0 %3856
      %v3858 = vsel %vm1011, %v3847, %v3849
      %v3859 = vsel %vm1011, %v3849, %v3851
      %v3860 = vsel %vm1011, %v3853, %v3855
      %v3861 = vsel %vm1011, %v3855, %v3857
      %v3866 = vsel %vm1003, %v3858, 0.0
      %v3867 = vsel %vm1004, %v3859, 0.0
      %v3868 = vsel %vm1003, %v3860, 0.0
      %v3869 = vsel %vm1004, %v3861, 0.0
      %v3870 = vpack.c.bf16 %v3868, %v3866
      %v3871 = vpack.c.bf16 %v3869, %v3867
      %s3872 = scalar_lea.vmem %s12, 16
      %v3873 = vld [vmem:[%s3872] sm:$0xf]
      %v3875 = vsel %vm1890, %v3873, 0
      %3877 = vmatpush.bf16.msra.mxu0 0
      %3878 = vmatpush.bf16.msra.mxu0 0
      %3879 = vmatpush.bf16.msra.mxu0 0
      %3880 = vmatpush.bf16.msra.mxu0 0
      %3881 = vmatpush.bf16.msra.mxu0 0
      %3882 = vmatpush.bf16.msra.mxu0 0
      %3883 = vmatpush.bf16.msra.mxu0 0
      %3884 = vmatpush.bf16.msra.mxu0 %v3870
      %3885 = vmatmul.bf16.gmra.mxu0 %v3875
      %v3886 = vpop.f32.mrf.mxu0
      %v3887 = vadd.f32 0.0, %v3886
      %v3888 = vpop.f32.mrf.mxu0
      %3889 = vdwg.mxu0
      %3890 = vmatpush.bf16.msra.mxu0 0
      %3891 = vmatpush.bf16.msra.mxu0 0
      %3892 = vmatpush.bf16.msra.mxu0 0
      %3893 = vmatpush.bf16.msra.mxu0 0
      %3894 = vmatpush.bf16.msra.mxu0 0
      %3895 = vmatpush.bf16.msra.mxu0 0
      %3896 = vmatpush.bf16.msra.mxu0 0
      %3897 = vmatpush.bf16.msra.mxu0 %v3871
      %3898 = vmatmul.bf16.gmra.mxu0 %v3875
      %v3899 = vpop.f32.mrf.mxu0
      %v3900 = vadd.f32 0.0, %v3899
      %v3901 = vpop.f32.mrf.mxu0
      %3902 = vdwg.mxu0
      %v3903 = vadd.f32 %v3844, %v3887
      %v3904 = vadd.f32 %v3845, %v3900
      %3905 = vrot.lane.b32.xlu0 %v3623, 110
      %v3906 = vpop.permute.xlu0 %3905
      %3907 = vrot.lane.b32.xlu0 %v3624, 110
      %v3908 = vpop.permute.xlu0 %3907
      %3909 = vrot.lane.b32.xlu0 %v3634, 110
      %v3910 = vpop.permute.xlu0 %3909
      %3911 = vrot.lane.b32.xlu0 %v3625, 110
      %v3912 = vpop.permute.xlu0 %3911
      %3913 = vrot.lane.b32.xlu0 %v3626, 110
      %v3914 = vpop.permute.xlu0 %3913
      %3915 = vrot.lane.b32.xlu0 %v3635, 110
      %v3916 = vpop.permute.xlu0 %3915
      %v3917 = vsel %vm1073, %v3906, %v3908
      %v3918 = vsel %vm1073, %v3908, %v3910
      %v3919 = vsel %vm1073, %v3912, %v3914
      %v3920 = vsel %vm1073, %v3914, %v3916
      %v3925 = vsel %vm1065, %v3917, 0.0
      %v3926 = vsel %vm1066, %v3918, 0.0
      %v3927 = vsel %vm1065, %v3919, 0.0
      %v3928 = vsel %vm1066, %v3920, 0.0
      %v3929 = vpack.c.bf16 %v3927, %v3925
      %v3930 = vpack.c.bf16 %v3928, %v3926
      %s3931 = scalar_lea.vmem %s12, 20
      %v3932 = vld [vmem:[%s3931] sm:$0xf]
      %v3934 = vsel %vm1890, %v3932, 0
      %3936 = vmatpush.bf16.msra.mxu0 0
      %3937 = vmatpush.bf16.msra.mxu0 0
      %3938 = vmatpush.bf16.msra.mxu0 0
      %3939 = vmatpush.bf16.msra.mxu0 0
      %3940 = vmatpush.bf16.msra.mxu0 0
      %3941 = vmatpush.bf16.msra.mxu0 0
      %3942 = vmatpush.bf16.msra.mxu0 0
      %3943 = vmatpush.bf16.msra.mxu0 %v3929
      %3944 = vmatmul.bf16.gmra.mxu0 %v3934
      %v3945 = vpop.f32.mrf.mxu0
      %v3946 = vadd.f32 0.0, %v3945
      %v3947 = vpop.f32.mrf.mxu0
      %3948 = vdwg.mxu0
      %3949 = vmatpush.bf16.msra.mxu0 0
      %3950 = vmatpush.bf16.msra.mxu0 0
      %3951 = vmatpush.bf16.msra.mxu0 0
      %3952 = vmatpush.bf16.msra.mxu0 0
      %3953 = vmatpush.bf16.msra.mxu0 0
      %3954 = vmatpush.bf16.msra.mxu0 0
      %3955 = vmatpush.bf16.msra.mxu0 0
      %3956 = vmatpush.bf16.msra.mxu0 %v3930
      %3957 = vmatmul.bf16.gmra.mxu0 %v3934
      %v3958 = vpop.f32.mrf.mxu0
      %v3959 = vadd.f32 0.0, %v3958
      %v3960 = vpop.f32.mrf.mxu0
      %3961 = vdwg.mxu0
      %v3962 = vadd.f32 %v3903, %v3946
      %v3963 = vadd.f32 %v3904, %v3959
      %3964 = vrot.lane.b32.xlu0 %v3623, 96
      %v3965 = vpop.permute.xlu0 %3964
      %3966 = vrot.lane.b32.xlu0 %v3624, 96
      %v3967 = vpop.permute.xlu0 %3966
      %3968 = vrot.lane.b32.xlu0 %v3634, 96
      %v3969 = vpop.permute.xlu0 %3968
      %3970 = vrot.lane.b32.xlu0 %v3625, 96
      %v3971 = vpop.permute.xlu0 %3970
      %3972 = vrot.lane.b32.xlu0 %v3626, 96
      %v3973 = vpop.permute.xlu0 %3972
      %3974 = vrot.lane.b32.xlu0 %v3635, 96
      %v3975 = vpop.permute.xlu0 %3974
      %v3976 = vsel %vm1143, %v3965, %v3967
      %v3977 = vsel %vm1143, %v3967, %v3969
      %v3978 = vsel %vm1143, %v3971, %v3973
      %v3979 = vsel %vm1143, %v3973, %v3975
      %v3984 = vsel %vm1135, %v3976, 0.0
      %v3985 = vsel %vm1136, %v3977, 0.0
      %v3986 = vsel %vm1135, %v3978, 0.0
      %v3987 = vsel %vm1136, %v3979, 0.0
      %v3988 = vpack.c.bf16 %v3986, %v3984
      %v3989 = vpack.c.bf16 %v3987, %v3985
      %s3990 = scalar_lea.vmem %s12, 24
      %v3991 = vld [vmem:[%s3990] sm:$0xf]
      %v3993 = vsel %vm1890, %v3991, 0
      %3995 = vmatpush.bf16.msra.mxu0 0
      %3996 = vmatpush.bf16.msra.mxu0 0
      %3997 = vmatpush.bf16.msra.mxu0 0
      %3998 = vmatpush.bf16.msra.mxu0 0
      %3999 = vmatpush.bf16.msra.mxu0 0
      %4000 = vmatpush.bf16.msra.mxu0 0
      %4001 = vmatpush.bf16.msra.mxu0 0
      %4002 = vmatpush.bf16.msra.mxu0 %v3988
      %4003 = vmatmul.bf16.gmra.mxu0 %v3993
      %v4004 = vpop.f32.mrf.mxu0
      %v4005 = vadd.f32 0.0, %v4004
      %v4006 = vpop.f32.mrf.mxu0
      %4007 = vdwg.mxu0
      %4008 = vmatpush.bf16.msra.mxu0 0
      %4009 = vmatpush.bf16.msra.mxu0 0
      %4010 = vmatpush.bf16.msra.mxu0 0
      %4011 = vmatpush.bf16.msra.mxu0 0
      %4012 = vmatpush.bf16.msra.mxu0 0
      %4013 = vmatpush.bf16.msra.mxu0 0
      %4014 = vmatpush.bf16.msra.mxu0 0
      %4015 = vmatpush.bf16.msra.mxu0 %v3989
      %4016 = vmatmul.bf16.gmra.mxu0 %v3993
      %v4017 = vpop.f32.mrf.mxu0
      %v4018 = vadd.f32 0.0, %v4017
      %v4019 = vpop.f32.mrf.mxu0
      %4020 = vdwg.mxu0
      %v4021 = vadd.f32 %v3962, %v4005
      %v4022 = vadd.f32 %v3963, %v4018
      %4023 = vrot.lane.b32.xlu0 %v3623, 95
      %v4024 = vpop.permute.xlu0 %4023
      %4025 = vrot.lane.b32.xlu0 %v3624, 95
      %v4026 = vpop.permute.xlu0 %4025
      %4027 = vrot.lane.b32.xlu0 %v3634, 95
      %v4028 = vpop.permute.xlu0 %4027
      %4029 = vrot.lane.b32.xlu0 %v3625, 95
      %v4030 = vpop.permute.xlu0 %4029
      %4031 = vrot.lane.b32.xlu0 %v3626, 95
      %v4032 = vpop.permute.xlu0 %4031
      %4033 = vrot.lane.b32.xlu0 %v3635, 95
      %v4034 = vpop.permute.xlu0 %4033
      %v4035 = vsel %vm1205, %v4024, %v4026
      %v4036 = vsel %vm1205, %v4026, %v4028
      %v4037 = vsel %vm1205, %v4030, %v4032
      %v4038 = vsel %vm1205, %v4032, %v4034
      %v4043 = vsel %vm1197, %v4035, 0.0
      %v4044 = vsel %vm1198, %v4036, 0.0
      %v4045 = vsel %vm1197, %v4037, 0.0
      %v4046 = vsel %vm1198, %v4038, 0.0
      %v4047 = vpack.c.bf16 %v4045, %v4043
      %v4048 = vpack.c.bf16 %v4046, %v4044
      %s4049 = scalar_lea.vmem %s12, 28
      %v4050 = vld [vmem:[%s4049] sm:$0xf]
      %v4052 = vsel %vm1890, %v4050, 0
      %4054 = vmatpush.bf16.msra.mxu0 0
      %4055 = vmatpush.bf16.msra.mxu0 0
      %4056 = vmatpush.bf16.msra.mxu0 0
      %4057 = vmatpush.bf16.msra.mxu0 0
      %4058 = vmatpush.bf16.msra.mxu0 0
      %4059 = vmatpush.bf16.msra.mxu0 0
      %4060 = vmatpush.bf16.msra.mxu0 0
      %4061 = vmatpush.bf16.msra.mxu0 %v4047
      %4062 = vmatmul.bf16.gmra.mxu0 %v4052
      %v4063 = vpop.f32.mrf.mxu0
      %v4064 = vadd.f32 0.0, %v4063
      %v4065 = vpop.f32.mrf.mxu0
      %4066 = vdwg.mxu0
      %4067 = vmatpush.bf16.msra.mxu0 0
      %4068 = vmatpush.bf16.msra.mxu0 0
      %4069 = vmatpush.bf16.msra.mxu0 0
      %4070 = vmatpush.bf16.msra.mxu0 0
      %4071 = vmatpush.bf16.msra.mxu0 0
      %4072 = vmatpush.bf16.msra.mxu0 0
      %4073 = vmatpush.bf16.msra.mxu0 0
      %4074 = vmatpush.bf16.msra.mxu0 %v4048
      %4075 = vmatmul.bf16.gmra.mxu0 %v4052
      %v4076 = vpop.f32.mrf.mxu0
      %v4077 = vadd.f32 0.0, %v4076
      %v4078 = vpop.f32.mrf.mxu0
      %4079 = vdwg.mxu0
      %v4080 = vadd.f32 %v4021, %v4064
      %v4081 = vadd.f32 %v4022, %v4077
      %4082 = vrot.lane.b32.xlu0 %v3623, 94
      %v4083 = vpop.permute.xlu0 %4082
      %4084 = vrot.lane.b32.xlu0 %v3624, 94
      %v4085 = vpop.permute.xlu0 %4084
      %4086 = vrot.lane.b32.xlu0 %v3634, 94
      %v4087 = vpop.permute.xlu0 %4086
      %4088 = vrot.lane.b32.xlu0 %v3625, 94
      %v4089 = vpop.permute.xlu0 %4088
      %4090 = vrot.lane.b32.xlu0 %v3626, 94
      %v4091 = vpop.permute.xlu0 %4090
      %4092 = vrot.lane.b32.xlu0 %v3635, 94
      %v4093 = vpop.permute.xlu0 %4092
      %v4094 = vsel %vm1267, %v4083, %v4085
      %v4095 = vsel %vm1267, %v4085, %v4087
      %v4096 = vsel %vm1267, %v4089, %v4091
      %v4097 = vsel %vm1267, %v4091, %v4093
      %v4102 = vsel %vm1259, %v4094, 0.0
      %v4103 = vsel %vm1260, %v4095, 0.0
      %v4104 = vsel %vm1259, %v4096, 0.0
      %v4105 = vsel %vm1260, %v4097, 0.0
      %v4106 = vpack.c.bf16 %v4104, %v4102
      %v4107 = vpack.c.bf16 %v4105, %v4103
      %s4108 = scalar_lea.vmem %s12, 32
      %v4109 = vld [vmem:[%s4108] sm:$0xf]
      %v4111 = vsel %vm1890, %v4109, 0
      %4113 = vmatpush.bf16.msra.mxu0 0
      %4114 = vmatpush.bf16.msra.mxu0 0
      %4115 = vmatpush.bf16.msra.mxu0 0
      %4116 = vmatpush.bf16.msra.mxu0 0
      %4117 = vmatpush.bf16.msra.mxu0 0
      %4118 = vmatpush.bf16.msra.mxu0 0
      %4119 = vmatpush.bf16.msra.mxu0 0
      %4120 = vmatpush.bf16.msra.mxu0 %v4106
      %4121 = vmatmul.bf16.gmra.mxu0 %v4111
      %v4122 = vpop.f32.mrf.mxu0
      %v4123 = vadd.f32 0.0, %v4122
      %v4124 = vpop.f32.mrf.mxu0
      %4125 = vdwg.mxu0
      %4126 = vmatpush.bf16.msra.mxu0 0
      %4127 = vmatpush.bf16.msra.mxu0 0
      %4128 = vmatpush.bf16.msra.mxu0 0
      %4129 = vmatpush.bf16.msra.mxu0 0
      %4130 = vmatpush.bf16.msra.mxu0 0
      %4131 = vmatpush.bf16.msra.mxu0 0
      %4132 = vmatpush.bf16.msra.mxu0 0
      %4133 = vmatpush.bf16.msra.mxu0 %v4107
      %4134 = vmatmul.bf16.gmra.mxu0 %v4111
      %v4135 = vpop.f32.mrf.mxu0
      %v4136 = vadd.f32 0.0, %v4135
      %v4137 = vpop.f32.mrf.mxu0
      %4138 = vdwg.mxu0
      %v4139 = vadd.f32 %v4080, %v4123
      %v4140 = vadd.f32 %v4081, %v4136
      %4143 = vrot.lane.b32.xlu0 %v1323, 17
      %v4144 = vpop.permute.xlu0 %4143
      %4145 = vrot.lane.b32.xlu0 %v1324, 17
      %v4146 = vpop.permute.xlu0 %4145
      %v4147 = vsel %vm714, %v4144, %v4146
      %4151 = vst.msk [vmem:[#allocation2] sm:$0xff] %vm3616, %v4144
      %4152 = vst [vmem:[#allocation2 + $0x8] sm:$0xff] %v4147
      %4153 = vst.msk [vmem:[#allocation2 + $0x10] sm:$0xff] %vm714, %v4146
      %v4154 = vld [vmem:[#allocation2] sm:$0xff]
      %v4155 = vld [vmem:[#allocation2 + $0x8] sm:$0xff]
      %v4156 = vsel %vm746, %v4154, 0.0
      %v4157 = vsel %vm747, %v4155, 0.0
      %v4158 = vpack.c.bf16 %v4156, %v4156
      %v4159 = vpack.c.bf16 %v4157, %v4157
      %v4160 = vld [vmem:[%s13] sm:$0xf]
      %v4162 = vsel %vm1441, %v4160, 0
      %v4165 = vsel %vm1445, %v4158, 0
      %v4168 = vsel %vm1445, %v4159, 0
      %4170 = vmatpush.bf16.msra.mxu0 0
      %4171 = vmatpush.bf16.msra.mxu0 0
      %4172 = vmatpush.bf16.msra.mxu0 0
      %4173 = vmatpush.bf16.msra.mxu0 0
      %4174 = vmatpush.bf16.msra.mxu0 0
      %4175 = vmatpush.bf16.msra.mxu0 0
      %4176 = vmatpush.bf16.msra.mxu0 0
      %4177 = vmatpush.bf16.msra.mxu0 %v4165
      %4178 = vmatmul.bf16.gmra.mxu0 %v4162
      %v4179 = vpop.f32.mrf.mxu0
      %v4180 = vadd.f32 0.0, %v4179
      %v4181 = vpop.f32.mrf.mxu0
      %4182 = vdwg.mxu0
      %4183 = vmatpush.bf16.msra.mxu0 0
      %4184 = vmatpush.bf16.msra.mxu0 0
      %4185 = vmatpush.bf16.msra.mxu0 0
      %4186 = vmatpush.bf16.msra.mxu0 0
      %4187 = vmatpush.bf16.msra.mxu0 0
      %4188 = vmatpush.bf16.msra.mxu0 0
      %4189 = vmatpush.bf16.msra.mxu0 0
      %4190 = vmatpush.bf16.msra.mxu0 %v4168
      %4191 = vmatmul.bf16.gmra.mxu0 %v4162
      %v4192 = vpop.f32.mrf.mxu0
      %v4193 = vadd.f32 0.0, %v4192
      %v4194 = vpop.f32.mrf.mxu0
      %4195 = vdwg.mxu0
      %v4196 = vadd.f32 %v4139, %v4180
      %v4197 = vadd.f32 %v4140, %v4193
      %v4198 = vld [vmem:[#allocation2] sm:$0xff]
      %v4199 = vld [vmem:[#allocation2 + $0x8] sm:$0xff]
      %v4200 = vld [vmem:[#allocation2 + $0x10] sm:$0xff]
      %4204 = vrot.lane.b32.xlu0 %v4198, 127
      %v4205 = vpop.permute.xlu0 %4204
      %4206 = vrot.lane.b32.xlu0 %v4199, 127
      %v4207 = vpop.permute.xlu0 %4206
      %4208 = vrot.lane.b32.xlu0 %v4200, 127
      %v4209 = vpop.permute.xlu0 %4208
      %v4210 = vsel %vm775, %v4205, %v4207
      %v4211 = vsel %vm775, %v4207, %v4209
      %v4214 = vsel %vm764, %v4210, 0.0
      %v4215 = vsel %vm765, %v4211, 0.0
      %v4216 = vpack.c.bf16 %v4214, %v4214
      %v4217 = vpack.c.bf16 %v4215, %v4215
      %s4218 = scalar_lea.vmem %s13, 4
      %v4219 = vld [vmem:[%s4218] sm:$0xf]
      %v4221 = vsel %vm1441, %v4219, 0
      %v4224 = vsel %vm1445, %v4216, 0
      %v4227 = vsel %vm1445, %v4217, 0
      %4229 = vmatpush.bf16.msra.mxu0 0
      %4230 = vmatpush.bf16.msra.mxu0 0
      %4231 = vmatpush.bf16.msra.mxu0 0
      %4232 = vmatpush.bf16.msra.mxu0 0
      %4233 = vmatpush.bf16.msra.mxu0 0
      %4234 = vmatpush.bf16.msra.mxu0 0
      %4235 = vmatpush.bf16.msra.mxu0 0
      %4236 = vmatpush.bf16.msra.mxu0 %v4224
      %4237 = vmatmul.bf16.gmra.mxu0 %v4221
      %v4238 = vpop.f32.mrf.mxu0
      %v4239 = vadd.f32 0.0, %v4238
      %v4240 = vpop.f32.mrf.mxu0
      %4241 = vdwg.mxu0
      %4242 = vmatpush.bf16.msra.mxu0 0
      %4243 = vmatpush.bf16.msra.mxu0 0
      %4244 = vmatpush.bf16.msra.mxu0 0
      %4245 = vmatpush.bf16.msra.mxu0 0
      %4246 = vmatpush.bf16.msra.mxu0 0
      %4247 = vmatpush.bf16.msra.mxu0 0
      %4248 = vmatpush.bf16.msra.mxu0 0
      %4249 = vmatpush.bf16.msra.mxu0 %v4227
      %4250 = vmatmul.bf16.gmra.mxu0 %v4221
      %v4251 = vpop.f32.mrf.mxu0
      %v4252 = vadd.f32 0.0, %v4251
      %v4253 = vpop.f32.mrf.mxu0
      %4254 = vdwg.mxu0
      %v4255 = vadd.f32 %v4196, %v4239
      %v4256 = vadd.f32 %v4197, %v4252
      %4257 = vrot.lane.b32.xlu0 %v4198, 126
      %v4258 = vpop.permute.xlu0 %4257
      %4259 = vrot.lane.b32.xlu0 %v4199, 126
      %v4260 = vpop.permute.xlu0 %4259
      %4261 = vrot.lane.b32.xlu0 %v4200, 126
      %v4262 = vpop.permute.xlu0 %4261
      %v4263 = vsel %vm881, %v4258, %v4260
      %v4264 = vsel %vm881, %v4260, %v4262
      %v4267 = vsel %vm873, %v4263, 0.0
      %v4268 = vsel %vm874, %v4264, 0.0
      %v4269 = vpack.c.bf16 %v4267, %v4267
      %v4270 = vpack.c.bf16 %v4268, %v4268
      %s4271 = scalar_lea.vmem %s13, 8
      %v4272 = vld [vmem:[%s4271] sm:$0xf]
      %v4274 = vsel %vm1441, %v4272, 0
      %v4277 = vsel %vm1445, %v4269, 0
      %v4280 = vsel %vm1445, %v4270, 0
      %4282 = vmatpush.bf16.msra.mxu0 0
      %4283 = vmatpush.bf16.msra.mxu0 0
      %4284 = vmatpush.bf16.msra.mxu0 0
      %4285 = vmatpush.bf16.msra.mxu0 0
      %4286 = vmatpush.bf16.msra.mxu0 0
      %4287 = vmatpush.bf16.msra.mxu0 0
      %4288 = vmatpush.bf16.msra.mxu0 0
      %4289 = vmatpush.bf16.msra.mxu0 %v4277
      %4290 = vmatmul.bf16.gmra.mxu0 %v4274
      %v4291 = vpop.f32.mrf.mxu0
      %v4292 = vadd.f32 0.0, %v4291
      %v4293 = vpop.f32.mrf.mxu0
      %4294 = vdwg.mxu0
      %4295 = vmatpush.bf16.msra.mxu0 0
      %4296 = vmatpush.bf16.msra.mxu0 0
      %4297 = vmatpush.bf16.msra.mxu0 0
      %4298 = vmatpush.bf16.msra.mxu0 0
      %4299 = vmatpush.bf16.msra.mxu0 0
      %4300 = vmatpush.bf16.msra.mxu0 0
      %4301 = vmatpush.bf16.msra.mxu0 0
      %4302 = vmatpush.bf16.msra.mxu0 %v4280
      %4303 = vmatmul.bf16.gmra.mxu0 %v4274
      %v4304 = vpop.f32.mrf.mxu0
      %v4305 = vadd.f32 0.0, %v4304
      %v4306 = vpop.f32.mrf.mxu0
      %4307 = vdwg.mxu0
      %v4308 = vadd.f32 %v4255, %v4292
      %v4309 = vadd.f32 %v4256, %v4305
      %4310 = vrot.lane.b32.xlu0 %v4198, 112
      %v4311 = vpop.permute.xlu0 %4310
      %4312 = vrot.lane.b32.xlu0 %v4199, 112
      %v4313 = vpop.permute.xlu0 %4312
      %4314 = vrot.lane.b32.xlu0 %v4200, 112
      %v4315 = vpop.permute.xlu0 %4314
      %v4316 = vsel %vm949, %v4311, %v4313
      %v4317 = vsel %vm949, %v4313, %v4315
      %v4320 = vsel %vm941, %v4316, 0.0
      %v4321 = vsel %vm942, %v4317, 0.0
      %v4322 = vpack.c.bf16 %v4320, %v4320
      %v4323 = vpack.c.bf16 %v4321, %v4321
      %s4324 = scalar_lea.vmem %s13, 12
      %v4325 = vld [vmem:[%s4324] sm:$0xf]
      %v4327 = vsel %vm1441, %v4325, 0
      %v4330 = vsel %vm1445, %v4322, 0
      %v4333 = vsel %vm1445, %v4323, 0
      %4335 = vmatpush.bf16.msra.mxu0 0
      %4336 = vmatpush.bf16.msra.mxu0 0
      %4337 = vmatpush.bf16.msra.mxu0 0
      %4338 = vmatpush.bf16.msra.mxu0 0
      %4339 = vmatpush.bf16.msra.mxu0 0
      %4340 = vmatpush.bf16.msra.mxu0 0
      %4341 = vmatpush.bf16.msra.mxu0 0
      %4342 = vmatpush.bf16.msra.mxu0 %v4330
      %4343 = vmatmul.bf16.gmra.mxu0 %v4327
      %v4344 = vpop.f32.mrf.mxu0
      %v4345 = vadd.f32 0.0, %v4344
      %v4346 = vpop.f32.mrf.mxu0
      %4347 = vdwg.mxu0
      %4348 = vmatpush.bf16.msra.mxu0 0
      %4349 = vmatpush.bf16.msra.mxu0 0
      %4350 = vmatpush.bf16.msra.mxu0 0
      %4351 = vmatpush.bf16.msra.mxu0 0
      %4352 = vmatpush.bf16.msra.mxu0 0
      %4353 = vmatpush.bf16.msra.mxu0 0
      %4354 = vmatpush.bf16.msra.mxu0 0
      %4355 = vmatpush.bf16.msra.mxu0 %v4333
      %4356 = vmatmul.bf16.gmra.mxu0 %v4327
      %v4357 = vpop.f32.mrf.mxu0
      %v4358 = vadd.f32 0.0, %v4357
      %v4359 = vpop.f32.mrf.mxu0
      %4360 = vdwg.mxu0
      %v4361 = vadd.f32 %v4308, %v4345
      %v4362 = vadd.f32 %v4309, %v4358
      %4363 = vrot.lane.b32.xlu0 %v4198, 111
      %v4364 = vpop.permute.xlu0 %4363
      %4365 = vrot.lane.b32.xlu0 %v4199, 111
      %v4366 = vpop.permute.xlu0 %4365
      %4367 = vrot.lane.b32.xlu0 %v4200, 111
      %v4368 = vpop.permute.xlu0 %4367
      %v4369 = vsel %vm1011, %v4364, %v4366
      %v4370 = vsel %vm1011, %v4366, %v4368
      %v4373 = vsel %vm1003, %v4369, 0.0
      %v4374 = vsel %vm1004, %v4370, 0.0
      %v4375 = vpack.c.bf16 %v4373, %v4373
      %v4376 = vpack.c.bf16 %v4374, %v4374
      %s4377 = scalar_lea.vmem %s13, 16
      %v4378 = vld [vmem:[%s4377] sm:$0xf]
      %v4380 = vsel %vm1441, %v4378, 0
      %v4383 = vsel %vm1445, %v4375, 0
      %v4386 = vsel %vm1445, %v4376, 0
      %4388 = vmatpush.bf16.msra.mxu0 0
      %4389 = vmatpush.bf16.msra.mxu0 0
      %4390 = vmatpush.bf16.msra.mxu0 0
      %4391 = vmatpush.bf16.msra.mxu0 0
      %4392 = vmatpush.bf16.msra.mxu0 0
      %4393 = vmatpush.bf16.msra.mxu0 0
      %4394 = vmatpush.bf16.msra.mxu0 0
      %4395 = vmatpush.bf16.msra.mxu0 %v4383
      %4396 = vmatmul.bf16.gmra.mxu0 %v4380
      %v4397 = vpop.f32.mrf.mxu0
      %v4398 = vadd.f32 0.0, %v4397
      %v4399 = vpop.f32.mrf.mxu0
      %4400 = vdwg.mxu0
      %4401 = vmatpush.bf16.msra.mxu0 0
      %4402 = vmatpush.bf16.msra.mxu0 0
      %4403 = vmatpush.bf16.msra.mxu0 0
      %4404 = vmatpush.bf16.msra.mxu0 0
      %4405 = vmatpush.bf16.msra.mxu0 0
      %4406 = vmatpush.bf16.msra.mxu0 0
      %4407 = vmatpush.bf16.msra.mxu0 0
      %4408 = vmatpush.bf16.msra.mxu0 %v4386
      %4409 = vmatmul.bf16.gmra.mxu0 %v4380
      %v4410 = vpop.f32.mrf.mxu0
      %v4411 = vadd.f32 0.0, %v4410
      %v4412 = vpop.f32.mrf.mxu0
      %4413 = vdwg.mxu0
      %v4414 = vadd.f32 %v4361, %v4398
      %v4415 = vadd.f32 %v4362, %v4411
      %4416 = vrot.lane.b32.xlu0 %v4198, 110
      %v4417 = vpop.permute.xlu0 %4416
      %4418 = vrot.lane.b32.xlu0 %v4199, 110
      %v4419 = vpop.permute.xlu0 %4418
      %4420 = vrot.lane.b32.xlu0 %v4200, 110
      %v4421 = vpop.permute.xlu0 %4420
      %v4422 = vsel %vm1073, %v4417, %v4419
      %v4423 = vsel %vm1073, %v4419, %v4421
      %v4426 = vsel %vm1065, %v4422, 0.0
      %v4427 = vsel %vm1066, %v4423, 0.0
      %v4428 = vpack.c.bf16 %v4426, %v4426
      %v4429 = vpack.c.bf16 %v4427, %v4427
      %s4430 = scalar_lea.vmem %s13, 20
      %v4431 = vld [vmem:[%s4430] sm:$0xf]
      %v4433 = vsel %vm1441, %v4431, 0
      %v4436 = vsel %vm1445, %v4428, 0
      %v4439 = vsel %vm1445, %v4429, 0
      %4441 = vmatpush.bf16.msra.mxu0 0
      %4442 = vmatpush.bf16.msra.mxu0 0
      %4443 = vmatpush.bf16.msra.mxu0 0
      %4444 = vmatpush.bf16.msra.mxu0 0
      %4445 = vmatpush.bf16.msra.mxu0 0
      %4446 = vmatpush.bf16.msra.mxu0 0
      %4447 = vmatpush.bf16.msra.mxu0 0
      %4448 = vmatpush.bf16.msra.mxu0 %v4436
      %4449 = vmatmul.bf16.gmra.mxu0 %v4433
      %v4450 = vpop.f32.mrf.mxu0
      %v4451 = vadd.f32 0.0, %v4450
      %v4452 = vpop.f32.mrf.mxu0
      %4453 = vdwg.mxu0
      %4454 = vmatpush.bf16.msra.mxu0 0
      %4455 = vmatpush.bf16.msra.mxu0 0
      %4456 = vmatpush.bf16.msra.mxu0 0
      %4457 = vmatpush.bf16.msra.mxu0 0
      %4458 = vmatpush.bf16.msra.mxu0 0
      %4459 = vmatpush.bf16.msra.mxu0 0
      %4460 = vmatpush.bf16.msra.mxu0 0
      %4461 = vmatpush.bf16.msra.mxu0 %v4439
      %4462 = vmatmul.bf16.gmra.mxu0 %v4433
      %v4463 = vpop.f32.mrf.mxu0
      %v4464 = vadd.f32 0.0, %v4463
      %v4465 = vpop.f32.mrf.mxu0
      %4466 = vdwg.mxu0
      %v4467 = vadd.f32 %v4414, %v4451
      %v4468 = vadd.f32 %v4415, %v4464
      %4469 = vrot.lane.b32.xlu0 %v4198, 96
      %v4470 = vpop.permute.xlu0 %4469
      %4471 = vrot.lane.b32.xlu0 %v4199, 96
      %v4472 = vpop.permute.xlu0 %4471
      %4473 = vrot.lane.b32.xlu0 %v4200, 96
      %v4474 = vpop.permute.xlu0 %4473
      %v4475 = vsel %vm1143, %v4470, %v4472
      %v4476 = vsel %vm1143, %v4472, %v4474
      %v4479 = vsel %vm1135, %v4475, 0.0
      %v4480 = vsel %vm1136, %v4476, 0.0
      %v4481 = vpack.c.bf16 %v4479, %v4479
      %v4482 = vpack.c.bf16 %v4480, %v4480
      %s4483 = scalar_lea.vmem %s13, 24
      %v4484 = vld [vmem:[%s4483] sm:$0xf]
      %v4486 = vsel %vm1441, %v4484, 0
      %v4489 = vsel %vm1445, %v4481, 0
      %v4492 = vsel %vm1445, %v4482, 0
      %4494 = vmatpush.bf16.msra.mxu0 0
      %4495 = vmatpush.bf16.msra.mxu0 0
      %4496 = vmatpush.bf16.msra.mxu0 0
      %4497 = vmatpush.bf16.msra.mxu0 0
      %4498 = vmatpush.bf16.msra.mxu0 0
      %4499 = vmatpush.bf16.msra.mxu0 0
      %4500 = vmatpush.bf16.msra.mxu0 0
      %4501 = vmatpush.bf16.msra.mxu0 %v4489
      %4502 = vmatmul.bf16.gmra.mxu0 %v4486
      %v4503 = vpop.f32.mrf.mxu0
      %v4504 = vadd.f32 0.0, %v4503
      %v4505 = vpop.f32.mrf.mxu0
      %4506 = vdwg.mxu0
      %4507 = vmatpush.bf16.msra.mxu0 0
      %4508 = vmatpush.bf16.msra.mxu0 0
      %4509 = vmatpush.bf16.msra.mxu0 0
      %4510 = vmatpush.bf16.msra.mxu0 0
      %4511 = vmatpush.bf16.msra.mxu0 0
      %4512 = vmatpush.bf16.msra.mxu0 0
      %4513 = vmatpush.bf16.msra.mxu0 0
      %4514 = vmatpush.bf16.msra.mxu0 %v4492
      %4515 = vmatmul.bf16.gmra.mxu0 %v4486
      %v4516 = vpop.f32.mrf.mxu0
      %v4517 = vadd.f32 0.0, %v4516
      %v4518 = vpop.f32.mrf.mxu0
      %4519 = vdwg.mxu0
      %v4520 = vadd.f32 %v4467, %v4504
      %v4521 = vadd.f32 %v4468, %v4517
      %4522 = vrot.lane.b32.xlu0 %v4198, 95
      %v4523 = vpop.permute.xlu0 %4522
      %4524 = vrot.lane.b32.xlu0 %v4199, 95
      %v4525 = vpop.permute.xlu0 %4524
      %4526 = vrot.lane.b32.xlu0 %v4200, 95
      %v4527 = vpop.permute.xlu0 %4526
      %v4528 = vsel %vm1205, %v4523, %v4525
      %v4529 = vsel %vm1205, %v4525, %v4527
      %v4532 = vsel %vm1197, %v4528, 0.0
      %v4533 = vsel %vm1198, %v4529, 0.0
      %v4534 = vpack.c.bf16 %v4532, %v4532
      %v4535 = vpack.c.bf16 %v4533, %v4533
      %s4536 = scalar_lea.vmem %s13, 28
      %v4537 = vld [vmem:[%s4536] sm:$0xf]
      %v4539 = vsel %vm1441, %v4537, 0
      %v4542 = vsel %vm1445, %v4534, 0
      %v4545 = vsel %vm1445, %v4535, 0
      %4547 = vmatpush.bf16.msra.mxu0 0
      %4548 = vmatpush.bf16.msra.mxu0 0
      %4549 = vmatpush.bf16.msra.mxu0 0
      %4550 = vmatpush.bf16.msra.mxu0 0
      %4551 = vmatpush.bf16.msra.mxu0 0
      %4552 = vmatpush.bf16.msra.mxu0 0
      %4553 = vmatpush.bf16.msra.mxu0 0
      %4554 = vmatpush.bf16.msra.mxu0 %v4542
      %4555 = vmatmul.bf16.gmra.mxu0 %v4539
      %v4556 = vpop.f32.mrf.mxu0
      %v4557 = vadd.f32 0.0, %v4556
      %v4558 = vpop.f32.mrf.mxu0
      %4559 = vdwg.mxu0
      %4560 = vmatpush.bf16.msra.mxu0 0
      %4561 = vmatpush.bf16.msra.mxu0 0
      %4562 = vmatpush.bf16.msra.mxu0 0
      %4563 = vmatpush.bf16.msra.mxu0 0
      %4564 = vmatpush.bf16.msra.mxu0 0
      %4565 = vmatpush.bf16.msra.mxu0 0
      %4566 = vmatpush.bf16.msra.mxu0 0
      %4567 = vmatpush.bf16.msra.mxu0 %v4545
      %4568 = vmatmul.bf16.gmra.mxu0 %v4539
      %v4569 = vpop.f32.mrf.mxu0
      %v4570 = vadd.f32 0.0, %v4569
      %v4571 = vpop.f32.mrf.mxu0
      %4572 = vdwg.mxu0
      %v4573 = vadd.f32 %v4520, %v4557
      %v4574 = vadd.f32 %v4521, %v4570
      %4575 = vrot.lane.b32.xlu0 %v4198, 94
      %v4576 = vpop.permute.xlu0 %4575
      %4577 = vrot.lane.b32.xlu0 %v4199, 94
      %v4578 = vpop.permute.xlu0 %4577
      %4579 = vrot.lane.b32.xlu0 %v4200, 94
      %v4580 = vpop.permute.xlu0 %4579
      %v4581 = vsel %vm1267, %v4576, %v4578
      %v4582 = vsel %vm1267, %v4578, %v4580
      %v4585 = vsel %vm1259, %v4581, 0.0
      %v4586 = vsel %vm1260, %v4582, 0.0
      %v4587 = vpack.c.bf16 %v4585, %v4585
      %v4588 = vpack.c.bf16 %v4586, %v4586
      %s4589 = scalar_lea.vmem %s13, 32
      %v4590 = vld [vmem:[%s4589] sm:$0xf]
      %v4592 = vsel %vm1441, %v4590, 0
      %v4595 = vsel %vm1445, %v4587, 0
      %v4598 = vsel %vm1445, %v4588, 0
      %4600 = vmatpush.bf16.msra.mxu0 0
      %4601 = vmatpush.bf16.msra.mxu0 0
      %4602 = vmatpush.bf16.msra.mxu0 0
      %4603 = vmatpush.bf16.msra.mxu0 0
      %4604 = vmatpush.bf16.msra.mxu0 0
      %4605 = vmatpush.bf16.msra.mxu0 0
      %4606 = vmatpush.bf16.msra.mxu0 0
      %4607 = vmatpush.bf16.msra.mxu0 %v4595
      %4608 = vmatmul.bf16.gmra.mxu0 %v4592
      %v4609 = vpop.f32.mrf.mxu0
      %v4610 = vadd.f32 0.0, %v4609
      %v4611 = vpop.f32.mrf.mxu0
      %4612 = vdwg.mxu0
      %4613 = vmatpush.bf16.msra.mxu0 0
      %4614 = vmatpush.bf16.msra.mxu0 0
      %4615 = vmatpush.bf16.msra.mxu0 0
      %4616 = vmatpush.bf16.msra.mxu0 0
      %4617 = vmatpush.bf16.msra.mxu0 0
      %4618 = vmatpush.bf16.msra.mxu0 0
      %4619 = vmatpush.bf16.msra.mxu0 0
      %4620 = vmatpush.bf16.msra.mxu0 %v4598
      %4621 = vmatmul.bf16.gmra.mxu0 %v4592
      %v4622 = vpop.f32.mrf.mxu0
      %v4623 = vadd.f32 0.0, %v4622
      %v4624 = vpop.f32.mrf.mxu0
      %4625 = vdwg.mxu0
      %v4626 = vadd.f32 %v4573, %v4610
      %v4627 = vadd.f32 %v4574, %v4623
      %v4628 = vld [vmem:[%s14] sm:$0xff]
      %4630 = vset.pattern.permute.xlu0 0
      %4631 = vperm.xlu0 %4630, %v4628
      %v4632 = vpop.permute.xlu0 %4631
      %v4634 = vadd.f32 %v4626, %v4632
      %v4635 = vadd.f32 %v4627, %v4632
      %v4636 = vmax.f32 %v4634, 0.0
      %v4637 = vmax.f32 %v4635, 0.0
      %4640 = vrot.lane.b32.xlu0 %v4636, 17
      %v4641 = vpop.permute.xlu0 %4640
      %4642 = vrot.lane.b32.xlu0 %v4637, 17
      %v4643 = vpop.permute.xlu0 %4642
      %v4644 = vsel %vm714, %v4641, %v4643
      %4648 = vst.msk [vmem:[#allocation2] sm:$0xff] %vm3616, %v4641
      %4649 = vst [vmem:[#allocation2 + $0x8] sm:$0xff] %v4644
      %4650 = vst.msk [vmem:[#allocation2 + $0x10] sm:$0xff] %vm714, %v4643
      %v4651 = vld [vmem:[#allocation2] sm:$0xff]
      %v4652 = vld [vmem:[#allocation2 + $0x8] sm:$0xff]
      %v4653 = vsel %vm746, %v4651, 0.0
      %v4654 = vsel %vm747, %v4652, 0.0
      %v4655 = vpack.c.bf16 %v4653, %v4653
      %v4656 = vpack.c.bf16 %v4654, %v4654
      %v4657 = vld [vmem:[%s15] sm:$0x3]
      %v4658 = vld [vmem:[#allocation2 + $0x10] sm:$0xff]
      %4662 = vrot.lane.b32.xlu0 %v4651, 127
      %v4663 = vpop.permute.xlu0 %4662
      %4664 = vrot.lane.b32.xlu0 %v4652, 127
      %v4665 = vpop.permute.xlu0 %4664
      %4666 = vrot.lane.b32.xlu0 %v4658, 127
      %v4667 = vpop.permute.xlu0 %4666
      %v4668 = vsel %vm775, %v4663, %v4665
      %v4669 = vsel %vm775, %v4665, %v4667
      %v4672 = vsel %vm764, %v4668, 0.0
      %v4673 = vsel %vm765, %v4669, 0.0
      %v4674 = vpack.c.bf16 %v4672, %v4672
      %v4675 = vpack.c.bf16 %v4673, %v4673
      %s4676 = scalar_lea.vmem %s15, 2
      %v4677 = vld [vmem:[%s4676] sm:$0x3]
      %v4679 = vsel %vm1441, %v4677, 0
      %v4682 = vsel %vm1445, %v4674, 0
      %v4685 = vsel %vm1445, %v4675, 0
      %4687 = vmatpush.bf16.msra.mxu0 0
      %4688 = vmatpush.bf16.msra.mxu0 0
      %4689 = vmatpush.bf16.msra.mxu0 0
      %4690 = vmatpush.bf16.msra.mxu0 0
      %4691 = vmatpush.bf16.msra.mxu0 0
      %4692 = vmatpush.bf16.msra.mxu0 0
      %4693 = vmatpush.bf16.msra.mxu0 0
      %4694 = vmatpush.bf16.msra.mxu0 %v4682
      %4695 = vmatmul.bf16.gmra.mxu0 %v4679
      %v4696 = vpop.f32.mrf.mxu0
      %v4697 = vadd.f32 0.0, %v4696
      %v4698 = vpop.f32.mrf.mxu0
      %4699 = vdwg.mxu0
      %4700 = vmatpush.bf16.msra.mxu0 0
      %4701 = vmatpush.bf16.msra.mxu0 0
      %4702 = vmatpush.bf16.msra.mxu0 0
      %4703 = vmatpush.bf16.msra.mxu0 0
      %4704 = vmatpush.bf16.msra.mxu0 0
      %4705 = vmatpush.bf16.msra.mxu0 0
      %4706 = vmatpush.bf16.msra.mxu0 0
      %4707 = vmatpush.bf16.msra.mxu0 %v4685
      %4708 = vmatmul.bf16.gmra.mxu0 %v4679
      %v4709 = vpop.f32.mrf.mxu0
      %v4710 = vadd.f32 0.0, %v4709
      %v4711 = vpop.f32.mrf.mxu0
      %4712 = vdwg.mxu0
      %v4714 = vsel %vm1441, %v4657, 0
      %v4717 = vsel %vm1445, %v4655, 0
      %v4720 = vsel %vm1445, %v4656, 0
      %4722 = vmatpush.bf16.msra.mxu0 0
      %4723 = vmatpush.bf16.msra.mxu0 0
      %4724 = vmatpush.bf16.msra.mxu0 0
      %4725 = vmatpush.bf16.msra.mxu0 0
      %4726 = vmatpush.bf16.msra.mxu0 0
      %4727 = vmatpush.bf16.msra.mxu0 0
      %4728 = vmatpush.bf16.msra.mxu0 0
      %4729 = vmatpush.bf16.msra.mxu0 %v4717
      %4730 = vmatmul.bf16.gmra.mxu0 %v4714
      %v4731 = vpop.f32.mrf.mxu0
      %v4732 = vadd.f32 %v4697, %v4731
      %v4733 = vpop.f32.mrf.mxu0
      %4734 = vdwg.mxu0
      %4735 = vmatpush.bf16.msra.mxu0 0
      %4736 = vmatpush.bf16.msra.mxu0 0
      %4737 = vmatpush.bf16.msra.mxu0 0
      %4738 = vmatpush.bf16.msra.mxu0 0
      %4739 = vmatpush.bf16.msra.mxu0 0
      %4740 = vmatpush.bf16.msra.mxu0 0
      %4741 = vmatpush.bf16.msra.mxu0 0
      %4742 = vmatpush.bf16.msra.mxu0 %v4720
      %4743 = vmatmul.bf16.gmra.mxu0 %v4714
      %v4744 = vpop.f32.mrf.mxu0
      %v4745 = vadd.f32 %v4710, %v4744
      %v4746 = vpop.f32.mrf.mxu0
      %4747 = vdwg.mxu0
      %4748 = vrot.lane.b32.xlu0 %v4651, 126
      %v4749 = vpop.permute.xlu0 %4748
      %4750 = vrot.lane.b32.xlu0 %v4652, 126
      %v4751 = vpop.permute.xlu0 %4750
      %4752 = vrot.lane.b32.xlu0 %v4658, 126
      %v4753 = vpop.permute.xlu0 %4752
      %v4754 = vsel %vm881, %v4749, %v4751
      %v4755 = vsel %vm881, %v4751, %v4753
      %v4758 = vsel %vm873, %v4754, 0.0
      %v4759 = vsel %vm874, %v4755, 0.0
      %v4760 = vpack.c.bf16 %v4758, %v4758
      %v4761 = vpack.c.bf16 %v4759, %v4759
      %s4762 = scalar_lea.vmem %s15, 4
      %v4763 = vld [vmem:[%s4762] sm:$0x3]
      %v4765 = vsel %vm1441, %v4763, 0
      %v4768 = vsel %vm1445, %v4760, 0
      %v4771 = vsel %vm1445, %v4761, 0
      %4773 = vmatpush.bf16.msra.mxu0 0
      %4774 = vmatpush.bf16.msra.mxu0 0
      %4775 = vmatpush.bf16.msra.mxu0 0
      %4776 = vmatpush.bf16.msra.mxu0 0
      %4777 = vmatpush.bf16.msra.mxu0 0
      %4778 = vmatpush.bf16.msra.mxu0 0
      %4779 = vmatpush.bf16.msra.mxu0 0
      %4780 = vmatpush.bf16.msra.mxu0 %v4768
      %4781 = vmatmul.bf16.gmra.mxu0 %v4765
      %v4782 = vpop.f32.mrf.mxu0
      %v4783 = vadd.f32 0.0, %v4782
      %v4784 = vpop.f32.mrf.mxu0
      %4785 = vdwg.mxu0
      %4786 = vmatpush.bf16.msra.mxu0 0
      %4787 = vmatpush.bf16.msra.mxu0 0
      %4788 = vmatpush.bf16.msra.mxu0 0
      %4789 = vmatpush.bf16.msra.mxu0 0
      %4790 = vmatpush.bf16.msra.mxu0 0
      %4791 = vmatpush.bf16.msra.mxu0 0
      %4792 = vmatpush.bf16.msra.mxu0 0
      %4793 = vmatpush.bf16.msra.mxu0 %v4771
      %4794 = vmatmul.bf16.gmra.mxu0 %v4765
      %v4795 = vpop.f32.mrf.mxu0
      %v4796 = vadd.f32 0.0, %v4795
      %v4797 = vpop.f32.mrf.mxu0
      %4798 = vdwg.mxu0
      %v4799 = vadd.f32 %v4732, %v4783
      %v4800 = vadd.f32 %v4745, %v4796
      %4801 = vrot.lane.b32.xlu0 %v4651, 112
      %v4802 = vpop.permute.xlu0 %4801
      %4803 = vrot.lane.b32.xlu0 %v4652, 112
      %v4804 = vpop.permute.xlu0 %4803
      %4805 = vrot.lane.b32.xlu0 %v4658, 112
      %v4806 = vpop.permute.xlu0 %4805
      %v4807 = vsel %vm949, %v4802, %v4804
      %v4808 = vsel %vm949, %v4804, %v4806
      %v4811 = vsel %vm941, %v4807, 0.0
      %v4812 = vsel %vm942, %v4808, 0.0
      %v4813 = vpack.c.bf16 %v4811, %v4811
      %v4814 = vpack.c.bf16 %v4812, %v4812
      %s4815 = scalar_lea.vmem %s15, 6
      %v4816 = vld [vmem:[%s4815] sm:$0x3]
      %v4818 = vsel %vm1441, %v4816, 0
      %v4821 = vsel %vm1445, %v4813, 0
      %v4824 = vsel %vm1445, %v4814, 0
      %4826 = vmatpush.bf16.msra.mxu0 0
      %4827 = vmatpush.bf16.msra.mxu0 0
      %4828 = vmatpush.bf16.msra.mxu0 0
      %4829 = vmatpush.bf16.msra.mxu0 0
      %4830 = vmatpush.bf16.msra.mxu0 0
      %4831 = vmatpush.bf16.msra.mxu0 0
      %4832 = vmatpush.bf16.msra.mxu0 0
      %4833 = vmatpush.bf16.msra.mxu0 %v4821
      %4834 = vmatmul.bf16.gmra.mxu0 %v4818
      %v4835 = vpop.f32.mrf.mxu0
      %v4836 = vadd.f32 0.0, %v4835
      %v4837 = vpop.f32.mrf.mxu0
      %4838 = vdwg.mxu0
      %4839 = vmatpush.bf16.msra.mxu0 0
      %4840 = vmatpush.bf16.msra.mxu0 0
      %4841 = vmatpush.bf16.msra.mxu0 0
      %4842 = vmatpush.bf16.msra.mxu0 0
      %4843 = vmatpush.bf16.msra.mxu0 0
      %4844 = vmatpush.bf16.msra.mxu0 0
      %4845 = vmatpush.bf16.msra.mxu0 0
      %4846 = vmatpush.bf16.msra.mxu0 %v4824
      %4847 = vmatmul.bf16.gmra.mxu0 %v4818
      %v4848 = vpop.f32.mrf.mxu0
      %v4849 = vadd.f32 0.0, %v4848
      %v4850 = vpop.f32.mrf.mxu0
      %4851 = vdwg.mxu0
      %v4852 = vadd.f32 %v4799, %v4836
      %v4853 = vadd.f32 %v4800, %v4849
      %4854 = vrot.lane.b32.xlu0 %v4651, 111
      %v4855 = vpop.permute.xlu0 %4854
      %4856 = vrot.lane.b32.xlu0 %v4652, 111
      %v4857 = vpop.permute.xlu0 %4856
      %4858 = vrot.lane.b32.xlu0 %v4658, 111
      %v4859 = vpop.permute.xlu0 %4858
      %v4860 = vsel %vm1011, %v4855, %v4857
      %v4861 = vsel %vm1011, %v4857, %v4859
      %v4864 = vsel %vm1003, %v4860, 0.0
      %v4865 = vsel %vm1004, %v4861, 0.0
      %v4866 = vpack.c.bf16 %v4864, %v4864
      %v4867 = vpack.c.bf16 %v4865, %v4865
      %s4868 = scalar_lea.vmem %s15, 8
      %v4869 = vld [vmem:[%s4868] sm:$0x3]
      %v4871 = vsel %vm1441, %v4869, 0
      %v4874 = vsel %vm1445, %v4866, 0
      %v4877 = vsel %vm1445, %v4867, 0
      %4879 = vmatpush.bf16.msra.mxu0 0
      %4880 = vmatpush.bf16.msra.mxu0 0
      %4881 = vmatpush.bf16.msra.mxu0 0
      %4882 = vmatpush.bf16.msra.mxu0 0
      %4883 = vmatpush.bf16.msra.mxu0 0
      %4884 = vmatpush.bf16.msra.mxu0 0
      %4885 = vmatpush.bf16.msra.mxu0 0
      %4886 = vmatpush.bf16.msra.mxu0 %v4874
      %4887 = vmatmul.bf16.gmra.mxu0 %v4871
      %v4888 = vpop.f32.mrf.mxu0
      %v4889 = vadd.f32 0.0, %v4888
      %v4890 = vpop.f32.mrf.mxu0
      %4891 = vdwg.mxu0
      %4892 = vmatpush.bf16.msra.mxu0 0
      %4893 = vmatpush.bf16.msra.mxu0 0
      %4894 = vmatpush.bf16.msra.mxu0 0
      %4895 = vmatpush.bf16.msra.mxu0 0
      %4896 = vmatpush.bf16.msra.mxu0 0
      %4897 = vmatpush.bf16.msra.mxu0 0
      %4898 = vmatpush.bf16.msra.mxu0 0
      %4899 = vmatpush.bf16.msra.mxu0 %v4877
      %4900 = vmatmul.bf16.gmra.mxu0 %v4871
      %v4901 = vpop.f32.mrf.mxu0
      %v4902 = vadd.f32 0.0, %v4901
      %v4903 = vpop.f32.mrf.mxu0
      %4904 = vdwg.mxu0
      %v4905 = vadd.f32 %v4852, %v4889
      %v4906 = vadd.f32 %v4853, %v4902
      %4907 = vrot.lane.b32.xlu0 %v4651, 110
      %v4908 = vpop.permute.xlu0 %4907
      %4909 = vrot.lane.b32.xlu0 %v4652, 110
      %v4910 = vpop.permute.xlu0 %4909
      %4911 = vrot.lane.b32.xlu0 %v4658, 110
      %v4912 = vpop.permute.xlu0 %4911
      %v4913 = vsel %vm1073, %v4908, %v4910
      %v4914 = vsel %vm1073, %v4910, %v4912
      %v4917 = vsel %vm1065, %v4913, 0.0
      %v4918 = vsel %vm1066, %v4914, 0.0
      %v4919 = vpack.c.bf16 %v4917, %v4917
      %v4920 = vpack.c.bf16 %v4918, %v4918
      %s4921 = scalar_lea.vmem %s15, 10
      %v4922 = vld [vmem:[%s4921] sm:$0x3]
      %v4924 = vsel %vm1441, %v4922, 0
      %v4927 = vsel %vm1445, %v4919, 0
      %v4930 = vsel %vm1445, %v4920, 0
      %4932 = vmatpush.bf16.msra.mxu0 0
      %4933 = vmatpush.bf16.msra.mxu0 0
      %4934 = vmatpush.bf16.msra.mxu0 0
      %4935 = vmatpush.bf16.msra.mxu0 0
      %4936 = vmatpush.bf16.msra.mxu0 0
      %4937 = vmatpush.bf16.msra.mxu0 0
      %4938 = vmatpush.bf16.msra.mxu0 0
      %4939 = vmatpush.bf16.msra.mxu0 %v4927
      %4940 = vmatmul.bf16.gmra.mxu0 %v4924
      %v4941 = vpop.f32.mrf.mxu0
      %v4942 = vadd.f32 0.0, %v4941
      %v4943 = vpop.f32.mrf.mxu0
      %4944 = vdwg.mxu0
      %4945 = vmatpush.bf16.msra.mxu0 0
      %4946 = vmatpush.bf16.msra.mxu0 0
      %4947 = vmatpush.bf16.msra.mxu0 0
      %4948 = vmatpush.bf16.msra.mxu0 0
      %4949 = vmatpush.bf16.msra.mxu0 0
      %4950 = vmatpush.bf16.msra.mxu0 0
      %4951 = vmatpush.bf16.msra.mxu0 0
      %4952 = vmatpush.bf16.msra.mxu0 %v4930
      %4953 = vmatmul.bf16.gmra.mxu0 %v4924
      %v4954 = vpop.f32.mrf.mxu0
      %v4955 = vadd.f32 0.0, %v4954
      %v4956 = vpop.f32.mrf.mxu0
      %4957 = vdwg.mxu0
      %v4958 = vadd.f32 %v4905, %v4942
      %v4959 = vadd.f32 %v4906, %v4955
      %4960 = vrot.lane.b32.xlu0 %v4651, 96
      %v4961 = vpop.permute.xlu0 %4960
      %4962 = vrot.lane.b32.xlu0 %v4652, 96
      %v4963 = vpop.permute.xlu0 %4962
      %4964 = vrot.lane.b32.xlu0 %v4658, 96
      %v4965 = vpop.permute.xlu0 %4964
      %v4966 = vsel %vm1143, %v4961, %v4963
      %v4967 = vsel %vm1143, %v4963, %v4965
      %v4970 = vsel %vm1135, %v4966, 0.0
      %v4971 = vsel %vm1136, %v4967, 0.0
      %v4972 = vpack.c.bf16 %v4970, %v4970
      %v4973 = vpack.c.bf16 %v4971, %v4971
      %s4974 = scalar_lea.vmem %s15, 12
      %v4975 = vld [vmem:[%s4974] sm:$0x3]
      %v4977 = vsel %vm1441, %v4975, 0
      %v4980 = vsel %vm1445, %v4972, 0
      %v4983 = vsel %vm1445, %v4973, 0
      %4985 = vmatpush.bf16.msra.mxu0 0
      %4986 = vmatpush.bf16.msra.mxu0 0
      %4987 = vmatpush.bf16.msra.mxu0 0
      %4988 = vmatpush.bf16.msra.mxu0 0
      %4989 = vmatpush.bf16.msra.mxu0 0
      %4990 = vmatpush.bf16.msra.mxu0 0
      %4991 = vmatpush.bf16.msra.mxu0 0
      %4992 = vmatpush.bf16.msra.mxu0 %v4980
      %4993 = vmatmul.bf16.gmra.mxu0 %v4977
      %v4994 = vpop.f32.mrf.mxu0
      %v4995 = vadd.f32 0.0, %v4994
      %v4996 = vpop.f32.mrf.mxu0
      %4997 = vdwg.mxu0
      %4998 = vmatpush.bf16.msra.mxu0 0
      %4999 = vmatpush.bf16.msra.mxu0 0
      %5000 = vmatpush.bf16.msra.mxu0 0
      %5001 = vmatpush.bf16.msra.mxu0 0
      %5002 = vmatpush.bf16.msra.mxu0 0
      %5003 = vmatpush.bf16.msra.mxu0 0
      %5004 = vmatpush.bf16.msra.mxu0 0
      %5005 = vmatpush.bf16.msra.mxu0 %v4983
      %5006 = vmatmul.bf16.gmra.mxu0 %v4977
      %v5007 = vpop.f32.mrf.mxu0
      %v5008 = vadd.f32 0.0, %v5007
      %v5009 = vpop.f32.mrf.mxu0
      %5010 = vdwg.mxu0
      %v5011 = vadd.f32 %v4958, %v4995
      %v5012 = vadd.f32 %v4959, %v5008
      %5013 = vrot.lane.b32.xlu0 %v4651, 95
      %v5014 = vpop.permute.xlu0 %5013
      %5015 = vrot.lane.b32.xlu0 %v4652, 95
      %v5016 = vpop.permute.xlu0 %5015
      %5017 = vrot.lane.b32.xlu0 %v4658, 95
      %v5018 = vpop.permute.xlu0 %5017
      %v5019 = vsel %vm1205, %v5014, %v5016
      %v5020 = vsel %vm1205, %v5016, %v5018
      %v5023 = vsel %vm1197, %v5019, 0.0
      %v5024 = vsel %vm1198, %v5020, 0.0
      %v5025 = vpack.c.bf16 %v5023, %v5023
      %v5026 = vpack.c.bf16 %v5024, %v5024
      %s5027 = scalar_lea.vmem %s15, 14
      %v5028 = vld [vmem:[%s5027] sm:$0x3]
      %v5030 = vsel %vm1441, %v5028, 0
      %v5033 = vsel %vm1445, %v5025, 0
      %v5036 = vsel %vm1445, %v5026, 0
      %5038 = vmatpush.bf16.msra.mxu0 0
      %5039 = vmatpush.bf16.msra.mxu0 0
      %5040 = vmatpush.bf16.msra.mxu0 0
      %5041 = vmatpush.bf16.msra.mxu0 0
      %5042 = vmatpush.bf16.msra.mxu0 0
      %5043 = vmatpush.bf16.msra.mxu0 0
      %5044 = vmatpush.bf16.msra.mxu0 0
      %5045 = vmatpush.bf16.msra.mxu0 %v5033
      %5046 = vmatmul.bf16.gmra.mxu0 %v5030
      %v5047 = vpop.f32.mrf.mxu0
      %v5048 = vadd.f32 0.0, %v5047
      %v5049 = vpop.f32.mrf.mxu0
      %5050 = vdwg.mxu0
      %5051 = vmatpush.bf16.msra.mxu0 0
      %5052 = vmatpush.bf16.msra.mxu0 0
      %5053 = vmatpush.bf16.msra.mxu0 0
      %5054 = vmatpush.bf16.msra.mxu0 0
      %5055 = vmatpush.bf16.msra.mxu0 0
      %5056 = vmatpush.bf16.msra.mxu0 0
      %5057 = vmatpush.bf16.msra.mxu0 0
      %5058 = vmatpush.bf16.msra.mxu0 %v5036
      %5059 = vmatmul.bf16.gmra.mxu0 %v5030
      %v5060 = vpop.f32.mrf.mxu0
      %v5061 = vadd.f32 0.0, %v5060
      %v5062 = vpop.f32.mrf.mxu0
      %5063 = vdwg.mxu0
      %v5064 = vadd.f32 %v5011, %v5048
      %v5065 = vadd.f32 %v5012, %v5061
      %5066 = vrot.lane.b32.xlu0 %v4651, 94
      %v5067 = vpop.permute.xlu0 %5066
      %5068 = vrot.lane.b32.xlu0 %v4652, 94
      %v5069 = vpop.permute.xlu0 %5068
      %5070 = vrot.lane.b32.xlu0 %v4658, 94
      %v5071 = vpop.permute.xlu0 %5070
      %v5072 = vsel %vm1267, %v5067, %v5069
      %v5073 = vsel %vm1267, %v5069, %v5071
      %v5076 = vsel %vm1259, %v5072, 0.0
      %v5077 = vsel %vm1260, %v5073, 0.0
      %v5078 = vpack.c.bf16 %v5076, %v5076
      %v5079 = vpack.c.bf16 %v5077, %v5077
      %s5080 = scalar_lea.vmem %s15, 16
      %v5081 = vld [vmem:[%s5080] sm:$0x3]
      %v5083 = vsel %vm1441, %v5081, 0
      %v5086 = vsel %vm1445, %v5078, 0
      %v5089 = vsel %vm1445, %v5079, 0
      %5091 = vmatpush.bf16.msra.mxu0 0
      %5092 = vmatpush.bf16.msra.mxu0 0
      %5093 = vmatpush.bf16.msra.mxu0 0
      %5094 = vmatpush.bf16.msra.mxu0 0
      %5095 = vmatpush.bf16.msra.mxu0 0
      %5096 = vmatpush.bf16.msra.mxu0 0
      %5097 = vmatpush.bf16.msra.mxu0 0
      %5098 = vmatpush.bf16.msra.mxu0 %v5086
      %5099 = vmatmul.bf16.gmra.mxu0 %v5083
      %v5100 = vpop.f32.mrf.mxu0
      %v5101 = vadd.f32 0.0, %v5100
      %v5102 = vpop.f32.mrf.mxu0
      %5103 = vdwg.mxu0
      %5104 = vmatpush.bf16.msra.mxu0 0
      %5105 = vmatpush.bf16.msra.mxu0 0
      %5106 = vmatpush.bf16.msra.mxu0 0
      %5107 = vmatpush.bf16.msra.mxu0 0
      %5108 = vmatpush.bf16.msra.mxu0 0
      %5109 = vmatpush.bf16.msra.mxu0 0
      %5110 = vmatpush.bf16.msra.mxu0 0
      %5111 = vmatpush.bf16.msra.mxu0 %v5089
      %5112 = vmatmul.bf16.gmra.mxu0 %v5083
      %v5113 = vpop.f32.mrf.mxu0
      %v5114 = vadd.f32 0.0, %v5113
      %v5115 = vpop.f32.mrf.mxu0
      %5116 = vdwg.mxu0
      %v5117 = vadd.f32 %v5064, %v5101
      %v5118 = vadd.f32 %v5065, %v5114
      %5119 = vst [vmem:[#allocation1] ss:$2 sm:$0xff] %v698
      %v5120 = vld.sshfl [vmem:[#allocation1] sm:$0xff pattern:$0x75316420]
      %v5121 = vld.sshfl [vmem:[#allocation1 + $0x8] sm:$0xff pattern:$0x75316420]
      %5122 = vrot.lane.b32.xlu0 %v5120, 17
      %v5123 = vpop.permute.xlu0 %5122
      %5124 = vrot.lane.b32.xlu0 %v5121, 17
      %v5125 = vpop.permute.xlu0 %5124
      %v5126 = vsel %vm714, %v5123, %v5125
      %5130 = vst.msk [vmem:[#allocation2] sm:$0x7] %vm719, %v5123
      %5131 = vst [vmem:[#allocation2 + $0x8] sm:$0x7] %v5126
      %5132 = vst.msk [vmem:[#allocation2 + $0x10] sm:$0x7] %vm722, %v5125
      %v5133 = vld [vmem:[#allocation2] sm:$0x7]
      %v5134 = vld [vmem:[#allocation2 + $0x8] sm:$0x7]
      %v5135 = vsel %vm746, %v5133, 0.0
      %v5136 = vsel %vm747, %v5134, 0.0
      %v5137 = vpack.c.bf16 %v5135, %v5135
      %v5138 = vpack.c.bf16 %v5136, %v5136
      %v5139 = vld [vmem:[%s16] sm:$0x3]
      %v5141 = vsel %vm786, %v5139, 0
      %v5144 = vand.u32 %v5137, %v793
      %v5147 = vand.u32 %v5138, %v793
      %5149 = vmatpush.bf16.msra.mxu0 0
      %5150 = vmatpush.bf16.msra.mxu0 0
      %5151 = vmatpush.bf16.msra.mxu0 0
      %5152 = vmatpush.bf16.msra.mxu0 0
      %5153 = vmatpush.bf16.msra.mxu0 0
      %5154 = vmatpush.bf16.msra.mxu0 0
      %5155 = vmatpush.bf16.msra.mxu0 0
      %5156 = vmatpush.bf16.msra.mxu0 %v5144
      %5157 = vmatmul.bf16.gmra.mxu0 %v5141
      %v5158 = vpop.f32.mrf.mxu0
      %v5159 = vadd.f32 0.0, %v5158
      %v5160 = vpop.f32.mrf.mxu0
      %5161 = vdwg.mxu0
      %5162 = vmatpush.bf16.msra.mxu0 0
      %5163 = vmatpush.bf16.msra.mxu0 0
      %5164 = vmatpush.bf16.msra.mxu0 0
      %5165 = vmatpush.bf16.msra.mxu0 0
      %5166 = vmatpush.bf16.msra.mxu0 0
      %5167 = vmatpush.bf16.msra.mxu0 0
      %5168 = vmatpush.bf16.msra.mxu0 0
      %5169 = vmatpush.bf16.msra.mxu0 %v5147
      %5170 = vmatmul.bf16.gmra.mxu0 %v5141
      %v5171 = vpop.f32.mrf.mxu0
      %v5172 = vadd.f32 0.0, %v5171
      %v5173 = vpop.f32.mrf.mxu0
      %5174 = vdwg.mxu0
      %v5175 = vadd.f32 %v5117, %v5159
      %v5176 = vadd.f32 %v5118, %v5172
      %v5177 = vld [vmem:[#allocation2] sm:$0x7]
      %v5178 = vld [vmem:[#allocation2 + $0x8] sm:$0x7]
      %v5179 = vld [vmem:[#allocation2 + $0x10] sm:$0x7]
      %5183 = vrot.lane.b32.xlu0 %v5177, 127
      %v5184 = vpop.permute.xlu0 %5183
      %5185 = vrot.lane.b32.xlu0 %v5178, 127
      %v5186 = vpop.permute.xlu0 %5185
      %5187 = vrot.lane.b32.xlu0 %v5179, 127
      %v5188 = vpop.permute.xlu0 %5187
      %v5189 = vsel %vm775, %v5184, %v5186
      %v5190 = vsel %vm775, %v5186, %v5188
      %v5193 = vsel %vm764, %v5189, 0.0
      %v5194 = vsel %vm765, %v5190, 0.0
      %v5195 = vpack.c.bf16 %v5193, %v5193
      %v5196 = vpack.c.bf16 %v5194, %v5194
      %s5197 = scalar_lea.vmem %s16, 2
      %v5198 = vld [vmem:[%s5197] sm:$0x3]
      %v5200 = vsel %vm786, %v5198, 0
      %v5203 = vand.u32 %v5195, %v793
      %v5206 = vand.u32 %v5196, %v793
      %5208 = vmatpush.bf16.msra.mxu0 0
      %5209 = vmatpush.bf16.msra.mxu0 0
      %5210 = vmatpush.bf16.msra.mxu0 0
      %5211 = vmatpush.bf16.msra.mxu0 0
      %5212 = vmatpush.bf16.msra.mxu0 0
      %5213 = vmatpush.bf16.msra.mxu0 0
      %5214 = vmatpush.bf16.msra.mxu0 0
      %5215 = vmatpush.bf16.msra.mxu0 %v5203
      %5216 = vmatmul.bf16.gmra.mxu0 %v5200
      %v5217 = vpop.f32.mrf.mxu0
      %v5218 = vadd.f32 0.0, %v5217
      %v5219 = vpop.f32.mrf.mxu0
      %5220 = vdwg.mxu0
      %5221 = vmatpush.bf16.msra.mxu0 0
      %5222 = vmatpush.bf16.msra.mxu0 0
      %5223 = vmatpush.bf16.msra.mxu0 0
      %5224 = vmatpush.bf16.msra.mxu0 0
      %5225 = vmatpush.bf16.msra.mxu0 0
      %5226 = vmatpush.bf16.msra.mxu0 0
      %5227 = vmatpush.bf16.msra.mxu0 0
      %5228 = vmatpush.bf16.msra.mxu0 %v5206
      %5229 = vmatmul.bf16.gmra.mxu0 %v5200
      %v5230 = vpop.f32.mrf.mxu0
      %v5231 = vadd.f32 0.0, %v5230
      %v5232 = vpop.f32.mrf.mxu0
      %5233 = vdwg.mxu0
      %v5234 = vadd.f32 %v5175, %v5218
      %v5235 = vadd.f32 %v5176, %v5231
      %5236 = vrot.lane.b32.xlu0 %v5177, 126
      %v5237 = vpop.permute.xlu0 %5236
      %5238 = vrot.lane.b32.xlu0 %v5178, 126
      %v5239 = vpop.permute.xlu0 %5238
      %5240 = vrot.lane.b32.xlu0 %v5179, 126
      %v5241 = vpop.permute.xlu0 %5240
      %v5242 = vsel %vm881, %v5237, %v5239
      %v5243 = vsel %vm881, %v5239, %v5241
      %v5246 = vsel %vm873, %v5242, 0.0
      %v5247 = vsel %vm874, %v5243, 0.0
      %v5248 = vpack.c.bf16 %v5246, %v5246
      %v5249 = vpack.c.bf16 %v5247, %v5247
      %s5250 = scalar_lea.vmem %s16, 4
      %v5251 = vld [vmem:[%s5250] sm:$0x3]
      %v5253 = vsel %vm786, %v5251, 0
      %v5256 = vand.u32 %v5248, %v793
      %v5259 = vand.u32 %v5249, %v793
      %5261 = vmatpush.bf16.msra.mxu0 0
      %5262 = vmatpush.bf16.msra.mxu0 0
      %5263 = vmatpush.bf16.msra.mxu0 0
      %5264 = vmatpush.bf16.msra.mxu0 0
      %5265 = vmatpush.bf16.msra.mxu0 0
      %5266 = vmatpush.bf16.msra.mxu0 0
      %5267 = vmatpush.bf16.msra.mxu0 0
      %5268 = vmatpush.bf16.msra.mxu0 %v5256
      %5269 = vmatmul.bf16.gmra.mxu0 %v5253
      %v5270 = vpop.f32.mrf.mxu0
      %v5271 = vadd.f32 0.0, %v5270
      %v5272 = vpop.f32.mrf.mxu0
      %5273 = vdwg.mxu0
      %5274 = vmatpush.bf16.msra.mxu0 0
      %5275 = vmatpush.bf16.msra.mxu0 0
      %5276 = vmatpush.bf16.msra.mxu0 0
      %5277 = vmatpush.bf16.msra.mxu0 0
      %5278 = vmatpush.bf16.msra.mxu0 0
      %5279 = vmatpush.bf16.msra.mxu0 0
      %5280 = vmatpush.bf16.msra.mxu0 0
      %5281 = vmatpush.bf16.msra.mxu0 %v5259
      %5282 = vmatmul.bf16.gmra.mxu0 %v5253
      %v5283 = vpop.f32.mrf.mxu0
      %v5284 = vadd.f32 0.0, %v5283
      %v5285 = vpop.f32.mrf.mxu0
      %5286 = vdwg.mxu0
      %v5287 = vadd.f32 %v5234, %v5271
      %v5288 = vadd.f32 %v5235, %v5284
      %5289 = vrot.lane.b32.xlu0 %v5177, 112
      %v5290 = vpop.permute.xlu0 %5289
      %5291 = vrot.lane.b32.xlu0 %v5178, 112
      %v5292 = vpop.permute.xlu0 %5291
      %5293 = vrot.lane.b32.xlu0 %v5179, 112
      %v5294 = vpop.permute.xlu0 %5293
      %v5295 = vsel %vm949, %v5290, %v5292
      %v5296 = vsel %vm949, %v5292, %v5294
      %v5299 = vsel %vm941, %v5295, 0.0
      %v5300 = vsel %vm942, %v5296, 0.0
      %v5301 = vpack.c.bf16 %v5299, %v5299
      %v5302 = vpack.c.bf16 %v5300, %v5300
      %s5303 = scalar_lea.vmem %s16, 6
      %v5304 = vld [vmem:[%s5303] sm:$0x3]
      %v5306 = vsel %vm786, %v5304, 0
      %v5309 = vand.u32 %v5301, %v793
      %v5312 = vand.u32 %v5302, %v793
      %5314 = vmatpush.bf16.msra.mxu0 0
      %5315 = vmatpush.bf16.msra.mxu0 0
      %5316 = vmatpush.bf16.msra.mxu0 0
      %5317 = vmatpush.bf16.msra.mxu0 0
      %5318 = vmatpush.bf16.msra.mxu0 0
      %5319 = vmatpush.bf16.msra.mxu0 0
      %5320 = vmatpush.bf16.msra.mxu0 0
      %5321 = vmatpush.bf16.msra.mxu0 %v5309
      %5322 = vmatmul.bf16.gmra.mxu0 %v5306
      %v5323 = vpop.f32.mrf.mxu0
      %v5324 = vadd.f32 0.0, %v5323
      %v5325 = vpop.f32.mrf.mxu0
      %5326 = vdwg.mxu0
      %5327 = vmatpush.bf16.msra.mxu0 0
      %5328 = vmatpush.bf16.msra.mxu0 0
      %5329 = vmatpush.bf16.msra.mxu0 0
      %5330 = vmatpush.bf16.msra.mxu0 0
      %5331 = vmatpush.bf16.msra.mxu0 0
      %5332 = vmatpush.bf16.msra.mxu0 0
      %5333 = vmatpush.bf16.msra.mxu0 0
      %5334 = vmatpush.bf16.msra.mxu0 %v5312
      %5335 = vmatmul.bf16.gmra.mxu0 %v5306
      %v5336 = vpop.f32.mrf.mxu0
      %v5337 = vadd.f32 0.0, %v5336
      %v5338 = vpop.f32.mrf.mxu0
      %5339 = vdwg.mxu0
      %v5340 = vadd.f32 %v5287, %v5324
      %v5341 = vadd.f32 %v5288, %v5337
      %5342 = vrot.lane.b32.xlu0 %v5177, 111
      %v5343 = vpop.permute.xlu0 %5342
      %5344 = vrot.lane.b32.xlu0 %v5178, 111
      %v5345 = vpop.permute.xlu0 %5344
      %5346 = vrot.lane.b32.xlu0 %v5179, 111
      %v5347 = vpop.permute.xlu0 %5346
      %v5348 = vsel %vm1011, %v5343, %v5345
      %v5349 = vsel %vm1011, %v5345, %v5347
      %v5352 = vsel %vm1003, %v5348, 0.0
      %v5353 = vsel %vm1004, %v5349, 0.0
      %v5354 = vpack.c.bf16 %v5352, %v5352
      %v5355 = vpack.c.bf16 %v5353, %v5353
      %s5356 = scalar_lea.vmem %s16, 8
      %v5357 = vld [vmem:[%s5356] sm:$0x3]
      %v5359 = vsel %vm786, %v5357, 0
      %v5362 = vand.u32 %v5354, %v793
      %v5365 = vand.u32 %v5355, %v793
      %5367 = vmatpush.bf16.msra.mxu0 0
      %5368 = vmatpush.bf16.msra.mxu0 0
      %5369 = vmatpush.bf16.msra.mxu0 0
      %5370 = vmatpush.bf16.msra.mxu0 0
      %5371 = vmatpush.bf16.msra.mxu0 0
      %5372 = vmatpush.bf16.msra.mxu0 0
      %5373 = vmatpush.bf16.msra.mxu0 0
      %5374 = vmatpush.bf16.msra.mxu0 %v5362
      %5375 = vmatmul.bf16.gmra.mxu0 %v5359
      %v5376 = vpop.f32.mrf.mxu0
      %v5377 = vadd.f32 0.0, %v5376
      %v5378 = vpop.f32.mrf.mxu0
      %5379 = vdwg.mxu0
      %5380 = vmatpush.bf16.msra.mxu0 0
      %5381 = vmatpush.bf16.msra.mxu0 0
      %5382 = vmatpush.bf16.msra.mxu0 0
      %5383 = vmatpush.bf16.msra.mxu0 0
      %5384 = vmatpush.bf16.msra.mxu0 0
      %5385 = vmatpush.bf16.msra.mxu0 0
      %5386 = vmatpush.bf16.msra.mxu0 0
      %5387 = vmatpush.bf16.msra.mxu0 %v5365
      %5388 = vmatmul.bf16.gmra.mxu0 %v5359
      %v5389 = vpop.f32.mrf.mxu0
      %v5390 = vadd.f32 0.0, %v5389
      %v5391 = vpop.f32.mrf.mxu0
      %5392 = vdwg.mxu0
      %v5393 = vadd.f32 %v5340, %v5377
      %v5394 = vadd.f32 %v5341, %v5390
      %5395 = vrot.lane.b32.xlu0 %v5177, 110
      %v5396 = vpop.permute.xlu0 %5395
      %5397 = vrot.lane.b32.xlu0 %v5178, 110
      %v5398 = vpop.permute.xlu0 %5397
      %5399 = vrot.lane.b32.xlu0 %v5179, 110
      %v5400 = vpop.permute.xlu0 %5399
      %v5401 = vsel %vm1073, %v5396, %v5398
      %v5402 = vsel %vm1073, %v5398, %v5400
      %v5405 = vsel %vm1065, %v5401, 0.0
      %v5406 = vsel %vm1066, %v5402, 0.0
      %v5407 = vpack.c.bf16 %v5405, %v5405
      %v5408 = vpack.c.bf16 %v5406, %v5406
      %s5409 = scalar_lea.vmem %s16, 10
      %v5410 = vld [vmem:[%s5409] sm:$0x3]
      %v5412 = vsel %vm786, %v5410, 0
      %v5415 = vand.u32 %v5407, %v793
      %v5418 = vand.u32 %v5408, %v793
      %5420 = vmatpush.bf16.msra.mxu0 0
      %5421 = vmatpush.bf16.msra.mxu0 0
      %5422 = vmatpush.bf16.msra.mxu0 0
      %5423 = vmatpush.bf16.msra.mxu0 0
      %5424 = vmatpush.bf16.msra.mxu0 0
      %5425 = vmatpush.bf16.msra.mxu0 0
      %5426 = vmatpush.bf16.msra.mxu0 0
      %5427 = vmatpush.bf16.msra.mxu0 %v5415
      %5428 = vmatmul.bf16.gmra.mxu0 %v5412
      %v5429 = vpop.f32.mrf.mxu0
      %v5430 = vadd.f32 0.0, %v5429
      %v5431 = vpop.f32.mrf.mxu0
      %5432 = vdwg.mxu0
      %5433 = vmatpush.bf16.msra.mxu0 0
      %5434 = vmatpush.bf16.msra.mxu0 0
      %5435 = vmatpush.bf16.msra.mxu0 0
      %5436 = vmatpush.bf16.msra.mxu0 0
      %5437 = vmatpush.bf16.msra.mxu0 0
      %5438 = vmatpush.bf16.msra.mxu0 0
      %5439 = vmatpush.bf16.msra.mxu0 0
      %5440 = vmatpush.bf16.msra.mxu0 %v5418
      %5441 = vmatmul.bf16.gmra.mxu0 %v5412
      %v5442 = vpop.f32.mrf.mxu0
      %v5443 = vadd.f32 0.0, %v5442
      %v5444 = vpop.f32.mrf.mxu0
      %5445 = vdwg.mxu0
      %v5446 = vadd.f32 %v5393, %v5430
      %v5447 = vadd.f32 %v5394, %v5443
      %5448 = vrot.lane.b32.xlu0 %v5177, 96
      %v5449 = vpop.permute.xlu0 %5448
      %5450 = vrot.lane.b32.xlu0 %v5178, 96
      %v5451 = vpop.permute.xlu0 %5450
      %5452 = vrot.lane.b32.xlu0 %v5179, 96
      %v5453 = vpop.permute.xlu0 %5452
      %v5454 = vsel %vm1143, %v5449, %v5451
      %v5455 = vsel %vm1143, %v5451, %v5453
      %v5458 = vsel %vm1135, %v5454, 0.0
      %v5459 = vsel %vm1136, %v5455, 0.0
      %v5460 = vpack.c.bf16 %v5458, %v5458
      %v5461 = vpack.c.bf16 %v5459, %v5459
      %s5462 = scalar_lea.vmem %s16, 12
      %v5463 = vld [vmem:[%s5462] sm:$0x3]
      %v5465 = vsel %vm786, %v5463, 0
      %v5468 = vand.u32 %v5460, %v793
      %v5471 = vand.u32 %v5461, %v793
      %5473 = vmatpush.bf16.msra.mxu0 0
      %5474 = vmatpush.bf16.msra.mxu0 0
      %5475 = vmatpush.bf16.msra.mxu0 0
      %5476 = vmatpush.bf16.msra.mxu0 0
      %5477 = vmatpush.bf16.msra.mxu0 0
      %5478 = vmatpush.bf16.msra.mxu0 0
      %5479 = vmatpush.bf16.msra.mxu0 0
      %5480 = vmatpush.bf16.msra.mxu0 %v5468
      %5481 = vmatmul.bf16.gmra.mxu0 %v5465
      %v5482 = vpop.f32.mrf.mxu0
      %v5483 = vadd.f32 0.0, %v5482
      %v5484 = vpop.f32.mrf.mxu0
      %5485 = vdwg.mxu0
      %5486 = vmatpush.bf16.msra.mxu0 0
      %5487 = vmatpush.bf16.msra.mxu0 0
      %5488 = vmatpush.bf16.msra.mxu0 0
      %5489 = vmatpush.bf16.msra.mxu0 0
      %5490 = vmatpush.bf16.msra.mxu0 0
      %5491 = vmatpush.bf16.msra.mxu0 0
      %5492 = vmatpush.bf16.msra.mxu0 0
      %5493 = vmatpush.bf16.msra.mxu0 %v5471
      %5494 = vmatmul.bf16.gmra.mxu0 %v5465
      %v5495 = vpop.f32.mrf.mxu0
      %v5496 = vadd.f32 0.0, %v5495
      %v5497 = vpop.f32.mrf.mxu0
      %5498 = vdwg.mxu0
      %v5499 = vadd.f32 %v5446, %v5483
      %v5500 = vadd.f32 %v5447, %v5496
      %5501 = vrot.lane.b32.xlu0 %v5177, 95
      %v5502 = vpop.permute.xlu0 %5501
      %5503 = vrot.lane.b32.xlu0 %v5178, 95
      %v5504 = vpop.permute.xlu0 %5503
      %5505 = vrot.lane.b32.xlu0 %v5179, 95
      %v5506 = vpop.permute.xlu0 %5505
      %v5507 = vsel %vm1205, %v5502, %v5504
      %v5508 = vsel %vm1205, %v5504, %v5506
      %v5511 = vsel %vm1197, %v5507, 0.0
      %v5512 = vsel %vm1198, %v5508, 0.0
      %v5513 = vpack.c.bf16 %v5511, %v5511
      %v5514 = vpack.c.bf16 %v5512, %v5512
      %s5515 = scalar_lea.vmem %s16, 14
      %v5516 = vld [vmem:[%s5515] sm:$0x3]
      %v5518 = vsel %vm786, %v5516, 0
      %v5521 = vand.u32 %v5513, %v793
      %v5524 = vand.u32 %v5514, %v793
      %5526 = vmatpush.bf16.msra.mxu0 0
      %5527 = vmatpush.bf16.msra.mxu0 0
      %5528 = vmatpush.bf16.msra.mxu0 0
      %5529 = vmatpush.bf16.msra.mxu0 0
      %5530 = vmatpush.bf16.msra.mxu0 0
      %5531 = vmatpush.bf16.msra.mxu0 0
      %5532 = vmatpush.bf16.msra.mxu0 0
      %5533 = vmatpush.bf16.msra.mxu0 %v5521
      %5534 = vmatmul.bf16.gmra.mxu0 %v5518
      %v5535 = vpop.f32.mrf.mxu0
      %v5536 = vadd.f32 0.0, %v5535
      %v5537 = vpop.f32.mrf.mxu0
      %5538 = vdwg.mxu0
      %5539 = vmatpush.bf16.msra.mxu0 0
      %5540 = vmatpush.bf16.msra.mxu0 0
      %5541 = vmatpush.bf16.msra.mxu0 0
      %5542 = vmatpush.bf16.msra.mxu0 0
      %5543 = vmatpush.bf16.msra.mxu0 0
      %5544 = vmatpush.bf16.msra.mxu0 0
      %5545 = vmatpush.bf16.msra.mxu0 0
      %5546 = vmatpush.bf16.msra.mxu0 %v5524
      %5547 = vmatmul.bf16.gmra.mxu0 %v5518
      %v5548 = vpop.f32.mrf.mxu0
      %v5549 = vadd.f32 0.0, %v5548
      %v5550 = vpop.f32.mrf.mxu0
      %5551 = vdwg.mxu0
      %v5552 = vadd.f32 %v5499, %v5536
      %v5553 = vadd.f32 %v5500, %v5549
      %5554 = vrot.lane.b32.xlu0 %v5177, 94
      %v5555 = vpop.permute.xlu0 %5554
      %5556 = vrot.lane.b32.xlu0 %v5178, 94
      %v5557 = vpop.permute.xlu0 %5556
      %5558 = vrot.lane.b32.xlu0 %v5179, 94
      %v5559 = vpop.permute.xlu0 %5558
      %v5560 = vsel %vm1267, %v5555, %v5557
      %v5561 = vsel %vm1267, %v5557, %v5559
      %v5564 = vsel %vm1259, %v5560, 0.0
      %v5565 = vsel %vm1260, %v5561, 0.0
      %v5566 = vpack.c.bf16 %v5564, %v5564
      %v5567 = vpack.c.bf16 %v5565, %v5565
      %s5568 = scalar_lea.vmem %s16, 16
      %v5569 = vld [vmem:[%s5568] sm:$0x3]
      %v5571 = vsel %vm786, %v5569, 0
      %v5574 = vand.u32 %v5566, %v793
      %v5577 = vand.u32 %v5567, %v793
      %5579 = vmatpush.bf16.msra.mxu0 0
      %5580 = vmatpush.bf16.msra.mxu0 0
      %5581 = vmatpush.bf16.msra.mxu0 0
      %5582 = vmatpush.bf16.msra.mxu0 0
      %5583 = vmatpush.bf16.msra.mxu0 0
      %5584 = vmatpush.bf16.msra.mxu0 0
      %5585 = vmatpush.bf16.msra.mxu0 0
      %5586 = vmatpush.bf16.msra.mxu0 %v5574
      %5587 = vmatmul.bf16.gmra.mxu0 %v5571
      %v5588 = vpop.f32.mrf.mxu0
      %v5589 = vadd.f32 0.0, %v5588
      %v5590 = vpop.f32.mrf.mxu0
      %5591 = vdwg.mxu0
      %5592 = vmatpush.bf16.msra.mxu0 0
      %5593 = vmatpush.bf16.msra.mxu0 0
      %5594 = vmatpush.bf16.msra.mxu0 0
      %5595 = vmatpush.bf16.msra.mxu0 0
      %5596 = vmatpush.bf16.msra.mxu0 0
      %5597 = vmatpush.bf16.msra.mxu0 0
      %5598 = vmatpush.bf16.msra.mxu0 0
      %5599 = vmatpush.bf16.msra.mxu0 %v5577
      %5600 = vmatmul.bf16.gmra.mxu0 %v5571
      %v5601 = vpop.f32.mrf.mxu0
      %v5602 = vadd.f32 0.0, %v5601
      %v5603 = vpop.f32.mrf.mxu0
      %5604 = vdwg.mxu0
      %v5605 = vadd.f32 %v5552, %v5589
      %v5606 = vadd.f32 %v5553, %v5602
      %v5607 = vld [vmem:[%s17] sm:$0x7]
      %5609 = vset.pattern.permute.xlu0 0
      %5610 = vperm.xlu0 %5609, %v5607
      %v5611 = vpop.permute.xlu0 %5610
      %v5613 = vadd.f32 %v5605, %v5611
      %v5614 = vadd.f32 %v5606, %v5611
      %v5615 = vxor.u32 %v5613, 2147483648
      %v5616 = vxor.u32 %v5614, 2147483648
      %v5617 = vmul.f32 %v5615, 1.442695
      %v5618 = vpow.pop %v5617
      %v5619 = vmul.f32 %v5616, 1.442695
      %v5620 = vpow.pop %v5619
      %v5621 = vadd.f32 %v5618, 1.0
      %v5622 = vadd.f32 %v5620, 1.0
      %v5623 = vrcp.pop %v5621
      %v5624 = vmul.f32 %v5621, %v5623
      %v5625 = vsub.f32 1.0, %v5624
      %v5626 = vmul.f32 %v5623, %v5625
      %v5627 = vadd.f32 %v5623, %v5626
      %vm5628 = vweird.f32 %v5621
      %vm5629 = vweird.f32 %v5623
      %vm5630 = vmor %vm5628, %vm5629
      %v5631 = vsel %vm5630, %v5623, %v5627
      %v5632 = vand.u32 2147483647, %v5621
      %vm5633 = vcmp.eq.f32.partialorder %v5632, 8.507059e+37
      %v5634 = vand.u32 %v5621, 2147483648
      %v5635 = vor.u32 1.1754944e-38, %v5634
      %v5636 = vsel %vm5633, %v5635, %v5631
      %v5637 = vmul.f32 1.0, %v5636
      %v5638 = vrcp.pop %v5622
      %v5639 = vmul.f32 %v5622, %v5638
      %v5640 = vsub.f32 1.0, %v5639
      %v5641 = vmul.f32 %v5638, %v5640
      %v5642 = vadd.f32 %v5638, %v5641
      %vm5643 = vweird.f32 %v5622
      %vm5644 = vweird.f32 %v5638
      %vm5645 = vmor %vm5643, %vm5644
      %v5646 = vsel %vm5645, %v5638, %v5642
      %v5647 = vand.u32 2147483647, %v5622
      %vm5648 = vcmp.eq.f32.partialorder %v5647, 8.507059e+37
      %v5649 = vand.u32 %v5622, 2147483648
      %v5650 = vor.u32 1.1754944e-38, %v5649
      %v5651 = vsel %vm5648, %v5650, %v5646
      %v5652 = vmul.f32 1.0, %v5651
      %v5655 = vrot.slane %v5652, 4
      %v5656 = vsel %vm1445, %v5637, %v5655
      %5658 = vst [vmem:[%s683] sm:$0x77] %v5656
      %p5659 = scmp.lt.s32.totalorder %s33, 1
      %s5660 = scalar_select %p5659, %s33, 1
      %s5661 = smul.addr %s5660, 2
      %s5662 = smul.addr %s5661, 4
      %s5663 = scalar_lea.vmem %s22, %s5662
      // Predicated region
      $region109: #{deoldify_generator_forward.1} parent=107 // pred_check
        %p5664 = pneg %p518
      $region110: #{deoldify_generator_forward.1} parent=107 // pred_check_branch
        %5666 = sbr.rel (%p5664) target = $region112
      $region111: #{deoldify_generator_forward.1} parent=107 // pred_region
        _
      $region112: #{deoldify_generator_forward.1} parent=107 // pred_fallthru
        _
    $region108: #{deoldify_generator_forward.1} parent=5 // pred_fallthru
      _
    %p5667 = scmp.le.s32.totalorder 2, %s28
    // Predicated region
    $region113: #{deoldify_generator_forward.1} parent=5 // pred_check
      %p5668 = pneg %p5667
    $region114: #{deoldify_generator_forward.1} parent=5 // pred_check_branch
      %5670 = sbr.rel (%p5668) target = $region116
    $region115: #{deoldify_generator_forward.1} parent=5 // pred_region
      %s5671 = ssub.s32 %s28, 2
      // Predicated region
      $region117: #{deoldify_generator_forward.1} parent=115 // pred_check
        %p5672 = pneg %p524
      $region118: #{deoldify_generator_forward.1} parent=115 // pred_check_branch
        %5674 = sbr.rel (%p5672) target = $region120
      $region119: #{deoldify_generator_forward.1} parent=115 // pred_region
        %p5675 = scmp.lt.s32.totalorder %s34, 1
        %s5676 = scalar_select %p5675, %s34, 1
        %s5677 = smul.addr %s5676, 2
        %s5678 = smul.addr %s5677, 4
        %s5679 = scalar_lea.vmem %s22, %s5678
      $region120: #{deoldify_generator_forward.1} parent=115 // pred_fallthru
        _
    $region116: #{deoldify_generator_forward.1} parent=5 // pred_fallthru
      _
  $region6: #{deoldify_generator_forward.1} parent=0 // loop_footer
    %s32 = sadd.s32 1, %s28
  $region7: #{deoldify_generator_forward.1} parent=0 // loop_footer_branch
    %27 = sbr.rel target = $region3
  $region8: #{deoldify_generator_forward.1} parent=0 // loop_exit
    _

</llo_original>
